<compile_context>
chip_gen: v6e
topology: v6e:2x2x1
jax: 0.10.0
libtpu: 0.0.40
codegen_flags: <defaults>
</compile_context>

<pallas_src>
import functools

import jax
import jax.numpy as jnp
from jax import lax
from jax.experimental import pallas as pl
from jax.experimental.pallas import tpu as pltpu


def _merged_conv_kernel(x_ref, w_ref, o_ref, *, tap_offsets, out_rows):
    """Grid step = (sample n, 128-wide output-channel slab c).

    x_ref : (1, L, Cin)          zero-padded, spatially-flattened NHWC image
    w_ref : (1, T, Cin, 128)     per-sample merged conv weight, T = kh*kw taps
    o_ref : (1, out_rows, 128)   bf16 output on the padded-column grid
    """
    acc = None
    for t, off in enumerate(tap_offsets):              # static unrolled taps
        xs = x_ref[0, off:off + out_rows, :].astype(jnp.bfloat16)
        part = jnp.dot(xs, w_ref[0, t], preferred_element_type=jnp.float32)
        acc = part if acc is None else acc + part
    o_ref[0] = acc.astype(o_ref.dtype)


def _shared_conv_kernel(scale_ref, x_ref, w0_ref, a_ref, b_ref, o_ref, *,
                        tap_offsets, out_rows):
    """Grid step = one sample; weights are grid-invariant (resident in VMEM).

    scale_ref : (1, 1, Er)           f32  scaling * route[n], repeated r / expert
    x_ref     : (1, L, Cin)          padded, flattened image
    w0_ref    : (T, Cin, Coutp)      bf16 base conv weight
    a_ref     : (T, Cin, Er)         bf16 concatenated LoRA-A (all experts)
    b_ref     : (Er, Coutp)          bf16 concatenated LoRA-B (all experts)
    o_ref     : (1, out_rows, Coutp) bf16
    """
    acc = None
    h = None
    for t, off in enumerate(tap_offsets):
        xs = x_ref[0, off:off + out_rows, :].astype(jnp.bfloat16)
        part = jnp.dot(xs, w0_ref[t], preferred_element_type=jnp.float32)
        lpart = jnp.dot(xs, a_ref[t], preferred_element_type=jnp.float32)
        acc = part if acc is None else acc + part
        h = lpart if h is None else h + lpart
    # gate * (lora_alpha/r) on the small (rows, E*r) activation (f32 VPU), then
    # back to bf16 so the LoRA-B matmul stays a bf16 MXU pass (v5e review note:
    # never reintroduce f32 matmuls).
    h = (h * scale_ref[0]).astype(jnp.bfloat16)
    acc = acc + jnp.dot(h, b_ref[...], preferred_element_type=jnp.float32)
    o_ref[0] = acc.astype(o_ref.dtype)


def _first_successful(builders):
    """Run pallas_call variants in order; return the first that lowers & runs.

    The first builder is the intended fast path; later entries only relax
    optional features (single-buffered weights, f32-tiled activations) as a
    robustness ladder across Mosaic toolchain versions.
    """
    last_err = None
    for build in builders:
        try:
            return build()
        except Exception as err:  # deliberate fallback ladder
            last_err = err
    raise last_err


def multi_lora_conv2d(x_nchw, w0, lora_a, lora_b, gate_w, *, lora_alpha, r,
                      padding=1, merge_weights=None, out_format="NHWC"):
    """MultiLoraConv2d forward (stride 1, dilation 1) as a Pallas TPU kernel.

    Returns (y, route); y is NHWC by default (per review: avoid the extra NCHW
    transpose pass), NCHW when out_format == 'NCHW'.
    """
    N, Cin, H, W = x_nchw.shape
    Cout, _, kh, kw = w0.shape
    E = lora_a.shape[0]
    scaling = float(lora_alpha) / float(r)
    p = int(padding)
    Hp, Wp = H + 2 * p, W + 2 * p
    Hout, Wout = Hp - kh + 1, Wp - kw + 1            # stride-1 output size
    T = kh * kw
    Er = E * r
    Coutp = ((Cout + 127) // 128) * 128              # lane-dense output slab
    out_rows = Hout * Wp                             # output on padded-column grid
    tap_offsets = tuple(i * Wp + j for i in range(kh) for j in range(kw))
    # flattened padded image + overhang needed by the last tap, rounded to 8 rows
    L = -(-(Hp * Wp + kw - 1) // 8) * 8

    # ---- routing gate (tiny glue): softmax(GAP(x) @ gate_w) ----
    # TODO(synk): the exact MultiLoraConv2d routing gate is not defined in the
    # provided source; a per-sample softmax gate over globally pooled input is
    # assumed.
    x_nhwc = jnp.transpose(x_nchw, (0, 2, 3, 1))
    gap = jnp.mean(x_nhwc, axis=(1, 2))                          # (N, Cin)
    route = jax.nn.softmax(gap @ gate_w, axis=-1)                # (N, E) f32

    # ---- padded + spatially flattened activation (NO im2col materialization) ----
    xp = jnp.pad(x_nhwc, ((0, 0), (p, p), (p, p), (0, 0)))       # (N, Hp, Wp, Cin)
    xflat = xp.reshape(N, Hp * Wp, Cin)
    xflat = jnp.pad(xflat, ((0, 0), (0, L - Hp * Wp), (0, 0)))   # f32; cast per try

    bw = lora_b[:, :, :, 0, 0]                                   # (E, Cout, r)

    if merge_weights is None:
        # merged per-sample weight streams ~K*Coutp bytes/sample: worth it only
        # when the spatial extent (matmul rows) is at least K = T*Cin wide.
        merge_weights = out_rows >= T * Cin

    if merge_weights:
        # ---- review option A: fold the gate into one per-sample conv weight ----
        delta = jnp.einsum('eor,ercij->eocij', bw, lora_a)       # (E,Cout,Cin,kh,kw)
        w_eff = w0[None] + scaling * jnp.einsum('ne,eocij->nocij', route, delta)
        w_mat = jnp.transpose(w_eff, (0, 3, 4, 2, 1)).reshape(N, T, Cin, Cout)
        w_mat = jnp.pad(w_mat, ((0, 0), (0, 0), (0, 0), (0, Coutp - Cout)))
        w_mat = w_mat.astype(jnp.bfloat16)

        kernel = functools.partial(_merged_conv_kernel,
                                   tap_offsets=tap_offsets, out_rows=out_rows)
        n_ct = Coutp // 128
        flops = 2 * N * out_rows * T * Cin * Coutp
        bytes_accessed = N * (L * Cin * 2 + T * Cin * Coutp * 2
                              + out_rows * Coutp * 2)

        def run_merged(x_dtype):
            xin = xflat.astype(x_dtype)
            isz = jnp.dtype(x_dtype).itemsize
            # actual buffer counts: 2x streamed x / w / out blocks + f32 temps
            vmem = (2 * L * Cin * isz + 2 * T * Cin * 128 * 2
                    + 2 * out_rows * 128 * 2 + 3 * out_rows * 128 * 4 + (4 << 20))
            vmem = int(min(max(vmem, 32 << 20), 64 << 20))       # v7x: 64 MiB/TC
            return pl.pallas_call(
                kernel,
                grid=(N, n_ct),
                in_specs=[
                    pl.BlockSpec((1, L, Cin), lambda n, c: (n, 0, 0)),
                    pl.BlockSpec((1, T, Cin, 128), lambda n, c: (n, 0, 0, c)),
                ],
                out_specs=pl.BlockSpec((1, out_rows, 128), lambda n, c: (n, 0, c)),
                out_shape=jax.ShapeDtypeStruct((N, out_rows, Coutp), jnp.bfloat16),
                compiler_params=pltpu.CompilerParams(
                    dimension_semantics=("parallel", "parallel"),
                    vmem_limit_bytes=vmem),
                cost_estimate=pl.CostEstimate(flops=flops, transcendentals=0,
                                              bytes_accessed=bytes_accessed),
            )(xin, w_mat)

        out = _first_successful([
            functools.partial(run_merged, jnp.bfloat16),
            functools.partial(run_merged, jnp.float32),   # robustness fallback
        ])
    else:
        # ---- shared resident weights; gate applied to the (rows, E*r) LoRA act ----
        w0_mat = jnp.transpose(w0, (2, 3, 1, 0)).reshape(T, Cin, Cout)
        w0_mat = jnp.pad(w0_mat, ((0, 0), (0, 0), (0, Coutp - Cout)))
        w0_mat = w0_mat.astype(jnp.bfloat16)
        a_cat = jnp.transpose(lora_a, (3, 4, 2, 0, 1)).reshape(T, Cin, Er)
        a_cat = a_cat.astype(jnp.bfloat16)
        b_cat = jnp.transpose(bw, (0, 2, 1)).reshape(Er, Cout)
        b_cat = jnp.pad(b_cat, ((0, 0), (0, Coutp - Cout))).astype(jnp.bfloat16)
        scale = (scaling * jnp.repeat(route, r, axis=1)).astype(jnp.float32)
        scale = scale.reshape(N, 1, Er)

        kernel = functools.partial(_shared_conv_kernel,
                                   tap_offsets=tap_offsets, out_rows=out_rows)
        weight_bytes = 2 * (T * Cin * (Coutp + Er) + Er * Coutp)
        flops = 2 * N * out_rows * (T * Cin * (Coutp + Er) + Er * Coutp)
        bytes_accessed = (N * (L * Cin * 2 + out_rows * Coutp * 2 + Er * 4)
                          + weight_bytes)

        def run_shared(x_dtype, single_buffer):
            xin = xflat.astype(x_dtype)
            isz = jnp.dtype(x_dtype).itemsize

            def wspec(shape, index_map):
                if single_buffer:   # grid-invariant weights: no double-buffer
                    return pl.BlockSpec(shape, index_map,
                                        pipeline_mode=pl.Buffered(1))
                return pl.BlockSpec(shape, index_map)

            nbuf = 1 if single_buffer else 2
            vmem = (2 * (L * Cin * isz + Er * 4) + 2 * out_rows * Coutp * 2
                    + nbuf * weight_bytes + 3 * out_rows * Coutp * 4 + (4 << 20))
            vmem = int(min(max(vmem, 32 << 20), 64 << 20))
            return pl.pallas_call(
                kernel,
                grid=(N,),
                in_specs=[
                    pl.BlockSpec((1, 1, Er), lambda n: (n, 0, 0)),
                    pl.BlockSpec((1, L, Cin), lambda n: (n, 0, 0)),
                    wspec((T, Cin, Coutp), lambda n: (0, 0, 0)),
                    wspec((T, Cin, Er), lambda n: (0, 0, 0)),
                    wspec((Er, Coutp), lambda n: (0, 0)),
                ],
                out_specs=pl.BlockSpec((1, out_rows, Coutp), lambda n: (n, 0, 0)),
                out_shape=jax.ShapeDtypeStruct((N, out_rows, Coutp), jnp.bfloat16),
                compiler_params=pltpu.CompilerParams(
                    dimension_semantics=("parallel",),
                    vmem_limit_bytes=vmem),
                cost_estimate=pl.CostEstimate(flops=flops, transcendentals=0,
                                              bytes_accessed=bytes_accessed),
            )(scale, xin, w0_mat, a_cat, b_cat)

        out = _first_successful([
            functools.partial(run_shared, jnp.bfloat16, True),
            functools.partial(run_shared, jnp.bfloat16, False),
            functools.partial(run_shared, jnp.float32, True),
            functools.partial(run_shared, jnp.float32, False),
        ])

    # ---- epilogue: free reshape + one slice; NHWC by default ----
    y = out.reshape(N, Hout, Wp, Coutp)[:, :, :Wout, :Cout]
    if out_format == "NCHW":
        y = jnp.transpose(y, (0, 3, 1, 2))
    return y, route


if __name__ == "__main__":
    key = jax.random.PRNGKey(0)
    N, Cin, H, W = 2, 4, 16, 16
    Cout, kh, kw = 8, 3, 3
    n_expert, gamma, lora_alpha = 5, 4, 16           # Res_Lora_Mix defaults
    r = gamma
    scaling = lora_alpha / r

    ks = jax.random.split(key, 5)
    x = jax.random.normal(ks[0], (N, Cin, H, W), jnp.float32)
    # real LoRA init has B = 0; use random values so the expert branches matter
    w0 = jax.random.normal(ks[1], (Cout, Cin, kh, kw), jnp.float32) * 0.1
    lora_a = jax.random.normal(ks[2], (n_expert, r, Cin, kh, kw), jnp.float32) * 0.1
    lora_b = jax.random.normal(ks[3], (n_expert, Cout, r, 1, 1), jnp.float32) * 0.1
    gate_w = jax.random.normal(ks[4], (Cin, n_expert), jnp.float32)

    # ---- pure-JAX f32 reference: per-sample merged effective conv weight ----
    x_nhwc = jnp.transpose(x, (0, 2, 3, 1))
    route_ref = jax.nn.softmax(jnp.mean(x_nhwc, axis=(1, 2)) @ gate_w, axis=-1)
    delta = jnp.einsum('eor,ercij->eocij', lora_b[:, :, :, 0, 0], lora_a)
    w_eff = w0[None] + scaling * jnp.einsum('ne,eocij->nocij', route_ref, delta)
    ref = jnp.concatenate([
        lax.conv_general_dilated(
            x[n:n + 1], w_eff[n], window_strides=(1, 1),
            padding=((1, 1), (1, 1)),
            dimension_numbers=('NCHW', 'OIHW', 'NCHW'))
        for n in range(N)], axis=0)
    ref_nhwc = jnp.transpose(ref, (0, 2, 3, 1))

    # exercise both kernel paths: merged per-sample weight and shared weights
    for merge in (True, False):
        y, route = multi_lora_conv2d(x, w0, lora_a, lora_b, gate_w,
                                     lora_alpha=lora_alpha, r=r, padding=1,
                                     merge_weights=merge, out_format="NHWC")
        y = jax.block_until_ready(y).astype(jnp.float32)
        # bf16-streamed kernel vs f32 reference: relaxed tolerance (deliberate).
        if not jnp.allclose(y, ref_nhwc, rtol=5e-2, atol=5e-2):
            raise AssertionError(
                f"mismatch (merge_weights={merge}): max abs err = "
                f"{float(jnp.max(jnp.abs(y - ref_nhwc)))}")
    print("KERNEL_OK")
</pallas_src>

<mosaic_0001>
module attributes {stable_mosaic.version = 11 : i64} {
  func.func @_merged_conv_kernel(%arg0: i32, %arg1: i32, %arg2: memref<1x328x4xbf16, #tpu.memory_space<vmem>>, %arg3: memref<1x9x4x128xbf16, #tpu.memory_space<vmem>>, %arg4: memref<1x288x128xbf16, #tpu.memory_space<vmem>>) attributes {dimension_semantics = [#tpu.dimension_semantics<parallel>, #tpu.dimension_semantics<parallel>], iteration_bounds = array<i64: 2, 1>, scalar_prefetch = 0 : i64, scratch_operands = 0 : i64, tpu.core_type = #tpu.core_type<tc>, window_params = [{transform_indices = @transform_0, window_bounds = array<i64: 1, 328, 4>}, {transform_indices = @transform_1, window_bounds = array<i64: 1, 9, 4, 128>}, {transform_indices = @transform_2, window_bounds = array<i64: 1, 288, 128>}]} {
    %c0 = arith.constant 0 : index
    %c0_0 = arith.constant 0 : index
    %c0_1 = arith.constant 0 : index
    %0 = vector.load %arg2[%c0, %c0_0, %c0_1] : memref<1x328x4xbf16, #tpu.memory_space<vmem>>, vector<1x288x4xbf16>
    %1 = vector.shape_cast %0 : vector<1x288x4xbf16> to vector<288x4xbf16>
    %c0_2 = arith.constant 0 : index
    %c0_3 = arith.constant 0 : index
    %c0_4 = arith.constant 0 : index
    %c0_5 = arith.constant 0 : index
    %2 = vector.load %arg3[%c0_2, %c0_3, %c0_4, %c0_5] : memref<1x9x4x128xbf16, #tpu.memory_space<vmem>>, vector<1x1x4x128xbf16>
    %3 = vector.shape_cast %2 : vector<1x1x4x128xbf16> to vector<4x128xbf16>
    %cst = arith.constant dense<0.000000e+00> : vector<288x128xf32>
    %4 = tpu.matmul %1, %3, %cst {dimension_numbers = #tpu.dot_dimension_numbers<[1], [0], [0], [1], [0, 0, 1, 1], [], []>} : vector<288x4xbf16>, vector<4x128xbf16>, vector<288x128xf32> -> vector<288x128xf32>
    %c0_6 = arith.constant 0 : index
    %c1 = arith.constant 1 : index
    %c0_7 = arith.constant 0 : index
    %5 = vector.load %arg2[%c0_6, %c1, %c0_7] : memref<1x328x4xbf16, #tpu.memory_space<vmem>>, vector<1x288x4xbf16>
    %6 = vector.shape_cast %5 : vector<1x288x4xbf16> to vector<288x4xbf16>
    %c0_8 = arith.constant 0 : index
    %c1_9 = arith.constant 1 : index
    %c0_10 = arith.constant 0 : index
    %c0_11 = arith.constant 0 : index
    %7 = vector.load %arg3[%c0_8, %c1_9, %c0_10, %c0_11] : memref<1x9x4x128xbf16, #tpu.memory_space<vmem>>, vector<1x1x4x128xbf16>
    %8 = vector.shape_cast %7 : vector<1x1x4x128xbf16> to vector<4x128xbf16>
    %cst_12 = arith.constant dense<0.000000e+00> : vector<288x128xf32>
    %9 = tpu.matmul %6, %8, %cst_12 {dimension_numbers = #tpu.dot_dimension_numbers<[1], [0], [0], [1], [0, 0, 1, 1], [], []>} : vector<288x4xbf16>, vector<4x128xbf16>, vector<288x128xf32> -> vector<288x128xf32>
    %10 = arith.addf %4, %9 : vector<288x128xf32>
    %c0_13 = arith.constant 0 : index
    %c2 = arith.constant 2 : index
    %c0_14 = arith.constant 0 : index
    %11 = vector.load %arg2[%c0_13, %c2, %c0_14] : memref<1x328x4xbf16, #tpu.memory_space<vmem>>, vector<1x288x4xbf16>
    %12 = vector.shape_cast %11 : vector<1x288x4xbf16> to vector<288x4xbf16>
    %c0_15 = arith.constant 0 : index
    %c2_16 = arith.constant 2 : index
    %c0_17 = arith.constant 0 : index
    %c0_18 = arith.constant 0 : index
    %13 = vector.load %arg3[%c0_15, %c2_16, %c0_17, %c0_18] : memref<1x9x4x128xbf16, #tpu.memory_space<vmem>>, vector<1x1x4x128xbf16>
    %14 = vector.shape_cast %13 : vector<1x1x4x128xbf16> to vector<4x128xbf16>
    %cst_19 = arith.constant dense<0.000000e+00> : vector<288x128xf32>
    %15 = tpu.matmul %12, %14, %cst_19 {dimension_numbers = #tpu.dot_dimension_numbers<[1], [0], [0], [1], [0, 0, 1, 1], [], []>} : vector<288x4xbf16>, vector<4x128xbf16>, vector<288x128xf32> -> vector<288x128xf32>
    %16 = arith.addf %10, %15 : vector<288x128xf32>
    %c0_20 = arith.constant 0 : index
    %c18 = arith.constant 18 : index
    %c0_21 = arith.constant 0 : index
    %17 = vector.load %arg2[%c0_20, %c18, %c0_21] : memref<1x328x4xbf16, #tpu.memory_space<vmem>>, vector<1x288x4xbf16>
    %18 = vector.shape_cast %17 : vector<1x288x4xbf16> to vector<288x4xbf16>
    %c0_22 = arith.constant 0 : index
    %c3 = arith.constant 3 : index
    %c0_23 = arith.constant 0 : index
    %c0_24 = arith.constant 0 : index
    %19 = vector.load %arg3[%c0_22, %c3, %c0_23, %c0_24] : memref<1x9x4x128xbf16, #tpu.memory_space<vmem>>, vector<1x1x4x128xbf16>
    %20 = vector.shape_cast %19 : vector<1x1x4x128xbf16> to vector<4x128xbf16>
    %cst_25 = arith.constant dense<0.000000e+00> : vector<288x128xf32>
    %21 = tpu.matmul %18, %20, %cst_25 {dimension_numbers = #tpu.dot_dimension_numbers<[1], [0], [0], [1], [0, 0, 1, 1], [], []>} : vector<288x4xbf16>, vector<4x128xbf16>, vector<288x128xf32> -> vector<288x128xf32>
    %22 = arith.addf %16, %21 : vector<288x128xf32>
    %c0_26 = arith.constant 0 : index
    %c19 = arith.constant 19 : index
    %c0_27 = arith.constant 0 : index
    %23 = vector.load %arg2[%c0_26, %c19, %c0_27] : memref<1x328x4xbf16, #tpu.memory_space<vmem>>, vector<1x288x4xbf16>
    %24 = vector.shape_cast %23 : vector<1x288x4xbf16> to vector<288x4xbf16>
    %c0_28 = arith.constant 0 : index
    %c4 = arith.constant 4 : index
    %c0_29 = arith.constant 0 : index
    %c0_30 = arith.constant 0 : index
    %25 = vector.load %arg3[%c0_28, %c4, %c0_29, %c0_30] : memref<1x9x4x128xbf16, #tpu.memory_space<vmem>>, vector<1x1x4x128xbf16>
    %26 = vector.shape_cast %25 : vector<1x1x4x128xbf16> to vector<4x128xbf16>
    %cst_31 = arith.constant dense<0.000000e+00> : vector<288x128xf32>
    %27 = tpu.matmul %24, %26, %cst_31 {dimension_numbers = #tpu.dot_dimension_numbers<[1], [0], [0], [1], [0, 0, 1, 1], [], []>} : vector<288x4xbf16>, vector<4x128xbf16>, vector<288x128xf32> -> vector<288x128xf32>
    %28 = arith.addf %22, %27 : vector<288x128xf32>
    %c0_32 = arith.constant 0 : index
    %c20 = arith.constant 20 : index
    %c0_33 = arith.constant 0 : index
    %29 = vector.load %arg2[%c0_32, %c20, %c0_33] : memref<1x328x4xbf16, #tpu.memory_space<vmem>>, vector<1x288x4xbf16>
    %30 = vector.shape_cast %29 : vector<1x288x4xbf16> to vector<288x4xbf16>
    %c0_34 = arith.constant 0 : index
    %c5 = arith.constant 5 : index
    %c0_35 = arith.constant 0 : index
    %c0_36 = arith.constant 0 : index
    %31 = vector.load %arg3[%c0_34, %c5, %c0_35, %c0_36] : memref<1x9x4x128xbf16, #tpu.memory_space<vmem>>, vector<1x1x4x128xbf16>
    %32 = vector.shape_cast %31 : vector<1x1x4x128xbf16> to vector<4x128xbf16>
    %cst_37 = arith.constant dense<0.000000e+00> : vector<288x128xf32>
    %33 = tpu.matmul %30, %32, %cst_37 {dimension_numbers = #tpu.dot_dimension_numbers<[1], [0], [0], [1], [0, 0, 1, 1], [], []>} : vector<288x4xbf16>, vector<4x128xbf16>, vector<288x128xf32> -> vector<288x128xf32>
    %34 = arith.addf %28, %33 : vector<288x128xf32>
    %c0_38 = arith.constant 0 : index
    %c36 = arith.constant 36 : index
    %c0_39 = arith.constant 0 : index
    %35 = vector.load %arg2[%c0_38, %c36, %c0_39] : memref<1x328x4xbf16, #tpu.memory_space<vmem>>, vector<1x288x4xbf16>
    %36 = vector.shape_cast %35 : vector<1x288x4xbf16> to vector<288x4xbf16>
    %c0_40 = arith.constant 0 : index
    %c6 = arith.constant 6 : index
    %c0_41 = arith.constant 0 : index
    %c0_42 = arith.constant 0 : index
    %37 = vector.load %arg3[%c0_40, %c6, %c0_41, %c0_42] : memref<1x9x4x128xbf16, #tpu.memory_space<vmem>>, vector<1x1x4x128xbf16>
    %38 = vector.shape_cast %37 : vector<1x1x4x128xbf16> to vector<4x128xbf16>
    %cst_43 = arith.constant dense<0.000000e+00> : vector<288x128xf32>
    %39 = tpu.matmul %36, %38, %cst_43 {dimension_numbers = #tpu.dot_dimension_numbers<[1], [0], [0], [1], [0, 0, 1, 1], [], []>} : vector<288x4xbf16>, vector<4x128xbf16>, vector<288x128xf32> -> vector<288x128xf32>
    %40 = arith.addf %34, %39 : vector<288x128xf32>
    %c0_44 = arith.constant 0 : index
    %c37 = arith.constant 37 : index
    %c0_45 = arith.constant 0 : index
    %41 = vector.load %arg2[%c0_44, %c37, %c0_45] : memref<1x328x4xbf16, #tpu.memory_space<vmem>>, vector<1x288x4xbf16>
    %42 = vector.shape_cast %41 : vector<1x288x4xbf16> to vector<288x4xbf16>
    %c0_46 = arith.constant 0 : index
    %c7 = arith.constant 7 : index
    %c0_47 = arith.constant 0 : index
    %c0_48 = arith.constant 0 : index
    %43 = vector.load %arg3[%c0_46, %c7, %c0_47, %c0_48] : memref<1x9x4x128xbf16, #tpu.memory_space<vmem>>, vector<1x1x4x128xbf16>
    %44 = vector.shape_cast %43 : vector<1x1x4x128xbf16> to vector<4x128xbf16>
    %cst_49 = arith.constant dense<0.000000e+00> : vector<288x128xf32>
    %45 = tpu.matmul %42, %44, %cst_49 {dimension_numbers = #tpu.dot_dimension_numbers<[1], [0], [0], [1], [0, 0, 1, 1], [], []>} : vector<288x4xbf16>, vector<4x128xbf16>, vector<288x128xf32> -> vector<288x128xf32>
    %46 = arith.addf %40, %45 : vector<288x128xf32>
    %c0_50 = arith.constant 0 : index
    %c38 = arith.constant 38 : index
    %c0_51 = arith.constant 0 : index
    %47 = vector.load %arg2[%c0_50, %c38, %c0_51] : memref<1x328x4xbf16, #tpu.memory_space<vmem>>, vector<1x288x4xbf16>
    %48 = vector.shape_cast %47 : vector<1x288x4xbf16> to vector<288x4xbf16>
    %c0_52 = arith.constant 0 : index
    %c8 = arith.constant 8 : index
    %c0_53 = arith.constant 0 : index
    %c0_54 = arith.constant 0 : index
    %49 = vector.load %arg3[%c0_52, %c8, %c0_53, %c0_54] : memref<1x9x4x128xbf16, #tpu.memory_space<vmem>>, vector<1x1x4x128xbf16>
    %50 = vector.shape_cast %49 : vector<1x1x4x128xbf16> to vector<4x128xbf16>
    %cst_55 = arith.constant dense<0.000000e+00> : vector<288x128xf32>
    %51 = tpu.matmul %48, %50, %cst_55 {dimension_numbers = #tpu.dot_dimension_numbers<[1], [0], [0], [1], [0, 0, 1, 1], [], []>} : vector<288x4xbf16>, vector<4x128xbf16>, vector<288x128xf32> -> vector<288x128xf32>
    %52 = arith.addf %46, %51 : vector<288x128xf32>
    %53 = arith.truncf %52 : vector<288x128xf32> to vector<288x128xbf16>
    %c0_56 = arith.constant 0 : index
    %c0_57 = arith.constant 0 : index
    %c0_58 = arith.constant 0 : index
    %54 = vector.load %arg4[%c0_56, %c0_57, %c0_58] : memref<1x288x128xbf16, #tpu.memory_space<vmem>>, vector<1x288x128xbf16>
    %55 = vector.shape_cast %54 : vector<1x288x128xbf16> to vector<288x128xbf16>
    %56 = vector.shape_cast %53 : vector<288x128xbf16> to vector<1x288x128xbf16>
    tpu.vector_store %arg4[%c0_56, %c0_57, %c0_58], %56 {strides = array<i32>} : memref<1x288x128xbf16, #tpu.memory_space<vmem>>, vector<1x288x128xbf16>,
    return
  }
  func.func @transform_0(%arg0: i32, %arg1: i32) -> (i32, i32, i32) {
    %c0_i32 = arith.constant 0 : i32
    %c0_i32_0 = arith.constant 0 : i32
    %c0_i32_1 = arith.constant 0 : i32
    return %arg0, %c0_i32, %c0_i32_0 : i32, i32, i32
  }
  func.func @transform_1(%arg0: i32, %arg1: i32) -> (i32, i32, i32, i32) {
    %c0_i32 = arith.constant 0 : i32
    %c0_i32_0 = arith.constant 0 : i32
    %c0_i32_1 = arith.constant 0 : i32
    return %arg0, %c0_i32, %c0_i32_0, %arg1 : i32, i32, i32, i32
  }
  func.func @transform_2(%arg0: i32, %arg1: i32) -> (i32, i32, i32) {
    %c0_i32 = arith.constant 0 : i32
    %c0_i32_0 = arith.constant 0 : i32
    return %arg0, %c0_i32, %arg1 : i32, i32, i32
  }
}

module attributes {stable_mosaic.version = 11 : i64} {
  func.func @_merged_conv_kernel(%arg0: i32, %arg1: i32, %arg2: memref<1x328x4xf32, #tpu.memory_space<vmem>>, %arg3: memref<1x9x4x128xbf16, #tpu.memory_space<vmem>>, %arg4: memref<1x288x128xbf16, #tpu.memory_space<vmem>>) attributes {dimension_semantics = [#tpu.dimension_semantics<parallel>, #tpu.dimension_semantics<parallel>], iteration_bounds = array<i64: 2, 1>, scalar_prefetch = 0 : i64, scratch_operands = 0 : i64, tpu.core_type = #tpu.core_type<tc>, window_params = [{transform_indices = @transform_0, window_bounds = array<i64: 1, 328, 4>}, {transform_indices = @transform_1, window_bounds = array<i64: 1, 9, 4, 128>}, {transform_indices = @transform_2, window_bounds = array<i64: 1, 288, 128>}]} {
    %c0 = arith.constant 0 : index
    %c0_0 = arith.constant 0 : index
    %c0_1 = arith.constant 0 : index
    %0 = vector.load %arg2[%c0, %c0_0, %c0_1] : memref<1x328x4xf32, #tpu.memory_space<vmem>>, vector<1x288x4xf32>
    %1 = vector.shape_cast %0 : vector<1x288x4xf32> to vector<288x4xf32>
    %2 = arith.truncf %1 : vector<288x4xf32> to vector<288x4xbf16>
    %c0_2 = arith.constant 0 : index
    %c0_3 = arith.constant 0 : index
    %c0_4 = arith.constant 0 : index
    %c0_5 = arith.constant 0 : index
    %3 = vector.load %arg3[%c0_2, %c0_3, %c0_4, %c0_5] : memref<1x9x4x128xbf16, #tpu.memory_space<vmem>>, vector<1x1x4x128xbf16>
    %4 = vector.shape_cast %3 : vector<1x1x4x128xbf16> to vector<4x128xbf16>
    %cst = arith.constant dense<0.000000e+00> : vector<288x128xf32>
    %5 = tpu.matmul %2, %4, %cst {dimension_numbers = #tpu.dot_dimension_numbers<[1], [0], [0], [1], [0, 0, 1, 1], [], []>} : vector<288x4xbf16>, vector<4x128xbf16>, vector<288x128xf32> -> vector<288x128xf32>
    %c0_6 = arith.constant 0 : index
    %c1 = arith.constant 1 : index
    %c0_7 = arith.constant 0 : index
    %6 = vector.load %arg2[%c0_6, %c1, %c0_7] : memref<1x328x4xf32, #tpu.memory_space<vmem>>, vector<1x288x4xf32>
    %7 = vector.shape_cast %6 : vector<1x288x4xf32> to vector<288x4xf32>
    %8 = arith.truncf %7 : vector<288x4xf32> to vector<288x4xbf16>
    %c0_8 = arith.constant 0 : index
    %c1_9 = arith.constant 1 : index
    %c0_10 = arith.constant 0 : index
    %c0_11 = arith.constant 0 : index
    %9 = vector.load %arg3[%c0_8, %c1_9, %c0_10, %c0_11] : memref<1x9x4x128xbf16, #tpu.memory_space<vmem>>, vector<1x1x4x128xbf16>
    %10 = vector.shape_cast %9 : vector<1x1x4x128xbf16> to vector<4x128xbf16>
    %cst_12 = arith.constant dense<0.000000e+00> : vector<288x128xf32>
    %11 = tpu.matmul %8, %10, %cst_12 {dimension_numbers = #tpu.dot_dimension_numbers<[1], [0], [0], [1], [0, 0, 1, 1], [], []>} : vector<288x4xbf16>, vector<4x128xbf16>, vector<288x128xf32> -> vector<288x128xf32>
    %12 = arith.addf %5, %11 : vector<288x128xf32>
    %c0_13 = arith.constant 0 : index
    %c2 = arith.constant 2 : index
    %c0_14 = arith.constant 0 : index
    %13 = vector.load %arg2[%c0_13, %c2, %c0_14] : memref<1x328x4xf32, #tpu.memory_space<vmem>>, vector<1x288x4xf32>
    %14 = vector.shape_cast %13 : vector<1x288x4xf32> to vector<288x4xf32>
    %15 = arith.truncf %14 : vector<288x4xf32> to vector<288x4xbf16>
    %c0_15 = arith.constant 0 : index
    %c2_16 = arith.constant 2 : index
    %c0_17 = arith.constant 0 : index
    %c0_18 = arith.constant 0 : index
    %16 = vector.load %arg3[%c0_15, %c2_16, %c0_17, %c0_18] : memref<1x9x4x128xbf16, #tpu.memory_space<vmem>>, vector<1x1x4x128xbf16>
    %17 = vector.shape_cast %16 : vector<1x1x4x128xbf16> to vector<4x128xbf16>
    %cst_19 = arith.constant dense<0.000000e+00> : vector<288x128xf32>
    %18 = tpu.matmul %15, %17, %cst_19 {dimension_numbers = #tpu.dot_dimension_numbers<[1], [0], [0], [1], [0, 0, 1, 1], [], []>} : vector<288x4xbf16>, vector<4x128xbf16>, vector<288x128xf32> -> vector<288x128xf32>
    %19 = arith.addf %12, %18 : vector<288x128xf32>
    %c0_20 = arith.constant 0 : index
    %c18 = arith.constant 18 : index
    %c0_21 = arith.constant 0 : index
    %20 = vector.load %arg2[%c0_20, %c18, %c0_21] : memref<1x328x4xf32, #tpu.memory_space<vmem>>, vector<1x288x4xf32>
    %21 = vector.shape_cast %20 : vector<1x288x4xf32> to vector<288x4xf32>
    %22 = arith.truncf %21 : vector<288x4xf32> to vector<288x4xbf16>
    %c0_22 = arith.constant 0 : index
    %c3 = arith.constant 3 : index
    %c0_23 = arith.constant 0 : index
    %c0_24 = arith.constant 0 : index
    %23 = vector.load %arg3[%c0_22, %c3, %c0_23, %c0_24] : memref<1x9x4x128xbf16, #tpu.memory_space<vmem>>, vector<1x1x4x128xbf16>
    %24 = vector.shape_cast %23 : vector<1x1x4x128xbf16> to vector<4x128xbf16>
    %cst_25 = arith.constant dense<0.000000e+00> : vector<288x128xf32>
    %25 = tpu.matmul %22, %24, %cst_25 {dimension_numbers = #tpu.dot_dimension_numbers<[1], [0], [0], [1], [0, 0, 1, 1], [], []>} : vector<288x4xbf16>, vector<4x128xbf16>, vector<288x128xf32> -> vector<288x128xf32>
    %26 = arith.addf %19, %25 : vector<288x128xf32>
    %c0_26 = arith.constant 0 : index
    %c19 = arith.constant 19 : index
    %c0_27 = arith.constant 0 : index
    %27 = vector.load %arg2[%c0_26, %c19, %c0_27] : memref<1x328x4xf32, #tpu.memory_space<vmem>>, vector<1x288x4xf32>
    %28 = vector.shape_cast %27 : vector<1x288x4xf32> to vector<288x4xf32>
    %29 = arith.truncf %28 : vector<288x4xf32> to vector<288x4xbf16>
    %c0_28 = arith.constant 0 : index
    %c4 = arith.constant 4 : index
    %c0_29 = arith.constant 0 : index
    %c0_30 = arith.constant 0 : index
    %30 = vector.load %arg3[%c0_28, %c4, %c0_29, %c0_30] : memref<1x9x4x128xbf16, #tpu.memory_space<vmem>>, vector<1x1x4x128xbf16>
    %31 = vector.shape_cast %30 : vector<1x1x4x128xbf16> to vector<4x128xbf16>
    %cst_31 = arith.constant dense<0.000000e+00> : vector<288x128xf32>
    %32 = tpu.matmul %29, %31, %cst_31 {dimension_numbers = #tpu.dot_dimension_numbers<[1], [0], [0], [1], [0, 0, 1, 1], [], []>} : vector<288x4xbf16>, vector<4x128xbf16>, vector<288x128xf32> -> vector<288x128xf32>
    %33 = arith.addf %26, %32 : vector<288x128xf32>
    %c0_32 = arith.constant 0 : index
    %c20 = arith.constant 20 : index
    %c0_33 = arith.constant 0 : index
    %34 = vector.load %arg2[%c0_32, %c20, %c0_33] : memref<1x328x4xf32, #tpu.memory_space<vmem>>, vector<1x288x4xf32>
    %35 = vector.shape_cast %34 : vector<1x288x4xf32> to vector<288x4xf32>
    %36 = arith.truncf %35 : vector<288x4xf32> to vector<288x4xbf16>
    %c0_34 = arith.constant 0 : index
    %c5 = arith.constant 5 : index
    %c0_35 = arith.constant 0 : index
    %c0_36 = arith.constant 0 : index
    %37 = vector.load %arg3[%c0_34, %c5, %c0_35, %c0_36] : memref<1x9x4x128xbf16, #tpu.memory_space<vmem>>, vector<1x1x4x128xbf16>
    %38 = vector.shape_cast %37 : vector<1x1x4x128xbf16> to vector<4x128xbf16>
    %cst_37 = arith.constant dense<0.000000e+00> : vector<288x128xf32>
    %39 = tpu.matmul %36, %38, %cst_37 {dimension_numbers = #tpu.dot_dimension_numbers<[1], [0], [0], [1], [0, 0, 1, 1], [], []>} : vector<288x4xbf16>, vector<4x128xbf16>, vector<288x128xf32> -> vector<288x128xf32>
    %40 = arith.addf %33, %39 : vector<288x128xf32>
    %c0_38 = arith.constant 0 : index
    %c36 = arith.constant 36 : index
    %c0_39 = arith.constant 0 : index
    %41 = vector.load %arg2[%c0_38, %c36, %c0_39] : memref<1x328x4xf32, #tpu.memory_space<vmem>>, vector<1x288x4xf32>
    %42 = vector.shape_cast %41 : vector<1x288x4xf32> to vector<288x4xf32>
    %43 = arith.truncf %42 : vector<288x4xf32> to vector<288x4xbf16>
    %c0_40 = arith.constant 0 : index
    %c6 = arith.constant 6 : index
    %c0_41 = arith.constant 0 : index
    %c0_42 = arith.constant 0 : index
    %44 = vector.load %arg3[%c0_40, %c6, %c0_41, %c0_42] : memref<1x9x4x128xbf16, #tpu.memory_space<vmem>>, vector<1x1x4x128xbf16>
    %45 = vector.shape_cast %44 : vector<1x1x4x128xbf16> to vector<4x128xbf16>
    %cst_43 = arith.constant dense<0.000000e+00> : vector<288x128xf32>
    %46 = tpu.matmul %43, %45, %cst_43 {dimension_numbers = #tpu.dot_dimension_numbers<[1], [0], [0], [1], [0, 0, 1, 1], [], []>} : vector<288x4xbf16>, vector<4x128xbf16>, vector<288x128xf32> -> vector<288x128xf32>
    %47 = arith.addf %40, %46 : vector<288x128xf32>
    %c0_44 = arith.constant 0 : index
    %c37 = arith.constant 37 : index
    %c0_45 = arith.constant 0 : index
    %48 = vector.load %arg2[%c0_44, %c37, %c0_45] : memref<1x328x4xf32, #tpu.memory_space<vmem>>, vector<1x288x4xf32>
    %49 = vector.shape_cast %48 : vector<1x288x4xf32> to vector<288x4xf32>
    %50 = arith.truncf %49 : vector<288x4xf32> to vector<288x4xbf16>
    %c0_46 = arith.constant 0 : index
    %c7 = arith.constant 7 : index
    %c0_47 = arith.constant 0 : index
    %c0_48 = arith.constant 0 : index
    %51 = vector.load %arg3[%c0_46, %c7, %c0_47, %c0_48] : memref<1x9x4x128xbf16, #tpu.memory_space<vmem>>, vector<1x1x4x128xbf16>
    %52 = vector.shape_cast %51 : vector<1x1x4x128xbf16> to vector<4x128xbf16>
    %cst_49 = arith.constant dense<0.000000e+00> : vector<288x128xf32>
    %53 = tpu.matmul %50, %52, %cst_49 {dimension_numbers = #tpu.dot_dimension_numbers<[1], [0], [0], [1], [0, 0, 1, 1], [], []>} : vector<288x4xbf16>, vector<4x128xbf16>, vector<288x128xf32> -> vector<288x128xf32>
    %54 = arith.addf %47, %53 : vector<288x128xf32>
    %c0_50 = arith.constant 0 : index
    %c38 = arith.constant 38 : index
    %c0_51 = arith.constant 0 : index
    %55 = vector.load %arg2[%c0_50, %c38, %c0_51] : memref<1x328x4xf32, #tpu.memory_space<vmem>>, vector<1x288x4xf32>
    %56 = vector.shape_cast %55 : vector<1x288x4xf32> to vector<288x4xf32>
    %57 = arith.truncf %56 : vector<288x4xf32> to vector<288x4xbf16>
    %c0_52 = arith.constant 0 : index
    %c8 = arith.constant 8 : index
    %c0_53 = arith.constant 0 : index
    %c0_54 = arith.constant 0 : index
    %58 = vector.load %arg3[%c0_52, %c8, %c0_53, %c0_54] : memref<1x9x4x128xbf16, #tpu.memory_space<vmem>>, vector<1x1x4x128xbf16>
    %59 = vector.shape_cast %58 : vector<1x1x4x128xbf16> to vector<4x128xbf16>
    %cst_55 = arith.constant dense<0.000000e+00> : vector<288x128xf32>
    %60 = tpu.matmul %57, %59, %cst_55 {dimension_numbers = #tpu.dot_dimension_numbers<[1], [0], [0], [1], [0, 0, 1, 1], [], []>} : vector<288x4xbf16>, vector<4x128xbf16>, vector<288x128xf32> -> vector<288x128xf32>
    %61 = arith.addf %54, %60 : vector<288x128xf32>
    %62 = arith.truncf %61 : vector<288x128xf32> to vector<288x128xbf16>
    %c0_56 = arith.constant 0 : index
    %c0_57 = arith.constant 0 : index
    %c0_58 = arith.constant 0 : index
    %63 = vector.load %arg4[%c0_56, %c0_57, %c0_58] : memref<1x288x128xbf16, #tpu.memory_space<vmem>>, vector<1x288x128xbf16>
    %64 = vector.shape_cast %63 : vector<1x288x128xbf16> to vector<288x128xbf16>
    %65 = vector.shape_cast %62 : vector<288x128xbf16> to vector<1x288x128xbf16>
    tpu.vector_store %arg4[%c0_56, %c0_57, %c0_58], %65 {strides = array<i32>} : memref<1x288x128xbf16, #tpu.memory_space<vmem>>, vector<1x288x128xbf16>,
    return
  }
  func.func @transform_0(%arg0: i32, %arg1: i32) -> (i32, i32, i32) {
    %c0_i32 = arith.constant 0 : i32
    %c0_i32_0 = arith.constant 0 : i32
    %c0_i32_1 = arith.constant 0 : i32
    return %arg0, %c0_i32, %c0_i32_0 : i32, i32, i32
  }
  func.func @transform_1(%arg0: i32, %arg1: i32) -> (i32, i32, i32, i32) {
    %c0_i32 = arith.constant 0 : i32
    %c0_i32_0 = arith.constant 0 : i32
    %c0_i32_1 = arith.constant 0 : i32
    return %arg0, %c0_i32, %c0_i32_0, %arg1 : i32, i32, i32, i32
  }
  func.func @transform_2(%arg0: i32, %arg1: i32) -> (i32, i32, i32) {
    %c0_i32 = arith.constant 0 : i32
    %c0_i32_0 = arith.constant 0 : i32
    return %arg0, %c0_i32, %arg1 : i32, i32, i32
  }
}

</mosaic_0001>

<llo_original>
// kernel: tpu_custom_call.1
$region0: #{tpu_custom_call.1}
  #allocation0 [shape = 'u32[]', space=smem, size = 0x4, offset = 0x4, fixed_abs, tag = 'smem constant byte address 0x4 - core index']
  #allocation1 [shape = 'u32[144,128]{1,0:T(1,128)}', space=vmem, size = 0x12000, scoped, tag = 'internal scratch']
  %s0 = inlined_call_operand.vmem [shape: bf16[2,328,4], index: 0, kind: input, shape index: {}]
  %s1 = inlined_call_operand.vmem [shape: bf16[2,9,4,128], index: 1, kind: input, shape index: {}]
  %s2 = inlined_call_operand.hbm [shape: bf16[2,288,128], index: 2, kind: output, shape index: {}]
  %s3 = sld [smem:[#allocation0]]
  $region41: #{tpu_custom_call.1} parent=0
    _
  %s5 = ssub.s32 1, %s3
  %s6 = scalar_select 0, %s5, %s3
  $region1: #{tpu_custom_call.1} parent=0
    #allocation2 [shape = 'u8[147456]{0}', space=vmem, size = 0x24000, scoped, tag = 'output window, operand 0']
    #allocation3 [shape = 's32[2]{0}', space=sflag, size = 0x8, scoped, tag = 'scoped memory for tpu_custom_call.1']
    %7 = vsyncpa [#allocation3], 0
    %s8 = scalar_lea.sflag [#allocation3], 1
    %9 = vsyncpa %s8, 0
    loop: start=0, step=1, limit=4
    $region2: #{tpu_custom_call.1} parent=1 // loop_pre_header
      _
    $region3: #{tpu_custom_call.1} parent=1 // loop_header
      %s11 = sphi 0, %s15
      %p12 = scmp.ge.s32.totalorder %s11, 4
      %s18 = sphi 0, %s30
      %s19 = sphi 0, %s26
      %s20 = sphi 0, %s18
      %s21 = sphi 0, %s19
      %s22 = sphi 0, %s20
      %s23 = sphi 0, %s21
      %s33 = sphi 0, %s35
      %s36 = sphi 0, %s33
      %s37 = sphi 0, %s36
      %s53 = sphi 0, %s37
      %s61 = sphi 0, %s63
      %s64 = sphi 0, %s61
      %s65 = sphi 0, %s64
      %s81 = sphi 0, %s65
      %s89 = sphi 0, %s91
      %s92 = sphi 0, %s89
      %s93 = sphi 0, %s92
      %s109 = sphi 0, %s93
    $region4: #{tpu_custom_call.1} parent=1 // loop_header_branch
      %14 = sbr.rel (%p12) target = $region8
    $region5: #{tpu_custom_call.1} parent=1 // loop_body
      %s16 = ssub.s32 %s11, 1
      %s17 = ssub.s32 %s11, 2
      %s24 = sadd.s32 1, %s19
      %p25 = scmp.ge.s32.totalorder %s24, 1
      %s26 = scalar_select %p25, 0, %s24
      %s27 = sadd.s32 1, %s18
      %s28 = scalar_select %p25, %s27, %s18
      %p29 = scmp.ge.s32.totalorder %s28, 2
      %s30 = scalar_select %p29, 0, %s28
      %s31 = ssub.s32 %s18, %s30
      %p32 = scmp.eq.s32.totalorder %s31, 0
      %s34 = sadd.s32 %s33, 1
      %s35 = scalar_select %p32, %s33, %s34
      %p38 = pneg %p32
      %p39 = scmp.eq.s32.totalorder %s11, 1
      %p40 = por %p38, %p39
      %p41 = scmp.ne.s32.totalorder %s33, %s36
      %p42 = scmp.eq.s32.totalorder %s11, 0
      %p43 = por %p41, %p42
      %p44 = scmp.ne.s32.totalorder %s33, %s36
      %p45 = scmp.eq.s32.totalorder %s16, 1
      %p46 = por %p44, %p45
      %p47 = scmp.ne.s32.totalorder %s36, %s37
      %p48 = scmp.eq.s32.totalorder %s16, 0
      %p49 = por %p47, %p48
      %p50 = scmp.ne.s32.totalorder %s36, %s37
      %p51 = scmp.eq.s32.totalorder %s17, 1
      %p52 = por %p50, %p51
      %p54 = scmp.ne.s32.totalorder %s37, %s53
      %p55 = scmp.eq.s32.totalorder %s17, 0
      %p56 = por %p54, %p55
      %s57 = ssub.s32 %s18, %s30
      %s58 = ssub.s32 %s19, %s26
      %s59 = sor.u32 %s57, %s58
      %p60 = scmp.eq.s32.totalorder %s59, 0
      %s62 = sadd.s32 %s61, 1
      %s63 = scalar_select %p60, %s61, %s62
      %p66 = pneg %p60
      %p67 = scmp.eq.s32.totalorder %s11, 1
      %p68 = por %p66, %p67
      %p69 = scmp.ne.s32.totalorder %s61, %s64
      %p70 = scmp.eq.s32.totalorder %s11, 0
      %p71 = por %p69, %p70
      %p72 = scmp.ne.s32.totalorder %s61, %s64
      %p73 = scmp.eq.s32.totalorder %s16, 1
      %p74 = por %p72, %p73
      %p75 = scmp.ne.s32.totalorder %s64, %s65
      %p76 = scmp.eq.s32.totalorder %s16, 0
      %p77 = por %p75, %p76
      %p78 = scmp.ne.s32.totalorder %s64, %s65
      %p79 = scmp.eq.s32.totalorder %s17, 1
      %p80 = por %p78, %p79
      %p82 = scmp.ne.s32.totalorder %s65, %s81
      %p83 = scmp.eq.s32.totalorder %s17, 0
      %p84 = por %p82, %p83
      %s85 = ssub.s32 %s18, %s30
      %s86 = ssub.s32 %s19, %s26
      %s87 = sor.u32 %s85, %s86
      %p88 = scmp.eq.s32.totalorder %s87, 0
      %s90 = sadd.s32 %s89, 1
      %s91 = scalar_select %p88, %s89, %s90
      %p94 = pneg %p88
      %p95 = scmp.eq.s32.totalorder %s11, 1
      %p96 = por %p94, %p95
      %p97 = scmp.ne.s32.totalorder %s89, %s92
      %p98 = scmp.eq.s32.totalorder %s11, 0
      %p99 = por %p97, %p98
      %p100 = scmp.ne.s32.totalorder %s89, %s92
      %p101 = scmp.eq.s32.totalorder %s16, 1
      %p102 = por %p100, %p101
      %p103 = scmp.ne.s32.totalorder %s92, %s93
      %p104 = scmp.eq.s32.totalorder %s16, 0
      %p105 = por %p103, %p104
      %p106 = scmp.ne.s32.totalorder %s92, %s93
      %p107 = scmp.eq.s32.totalorder %s17, 1
      %p108 = por %p106, %p107
      %p110 = scmp.ne.s32.totalorder %s93, %s109
      %p111 = scmp.eq.s32.totalorder %s17, 0
      %p112 = por %p110, %p111
      %p113 = scmp.le.s32.totalorder 1, %s11
      %p114 = scmp.lt.s32.totalorder %s11, 3
      %p115 = pnand %p113, %p114
      %p116 = pneg %p115
      // Predicated region
      $region9: #{tpu_custom_call.1} parent=5 // pred_check
        _
      $region10: #{tpu_custom_call.1} parent=5 // pred_check_branch
        %118 = sbr.rel (%p115) target = $region12
      $region11: #{tpu_custom_call.1} parent=5 // pred_region
        %s119 = ssub.s32 %s11, 1
      $region12: #{tpu_custom_call.1} parent=5 // pred_fallthru
        _
      %p120 = scmp.lt.s32.totalorder %s11, 2
      // Predicated region
      $region13: #{tpu_custom_call.1} parent=5 // pred_check
        %p121 = pneg %p120
      $region14: #{tpu_custom_call.1} parent=5 // pred_check_branch
        %123 = sbr.rel (%p121) target = $region16
      $region15: #{tpu_custom_call.1} parent=5 // pred_region
        // Predicated region
        $region17: #{tpu_custom_call.1} parent=15 // pred_check
          %p124 = pneg %p43
        $region18: #{tpu_custom_call.1} parent=15 // pred_check_branch
          %126 = sbr.rel (%p124) target = $region20
        $region19: #{tpu_custom_call.1} parent=15 // pred_region
          %p127 = scmp.lt.s32.totalorder %s18, 1
          %s128 = scalar_select %p127, %s18, 1
          %s129 = smul.addr %s128, 41
          %s130 = smul.addr %s129, 4
          %s131 = scalar_lea.vmem %s0, %s130
        $region20: #{tpu_custom_call.1} parent=15 // pred_fallthru
          _
        // Predicated region
        $region21: #{tpu_custom_call.1} parent=15 // pred_check
          %p132 = pneg %p71
        $region22: #{tpu_custom_call.1} parent=15 // pred_check_branch
          %134 = sbr.rel (%p132) target = $region24
        $region23: #{tpu_custom_call.1} parent=15 // pred_region
          %p135 = scmp.lt.s32.totalorder %s18, 1
          %s136 = scalar_select %p135, %s18, 1
          %p137 = scmp.lt.s32.totalorder %s19, 0
          %s138 = scalar_select %p137, %s19, 0
          %s139 = smul.addr %s136, 9
          %s140 = sadd.s32 %s138, %s139
          %s141 = smul.addr %s140, 2
          %s142 = scalar_lea.vmem %s1, %s141
        $region24: #{tpu_custom_call.1} parent=15 // pred_fallthru
          _
      $region16: #{tpu_custom_call.1} parent=5 // pred_fallthru
        _
      %p143 = scmp.le.s32.totalorder 1, %s11
      %p144 = scmp.lt.s32.totalorder %s11, 3
      %p145 = pnand %p143, %p144
      %p146 = pneg %p145
      // Predicated region
      $region25: #{tpu_custom_call.1} parent=5 // pred_check
        _
      $region26: #{tpu_custom_call.1} parent=5 // pred_check_branch
        %148 = sbr.rel (%p145) target = $region28
      $region27: #{tpu_custom_call.1} parent=5 // pred_region
        %s149 = ssub.s32 %s11, 1
        %p150 = scmp.lt.s32.totalorder %s20, 1
        %s151 = scalar_select %p150, %s20, 1
        %s152 = smul.addr %s151, 41
        %s153 = smul.addr %s152, 4
        %s154 = scalar_lea.vmem %s0, %s153
        %p155 = pneg %p49
        %p156 = pneg %p46
        %p157 = scmp.lt.s32.totalorder %s20, 1
        %s158 = scalar_select %p157, %s20, 1
        %p159 = scmp.lt.s32.totalorder %s21, 0
        %s160 = scalar_select %p159, %s21, 0
        %s161 = smul.addr %s158, 9
        %s162 = sadd.s32 %s160, %s161
        %s163 = smul.addr %s162, 2
        %s164 = scalar_lea.vmem %s1, %s163
        %p165 = pneg %p77
        %p166 = pneg %p74
        %p167 = pneg %p105
        %p168 = pneg %p102
        %s169 = sand.u32 %s92, 1
        %s170 = scalar_lea.sflag [#allocation3], %s169
        %s171 = sand.u32 %s92, 1
        %s172 = smul.addr %s171, 144
        %s173 = scalar_lea.vmem [#allocation2], %s172
        %p174 = scmp.lt.s32.totalorder %s20, 1
        %s175 = scalar_select %p174, %s20, 1
        %s176 = smul.addr %s175, 41
        %s177 = smul.addr %s176, 4
        %s178 = scalar_lea.vmem %s0, %s177
        %p179 = scmp.lt.s32.totalorder %s20, 1
        %s180 = scalar_select %p179, %s20, 1
        %p181 = scmp.lt.s32.totalorder %s21, 0
        %s182 = scalar_select %p181, %s21, 0
        %s183 = smul.addr %s180, 9
        %s184 = sadd.s32 %s182, %s183
        %s185 = smul.addr %s184, 2
        %s186 = scalar_lea.vmem %s1, %s185
        %v188 = vld [vmem:[%s178] sm:$0xf]
        %v189 = vld [vmem:[%s178 + $0x4] sm:$0xf]
        %v190 = vld [vmem:[%s178 + $0x8] sm:$0xf]
        %v191 = vld [vmem:[%s178 + $0xc] sm:$0xf]
        %v192 = vld [vmem:[%s178 + $0x10] sm:$0xf]
        %v193 = vld [vmem:[%s178 + $0x14] sm:$0xf]
        %v194 = vld [vmem:[%s178 + $0x18] sm:$0xf]
        %v195 = vld [vmem:[%s178 + $0x1c] sm:$0xf]
        %v196 = vld [vmem:[%s178 + $0x20] sm:$0xf]
        %v197 = vld [vmem:[%s178 + $0x24] sm:$0xf]
        %v198 = vld [vmem:[%s178 + $0x28] sm:$0xf]
        %v199 = vld [vmem:[%s178 + $0x2c] sm:$0xf]
        %v200 = vld [vmem:[%s178 + $0x30] sm:$0xf]
        %v201 = vld [vmem:[%s178 + $0x34] sm:$0xf]
        %v202 = vld [vmem:[%s178 + $0x38] sm:$0xf]
        %v203 = vld [vmem:[%s178 + $0x3c] sm:$0xf]
        %v204 = vld [vmem:[%s178 + $0x40] sm:$0xf]
        %v205 = vld [vmem:[%s178 + $0x44] sm:$0xf]
        %v206 = vld [vmem:[%s178 + $0x48] sm:$0xf]
        %v207 = vld [vmem:[%s178 + $0x4c] sm:$0xf]
        %v208 = vld [vmem:[%s178 + $0x50] sm:$0xf]
        %v209 = vld [vmem:[%s178 + $0x54] sm:$0xf]
        %v210 = vld [vmem:[%s178 + $0x58] sm:$0xf]
        %v211 = vld [vmem:[%s178 + $0x5c] sm:$0xf]
        %v212 = vld [vmem:[%s178 + $0x60] sm:$0xf]
        %v213 = vld [vmem:[%s178 + $0x64] sm:$0xf]
        %v214 = vld [vmem:[%s178 + $0x68] sm:$0xf]
        %v215 = vld [vmem:[%s178 + $0x6c] sm:$0xf]
        %v216 = vld [vmem:[%s178 + $0x70] sm:$0xf]
        %v217 = vld [vmem:[%s178 + $0x74] sm:$0xf]
        %v218 = vld [vmem:[%s178 + $0x78] sm:$0xf]
        %v219 = vld [vmem:[%s178 + $0x7c] sm:$0xf]
        %v220 = vld [vmem:[%s178 + $0x80] sm:$0xf]
        %v221 = vld [vmem:[%s178 + $0x84] sm:$0xf]
        %v222 = vld [vmem:[%s178 + $0x88] sm:$0xf]
        %v223 = vld [vmem:[%s178 + $0x8c] sm:$0xf]
        %v224 = vld [vmem:[%s186] sm:$0x3]
        %v225 = vld [vmem:[%s178 + $0x90] sm:$0x1]
        %s226 = scalar_lea.vmem %s186, 2
        %v227 = vld [vmem:[%s226] sm:$0x3]
        %v265 = vunpack.c.l.b16 %v188
        %v266 = vunpack.c.l.b16 %v189
        %v267 = vunpack.c.l.b16 %v190
        %v268 = vunpack.c.l.b16 %v191
        %v269 = vunpack.c.l.b16 %v192
        %v270 = vunpack.c.l.b16 %v193
        %v271 = vunpack.c.l.b16 %v194
        %v272 = vunpack.c.l.b16 %v195
        %v273 = vunpack.c.l.b16 %v196
        %v274 = vunpack.c.l.b16 %v197
        %v275 = vunpack.c.l.b16 %v198
        %v276 = vunpack.c.l.b16 %v199
        %v277 = vunpack.c.l.b16 %v200
        %v278 = vunpack.c.l.b16 %v201
        %v279 = vunpack.c.l.b16 %v202
        %v280 = vunpack.c.l.b16 %v203
        %v281 = vunpack.c.l.b16 %v204
        %v282 = vunpack.c.l.b16 %v205
        %v283 = vunpack.c.l.b16 %v206
        %v284 = vunpack.c.l.b16 %v207
        %v285 = vunpack.c.l.b16 %v208
        %v286 = vunpack.c.l.b16 %v209
        %v287 = vunpack.c.l.b16 %v210
        %v288 = vunpack.c.l.b16 %v211
        %v289 = vunpack.c.l.b16 %v212
        %v290 = vunpack.c.l.b16 %v213
        %v291 = vunpack.c.l.b16 %v214
        %v292 = vunpack.c.l.b16 %v215
        %v293 = vunpack.c.l.b16 %v216
        %v294 = vunpack.c.l.b16 %v217
        %v295 = vunpack.c.l.b16 %v218
        %v296 = vunpack.c.l.b16 %v219
        %v297 = vunpack.c.l.b16 %v220
        %v298 = vunpack.c.l.b16 %v221
        %v299 = vunpack.c.l.b16 %v222
        %v300 = vunpack.c.l.b16 %v223
        %v301 = vunpack.c.l.b16 %v225
        %v302 = vpack.c.b16 %v266, %v265
        %v303 = vpack.c.b16 %v268, %v267
        %v304 = vpack.c.b16 %v270, %v269
        %v305 = vpack.c.b16 %v272, %v271
        %v306 = vpack.c.b16 %v274, %v273
        %v307 = vpack.c.b16 %v276, %v275
        %v308 = vpack.c.b16 %v278, %v277
        %v309 = vpack.c.b16 %v280, %v279
        %v310 = vpack.c.b16 %v282, %v281
        %v311 = vpack.c.b16 %v284, %v283
        %v312 = vpack.c.b16 %v286, %v285
        %v313 = vpack.c.b16 %v288, %v287
        %v314 = vpack.c.b16 %v290, %v289
        %v315 = vpack.c.b16 %v292, %v291
        %v316 = vpack.c.b16 %v294, %v293
        %v317 = vpack.c.b16 %v296, %v295
        %v318 = vpack.c.b16 %v298, %v297
        %v319 = vpack.c.b16 %v300, %v299
        %v320 = vpack.c.b16 %v301, %v301
        %vm321 = vsmask.f32 7424
        %v323 = vshrl.u32 %v302, 16
        %v325 = vshll.u32 %v302, 16
        %v327 = vrot.slane %v325, 1
        %v328 = vor.u32 %v323, %v327
        %v330 = vshll.u32 %v303, 16
        %v332 = vrot.slane %v330, 1
        %v333 = vsel %vm321, %v328, %v332
        %v334 = vshrl.u32 %v303, 16
        %v336 = vor.u32 %v334, %v332
        %v338 = vshll.u32 %v304, 16
        %v340 = vrot.slane %v338, 1
        %v341 = vsel %vm321, %v336, %v340
        %v342 = vshrl.u32 %v304, 16
        %v344 = vor.u32 %v342, %v340
        %v346 = vshll.u32 %v305, 16
        %v348 = vrot.slane %v346, 1
        %v349 = vsel %vm321, %v344, %v348
        %v350 = vshrl.u32 %v305, 16
        %v352 = vor.u32 %v350, %v348
        %v354 = vshll.u32 %v306, 16
        %v356 = vrot.slane %v354, 1
        %v357 = vsel %vm321, %v352, %v356
        %v358 = vshrl.u32 %v306, 16
        %v360 = vor.u32 %v358, %v356
        %v362 = vshll.u32 %v307, 16
        %v364 = vrot.slane %v362, 1
        %v365 = vsel %vm321, %v360, %v364
        %v366 = vshrl.u32 %v307, 16
        %v368 = vor.u32 %v366, %v364
        %v370 = vshll.u32 %v308, 16
        %v372 = vrot.slane %v370, 1
        %v373 = vsel %vm321, %v368, %v372
        %v374 = vshrl.u32 %v308, 16
        %v376 = vor.u32 %v374, %v372
        %v378 = vshll.u32 %v309, 16
        %v380 = vrot.slane %v378, 1
        %v381 = vsel %vm321, %v376, %v380
        %v382 = vshrl.u32 %v309, 16
        %v384 = vor.u32 %v382, %v380
        %v386 = vshll.u32 %v310, 16
        %v388 = vrot.slane %v386, 1
        %v389 = vsel %vm321, %v384, %v388
        %v390 = vshrl.u32 %v310, 16
        %v392 = vor.u32 %v390, %v388
        %v394 = vshll.u32 %v311, 16
        %v396 = vrot.slane %v394, 1
        %v397 = vsel %vm321, %v392, %v396
        %v398 = vshrl.u32 %v311, 16
        %v400 = vor.u32 %v398, %v396
        %v402 = vshll.u32 %v312, 16
        %v404 = vrot.slane %v402, 1
        %v405 = vsel %vm321, %v400, %v404
        %v406 = vshrl.u32 %v312, 16
        %v408 = vor.u32 %v406, %v404
        %v410 = vshll.u32 %v313, 16
        %v412 = vrot.slane %v410, 1
        %v413 = vsel %vm321, %v408, %v412
        %v414 = vshrl.u32 %v313, 16
        %v416 = vor.u32 %v414, %v412
        %v418 = vshll.u32 %v314, 16
        %v420 = vrot.slane %v418, 1
        %v421 = vsel %vm321, %v416, %v420
        %v422 = vshrl.u32 %v314, 16
        %v424 = vor.u32 %v422, %v420
        %v426 = vshll.u32 %v315, 16
        %v428 = vrot.slane %v426, 1
        %v429 = vsel %vm321, %v424, %v428
        %v430 = vshrl.u32 %v315, 16
        %v432 = vor.u32 %v430, %v428
        %v434 = vshll.u32 %v316, 16
        %v436 = vrot.slane %v434, 1
        %v437 = vsel %vm321, %v432, %v436
        %v438 = vshrl.u32 %v316, 16
        %v440 = vor.u32 %v438, %v436
        %v442 = vshll.u32 %v317, 16
        %v444 = vrot.slane %v442, 1
        %v445 = vsel %vm321, %v440, %v444
        %v446 = vshrl.u32 %v317, 16
        %v448 = vor.u32 %v446, %v444
        %v450 = vshll.u32 %v318, 16
        %v452 = vrot.slane %v450, 1
        %v453 = vsel %vm321, %v448, %v452
        %v454 = vshrl.u32 %v318, 16
        %v456 = vor.u32 %v454, %v452
        %v458 = vshll.u32 %v319, 16
        %v460 = vrot.slane %v458, 1
        %v461 = vsel %vm321, %v456, %v460
        %v462 = vshrl.u32 %v319, 16
        %v464 = vor.u32 %v462, %v460
        %v466 = vshll.u32 %v320, 16
        %v468 = vrot.slane %v466, 1
        %v469 = vsel %vm321, %v464, %v468
        %vm470 = vcmask 31744
        %v472 = vsel %vm470, %v333, 0
        %v475 = vsel %vm470, %v341, 0
        %v478 = vsel %vm470, %v349, 0
        %v481 = vsel %vm470, %v357, 0
        %v484 = vsel %vm470, %v365, 0
        %v487 = vsel %vm470, %v373, 0
        %v490 = vsel %vm470, %v381, 0
        %v493 = vsel %vm470, %v389, 0
        %v496 = vsel %vm470, %v397, 0
        %v499 = vsel %vm470, %v405, 0
        %v502 = vsel %vm470, %v413, 0
        %v505 = vsel %vm470, %v421, 0
        %v508 = vsel %vm470, %v429, 0
        %v511 = vsel %vm470, %v437, 0
        %v514 = vsel %vm470, %v445, 0
        %v517 = vsel %vm470, %v453, 0
        %v520 = vsel %vm470, %v461, 0
        %v523 = vsel %vm470, %v469, 0
        %vm525 = vcmask 1041408
        %v527 = vsel %vm525, %v227, 0
        %529 = vmatprep.subr.bf16.mxu0 0
        %530 = vmatpush1.bf16.msra.mxu0 0
        %531 = vmatprep.subr.bf16.mxu0 0
        %532 = vmatpush1.bf16.msra.mxu0 0
        %533 = vmatprep.subr.bf16.mxu0 0
        %534 = vmatpush1.bf16.msra.mxu0 0
        %535 = vmatprep.subr.bf16.mxu0 0
        %536 = vmatpush1.bf16.msra.mxu0 0
        %537 = vmatprep.subr.bf16.mxu0 0
        %538 = vmatpush1.bf16.msra.mxu0 0
        %539 = vmatprep.subr.bf16.mxu0 0
        %540 = vmatpush1.bf16.msra.mxu0 0
        %541 = vmatprep.subr.bf16.mxu0 0
        %542 = vmatpush1.bf16.msra.mxu0 0
        %543 = vmatprep.subr.bf16.mxu0 0
        %544 = vmatpush1.bf16.msra.mxu0 %v527
        %545 = vmatprep.subr.bf16.mxu0 0
        %546 = vmatpush2.bf16.msra.mxu0 0
        %547 = vmatprep.subr.bf16.mxu0 0
        %548 = vmatpush2.bf16.msra.mxu0 0
        %549 = vmatprep.subr.bf16.mxu0 0
        %550 = vmatpush2.bf16.msra.mxu0 0
        %551 = vmatprep.subr.bf16.mxu0 0
        %552 = vmatpush2.bf16.msra.mxu0 0
        %553 = vmatprep.subr.bf16.mxu0 0
        %554 = vmatpush2.bf16.msra.mxu0 0
        %555 = vmatprep.subr.bf16.mxu0 0
        %556 = vmatpush2.bf16.msra.mxu0 0
        %557 = vmatprep.subr.bf16.mxu0 0
        %558 = vmatpush2.bf16.msra.mxu0 0
        %559 = vmatprep.subr.bf16.mxu0 0
        %560 = vmatpush2.bf16.msra.mxu0 0
        %561 = vmatprep.mubr.bf16.mxu0 0
        %562 = vmatmul.mubr.bf16.gmra.mxu0 %v472
        %v563 = vpop.f32.mrf.mxu0
        %v564 = vadd.f32 0.0, %v563
        %v565 = vpop.f32.mrf.mxu0
        %v566 = vpop.f32.mrf.mxu0
        %v567 = vadd.f32 0.0, %v566
        %v568 = vpop.f32.mrf.mxu0
        %569 = vmatprep.mubr.bf16.mxu0 0
        %570 = vmatmul.mubr.bf16.gmra.mxu0 %v475
        %v571 = vpop.f32.mrf.mxu0
        %v572 = vadd.f32 0.0, %v571
        %v573 = vpop.f32.mrf.mxu0
        %v574 = vpop.f32.mrf.mxu0
        %v575 = vadd.f32 0.0, %v574
        %v576 = vpop.f32.mrf.mxu0
        %577 = vmatprep.mubr.bf16.mxu0 0
        %578 = vmatmul.mubr.bf16.gmra.mxu0 %v478
        %v579 = vpop.f32.mrf.mxu0
        %v580 = vadd.f32 0.0, %v579
        %v581 = vpop.f32.mrf.mxu0
        %v582 = vpop.f32.mrf.mxu0
        %v583 = vadd.f32 0.0, %v582
        %v584 = vpop.f32.mrf.mxu0
        %585 = vmatprep.mubr.bf16.mxu0 0
        %586 = vmatmul.mubr.bf16.gmra.mxu0 %v481
        %v587 = vpop.f32.mrf.mxu0
        %v588 = vadd.f32 0.0, %v587
        %v589 = vpop.f32.mrf.mxu0
        %v590 = vpop.f32.mrf.mxu0
        %v591 = vadd.f32 0.0, %v590
        %v592 = vpop.f32.mrf.mxu0
        %593 = vmatprep.mubr.bf16.mxu0 0
        %594 = vmatmul.mubr.bf16.gmra.mxu0 %v484
        %v595 = vpop.f32.mrf.mxu0
        %v596 = vadd.f32 0.0, %v595
        %v597 = vpop.f32.mrf.mxu0
        %v598 = vpop.f32.mrf.mxu0
        %v599 = vadd.f32 0.0, %v598
        %v600 = vpop.f32.mrf.mxu0
        %601 = vmatprep.mubr.bf16.mxu0 0
        %602 = vmatmul.mubr.bf16.gmra.mxu0 %v487
        %v603 = vpop.f32.mrf.mxu0
        %v604 = vadd.f32 0.0, %v603
        %v605 = vpop.f32.mrf.mxu0
        %v606 = vpop.f32.mrf.mxu0
        %v607 = vadd.f32 0.0, %v606
        %v608 = vpop.f32.mrf.mxu0
        %609 = vmatprep.mubr.bf16.mxu0 0
        %610 = vmatmul.mubr.bf16.gmra.mxu0 %v490
        %v611 = vpop.f32.mrf.mxu0
        %v612 = vadd.f32 0.0, %v611
        %v613 = vpop.f32.mrf.mxu0
        %v614 = vpop.f32.mrf.mxu0
        %v615 = vadd.f32 0.0, %v614
        %v616 = vpop.f32.mrf.mxu0
        %617 = vmatprep.mubr.bf16.mxu0 0
        %618 = vmatmul.mubr.bf16.gmra.mxu0 %v493
        %v619 = vpop.f32.mrf.mxu0
        %v620 = vadd.f32 0.0, %v619
        %v621 = vpop.f32.mrf.mxu0
        %v622 = vpop.f32.mrf.mxu0
        %v623 = vadd.f32 0.0, %v622
        %v624 = vpop.f32.mrf.mxu0
        %625 = vmatprep.mubr.bf16.mxu0 0
        %626 = vmatmul.mubr.bf16.gmra.mxu0 %v496
        %v627 = vpop.f32.mrf.mxu0
        %v628 = vadd.f32 0.0, %v627
        %v629 = vpop.f32.mrf.mxu0
        %v630 = vpop.f32.mrf.mxu0
        %v631 = vadd.f32 0.0, %v630
        %v632 = vpop.f32.mrf.mxu0
        %633 = vmatprep.mubr.bf16.mxu0 0
        %634 = vmatmul.mubr.bf16.gmra.mxu0 %v499
        %v635 = vpop.f32.mrf.mxu0
        %v636 = vadd.f32 0.0, %v635
        %v637 = vpop.f32.mrf.mxu0
        %v638 = vpop.f32.mrf.mxu0
        %v639 = vadd.f32 0.0, %v638
        %v640 = vpop.f32.mrf.mxu0
        %641 = vmatprep.mubr.bf16.mxu0 0
        %642 = vmatmul.mubr.bf16.gmra.mxu0 %v502
        %v643 = vpop.f32.mrf.mxu0
        %v644 = vadd.f32 0.0, %v643
        %v645 = vpop.f32.mrf.mxu0
        %v646 = vpop.f32.mrf.mxu0
        %v647 = vadd.f32 0.0, %v646
        %v648 = vpop.f32.mrf.mxu0
        %649 = vmatprep.mubr.bf16.mxu0 0
        %650 = vmatmul.mubr.bf16.gmra.mxu0 %v505
        %v651 = vpop.f32.mrf.mxu0
        %v652 = vadd.f32 0.0, %v651
        %v653 = vpop.f32.mrf.mxu0
        %v654 = vpop.f32.mrf.mxu0
        %v655 = vadd.f32 0.0, %v654
        %v656 = vpop.f32.mrf.mxu0
        %657 = vmatprep.mubr.bf16.mxu0 0
        %658 = vmatmul.mubr.bf16.gmra.mxu0 %v508
        %v659 = vpop.f32.mrf.mxu0
        %v660 = vadd.f32 0.0, %v659
        %v661 = vpop.f32.mrf.mxu0
        %v662 = vpop.f32.mrf.mxu0
        %v663 = vadd.f32 0.0, %v662
        %v664 = vpop.f32.mrf.mxu0
        %665 = vmatprep.mubr.bf16.mxu0 0
        %666 = vmatmul.mubr.bf16.gmra.mxu0 %v511
        %v667 = vpop.f32.mrf.mxu0
        %v668 = vadd.f32 0.0, %v667
        %v669 = vpop.f32.mrf.mxu0
        %v670 = vpop.f32.mrf.mxu0
        %v671 = vadd.f32 0.0, %v670
        %v672 = vpop.f32.mrf.mxu0
        %673 = vmatprep.mubr.bf16.mxu0 0
        %674 = vmatmul.mubr.bf16.gmra.mxu0 %v514
        %v675 = vpop.f32.mrf.mxu0
        %v676 = vadd.f32 0.0, %v675
        %v677 = vpop.f32.mrf.mxu0
        %v678 = vpop.f32.mrf.mxu0
        %v679 = vadd.f32 0.0, %v678
        %v680 = vpop.f32.mrf.mxu0
        %681 = vmatprep.mubr.bf16.mxu0 0
        %682 = vmatmul.mubr.bf16.gmra.mxu0 %v517
        %v683 = vpop.f32.mrf.mxu0
        %v684 = vadd.f32 0.0, %v683
        %v685 = vpop.f32.mrf.mxu0
        %v686 = vpop.f32.mrf.mxu0
        %v687 = vadd.f32 0.0, %v686
        %v688 = vpop.f32.mrf.mxu0
        %689 = vmatprep.mubr.bf16.mxu0 0
        %690 = vmatmul.mubr.bf16.gmra.mxu0 %v520
        %v691 = vpop.f32.mrf.mxu0
        %v692 = vadd.f32 0.0, %v691
        %v693 = vpop.f32.mrf.mxu0
        %v694 = vpop.f32.mrf.mxu0
        %v695 = vadd.f32 0.0, %v694
        %v696 = vpop.f32.mrf.mxu0
        %697 = vmatprep.mubr.bf16.mxu0 0
        %698 = vmatmul.mubr.bf16.gmra.mxu0 %v523
        %v699 = vpop.f32.mrf.mxu0
        %v700 = vadd.f32 0.0, %v699
        %v701 = vpop.f32.mrf.mxu0
        %v702 = vpop.f32.mrf.mxu0
        %v703 = vadd.f32 0.0, %v702
        %v704 = vpop.f32.mrf.mxu0
        %705 = vdwg.mxu0
        %v706 = vsel %vm470, %v302, 0
        %v708 = vsel %vm470, %v303, 0
        %v710 = vsel %vm470, %v304, 0
        %v712 = vsel %vm470, %v305, 0
        %v714 = vsel %vm470, %v306, 0
        %v716 = vsel %vm470, %v307, 0
        %v718 = vsel %vm470, %v308, 0
        %v720 = vsel %vm470, %v309, 0
        %v722 = vsel %vm470, %v310, 0
        %v724 = vsel %vm470, %v311, 0
        %v726 = vsel %vm470, %v312, 0
        %v728 = vsel %vm470, %v313, 0
        %v730 = vsel %vm470, %v314, 0
        %v732 = vsel %vm470, %v315, 0
        %v734 = vsel %vm470, %v316, 0
        %v736 = vsel %vm470, %v317, 0
        %v738 = vsel %vm470, %v318, 0
        %v740 = vsel %vm470, %v319, 0
        %v743 = vsel %vm525, %v224, 0
        %745 = vmatprep.subr.bf16.mxu0 0
        %746 = vmatpush1.bf16.msra.mxu0 0
        %747 = vmatprep.subr.bf16.mxu0 0
        %748 = vmatpush1.bf16.msra.mxu0 0
        %749 = vmatprep.subr.bf16.mxu0 0
        %750 = vmatpush1.bf16.msra.mxu0 0
        %751 = vmatprep.subr.bf16.mxu0 0
        %752 = vmatpush1.bf16.msra.mxu0 0
        %753 = vmatprep.subr.bf16.mxu0 0
        %754 = vmatpush1.bf16.msra.mxu0 0
        %755 = vmatprep.subr.bf16.mxu0 0
        %756 = vmatpush1.bf16.msra.mxu0 0
        %757 = vmatprep.subr.bf16.mxu0 0
        %758 = vmatpush1.bf16.msra.mxu0 0
        %759 = vmatprep.subr.bf16.mxu0 0
        %760 = vmatpush1.bf16.msra.mxu0 %v743
        %761 = vmatprep.subr.bf16.mxu0 0
        %762 = vmatpush2.bf16.msra.mxu0 0
        %763 = vmatprep.subr.bf16.mxu0 0
        %764 = vmatpush2.bf16.msra.mxu0 0
        %765 = vmatprep.subr.bf16.mxu0 0
        %766 = vmatpush2.bf16.msra.mxu0 0
        %767 = vmatprep.subr.bf16.mxu0 0
        %768 = vmatpush2.bf16.msra.mxu0 0
        %769 = vmatprep.subr.bf16.mxu0 0
        %770 = vmatpush2.bf16.msra.mxu0 0
        %771 = vmatprep.subr.bf16.mxu0 0
        %772 = vmatpush2.bf16.msra.mxu0 0
        %773 = vmatprep.subr.bf16.mxu0 0
        %774 = vmatpush2.bf16.msra.mxu0 0
        %775 = vmatprep.subr.bf16.mxu0 0
        %776 = vmatpush2.bf16.msra.mxu0 0
        %777 = vmatprep.mubr.bf16.mxu0 0
        %778 = vmatmul.mubr.bf16.gmra.mxu0 %v706
        %v779 = vpop.f32.mrf.mxu0
        %v780 = vadd.f32 %v564, %v779
        %v781 = vpop.f32.mrf.mxu0
        %v782 = vpop.f32.mrf.mxu0
        %v783 = vadd.f32 %v567, %v782
        %v784 = vpop.f32.mrf.mxu0
        %785 = vmatprep.mubr.bf16.mxu0 0
        %786 = vmatmul.mubr.bf16.gmra.mxu0 %v708
        %v787 = vpop.f32.mrf.mxu0
        %v788 = vadd.f32 %v572, %v787
        %v789 = vpop.f32.mrf.mxu0
        %v790 = vpop.f32.mrf.mxu0
        %v791 = vadd.f32 %v575, %v790
        %v792 = vpop.f32.mrf.mxu0
        %793 = vmatprep.mubr.bf16.mxu0 0
        %794 = vmatmul.mubr.bf16.gmra.mxu0 %v710
        %v795 = vpop.f32.mrf.mxu0
        %v796 = vadd.f32 %v580, %v795
        %v797 = vpop.f32.mrf.mxu0
        %v798 = vpop.f32.mrf.mxu0
        %v799 = vadd.f32 %v583, %v798
        %v800 = vpop.f32.mrf.mxu0
        %801 = vmatprep.mubr.bf16.mxu0 0
        %802 = vmatmul.mubr.bf16.gmra.mxu0 %v712
        %v803 = vpop.f32.mrf.mxu0
        %v804 = vadd.f32 %v588, %v803
        %v805 = vpop.f32.mrf.mxu0
        %v806 = vpop.f32.mrf.mxu0
        %v807 = vadd.f32 %v591, %v806
        %v808 = vpop.f32.mrf.mxu0
        %809 = vmatprep.mubr.bf16.mxu0 0
        %810 = vmatmul.mubr.bf16.gmra.mxu0 %v714
        %v811 = vpop.f32.mrf.mxu0
        %v812 = vadd.f32 %v596, %v811
        %v813 = vpop.f32.mrf.mxu0
        %v814 = vpop.f32.mrf.mxu0
        %v815 = vadd.f32 %v599, %v814
        %v816 = vpop.f32.mrf.mxu0
        %817 = vmatprep.mubr.bf16.mxu0 0
        %818 = vmatmul.mubr.bf16.gmra.mxu0 %v716
        %v819 = vpop.f32.mrf.mxu0
        %v820 = vadd.f32 %v604, %v819
        %v821 = vpop.f32.mrf.mxu0
        %v822 = vpop.f32.mrf.mxu0
        %v823 = vadd.f32 %v607, %v822
        %v824 = vpop.f32.mrf.mxu0
        %825 = vmatprep.mubr.bf16.mxu0 0
        %826 = vmatmul.mubr.bf16.gmra.mxu0 %v718
        %v827 = vpop.f32.mrf.mxu0
        %v828 = vadd.f32 %v612, %v827
        %v829 = vpop.f32.mrf.mxu0
        %v830 = vpop.f32.mrf.mxu0
        %v831 = vadd.f32 %v615, %v830
        %v832 = vpop.f32.mrf.mxu0
        %833 = vmatprep.mubr.bf16.mxu0 0
        %834 = vmatmul.mubr.bf16.gmra.mxu0 %v720
        %v835 = vpop.f32.mrf.mxu0
        %v836 = vadd.f32 %v620, %v835
        %v837 = vpop.f32.mrf.mxu0
        %v838 = vpop.f32.mrf.mxu0
        %v839 = vadd.f32 %v623, %v838
        %v840 = vpop.f32.mrf.mxu0
        %841 = vmatprep.mubr.bf16.mxu0 0
        %842 = vmatmul.mubr.bf16.gmra.mxu0 %v722
        %v843 = vpop.f32.mrf.mxu0
        %v844 = vadd.f32 %v628, %v843
        %v845 = vpop.f32.mrf.mxu0
        %v846 = vpop.f32.mrf.mxu0
        %v847 = vadd.f32 %v631, %v846
        %v848 = vpop.f32.mrf.mxu0
        %849 = vmatprep.mubr.bf16.mxu0 0
        %850 = vmatmul.mubr.bf16.gmra.mxu0 %v724
        %v851 = vpop.f32.mrf.mxu0
        %v852 = vadd.f32 %v636, %v851
        %v853 = vpop.f32.mrf.mxu0
        %v854 = vpop.f32.mrf.mxu0
        %v855 = vadd.f32 %v639, %v854
        %v856 = vpop.f32.mrf.mxu0
        %857 = vmatprep.mubr.bf16.mxu0 0
        %858 = vmatmul.mubr.bf16.gmra.mxu0 %v726
        %v859 = vpop.f32.mrf.mxu0
        %v860 = vadd.f32 %v644, %v859
        %v861 = vpop.f32.mrf.mxu0
        %v862 = vpop.f32.mrf.mxu0
        %v863 = vadd.f32 %v647, %v862
        %v864 = vpop.f32.mrf.mxu0
        %865 = vmatprep.mubr.bf16.mxu0 0
        %866 = vmatmul.mubr.bf16.gmra.mxu0 %v728
        %v867 = vpop.f32.mrf.mxu0
        %v868 = vadd.f32 %v652, %v867
        %v869 = vpop.f32.mrf.mxu0
        %v870 = vpop.f32.mrf.mxu0
        %v871 = vadd.f32 %v655, %v870
        %v872 = vpop.f32.mrf.mxu0
        %873 = vmatprep.mubr.bf16.mxu0 0
        %874 = vmatmul.mubr.bf16.gmra.mxu0 %v730
        %v875 = vpop.f32.mrf.mxu0
        %v876 = vadd.f32 %v660, %v875
        %v877 = vpop.f32.mrf.mxu0
        %v878 = vpop.f32.mrf.mxu0
        %v879 = vadd.f32 %v663, %v878
        %v880 = vpop.f32.mrf.mxu0
        %881 = vmatprep.mubr.bf16.mxu0 0
        %882 = vmatmul.mubr.bf16.gmra.mxu0 %v732
        %v883 = vpop.f32.mrf.mxu0
        %v884 = vadd.f32 %v668, %v883
        %v885 = vpop.f32.mrf.mxu0
        %v886 = vpop.f32.mrf.mxu0
        %v887 = vadd.f32 %v671, %v886
        %v888 = vpop.f32.mrf.mxu0
        %889 = vmatprep.mubr.bf16.mxu0 0
        %890 = vmatmul.mubr.bf16.gmra.mxu0 %v734
        %v891 = vpop.f32.mrf.mxu0
        %v892 = vadd.f32 %v676, %v891
        %v893 = vpop.f32.mrf.mxu0
        %v894 = vpop.f32.mrf.mxu0
        %v895 = vadd.f32 %v679, %v894
        %v896 = vpop.f32.mrf.mxu0
        %897 = vmatprep.mubr.bf16.mxu0 0
        %898 = vmatmul.mubr.bf16.gmra.mxu0 %v736
        %v899 = vpop.f32.mrf.mxu0
        %v900 = vadd.f32 %v684, %v899
        %v901 = vpop.f32.mrf.mxu0
        %v902 = vpop.f32.mrf.mxu0
        %v903 = vadd.f32 %v687, %v902
        %v904 = vpop.f32.mrf.mxu0
        %905 = vmatprep.mubr.bf16.mxu0 0
        %906 = vmatmul.mubr.bf16.gmra.mxu0 %v738
        %v907 = vpop.f32.mrf.mxu0
        %v908 = vadd.f32 %v692, %v907
        %v909 = vpop.f32.mrf.mxu0
        %v910 = vpop.f32.mrf.mxu0
        %v911 = vadd.f32 %v695, %v910
        %v912 = vpop.f32.mrf.mxu0
        %913 = vmatprep.mubr.bf16.mxu0 0
        %914 = vmatmul.mubr.bf16.gmra.mxu0 %v740
        %v915 = vpop.f32.mrf.mxu0
        %v916 = vadd.f32 %v700, %v915
        %v917 = vpop.f32.mrf.mxu0
        %v918 = vpop.f32.mrf.mxu0
        %v919 = vadd.f32 %v703, %v918
        %v920 = vpop.f32.mrf.mxu0
        %921 = vdwg.mxu0
        %v922 = vld [vmem:[%s178] sm:$0xe]
        %s923 = scalar_lea.vmem %s186, 4
        %v924 = vld [vmem:[%s923] sm:$0x3]
        %v926 = vunpack.c.l.b16 %v922
        %v927 = vpack.c.b16 %v266, %v926
        %vm928 = vcmask 1046528
        %v929 = vrot.slane %v927, 1
        %v930 = vrot.slane %v303, 1
        %v931 = vsel %vm928, %v929, %v930
        %v932 = vrot.slane %v304, 1
        %v933 = vsel %vm928, %v930, %v932
        %v934 = vrot.slane %v305, 1
        %v935 = vsel %vm928, %v932, %v934
        %v936 = vrot.slane %v306, 1
        %v937 = vsel %vm928, %v934, %v936
        %v938 = vrot.slane %v307, 1
        %v939 = vsel %vm928, %v936, %v938
        %v940 = vrot.slane %v308, 1
        %v941 = vsel %vm928, %v938, %v940
        %v942 = vrot.slane %v309, 1
        %v943 = vsel %vm928, %v940, %v942
        %v944 = vrot.slane %v310, 1
        %v945 = vsel %vm928, %v942, %v944
        %v946 = vrot.slane %v311, 1
        %v947 = vsel %vm928, %v944, %v946
        %v948 = vrot.slane %v312, 1
        %v949 = vsel %vm928, %v946, %v948
        %v950 = vrot.slane %v313, 1
        %v951 = vsel %vm928, %v948, %v950
        %v952 = vrot.slane %v314, 1
        %v953 = vsel %vm928, %v950, %v952
        %v954 = vrot.slane %v315, 1
        %v955 = vsel %vm928, %v952, %v954
        %v956 = vrot.slane %v316, 1
        %v957 = vsel %vm928, %v954, %v956
        %v958 = vrot.slane %v317, 1
        %v959 = vsel %vm928, %v956, %v958
        %v960 = vrot.slane %v318, 1
        %v961 = vsel %vm928, %v958, %v960
        %v962 = vrot.slane %v319, 1
        %v963 = vsel %vm928, %v960, %v962
        %v964 = vrot.slane %v320, 1
        %v965 = vsel %vm928, %v962, %v964
        %v967 = vsel %vm470, %v931, 0
        %v970 = vsel %vm470, %v933, 0
        %v973 = vsel %vm470, %v935, 0
        %v976 = vsel %vm470, %v937, 0
        %v979 = vsel %vm470, %v939, 0
        %v982 = vsel %vm470, %v941, 0
        %v985 = vsel %vm470, %v943, 0
        %v988 = vsel %vm470, %v945, 0
        %v991 = vsel %vm470, %v947, 0
        %v994 = vsel %vm470, %v949, 0
        %v997 = vsel %vm470, %v951, 0
        %v1000 = vsel %vm470, %v953, 0
        %v1003 = vsel %vm470, %v955, 0
        %v1006 = vsel %vm470, %v957, 0
        %v1009 = vsel %vm470, %v959, 0
        %v1012 = vsel %vm470, %v961, 0
        %v1015 = vsel %vm470, %v963, 0
        %v1018 = vsel %vm470, %v965, 0
        %v1021 = vsel %vm525, %v924, 0
        %1023 = vmatprep.subr.bf16.mxu0 0
        %1024 = vmatpush1.bf16.msra.mxu0 0
        %1025 = vmatprep.subr.bf16.mxu0 0
        %1026 = vmatpush1.bf16.msra.mxu0 0
        %1027 = vmatprep.subr.bf16.mxu0 0
        %1028 = vmatpush1.bf16.msra.mxu0 0
        %1029 = vmatprep.subr.bf16.mxu0 0
        %1030 = vmatpush1.bf16.msra.mxu0 0
        %1031 = vmatprep.subr.bf16.mxu0 0
        %1032 = vmatpush1.bf16.msra.mxu0 0
        %1033 = vmatprep.subr.bf16.mxu0 0
        %1034 = vmatpush1.bf16.msra.mxu0 0
        %1035 = vmatprep.subr.bf16.mxu0 0
        %1036 = vmatpush1.bf16.msra.mxu0 0
        %1037 = vmatprep.subr.bf16.mxu0 0
        %1038 = vmatpush1.bf16.msra.mxu0 %v1021
        %1039 = vmatprep.subr.bf16.mxu0 0
        %1040 = vmatpush2.bf16.msra.mxu0 0
        %1041 = vmatprep.subr.bf16.mxu0 0
        %1042 = vmatpush2.bf16.msra.mxu0 0
        %1043 = vmatprep.subr.bf16.mxu0 0
        %1044 = vmatpush2.bf16.msra.mxu0 0
        %1045 = vmatprep.subr.bf16.mxu0 0
        %1046 = vmatpush2.bf16.msra.mxu0 0
        %1047 = vmatprep.subr.bf16.mxu0 0
        %1048 = vmatpush2.bf16.msra.mxu0 0
        %1049 = vmatprep.subr.bf16.mxu0 0
        %1050 = vmatpush2.bf16.msra.mxu0 0
        %1051 = vmatprep.subr.bf16.mxu0 0
        %1052 = vmatpush2.bf16.msra.mxu0 0
        %1053 = vmatprep.subr.bf16.mxu0 0
        %1054 = vmatpush2.bf16.msra.mxu0 0
        %1055 = vmatprep.mubr.bf16.mxu0 0
        %1056 = vmatmul.mubr.bf16.gmra.mxu0 %v967
        %v1057 = vpop.f32.mrf.mxu0
        %v1058 = vadd.f32 0.0, %v1057
        %v1059 = vpop.f32.mrf.mxu0
        %v1060 = vpop.f32.mrf.mxu0
        %v1061 = vadd.f32 0.0, %v1060
        %v1062 = vpop.f32.mrf.mxu0
        %1063 = vmatprep.mubr.bf16.mxu0 0
        %1064 = vmatmul.mubr.bf16.gmra.mxu0 %v970
        %v1065 = vpop.f32.mrf.mxu0
        %v1066 = vadd.f32 0.0, %v1065
        %v1067 = vpop.f32.mrf.mxu0
        %v1068 = vpop.f32.mrf.mxu0
        %v1069 = vadd.f32 0.0, %v1068
        %v1070 = vpop.f32.mrf.mxu0
        %1071 = vmatprep.mubr.bf16.mxu0 0
        %1072 = vmatmul.mubr.bf16.gmra.mxu0 %v973
        %v1073 = vpop.f32.mrf.mxu0
        %v1074 = vadd.f32 0.0, %v1073
        %v1075 = vpop.f32.mrf.mxu0
        %v1076 = vpop.f32.mrf.mxu0
        %v1077 = vadd.f32 0.0, %v1076
        %v1078 = vpop.f32.mrf.mxu0
        %1079 = vmatprep.mubr.bf16.mxu0 0
        %1080 = vmatmul.mubr.bf16.gmra.mxu0 %v976
        %v1081 = vpop.f32.mrf.mxu0
        %v1082 = vadd.f32 0.0, %v1081
        %v1083 = vpop.f32.mrf.mxu0
        %v1084 = vpop.f32.mrf.mxu0
        %v1085 = vadd.f32 0.0, %v1084
        %v1086 = vpop.f32.mrf.mxu0
        %1087 = vmatprep.mubr.bf16.mxu0 0
        %1088 = vmatmul.mubr.bf16.gmra.mxu0 %v979
        %v1089 = vpop.f32.mrf.mxu0
        %v1090 = vadd.f32 0.0, %v1089
        %v1091 = vpop.f32.mrf.mxu0
        %v1092 = vpop.f32.mrf.mxu0
        %v1093 = vadd.f32 0.0, %v1092
        %v1094 = vpop.f32.mrf.mxu0
        %1095 = vmatprep.mubr.bf16.mxu0 0
        %1096 = vmatmul.mubr.bf16.gmra.mxu0 %v982
        %v1097 = vpop.f32.mrf.mxu0
        %v1098 = vadd.f32 0.0, %v1097
        %v1099 = vpop.f32.mrf.mxu0
        %v1100 = vpop.f32.mrf.mxu0
        %v1101 = vadd.f32 0.0, %v1100
        %v1102 = vpop.f32.mrf.mxu0
        %1103 = vmatprep.mubr.bf16.mxu0 0
        %1104 = vmatmul.mubr.bf16.gmra.mxu0 %v985
        %v1105 = vpop.f32.mrf.mxu0
        %v1106 = vadd.f32 0.0, %v1105
        %v1107 = vpop.f32.mrf.mxu0
        %v1108 = vpop.f32.mrf.mxu0
        %v1109 = vadd.f32 0.0, %v1108
        %v1110 = vpop.f32.mrf.mxu0
        %1111 = vmatprep.mubr.bf16.mxu0 0
        %1112 = vmatmul.mubr.bf16.gmra.mxu0 %v988
        %v1113 = vpop.f32.mrf.mxu0
        %v1114 = vadd.f32 0.0, %v1113
        %v1115 = vpop.f32.mrf.mxu0
        %v1116 = vpop.f32.mrf.mxu0
        %v1117 = vadd.f32 0.0, %v1116
        %v1118 = vpop.f32.mrf.mxu0
        %1119 = vmatprep.mubr.bf16.mxu0 0
        %1120 = vmatmul.mubr.bf16.gmra.mxu0 %v991
        %v1121 = vpop.f32.mrf.mxu0
        %v1122 = vadd.f32 0.0, %v1121
        %v1123 = vpop.f32.mrf.mxu0
        %v1124 = vpop.f32.mrf.mxu0
        %v1125 = vadd.f32 0.0, %v1124
        %v1126 = vpop.f32.mrf.mxu0
        %1127 = vmatprep.mubr.bf16.mxu0 0
        %1128 = vmatmul.mubr.bf16.gmra.mxu0 %v994
        %v1129 = vpop.f32.mrf.mxu0
        %v1130 = vadd.f32 0.0, %v1129
        %v1131 = vpop.f32.mrf.mxu0
        %v1132 = vpop.f32.mrf.mxu0
        %v1133 = vadd.f32 0.0, %v1132
        %v1134 = vpop.f32.mrf.mxu0
        %1135 = vmatprep.mubr.bf16.mxu0 0
        %1136 = vmatmul.mubr.bf16.gmra.mxu0 %v997
        %v1137 = vpop.f32.mrf.mxu0
        %v1138 = vadd.f32 0.0, %v1137
        %v1139 = vpop.f32.mrf.mxu0
        %v1140 = vpop.f32.mrf.mxu0
        %v1141 = vadd.f32 0.0, %v1140
        %v1142 = vpop.f32.mrf.mxu0
        %1143 = vmatprep.mubr.bf16.mxu0 0
        %1144 = vmatmul.mubr.bf16.gmra.mxu0 %v1000
        %v1145 = vpop.f32.mrf.mxu0
        %v1146 = vadd.f32 0.0, %v1145
        %v1147 = vpop.f32.mrf.mxu0
        %v1148 = vpop.f32.mrf.mxu0
        %v1149 = vadd.f32 0.0, %v1148
        %v1150 = vpop.f32.mrf.mxu0
        %1151 = vmatprep.mubr.bf16.mxu0 0
        %1152 = vmatmul.mubr.bf16.gmra.mxu0 %v1003
        %v1153 = vpop.f32.mrf.mxu0
        %v1154 = vadd.f32 0.0, %v1153
        %v1155 = vpop.f32.mrf.mxu0
        %v1156 = vpop.f32.mrf.mxu0
        %v1157 = vadd.f32 0.0, %v1156
        %v1158 = vpop.f32.mrf.mxu0
        %1159 = vmatprep.mubr.bf16.mxu0 0
        %1160 = vmatmul.mubr.bf16.gmra.mxu0 %v1006
        %v1161 = vpop.f32.mrf.mxu0
        %v1162 = vadd.f32 0.0, %v1161
        %v1163 = vpop.f32.mrf.mxu0
        %v1164 = vpop.f32.mrf.mxu0
        %v1165 = vadd.f32 0.0, %v1164
        %v1166 = vpop.f32.mrf.mxu0
        %1167 = vmatprep.mubr.bf16.mxu0 0
        %1168 = vmatmul.mubr.bf16.gmra.mxu0 %v1009
        %v1169 = vpop.f32.mrf.mxu0
        %v1170 = vadd.f32 0.0, %v1169
        %v1171 = vpop.f32.mrf.mxu0
        %v1172 = vpop.f32.mrf.mxu0
        %v1173 = vadd.f32 0.0, %v1172
        %v1174 = vpop.f32.mrf.mxu0
        %1175 = vmatprep.mubr.bf16.mxu0 0
        %1176 = vmatmul.mubr.bf16.gmra.mxu0 %v1012
        %v1177 = vpop.f32.mrf.mxu0
        %v1178 = vadd.f32 0.0, %v1177
        %v1179 = vpop.f32.mrf.mxu0
        %v1180 = vpop.f32.mrf.mxu0
        %v1181 = vadd.f32 0.0, %v1180
        %v1182 = vpop.f32.mrf.mxu0
        %1183 = vmatprep.mubr.bf16.mxu0 0
        %1184 = vmatmul.mubr.bf16.gmra.mxu0 %v1015
        %v1185 = vpop.f32.mrf.mxu0
        %v1186 = vadd.f32 0.0, %v1185
        %v1187 = vpop.f32.mrf.mxu0
        %v1188 = vpop.f32.mrf.mxu0
        %v1189 = vadd.f32 0.0, %v1188
        %v1190 = vpop.f32.mrf.mxu0
        %1191 = vmatprep.mubr.bf16.mxu0 0
        %1192 = vmatmul.mubr.bf16.gmra.mxu0 %v1018
        %v1193 = vpop.f32.mrf.mxu0
        %v1194 = vadd.f32 0.0, %v1193
        %v1195 = vpop.f32.mrf.mxu0
        %v1196 = vpop.f32.mrf.mxu0
        %v1197 = vadd.f32 0.0, %v1196
        %v1198 = vpop.f32.mrf.mxu0
        %1199 = vdwg.mxu0
        %v1200 = vadd.f32 %v780, %v1058
        %v1201 = vadd.f32 %v783, %v1061
        %v1202 = vadd.f32 %v788, %v1066
        %v1203 = vadd.f32 %v791, %v1069
        %v1204 = vadd.f32 %v796, %v1074
        %v1205 = vadd.f32 %v799, %v1077
        %v1206 = vadd.f32 %v804, %v1082
        %v1207 = vadd.f32 %v807, %v1085
        %v1208 = vadd.f32 %v812, %v1090
        %v1209 = vadd.f32 %v815, %v1093
        %v1210 = vadd.f32 %v820, %v1098
        %v1211 = vadd.f32 %v823, %v1101
        %v1212 = vadd.f32 %v828, %v1106
        %v1213 = vadd.f32 %v831, %v1109
        %v1214 = vadd.f32 %v836, %v1114
        %v1215 = vadd.f32 %v839, %v1117
        %v1216 = vadd.f32 %v844, %v1122
        %v1217 = vadd.f32 %v847, %v1125
        %v1218 = vadd.f32 %v852, %v1130
        %v1219 = vadd.f32 %v855, %v1133
        %v1220 = vadd.f32 %v860, %v1138
        %v1221 = vadd.f32 %v863, %v1141
        %v1222 = vadd.f32 %v868, %v1146
        %v1223 = vadd.f32 %v871, %v1149
        %v1224 = vadd.f32 %v876, %v1154
        %v1225 = vadd.f32 %v879, %v1157
        %v1226 = vadd.f32 %v884, %v1162
        %v1227 = vadd.f32 %v887, %v1165
        %v1228 = vadd.f32 %v892, %v1170
        %v1229 = vadd.f32 %v895, %v1173
        %v1230 = vadd.f32 %v900, %v1178
        %v1231 = vadd.f32 %v903, %v1181
        %v1232 = vadd.f32 %v908, %v1186
        %v1233 = vadd.f32 %v911, %v1189
        %v1234 = vadd.f32 %v916, %v1194
        %v1235 = vadd.f32 %v919, %v1197
        %v1236 = vld [vmem:[%s178 + $0x8] sm:$0xe]
        %v1237 = vld [vmem:[%s178 + $0xc] sm:$0xf]
        %v1238 = vld [vmem:[%s178 + $0x10] sm:$0xf]
        %v1239 = vld [vmem:[%s178 + $0x14] sm:$0xf]
        %v1240 = vld [vmem:[%s178 + $0x18] sm:$0xf]
        %v1241 = vld [vmem:[%s178 + $0x1c] sm:$0xf]
        %v1242 = vld [vmem:[%s178 + $0x20] sm:$0xf]
        %v1243 = vld [vmem:[%s178 + $0x24] sm:$0xf]
        %v1244 = vld [vmem:[%s178 + $0x28] sm:$0xf]
        %v1245 = vld [vmem:[%s178 + $0x2c] sm:$0xf]
        %v1246 = vld [vmem:[%s178 + $0x30] sm:$0xf]
        %v1247 = vld [vmem:[%s178 + $0x34] sm:$0xf]
        %v1248 = vld [vmem:[%s178 + $0x38] sm:$0xf]
        %v1249 = vld [vmem:[%s178 + $0x3c] sm:$0xf]
        %v1250 = vld [vmem:[%s178 + $0x40] sm:$0xf]
        %v1251 = vld [vmem:[%s178 + $0x44] sm:$0xf]
        %v1252 = vld [vmem:[%s178 + $0x48] sm:$0xf]
        %v1253 = vld [vmem:[%s178 + $0x4c] sm:$0xf]
        %v1254 = vld [vmem:[%s178 + $0x50] sm:$0xf]
        %v1255 = vld [vmem:[%s178 + $0x54] sm:$0xf]
        %v1256 = vld [vmem:[%s178 + $0x58] sm:$0xf]
        %v1257 = vld [vmem:[%s178 + $0x5c] sm:$0xf]
        %v1258 = vld [vmem:[%s178 + $0x60] sm:$0xf]
        %v1259 = vld [vmem:[%s178 + $0x64] sm:$0xf]
        %v1260 = vld [vmem:[%s178 + $0x68] sm:$0xf]
        %v1261 = vld [vmem:[%s178 + $0x6c] sm:$0xf]
        %v1262 = vld [vmem:[%s178 + $0x70] sm:$0xf]
        %v1263 = vld [vmem:[%s178 + $0x74] sm:$0xf]
        %v1264 = vld [vmem:[%s178 + $0x78] sm:$0xf]
        %v1265 = vld [vmem:[%s178 + $0x7c] sm:$0xf]
        %v1266 = vld [vmem:[%s178 + $0x80] sm:$0xf]
        %v1267 = vld [vmem:[%s178 + $0x84] sm:$0xf]
        %v1268 = vld [vmem:[%s178 + $0x88] sm:$0xf]
        %v1269 = vld [vmem:[%s178 + $0x8c] sm:$0xf]
        %v1270 = vld [vmem:[%s178 + $0x90] sm:$0xf]
        %v1271 = vld [vmem:[%s178 + $0x94] sm:$0xf]
        %v1272 = vld [vmem:[%s178 + $0x98] sm:$0x1]
        %s1273 = scalar_lea.vmem %s186, 6
        %v1274 = vld [vmem:[%s1273] sm:$0x3]
        %v1312 = vunpack.c.l.b16 %v1236
        %v1313 = vunpack.c.l.b16 %v1237
        %v1314 = vunpack.c.l.b16 %v1238
        %v1315 = vunpack.c.l.b16 %v1239
        %v1316 = vunpack.c.l.b16 %v1240
        %v1317 = vunpack.c.l.b16 %v1241
        %v1318 = vunpack.c.l.b16 %v1242
        %v1319 = vunpack.c.l.b16 %v1243
        %v1320 = vunpack.c.l.b16 %v1244
        %v1321 = vunpack.c.l.b16 %v1245
        %v1322 = vunpack.c.l.b16 %v1246
        %v1323 = vunpack.c.l.b16 %v1247
        %v1324 = vunpack.c.l.b16 %v1248
        %v1325 = vunpack.c.l.b16 %v1249
        %v1326 = vunpack.c.l.b16 %v1250
        %v1327 = vunpack.c.l.b16 %v1251
        %v1328 = vunpack.c.l.b16 %v1252
        %v1329 = vunpack.c.l.b16 %v1253
        %v1330 = vunpack.c.l.b16 %v1254
        %v1331 = vunpack.c.l.b16 %v1255
        %v1332 = vunpack.c.l.b16 %v1256
        %v1333 = vunpack.c.l.b16 %v1257
        %v1334 = vunpack.c.l.b16 %v1258
        %v1335 = vunpack.c.l.b16 %v1259
        %v1336 = vunpack.c.l.b16 %v1260
        %v1337 = vunpack.c.l.b16 %v1261
        %v1338 = vunpack.c.l.b16 %v1262
        %v1339 = vunpack.c.l.b16 %v1263
        %v1340 = vunpack.c.l.b16 %v1264
        %v1341 = vunpack.c.l.b16 %v1265
        %v1342 = vunpack.c.l.b16 %v1266
        %v1343 = vunpack.c.l.b16 %v1267
        %v1344 = vunpack.c.l.b16 %v1268
        %v1345 = vunpack.c.l.b16 %v1269
        %v1346 = vunpack.c.l.b16 %v1270
        %v1347 = vunpack.c.l.b16 %v1271
        %v1348 = vunpack.c.l.b16 %v1272
        %v1349 = vpack.c.b16 %v1313, %v1312
        %v1350 = vpack.c.b16 %v1315, %v1314
        %v1351 = vpack.c.b16 %v1317, %v1316
        %v1352 = vpack.c.b16 %v1319, %v1318
        %v1353 = vpack.c.b16 %v1321, %v1320
        %v1354 = vpack.c.b16 %v1323, %v1322
        %v1355 = vpack.c.b16 %v1325, %v1324
        %v1356 = vpack.c.b16 %v1327, %v1326
        %v1357 = vpack.c.b16 %v1329, %v1328
        %v1358 = vpack.c.b16 %v1331, %v1330
        %v1359 = vpack.c.b16 %v1333, %v1332
        %v1360 = vpack.c.b16 %v1335, %v1334
        %v1361 = vpack.c.b16 %v1337, %v1336
        %v1362 = vpack.c.b16 %v1339, %v1338
        %v1363 = vpack.c.b16 %v1341, %v1340
        %v1364 = vpack.c.b16 %v1343, %v1342
        %v1365 = vpack.c.b16 %v1345, %v1344
        %v1366 = vpack.c.b16 %v1347, %v1346
        %v1367 = vpack.c.b16 %v1348, %v1348
        %v1368 = vrot.slane %v1349, 1
        %v1369 = vrot.slane %v1350, 1
        %v1370 = vsel %vm928, %v1368, %v1369
        %v1371 = vrot.slane %v1351, 1
        %v1372 = vsel %vm928, %v1369, %v1371
        %v1373 = vrot.slane %v1352, 1
        %v1374 = vsel %vm928, %v1371, %v1373
        %v1375 = vrot.slane %v1353, 1
        %v1376 = vsel %vm928, %v1373, %v1375
        %v1377 = vrot.slane %v1354, 1
        %v1378 = vsel %vm928, %v1375, %v1377
        %v1379 = vrot.slane %v1355, 1
        %v1380 = vsel %vm928, %v1377, %v1379
        %v1381 = vrot.slane %v1356, 1
        %v1382 = vsel %vm928, %v1379, %v1381
        %v1383 = vrot.slane %v1357, 1
        %v1384 = vsel %vm928, %v1381, %v1383
        %v1385 = vrot.slane %v1358, 1
        %v1386 = vsel %vm928, %v1383, %v1385
        %v1387 = vrot.slane %v1359, 1
        %v1388 = vsel %vm928, %v1385, %v1387
        %v1389 = vrot.slane %v1360, 1
        %v1390 = vsel %vm928, %v1387, %v1389
        %v1391 = vrot.slane %v1361, 1
        %v1392 = vsel %vm928, %v1389, %v1391
        %v1393 = vrot.slane %v1362, 1
        %v1394 = vsel %vm928, %v1391, %v1393
        %v1395 = vrot.slane %v1363, 1
        %v1396 = vsel %vm928, %v1393, %v1395
        %v1397 = vrot.slane %v1364, 1
        %v1398 = vsel %vm928, %v1395, %v1397
        %v1399 = vrot.slane %v1365, 1
        %v1400 = vsel %vm928, %v1397, %v1399
        %v1401 = vrot.slane %v1366, 1
        %v1402 = vsel %vm928, %v1399, %v1401
        %v1403 = vrot.slane %v1367, 1
        %v1404 = vsel %vm928, %v1401, %v1403
        %v1406 = vsel %vm470, %v1370, 0
        %v1409 = vsel %vm470, %v1372, 0
        %v1412 = vsel %vm470, %v1374, 0
        %v1415 = vsel %vm470, %v1376, 0
        %v1418 = vsel %vm470, %v1378, 0
        %v1421 = vsel %vm470, %v1380, 0
        %v1424 = vsel %vm470, %v1382, 0
        %v1427 = vsel %vm470, %v1384, 0
        %v1430 = vsel %vm470, %v1386, 0
        %v1433 = vsel %vm470, %v1388, 0
        %v1436 = vsel %vm470, %v1390, 0
        %v1439 = vsel %vm470, %v1392, 0
        %v1442 = vsel %vm470, %v1394, 0
        %v1445 = vsel %vm470, %v1396, 0
        %v1448 = vsel %vm470, %v1398, 0
        %v1451 = vsel %vm470, %v1400, 0
        %v1454 = vsel %vm470, %v1402, 0
        %v1457 = vsel %vm470, %v1404, 0
        %v1460 = vsel %vm525, %v1274, 0
        %1462 = vmatprep.subr.bf16.mxu0 0
        %1463 = vmatpush1.bf16.msra.mxu0 0
        %1464 = vmatprep.subr.bf16.mxu0 0
        %1465 = vmatpush1.bf16.msra.mxu0 0
        %1466 = vmatprep.subr.bf16.mxu0 0
        %1467 = vmatpush1.bf16.msra.mxu0 0
        %1468 = vmatprep.subr.bf16.mxu0 0
        %1469 = vmatpush1.bf16.msra.mxu0 0
        %1470 = vmatprep.subr.bf16.mxu0 0
        %1471 = vmatpush1.bf16.msra.mxu0 0
        %1472 = vmatprep.subr.bf16.mxu0 0
        %1473 = vmatpush1.bf16.msra.mxu0 0
        %1474 = vmatprep.subr.bf16.mxu0 0
        %1475 = vmatpush1.bf16.msra.mxu0 0
        %1476 = vmatprep.subr.bf16.mxu0 0
        %1477 = vmatpush1.bf16.msra.mxu0 %v1460
        %1478 = vmatprep.subr.bf16.mxu0 0
        %1479 = vmatpush2.bf16.msra.mxu0 0
        %1480 = vmatprep.subr.bf16.mxu0 0
        %1481 = vmatpush2.bf16.msra.mxu0 0
        %1482 = vmatprep.subr.bf16.mxu0 0
        %1483 = vmatpush2.bf16.msra.mxu0 0
        %1484 = vmatprep.subr.bf16.mxu0 0
        %1485 = vmatpush2.bf16.msra.mxu0 0
        %1486 = vmatprep.subr.bf16.mxu0 0
        %1487 = vmatpush2.bf16.msra.mxu0 0
        %1488 = vmatprep.subr.bf16.mxu0 0
        %1489 = vmatpush2.bf16.msra.mxu0 0
        %1490 = vmatprep.subr.bf16.mxu0 0
        %1491 = vmatpush2.bf16.msra.mxu0 0
        %1492 = vmatprep.subr.bf16.mxu0 0
        %1493 = vmatpush2.bf16.msra.mxu0 0
        %1494 = vmatprep.mubr.bf16.mxu0 0
        %1495 = vmatmul.mubr.bf16.gmra.mxu0 %v1406
        %v1496 = vpop.f32.mrf.mxu0
        %v1497 = vadd.f32 0.0, %v1496
        %v1498 = vpop.f32.mrf.mxu0
        %v1499 = vpop.f32.mrf.mxu0
        %v1500 = vadd.f32 0.0, %v1499
        %v1501 = vpop.f32.mrf.mxu0
        %1502 = vmatprep.mubr.bf16.mxu0 0
        %1503 = vmatmul.mubr.bf16.gmra.mxu0 %v1409
        %v1504 = vpop.f32.mrf.mxu0
        %v1505 = vadd.f32 0.0, %v1504
        %v1506 = vpop.f32.mrf.mxu0
        %v1507 = vpop.f32.mrf.mxu0
        %v1508 = vadd.f32 0.0, %v1507
        %v1509 = vpop.f32.mrf.mxu0
        %1510 = vmatprep.mubr.bf16.mxu0 0
        %1511 = vmatmul.mubr.bf16.gmra.mxu0 %v1412
        %v1512 = vpop.f32.mrf.mxu0
        %v1513 = vadd.f32 0.0, %v1512
        %v1514 = vpop.f32.mrf.mxu0
        %v1515 = vpop.f32.mrf.mxu0
        %v1516 = vadd.f32 0.0, %v1515
        %v1517 = vpop.f32.mrf.mxu0
        %1518 = vmatprep.mubr.bf16.mxu0 0
        %1519 = vmatmul.mubr.bf16.gmra.mxu0 %v1415
        %v1520 = vpop.f32.mrf.mxu0
        %v1521 = vadd.f32 0.0, %v1520
        %v1522 = vpop.f32.mrf.mxu0
        %v1523 = vpop.f32.mrf.mxu0
        %v1524 = vadd.f32 0.0, %v1523
        %v1525 = vpop.f32.mrf.mxu0
        %1526 = vmatprep.mubr.bf16.mxu0 0
        %1527 = vmatmul.mubr.bf16.gmra.mxu0 %v1418
        %v1528 = vpop.f32.mrf.mxu0
        %v1529 = vadd.f32 0.0, %v1528
        %v1530 = vpop.f32.mrf.mxu0
        %v1531 = vpop.f32.mrf.mxu0
        %v1532 = vadd.f32 0.0, %v1531
        %v1533 = vpop.f32.mrf.mxu0
        %1534 = vmatprep.mubr.bf16.mxu0 0
        %1535 = vmatmul.mubr.bf16.gmra.mxu0 %v1421
        %v1536 = vpop.f32.mrf.mxu0
        %v1537 = vadd.f32 0.0, %v1536
        %v1538 = vpop.f32.mrf.mxu0
        %v1539 = vpop.f32.mrf.mxu0
        %v1540 = vadd.f32 0.0, %v1539
        %v1541 = vpop.f32.mrf.mxu0
        %1542 = vmatprep.mubr.bf16.mxu0 0
        %1543 = vmatmul.mubr.bf16.gmra.mxu0 %v1424
        %v1544 = vpop.f32.mrf.mxu0
        %v1545 = vadd.f32 0.0, %v1544
        %v1546 = vpop.f32.mrf.mxu0
        %v1547 = vpop.f32.mrf.mxu0
        %v1548 = vadd.f32 0.0, %v1547
        %v1549 = vpop.f32.mrf.mxu0
        %1550 = vmatprep.mubr.bf16.mxu0 0
        %1551 = vmatmul.mubr.bf16.gmra.mxu0 %v1427
        %v1552 = vpop.f32.mrf.mxu0
        %v1553 = vadd.f32 0.0, %v1552
        %v1554 = vpop.f32.mrf.mxu0
        %v1555 = vpop.f32.mrf.mxu0
        %v1556 = vadd.f32 0.0, %v1555
        %v1557 = vpop.f32.mrf.mxu0
        %1558 = vmatprep.mubr.bf16.mxu0 0
        %1559 = vmatmul.mubr.bf16.gmra.mxu0 %v1430
        %v1560 = vpop.f32.mrf.mxu0
        %v1561 = vadd.f32 0.0, %v1560
        %v1562 = vpop.f32.mrf.mxu0
        %v1563 = vpop.f32.mrf.mxu0
        %v1564 = vadd.f32 0.0, %v1563
        %v1565 = vpop.f32.mrf.mxu0
        %1566 = vmatprep.mubr.bf16.mxu0 0
        %1567 = vmatmul.mubr.bf16.gmra.mxu0 %v1433
        %v1568 = vpop.f32.mrf.mxu0
        %v1569 = vadd.f32 0.0, %v1568
        %v1570 = vpop.f32.mrf.mxu0
        %v1571 = vpop.f32.mrf.mxu0
        %v1572 = vadd.f32 0.0, %v1571
        %v1573 = vpop.f32.mrf.mxu0
        %1574 = vmatprep.mubr.bf16.mxu0 0
        %1575 = vmatmul.mubr.bf16.gmra.mxu0 %v1436
        %v1576 = vpop.f32.mrf.mxu0
        %v1577 = vadd.f32 0.0, %v1576
        %v1578 = vpop.f32.mrf.mxu0
        %v1579 = vpop.f32.mrf.mxu0
        %v1580 = vadd.f32 0.0, %v1579
        %v1581 = vpop.f32.mrf.mxu0
        %1582 = vmatprep.mubr.bf16.mxu0 0
        %1583 = vmatmul.mubr.bf16.gmra.mxu0 %v1439
        %v1584 = vpop.f32.mrf.mxu0
        %v1585 = vadd.f32 0.0, %v1584
        %v1586 = vpop.f32.mrf.mxu0
        %v1587 = vpop.f32.mrf.mxu0
        %v1588 = vadd.f32 0.0, %v1587
        %v1589 = vpop.f32.mrf.mxu0
        %1590 = vmatprep.mubr.bf16.mxu0 0
        %1591 = vmatmul.mubr.bf16.gmra.mxu0 %v1442
        %v1592 = vpop.f32.mrf.mxu0
        %v1593 = vadd.f32 0.0, %v1592
        %v1594 = vpop.f32.mrf.mxu0
        %v1595 = vpop.f32.mrf.mxu0
        %v1596 = vadd.f32 0.0, %v1595
        %v1597 = vpop.f32.mrf.mxu0
        %1598 = vmatprep.mubr.bf16.mxu0 0
        %1599 = vmatmul.mubr.bf16.gmra.mxu0 %v1445
        %v1600 = vpop.f32.mrf.mxu0
        %v1601 = vadd.f32 0.0, %v1600
        %v1602 = vpop.f32.mrf.mxu0
        %v1603 = vpop.f32.mrf.mxu0
        %v1604 = vadd.f32 0.0, %v1603
        %v1605 = vpop.f32.mrf.mxu0
        %1606 = vmatprep.mubr.bf16.mxu0 0
        %1607 = vmatmul.mubr.bf16.gmra.mxu0 %v1448
        %v1608 = vpop.f32.mrf.mxu0
        %v1609 = vadd.f32 0.0, %v1608
        %v1610 = vpop.f32.mrf.mxu0
        %v1611 = vpop.f32.mrf.mxu0
        %v1612 = vadd.f32 0.0, %v1611
        %v1613 = vpop.f32.mrf.mxu0
        %1614 = vmatprep.mubr.bf16.mxu0 0
        %1615 = vmatmul.mubr.bf16.gmra.mxu0 %v1451
        %v1616 = vpop.f32.mrf.mxu0
        %v1617 = vadd.f32 0.0, %v1616
        %v1618 = vpop.f32.mrf.mxu0
        %v1619 = vpop.f32.mrf.mxu0
        %v1620 = vadd.f32 0.0, %v1619
        %v1621 = vpop.f32.mrf.mxu0
        %1622 = vmatprep.mubr.bf16.mxu0 0
        %1623 = vmatmul.mubr.bf16.gmra.mxu0 %v1454
        %v1624 = vpop.f32.mrf.mxu0
        %v1625 = vadd.f32 0.0, %v1624
        %v1626 = vpop.f32.mrf.mxu0
        %v1627 = vpop.f32.mrf.mxu0
        %v1628 = vadd.f32 0.0, %v1627
        %v1629 = vpop.f32.mrf.mxu0
        %1630 = vmatprep.mubr.bf16.mxu0 0
        %1631 = vmatmul.mubr.bf16.gmra.mxu0 %v1457
        %v1632 = vpop.f32.mrf.mxu0
        %v1633 = vadd.f32 0.0, %v1632
        %v1634 = vpop.f32.mrf.mxu0
        %v1635 = vpop.f32.mrf.mxu0
        %v1636 = vadd.f32 0.0, %v1635
        %v1637 = vpop.f32.mrf.mxu0
        %1638 = vdwg.mxu0
        %v1639 = vadd.f32 %v1200, %v1497
        %v1640 = vadd.f32 %v1201, %v1500
        %v1641 = vadd.f32 %v1202, %v1505
        %v1642 = vadd.f32 %v1203, %v1508
        %v1643 = vadd.f32 %v1204, %v1513
        %v1644 = vadd.f32 %v1205, %v1516
        %v1645 = vadd.f32 %v1206, %v1521
        %v1646 = vadd.f32 %v1207, %v1524
        %v1647 = vadd.f32 %v1208, %v1529
        %v1648 = vadd.f32 %v1209, %v1532
        %v1649 = vadd.f32 %v1210, %v1537
        %v1650 = vadd.f32 %v1211, %v1540
        %v1651 = vadd.f32 %v1212, %v1545
        %v1652 = vadd.f32 %v1213, %v1548
        %v1653 = vadd.f32 %v1214, %v1553
        %v1654 = vadd.f32 %v1215, %v1556
        %v1655 = vadd.f32 %v1216, %v1561
        %v1656 = vadd.f32 %v1217, %v1564
        %v1657 = vadd.f32 %v1218, %v1569
        %v1658 = vadd.f32 %v1219, %v1572
        %v1659 = vadd.f32 %v1220, %v1577
        %v1660 = vadd.f32 %v1221, %v1580
        %v1661 = vadd.f32 %v1222, %v1585
        %v1662 = vadd.f32 %v1223, %v1588
        %v1663 = vadd.f32 %v1224, %v1593
        %v1664 = vadd.f32 %v1225, %v1596
        %v1665 = vadd.f32 %v1226, %v1601
        %v1666 = vadd.f32 %v1227, %v1604
        %v1667 = vadd.f32 %v1228, %v1609
        %v1668 = vadd.f32 %v1229, %v1612
        %v1669 = vadd.f32 %v1230, %v1617
        %v1670 = vadd.f32 %v1231, %v1620
        %v1671 = vadd.f32 %v1232, %v1625
        %v1672 = vadd.f32 %v1233, %v1628
        %v1673 = vadd.f32 %v1234, %v1633
        %v1674 = vadd.f32 %v1235, %v1636
        %v1675 = vld [vmem:[%s178 + $0x98] sm:$0x3]
        %s1676 = scalar_lea.vmem %s186, 8
        %v1677 = vld [vmem:[%s1676] sm:$0x3]
        %v1679 = vunpack.c.l.b16 %v1675
        %v1680 = vpack.c.b16 %v1679, %v1679
        %vm1681 = vsmask.f32 6400
        %v1683 = vshrl.u32 %v1349, 16
        %v1685 = vrot.slane %v1683, 1
        %v1686 = vshll.u32 %v1349, 16
        %v1688 = vrot.slane %v1686, 2
        %v1689 = vor.u32 %v1685, %v1688
        %v1691 = vshrl.u32 %v1350, 16
        %v1693 = vrot.slane %v1691, 1
        %v1694 = vshll.u32 %v1350, 16
        %v1696 = vrot.slane %v1694, 2
        %v1697 = vor.u32 %v1693, %v1696
        %v1698 = vsel %vm1681, %v1689, %v1697
        %v1700 = vshrl.u32 %v1351, 16
        %v1702 = vrot.slane %v1700, 1
        %v1703 = vshll.u32 %v1351, 16
        %v1705 = vrot.slane %v1703, 2
        %v1706 = vor.u32 %v1702, %v1705
        %v1707 = vsel %vm1681, %v1697, %v1706
        %v1709 = vshrl.u32 %v1352, 16
        %v1711 = vrot.slane %v1709, 1
        %v1712 = vshll.u32 %v1352, 16
        %v1714 = vrot.slane %v1712, 2
        %v1715 = vor.u32 %v1711, %v1714
        %v1716 = vsel %vm1681, %v1706, %v1715
        %v1718 = vshrl.u32 %v1353, 16
        %v1720 = vrot.slane %v1718, 1
        %v1721 = vshll.u32 %v1353, 16
        %v1723 = vrot.slane %v1721, 2
        %v1724 = vor.u32 %v1720, %v1723
        %v1725 = vsel %vm1681, %v1715, %v1724
        %v1727 = vshrl.u32 %v1354, 16
        %v1729 = vrot.slane %v1727, 1
        %v1730 = vshll.u32 %v1354, 16
        %v1732 = vrot.slane %v1730, 2
        %v1733 = vor.u32 %v1729, %v1732
        %v1734 = vsel %vm1681, %v1724, %v1733
        %v1736 = vshrl.u32 %v1355, 16
        %v1738 = vrot.slane %v1736, 1
        %v1739 = vshll.u32 %v1355, 16
        %v1741 = vrot.slane %v1739, 2
        %v1742 = vor.u32 %v1738, %v1741
        %v1743 = vsel %vm1681, %v1733, %v1742
        %v1745 = vshrl.u32 %v1356, 16
        %v1747 = vrot.slane %v1745, 1
        %v1748 = vshll.u32 %v1356, 16
        %v1750 = vrot.slane %v1748, 2
        %v1751 = vor.u32 %v1747, %v1750
        %v1752 = vsel %vm1681, %v1742, %v1751
        %v1754 = vshrl.u32 %v1357, 16
        %v1756 = vrot.slane %v1754, 1
        %v1757 = vshll.u32 %v1357, 16
        %v1759 = vrot.slane %v1757, 2
        %v1760 = vor.u32 %v1756, %v1759
        %v1761 = vsel %vm1681, %v1751, %v1760
        %v1763 = vshrl.u32 %v1358, 16
        %v1765 = vrot.slane %v1763, 1
        %v1766 = vshll.u32 %v1358, 16
        %v1768 = vrot.slane %v1766, 2
        %v1769 = vor.u32 %v1765, %v1768
        %v1770 = vsel %vm1681, %v1760, %v1769
        %v1772 = vshrl.u32 %v1359, 16
        %v1774 = vrot.slane %v1772, 1
        %v1775 = vshll.u32 %v1359, 16
        %v1777 = vrot.slane %v1775, 2
        %v1778 = vor.u32 %v1774, %v1777
        %v1779 = vsel %vm1681, %v1769, %v1778
        %v1781 = vshrl.u32 %v1360, 16
        %v1783 = vrot.slane %v1781, 1
        %v1784 = vshll.u32 %v1360, 16
        %v1786 = vrot.slane %v1784, 2
        %v1787 = vor.u32 %v1783, %v1786
        %v1788 = vsel %vm1681, %v1778, %v1787
        %v1790 = vshrl.u32 %v1361, 16
        %v1792 = vrot.slane %v1790, 1
        %v1793 = vshll.u32 %v1361, 16
        %v1795 = vrot.slane %v1793, 2
        %v1796 = vor.u32 %v1792, %v1795
        %v1797 = vsel %vm1681, %v1787, %v1796
        %v1799 = vshrl.u32 %v1362, 16
        %v1801 = vrot.slane %v1799, 1
        %v1802 = vshll.u32 %v1362, 16
        %v1804 = vrot.slane %v1802, 2
        %v1805 = vor.u32 %v1801, %v1804
        %v1806 = vsel %vm1681, %v1796, %v1805
        %v1808 = vshrl.u32 %v1363, 16
        %v1810 = vrot.slane %v1808, 1
        %v1811 = vshll.u32 %v1363, 16
        %v1813 = vrot.slane %v1811, 2
        %v1814 = vor.u32 %v1810, %v1813
        %v1815 = vsel %vm1681, %v1805, %v1814
        %v1817 = vshrl.u32 %v1364, 16
        %v1819 = vrot.slane %v1817, 1
        %v1820 = vshll.u32 %v1364, 16
        %v1822 = vrot.slane %v1820, 2
        %v1823 = vor.u32 %v1819, %v1822
        %v1824 = vsel %vm1681, %v1814, %v1823
        %v1826 = vshrl.u32 %v1365, 16
        %v1828 = vrot.slane %v1826, 1
        %v1829 = vshll.u32 %v1365, 16
        %v1831 = vrot.slane %v1829, 2
        %v1832 = vor.u32 %v1828, %v1831
        %v1833 = vsel %vm1681, %v1823, %v1832
        %v1835 = vshrl.u32 %v1366, 16
        %v1837 = vrot.slane %v1835, 1
        %v1838 = vshll.u32 %v1366, 16
        %v1840 = vrot.slane %v1838, 2
        %v1841 = vor.u32 %v1837, %v1840
        %v1842 = vsel %vm1681, %v1832, %v1841
        %v1844 = vshrl.u32 %v1680, 16
        %v1846 = vrot.slane %v1844, 1
        %v1847 = vshll.u32 %v1680, 16
        %v1849 = vrot.slane %v1847, 2
        %v1850 = vor.u32 %v1846, %v1849
        %v1851 = vsel %vm1681, %v1841, %v1850
        %v1853 = vsel %vm470, %v1698, 0
        %v1856 = vsel %vm470, %v1707, 0
        %v1859 = vsel %vm470, %v1716, 0
        %v1862 = vsel %vm470, %v1725, 0
        %v1865 = vsel %vm470, %v1734, 0
        %v1868 = vsel %vm470, %v1743, 0
        %v1871 = vsel %vm470, %v1752, 0
        %v1874 = vsel %vm470, %v1761, 0
        %v1877 = vsel %vm470, %v1770, 0
        %v1880 = vsel %vm470, %v1779, 0
        %v1883 = vsel %vm470, %v1788, 0
        %v1886 = vsel %vm470, %v1797, 0
        %v1889 = vsel %vm470, %v1806, 0
        %v1892 = vsel %vm470, %v1815, 0
        %v1895 = vsel %vm470, %v1824, 0
        %v1898 = vsel %vm470, %v1833, 0
        %v1901 = vsel %vm470, %v1842, 0
        %v1904 = vsel %vm470, %v1851, 0
        %v1907 = vsel %vm525, %v1677, 0
        %1909 = vmatprep.subr.bf16.mxu0 0
        %1910 = vmatpush1.bf16.msra.mxu0 0
        %1911 = vmatprep.subr.bf16.mxu0 0
        %1912 = vmatpush1.bf16.msra.mxu0 0
        %1913 = vmatprep.subr.bf16.mxu0 0
        %1914 = vmatpush1.bf16.msra.mxu0 0
        %1915 = vmatprep.subr.bf16.mxu0 0
        %1916 = vmatpush1.bf16.msra.mxu0 0
        %1917 = vmatprep.subr.bf16.mxu0 0
        %1918 = vmatpush1.bf16.msra.mxu0 0
        %1919 = vmatprep.subr.bf16.mxu0 0
        %1920 = vmatpush1.bf16.msra.mxu0 0
        %1921 = vmatprep.subr.bf16.mxu0 0
        %1922 = vmatpush1.bf16.msra.mxu0 0
        %1923 = vmatprep.subr.bf16.mxu0 0
        %1924 = vmatpush1.bf16.msra.mxu0 %v1907
        %1925 = vmatprep.subr.bf16.mxu0 0
        %1926 = vmatpush2.bf16.msra.mxu0 0
        %1927 = vmatprep.subr.bf16.mxu0 0
        %1928 = vmatpush2.bf16.msra.mxu0 0
        %1929 = vmatprep.subr.bf16.mxu0 0
        %1930 = vmatpush2.bf16.msra.mxu0 0
        %1931 = vmatprep.subr.bf16.mxu0 0
        %1932 = vmatpush2.bf16.msra.mxu0 0
        %1933 = vmatprep.subr.bf16.mxu0 0
        %1934 = vmatpush2.bf16.msra.mxu0 0
        %1935 = vmatprep.subr.bf16.mxu0 0
        %1936 = vmatpush2.bf16.msra.mxu0 0
        %1937 = vmatprep.subr.bf16.mxu0 0
        %1938 = vmatpush2.bf16.msra.mxu0 0
        %1939 = vmatprep.subr.bf16.mxu0 0
        %1940 = vmatpush2.bf16.msra.mxu0 0
        %1941 = vmatprep.mubr.bf16.mxu0 0
        %1942 = vmatmul.mubr.bf16.gmra.mxu0 %v1853
        %v1943 = vpop.f32.mrf.mxu0
        %v1944 = vadd.f32 0.0, %v1943
        %v1945 = vpop.f32.mrf.mxu0
        %v1946 = vpop.f32.mrf.mxu0
        %v1947 = vadd.f32 0.0, %v1946
        %v1948 = vpop.f32.mrf.mxu0
        %1949 = vmatprep.mubr.bf16.mxu0 0
        %1950 = vmatmul.mubr.bf16.gmra.mxu0 %v1856
        %v1951 = vpop.f32.mrf.mxu0
        %v1952 = vadd.f32 0.0, %v1951
        %v1953 = vpop.f32.mrf.mxu0
        %v1954 = vpop.f32.mrf.mxu0
        %v1955 = vadd.f32 0.0, %v1954
        %v1956 = vpop.f32.mrf.mxu0
        %1957 = vmatprep.mubr.bf16.mxu0 0
        %1958 = vmatmul.mubr.bf16.gmra.mxu0 %v1859
        %v1959 = vpop.f32.mrf.mxu0
        %v1960 = vadd.f32 0.0, %v1959
        %v1961 = vpop.f32.mrf.mxu0
        %v1962 = vpop.f32.mrf.mxu0
        %v1963 = vadd.f32 0.0, %v1962
        %v1964 = vpop.f32.mrf.mxu0
        %1965 = vmatprep.mubr.bf16.mxu0 0
        %1966 = vmatmul.mubr.bf16.gmra.mxu0 %v1862
        %v1967 = vpop.f32.mrf.mxu0
        %v1968 = vadd.f32 0.0, %v1967
        %v1969 = vpop.f32.mrf.mxu0
        %v1970 = vpop.f32.mrf.mxu0
        %v1971 = vadd.f32 0.0, %v1970
        %v1972 = vpop.f32.mrf.mxu0
        %1973 = vmatprep.mubr.bf16.mxu0 0
        %1974 = vmatmul.mubr.bf16.gmra.mxu0 %v1865
        %v1975 = vpop.f32.mrf.mxu0
        %v1976 = vadd.f32 0.0, %v1975
        %v1977 = vpop.f32.mrf.mxu0
        %v1978 = vpop.f32.mrf.mxu0
        %v1979 = vadd.f32 0.0, %v1978
        %v1980 = vpop.f32.mrf.mxu0
        %1981 = vmatprep.mubr.bf16.mxu0 0
        %1982 = vmatmul.mubr.bf16.gmra.mxu0 %v1868
        %v1983 = vpop.f32.mrf.mxu0
        %v1984 = vadd.f32 0.0, %v1983
        %v1985 = vpop.f32.mrf.mxu0
        %v1986 = vpop.f32.mrf.mxu0
        %v1987 = vadd.f32 0.0, %v1986
        %v1988 = vpop.f32.mrf.mxu0
        %1989 = vmatprep.mubr.bf16.mxu0 0
        %1990 = vmatmul.mubr.bf16.gmra.mxu0 %v1871
        %v1991 = vpop.f32.mrf.mxu0
        %v1992 = vadd.f32 0.0, %v1991
        %v1993 = vpop.f32.mrf.mxu0
        %v1994 = vpop.f32.mrf.mxu0
        %v1995 = vadd.f32 0.0, %v1994
        %v1996 = vpop.f32.mrf.mxu0
        %1997 = vmatprep.mubr.bf16.mxu0 0
        %1998 = vmatmul.mubr.bf16.gmra.mxu0 %v1874
        %v1999 = vpop.f32.mrf.mxu0
        %v2000 = vadd.f32 0.0, %v1999
        %v2001 = vpop.f32.mrf.mxu0
        %v2002 = vpop.f32.mrf.mxu0
        %v2003 = vadd.f32 0.0, %v2002
        %v2004 = vpop.f32.mrf.mxu0
        %2005 = vmatprep.mubr.bf16.mxu0 0
        %2006 = vmatmul.mubr.bf16.gmra.mxu0 %v1877
        %v2007 = vpop.f32.mrf.mxu0
        %v2008 = vadd.f32 0.0, %v2007
        %v2009 = vpop.f32.mrf.mxu0
        %v2010 = vpop.f32.mrf.mxu0
        %v2011 = vadd.f32 0.0, %v2010
        %v2012 = vpop.f32.mrf.mxu0
        %2013 = vmatprep.mubr.bf16.mxu0 0
        %2014 = vmatmul.mubr.bf16.gmra.mxu0 %v1880
        %v2015 = vpop.f32.mrf.mxu0
        %v2016 = vadd.f32 0.0, %v2015
        %v2017 = vpop.f32.mrf.mxu0
        %v2018 = vpop.f32.mrf.mxu0
        %v2019 = vadd.f32 0.0, %v2018
        %v2020 = vpop.f32.mrf.mxu0
        %2021 = vmatprep.mubr.bf16.mxu0 0
        %2022 = vmatmul.mubr.bf16.gmra.mxu0 %v1883
        %v2023 = vpop.f32.mrf.mxu0
        %v2024 = vadd.f32 0.0, %v2023
        %v2025 = vpop.f32.mrf.mxu0
        %v2026 = vpop.f32.mrf.mxu0
        %v2027 = vadd.f32 0.0, %v2026
        %v2028 = vpop.f32.mrf.mxu0
        %2029 = vmatprep.mubr.bf16.mxu0 0
        %2030 = vmatmul.mubr.bf16.gmra.mxu0 %v1886
        %v2031 = vpop.f32.mrf.mxu0
        %v2032 = vadd.f32 0.0, %v2031
        %v2033 = vpop.f32.mrf.mxu0
        %v2034 = vpop.f32.mrf.mxu0
        %v2035 = vadd.f32 0.0, %v2034
        %v2036 = vpop.f32.mrf.mxu0
        %2037 = vmatprep.mubr.bf16.mxu0 0
        %2038 = vmatmul.mubr.bf16.gmra.mxu0 %v1889
        %v2039 = vpop.f32.mrf.mxu0
        %v2040 = vadd.f32 0.0, %v2039
        %v2041 = vpop.f32.mrf.mxu0
        %v2042 = vpop.f32.mrf.mxu0
        %v2043 = vadd.f32 0.0, %v2042
        %v2044 = vpop.f32.mrf.mxu0
        %2045 = vmatprep.mubr.bf16.mxu0 0
        %2046 = vmatmul.mubr.bf16.gmra.mxu0 %v1892
        %v2047 = vpop.f32.mrf.mxu0
        %v2048 = vadd.f32 0.0, %v2047
        %v2049 = vpop.f32.mrf.mxu0
        %v2050 = vpop.f32.mrf.mxu0
        %v2051 = vadd.f32 0.0, %v2050
        %v2052 = vpop.f32.mrf.mxu0
        %2053 = vmatprep.mubr.bf16.mxu0 0
        %2054 = vmatmul.mubr.bf16.gmra.mxu0 %v1895
        %v2055 = vpop.f32.mrf.mxu0
        %v2056 = vadd.f32 0.0, %v2055
        %v2057 = vpop.f32.mrf.mxu0
        %v2058 = vpop.f32.mrf.mxu0
        %v2059 = vadd.f32 0.0, %v2058
        %v2060 = vpop.f32.mrf.mxu0
        %2061 = vmatprep.mubr.bf16.mxu0 0
        %2062 = vmatmul.mubr.bf16.gmra.mxu0 %v1898
        %v2063 = vpop.f32.mrf.mxu0
        %v2064 = vadd.f32 0.0, %v2063
        %v2065 = vpop.f32.mrf.mxu0
        %v2066 = vpop.f32.mrf.mxu0
        %v2067 = vadd.f32 0.0, %v2066
        %v2068 = vpop.f32.mrf.mxu0
        %2069 = vmatprep.mubr.bf16.mxu0 0
        %2070 = vmatmul.mubr.bf16.gmra.mxu0 %v1901
        %v2071 = vpop.f32.mrf.mxu0
        %v2072 = vadd.f32 0.0, %v2071
        %v2073 = vpop.f32.mrf.mxu0
        %v2074 = vpop.f32.mrf.mxu0
        %v2075 = vadd.f32 0.0, %v2074
        %v2076 = vpop.f32.mrf.mxu0
        %2077 = vmatprep.mubr.bf16.mxu0 0
        %2078 = vmatmul.mubr.bf16.gmra.mxu0 %v1904
        %v2079 = vpop.f32.mrf.mxu0
        %v2080 = vadd.f32 0.0, %v2079
        %v2081 = vpop.f32.mrf.mxu0
        %v2082 = vpop.f32.mrf.mxu0
        %v2083 = vadd.f32 0.0, %v2082
        %v2084 = vpop.f32.mrf.mxu0
        %2085 = vdwg.mxu0
        %v2086 = vadd.f32 %v1639, %v1944
        %v2087 = vadd.f32 %v1640, %v1947
        %v2088 = vadd.f32 %v1641, %v1952
        %v2089 = vadd.f32 %v1642, %v1955
        %v2090 = vadd.f32 %v1643, %v1960
        %v2091 = vadd.f32 %v1644, %v1963
        %v2092 = vadd.f32 %v1645, %v1968
        %v2093 = vadd.f32 %v1646, %v1971
        %v2094 = vadd.f32 %v1647, %v1976
        %v2095 = vadd.f32 %v1648, %v1979
        %v2096 = vadd.f32 %v1649, %v1984
        %v2097 = vadd.f32 %v1650, %v1987
        %v2098 = vadd.f32 %v1651, %v1992
        %v2099 = vadd.f32 %v1652, %v1995
        %v2100 = vadd.f32 %v1653, %v2000
        %v2101 = vadd.f32 %v1654, %v2003
        %v2102 = vadd.f32 %v1655, %v2008
        %v2103 = vadd.f32 %v1656, %v2011
        %v2104 = vadd.f32 %v1657, %v2016
        %v2105 = vadd.f32 %v1658, %v2019
        %v2106 = vadd.f32 %v1659, %v2024
        %v2107 = vadd.f32 %v1660, %v2027
        %v2108 = vadd.f32 %v1661, %v2032
        %v2109 = vadd.f32 %v1662, %v2035
        %v2110 = vadd.f32 %v1663, %v2040
        %v2111 = vadd.f32 %v1664, %v2043
        %v2112 = vadd.f32 %v1665, %v2048
        %v2113 = vadd.f32 %v1666, %v2051
        %v2114 = vadd.f32 %v1667, %v2056
        %v2115 = vadd.f32 %v1668, %v2059
        %v2116 = vadd.f32 %v1669, %v2064
        %v2117 = vadd.f32 %v1670, %v2067
        %v2118 = vadd.f32 %v1671, %v2072
        %v2119 = vadd.f32 %v1672, %v2075
        %v2120 = vadd.f32 %v1673, %v2080
        %v2121 = vadd.f32 %v1674, %v2083
        %v2122 = vld [vmem:[%s178 + $0x8] sm:$0xc]
        %s2123 = scalar_lea.vmem %s186, 10
        %v2124 = vld [vmem:[%s2123] sm:$0x3]
        %v2126 = vunpack.c.l.b16 %v2122
        %v2127 = vpack.c.b16 %v1313, %v2126
        %vm2128 = vcmask 1045504
        %v2129 = vrot.slane %v2127, 2
        %v2130 = vrot.slane %v1350, 2
        %v2131 = vsel %vm2128, %v2129, %v2130
        %v2132 = vrot.slane %v1351, 2
        %v2133 = vsel %vm2128, %v2130, %v2132
        %v2134 = vrot.slane %v1352, 2
        %v2135 = vsel %vm2128, %v2132, %v2134
        %v2136 = vrot.slane %v1353, 2
        %v2137 = vsel %vm2128, %v2134, %v2136
        %v2138 = vrot.slane %v1354, 2
        %v2139 = vsel %vm2128, %v2136, %v2138
        %v2140 = vrot.slane %v1355, 2
        %v2141 = vsel %vm2128, %v2138, %v2140
        %v2142 = vrot.slane %v1356, 2
        %v2143 = vsel %vm2128, %v2140, %v2142
        %v2144 = vrot.slane %v1357, 2
        %v2145 = vsel %vm2128, %v2142, %v2144
        %v2146 = vrot.slane %v1358, 2
        %v2147 = vsel %vm2128, %v2144, %v2146
        %v2148 = vrot.slane %v1359, 2
        %v2149 = vsel %vm2128, %v2146, %v2148
        %v2150 = vrot.slane %v1360, 2
        %v2151 = vsel %vm2128, %v2148, %v2150
        %v2152 = vrot.slane %v1361, 2
        %v2153 = vsel %vm2128, %v2150, %v2152
        %v2154 = vrot.slane %v1362, 2
        %v2155 = vsel %vm2128, %v2152, %v2154
        %v2156 = vrot.slane %v1363, 2
        %v2157 = vsel %vm2128, %v2154, %v2156
        %v2158 = vrot.slane %v1364, 2
        %v2159 = vsel %vm2128, %v2156, %v2158
        %v2160 = vrot.slane %v1365, 2
        %v2161 = vsel %vm2128, %v2158, %v2160
        %v2162 = vrot.slane %v1366, 2
        %v2163 = vsel %vm2128, %v2160, %v2162
        %v2164 = vrot.slane %v1680, 2
        %v2165 = vsel %vm2128, %v2162, %v2164
        %v2167 = vsel %vm470, %v2131, 0
        %v2170 = vsel %vm470, %v2133, 0
        %v2173 = vsel %vm470, %v2135, 0
        %v2176 = vsel %vm470, %v2137, 0
        %v2179 = vsel %vm470, %v2139, 0
        %v2182 = vsel %vm470, %v2141, 0
        %v2185 = vsel %vm470, %v2143, 0
        %v2188 = vsel %vm470, %v2145, 0
        %v2191 = vsel %vm470, %v2147, 0
        %v2194 = vsel %vm470, %v2149, 0
        %v2197 = vsel %vm470, %v2151, 0
        %v2200 = vsel %vm470, %v2153, 0
        %v2203 = vsel %vm470, %v2155, 0
        %v2206 = vsel %vm470, %v2157, 0
        %v2209 = vsel %vm470, %v2159, 0
        %v2212 = vsel %vm470, %v2161, 0
        %v2215 = vsel %vm470, %v2163, 0
        %v2218 = vsel %vm470, %v2165, 0
        %v2221 = vsel %vm525, %v2124, 0
        %2223 = vmatprep.subr.bf16.mxu0 0
        %2224 = vmatpush1.bf16.msra.mxu0 0
        %2225 = vmatprep.subr.bf16.mxu0 0
        %2226 = vmatpush1.bf16.msra.mxu0 0
        %2227 = vmatprep.subr.bf16.mxu0 0
        %2228 = vmatpush1.bf16.msra.mxu0 0
        %2229 = vmatprep.subr.bf16.mxu0 0
        %2230 = vmatpush1.bf16.msra.mxu0 0
        %2231 = vmatprep.subr.bf16.mxu0 0
        %2232 = vmatpush1.bf16.msra.mxu0 0
        %2233 = vmatprep.subr.bf16.mxu0 0
        %2234 = vmatpush1.bf16.msra.mxu0 0
        %2235 = vmatprep.subr.bf16.mxu0 0
        %2236 = vmatpush1.bf16.msra.mxu0 0
        %2237 = vmatprep.subr.bf16.mxu0 0
        %2238 = vmatpush1.bf16.msra.mxu0 %v2221
        %2239 = vmatprep.subr.bf16.mxu0 0
        %2240 = vmatpush2.bf16.msra.mxu0 0
        %2241 = vmatprep.subr.bf16.mxu0 0
        %2242 = vmatpush2.bf16.msra.mxu0 0
        %2243 = vmatprep.subr.bf16.mxu0 0
        %2244 = vmatpush2.bf16.msra.mxu0 0
        %2245 = vmatprep.subr.bf16.mxu0 0
        %2246 = vmatpush2.bf16.msra.mxu0 0
        %2247 = vmatprep.subr.bf16.mxu0 0
        %2248 = vmatpush2.bf16.msra.mxu0 0
        %2249 = vmatprep.subr.bf16.mxu0 0
        %2250 = vmatpush2.bf16.msra.mxu0 0
        %2251 = vmatprep.subr.bf16.mxu0 0
        %2252 = vmatpush2.bf16.msra.mxu0 0
        %2253 = vmatprep.subr.bf16.mxu0 0
        %2254 = vmatpush2.bf16.msra.mxu0 0
        %2255 = vmatprep.mubr.bf16.mxu0 0
        %2256 = vmatmul.mubr.bf16.gmra.mxu0 %v2167
        %v2257 = vpop.f32.mrf.mxu0
        %v2258 = vadd.f32 0.0, %v2257
        %v2259 = vpop.f32.mrf.mxu0
        %v2260 = vpop.f32.mrf.mxu0
        %v2261 = vadd.f32 0.0, %v2260
        %v2262 = vpop.f32.mrf.mxu0
        %2263 = vmatprep.mubr.bf16.mxu0 0
        %2264 = vmatmul.mubr.bf16.gmra.mxu0 %v2170
        %v2265 = vpop.f32.mrf.mxu0
        %v2266 = vadd.f32 0.0, %v2265
        %v2267 = vpop.f32.mrf.mxu0
        %v2268 = vpop.f32.mrf.mxu0
        %v2269 = vadd.f32 0.0, %v2268
        %v2270 = vpop.f32.mrf.mxu0
        %2271 = vmatprep.mubr.bf16.mxu0 0
        %2272 = vmatmul.mubr.bf16.gmra.mxu0 %v2173
        %v2273 = vpop.f32.mrf.mxu0
        %v2274 = vadd.f32 0.0, %v2273
        %v2275 = vpop.f32.mrf.mxu0
        %v2276 = vpop.f32.mrf.mxu0
        %v2277 = vadd.f32 0.0, %v2276
        %v2278 = vpop.f32.mrf.mxu0
        %2279 = vmatprep.mubr.bf16.mxu0 0
        %2280 = vmatmul.mubr.bf16.gmra.mxu0 %v2176
        %v2281 = vpop.f32.mrf.mxu0
        %v2282 = vadd.f32 0.0, %v2281
        %v2283 = vpop.f32.mrf.mxu0
        %v2284 = vpop.f32.mrf.mxu0
        %v2285 = vadd.f32 0.0, %v2284
        %v2286 = vpop.f32.mrf.mxu0
        %2287 = vmatprep.mubr.bf16.mxu0 0
        %2288 = vmatmul.mubr.bf16.gmra.mxu0 %v2179
        %v2289 = vpop.f32.mrf.mxu0
        %v2290 = vadd.f32 0.0, %v2289
        %v2291 = vpop.f32.mrf.mxu0
        %v2292 = vpop.f32.mrf.mxu0
        %v2293 = vadd.f32 0.0, %v2292
        %v2294 = vpop.f32.mrf.mxu0
        %2295 = vmatprep.mubr.bf16.mxu0 0
        %2296 = vmatmul.mubr.bf16.gmra.mxu0 %v2182
        %v2297 = vpop.f32.mrf.mxu0
        %v2298 = vadd.f32 0.0, %v2297
        %v2299 = vpop.f32.mrf.mxu0
        %v2300 = vpop.f32.mrf.mxu0
        %v2301 = vadd.f32 0.0, %v2300
        %v2302 = vpop.f32.mrf.mxu0
        %2303 = vmatprep.mubr.bf16.mxu0 0
        %2304 = vmatmul.mubr.bf16.gmra.mxu0 %v2185
        %v2305 = vpop.f32.mrf.mxu0
        %v2306 = vadd.f32 0.0, %v2305
        %v2307 = vpop.f32.mrf.mxu0
        %v2308 = vpop.f32.mrf.mxu0
        %v2309 = vadd.f32 0.0, %v2308
        %v2310 = vpop.f32.mrf.mxu0
        %2311 = vmatprep.mubr.bf16.mxu0 0
        %2312 = vmatmul.mubr.bf16.gmra.mxu0 %v2188
        %v2313 = vpop.f32.mrf.mxu0
        %v2314 = vadd.f32 0.0, %v2313
        %v2315 = vpop.f32.mrf.mxu0
        %v2316 = vpop.f32.mrf.mxu0
        %v2317 = vadd.f32 0.0, %v2316
        %v2318 = vpop.f32.mrf.mxu0
        %2319 = vmatprep.mubr.bf16.mxu0 0
        %2320 = vmatmul.mubr.bf16.gmra.mxu0 %v2191
        %v2321 = vpop.f32.mrf.mxu0
        %v2322 = vadd.f32 0.0, %v2321
        %v2323 = vpop.f32.mrf.mxu0
        %v2324 = vpop.f32.mrf.mxu0
        %v2325 = vadd.f32 0.0, %v2324
        %v2326 = vpop.f32.mrf.mxu0
        %2327 = vmatprep.mubr.bf16.mxu0 0
        %2328 = vmatmul.mubr.bf16.gmra.mxu0 %v2194
        %v2329 = vpop.f32.mrf.mxu0
        %v2330 = vadd.f32 0.0, %v2329
        %v2331 = vpop.f32.mrf.mxu0
        %v2332 = vpop.f32.mrf.mxu0
        %v2333 = vadd.f32 0.0, %v2332
        %v2334 = vpop.f32.mrf.mxu0
        %2335 = vmatprep.mubr.bf16.mxu0 0
        %2336 = vmatmul.mubr.bf16.gmra.mxu0 %v2197
        %v2337 = vpop.f32.mrf.mxu0
        %v2338 = vadd.f32 0.0, %v2337
        %v2339 = vpop.f32.mrf.mxu0
        %v2340 = vpop.f32.mrf.mxu0
        %v2341 = vadd.f32 0.0, %v2340
        %v2342 = vpop.f32.mrf.mxu0
        %2343 = vmatprep.mubr.bf16.mxu0 0
        %2344 = vmatmul.mubr.bf16.gmra.mxu0 %v2200
        %v2345 = vpop.f32.mrf.mxu0
        %v2346 = vadd.f32 0.0, %v2345
        %v2347 = vpop.f32.mrf.mxu0
        %v2348 = vpop.f32.mrf.mxu0
        %v2349 = vadd.f32 0.0, %v2348
        %v2350 = vpop.f32.mrf.mxu0
        %2351 = vmatprep.mubr.bf16.mxu0 0
        %2352 = vmatmul.mubr.bf16.gmra.mxu0 %v2203
        %v2353 = vpop.f32.mrf.mxu0
        %v2354 = vadd.f32 0.0, %v2353
        %v2355 = vpop.f32.mrf.mxu0
        %v2356 = vpop.f32.mrf.mxu0
        %v2357 = vadd.f32 0.0, %v2356
        %v2358 = vpop.f32.mrf.mxu0
        %2359 = vmatprep.mubr.bf16.mxu0 0
        %2360 = vmatmul.mubr.bf16.gmra.mxu0 %v2206
        %v2361 = vpop.f32.mrf.mxu0
        %v2362 = vadd.f32 0.0, %v2361
        %v2363 = vpop.f32.mrf.mxu0
        %v2364 = vpop.f32.mrf.mxu0
        %v2365 = vadd.f32 0.0, %v2364
        %v2366 = vpop.f32.mrf.mxu0
        %2367 = vmatprep.mubr.bf16.mxu0 0
        %2368 = vmatmul.mubr.bf16.gmra.mxu0 %v2209
        %v2369 = vpop.f32.mrf.mxu0
        %v2370 = vadd.f32 0.0, %v2369
        %v2371 = vpop.f32.mrf.mxu0
        %v2372 = vpop.f32.mrf.mxu0
        %v2373 = vadd.f32 0.0, %v2372
        %v2374 = vpop.f32.mrf.mxu0
        %2375 = vmatprep.mubr.bf16.mxu0 0
        %2376 = vmatmul.mubr.bf16.gmra.mxu0 %v2212
        %v2377 = vpop.f32.mrf.mxu0
        %v2378 = vadd.f32 0.0, %v2377
        %v2379 = vpop.f32.mrf.mxu0
        %v2380 = vpop.f32.mrf.mxu0
        %v2381 = vadd.f32 0.0, %v2380
        %v2382 = vpop.f32.mrf.mxu0
        %2383 = vmatprep.mubr.bf16.mxu0 0
        %2384 = vmatmul.mubr.bf16.gmra.mxu0 %v2215
        %v2385 = vpop.f32.mrf.mxu0
        %v2386 = vadd.f32 0.0, %v2385
        %v2387 = vpop.f32.mrf.mxu0
        %v2388 = vpop.f32.mrf.mxu0
        %v2389 = vadd.f32 0.0, %v2388
        %v2390 = vpop.f32.mrf.mxu0
        %2391 = vmatprep.mubr.bf16.mxu0 0
        %2392 = vmatmul.mubr.bf16.gmra.mxu0 %v2218
        %v2393 = vpop.f32.mrf.mxu0
        %v2394 = vadd.f32 0.0, %v2393
        %v2395 = vpop.f32.mrf.mxu0
        %v2396 = vpop.f32.mrf.mxu0
        %v2397 = vadd.f32 0.0, %v2396
        %v2398 = vpop.f32.mrf.mxu0
        %2399 = vdwg.mxu0
        %v2400 = vadd.f32 %v2086, %v2258
        %v2401 = vadd.f32 %v2087, %v2261
        %v2402 = vadd.f32 %v2088, %v2266
        %v2403 = vadd.f32 %v2089, %v2269
        %v2404 = vadd.f32 %v2090, %v2274
        %v2405 = vadd.f32 %v2091, %v2277
        %v2406 = vadd.f32 %v2092, %v2282
        %v2407 = vadd.f32 %v2093, %v2285
        %v2408 = vadd.f32 %v2094, %v2290
        %v2409 = vadd.f32 %v2095, %v2293
        %v2410 = vadd.f32 %v2096, %v2298
        %v2411 = vadd.f32 %v2097, %v2301
        %v2412 = vadd.f32 %v2098, %v2306
        %v2413 = vadd.f32 %v2099, %v2309
        %v2414 = vadd.f32 %v2100, %v2314
        %v2415 = vadd.f32 %v2101, %v2317
        %v2416 = vadd.f32 %v2102, %v2322
        %v2417 = vadd.f32 %v2103, %v2325
        %v2418 = vadd.f32 %v2104, %v2330
        %v2419 = vadd.f32 %v2105, %v2333
        %v2420 = vadd.f32 %v2106, %v2338
        %v2421 = vadd.f32 %v2107, %v2341
        %v2422 = vadd.f32 %v2108, %v2346
        %v2423 = vadd.f32 %v2109, %v2349
        %v2424 = vadd.f32 %v2110, %v2354
        %v2425 = vadd.f32 %v2111, %v2357
        %v2426 = vadd.f32 %v2112, %v2362
        %v2427 = vadd.f32 %v2113, %v2365
        %v2428 = vadd.f32 %v2114, %v2370
        %v2429 = vadd.f32 %v2115, %v2373
        %v2430 = vadd.f32 %v2116, %v2378
        %v2431 = vadd.f32 %v2117, %v2381
        %v2432 = vadd.f32 %v2118, %v2386
        %v2433 = vadd.f32 %v2119, %v2389
        %v2434 = vadd.f32 %v2120, %v2394
        %v2435 = vadd.f32 %v2121, %v2397
        %v2436 = vld [vmem:[%s178 + $0x10] sm:$0xc]
        %v2437 = vld [vmem:[%s178 + $0x14] sm:$0xf]
        %v2438 = vld [vmem:[%s178 + $0x18] sm:$0xf]
        %v2439 = vld [vmem:[%s178 + $0x1c] sm:$0xf]
        %v2440 = vld [vmem:[%s178 + $0x20] sm:$0xf]
        %v2441 = vld [vmem:[%s178 + $0x24] sm:$0xf]
        %v2442 = vld [vmem:[%s178 + $0x28] sm:$0xf]
        %v2443 = vld [vmem:[%s178 + $0x2c] sm:$0xf]
        %v2444 = vld [vmem:[%s178 + $0x30] sm:$0xf]
        %v2445 = vld [vmem:[%s178 + $0x34] sm:$0xf]
        %v2446 = vld [vmem:[%s178 + $0x38] sm:$0xf]
        %v2447 = vld [vmem:[%s178 + $0x3c] sm:$0xf]
        %v2448 = vld [vmem:[%s178 + $0x40] sm:$0xf]
        %v2449 = vld [vmem:[%s178 + $0x44] sm:$0xf]
        %v2450 = vld [vmem:[%s178 + $0x48] sm:$0xf]
        %v2451 = vld [vmem:[%s178 + $0x4c] sm:$0xf]
        %v2452 = vld [vmem:[%s178 + $0x50] sm:$0xf]
        %v2453 = vld [vmem:[%s178 + $0x54] sm:$0xf]
        %v2454 = vld [vmem:[%s178 + $0x58] sm:$0xf]
        %v2455 = vld [vmem:[%s178 + $0x5c] sm:$0xf]
        %v2456 = vld [vmem:[%s178 + $0x60] sm:$0xf]
        %v2457 = vld [vmem:[%s178 + $0x64] sm:$0xf]
        %v2458 = vld [vmem:[%s178 + $0x68] sm:$0xf]
        %v2459 = vld [vmem:[%s178 + $0x6c] sm:$0xf]
        %v2460 = vld [vmem:[%s178 + $0x70] sm:$0xf]
        %v2461 = vld [vmem:[%s178 + $0x74] sm:$0xf]
        %v2462 = vld [vmem:[%s178 + $0x78] sm:$0xf]
        %v2463 = vld [vmem:[%s178 + $0x7c] sm:$0xf]
        %v2464 = vld [vmem:[%s178 + $0x80] sm:$0xf]
        %v2465 = vld [vmem:[%s178 + $0x84] sm:$0xf]
        %v2466 = vld [vmem:[%s178 + $0x88] sm:$0xf]
        %v2467 = vld [vmem:[%s178 + $0x8c] sm:$0xf]
        %v2468 = vld [vmem:[%s178 + $0x90] sm:$0xf]
        %v2469 = vld [vmem:[%s178 + $0x94] sm:$0xf]
        %v2470 = vld [vmem:[%s178 + $0x98] sm:$0xf]
        %v2471 = vld [vmem:[%s178 + $0x9c] sm:$0xf]
        %v2472 = vld [vmem:[%s178 + $0xa0] sm:$0x3]
        %s2473 = scalar_lea.vmem %s186, 12
        %v2474 = vld [vmem:[%s2473] sm:$0x3]
        %v2512 = vunpack.c.l.b16 %v2436
        %v2513 = vunpack.c.l.b16 %v2437
        %v2514 = vunpack.c.l.b16 %v2438
        %v2515 = vunpack.c.l.b16 %v2439
        %v2516 = vunpack.c.l.b16 %v2440
        %v2517 = vunpack.c.l.b16 %v2441
        %v2518 = vunpack.c.l.b16 %v2442
        %v2519 = vunpack.c.l.b16 %v2443
        %v2520 = vunpack.c.l.b16 %v2444
        %v2521 = vunpack.c.l.b16 %v2445
        %v2522 = vunpack.c.l.b16 %v2446
        %v2523 = vunpack.c.l.b16 %v2447
        %v2524 = vunpack.c.l.b16 %v2448
        %v2525 = vunpack.c.l.b16 %v2449
        %v2526 = vunpack.c.l.b16 %v2450
        %v2527 = vunpack.c.l.b16 %v2451
        %v2528 = vunpack.c.l.b16 %v2452
        %v2529 = vunpack.c.l.b16 %v2453
        %v2530 = vunpack.c.l.b16 %v2454
        %v2531 = vunpack.c.l.b16 %v2455
        %v2532 = vunpack.c.l.b16 %v2456
        %v2533 = vunpack.c.l.b16 %v2457
        %v2534 = vunpack.c.l.b16 %v2458
        %v2535 = vunpack.c.l.b16 %v2459
        %v2536 = vunpack.c.l.b16 %v2460
        %v2537 = vunpack.c.l.b16 %v2461
        %v2538 = vunpack.c.l.b16 %v2462
        %v2539 = vunpack.c.l.b16 %v2463
        %v2540 = vunpack.c.l.b16 %v2464
        %v2541 = vunpack.c.l.b16 %v2465
        %v2542 = vunpack.c.l.b16 %v2466
        %v2543 = vunpack.c.l.b16 %v2467
        %v2544 = vunpack.c.l.b16 %v2468
        %v2545 = vunpack.c.l.b16 %v2469
        %v2546 = vunpack.c.l.b16 %v2470
        %v2547 = vunpack.c.l.b16 %v2471
        %v2548 = vunpack.c.l.b16 %v2472
        %v2549 = vpack.c.b16 %v2513, %v2512
        %v2550 = vpack.c.b16 %v2515, %v2514
        %v2551 = vpack.c.b16 %v2517, %v2516
        %v2552 = vpack.c.b16 %v2519, %v2518
        %v2553 = vpack.c.b16 %v2521, %v2520
        %v2554 = vpack.c.b16 %v2523, %v2522
        %v2555 = vpack.c.b16 %v2525, %v2524
        %v2556 = vpack.c.b16 %v2527, %v2526
        %v2557 = vpack.c.b16 %v2529, %v2528
        %v2558 = vpack.c.b16 %v2531, %v2530
        %v2559 = vpack.c.b16 %v2533, %v2532
        %v2560 = vpack.c.b16 %v2535, %v2534
        %v2561 = vpack.c.b16 %v2537, %v2536
        %v2562 = vpack.c.b16 %v2539, %v2538
        %v2563 = vpack.c.b16 %v2541, %v2540
        %v2564 = vpack.c.b16 %v2543, %v2542
        %v2565 = vpack.c.b16 %v2545, %v2544
        %v2566 = vpack.c.b16 %v2547, %v2546
        %v2567 = vpack.c.b16 %v2548, %v2548
        %v2568 = vrot.slane %v2549, 2
        %v2569 = vrot.slane %v2550, 2
        %v2570 = vsel %vm2128, %v2568, %v2569
        %v2571 = vrot.slane %v2551, 2
        %v2572 = vsel %vm2128, %v2569, %v2571
        %v2573 = vrot.slane %v2552, 2
        %v2574 = vsel %vm2128, %v2571, %v2573
        %v2575 = vrot.slane %v2553, 2
        %v2576 = vsel %vm2128, %v2573, %v2575
        %v2577 = vrot.slane %v2554, 2
        %v2578 = vsel %vm2128, %v2575, %v2577
        %v2579 = vrot.slane %v2555, 2
        %v2580 = vsel %vm2128, %v2577, %v2579
        %v2581 = vrot.slane %v2556, 2
        %v2582 = vsel %vm2128, %v2579, %v2581
        %v2583 = vrot.slane %v2557, 2
        %v2584 = vsel %vm2128, %v2581, %v2583
        %v2585 = vrot.slane %v2558, 2
        %v2586 = vsel %vm2128, %v2583, %v2585
        %v2587 = vrot.slane %v2559, 2
        %v2588 = vsel %vm2128, %v2585, %v2587
        %v2589 = vrot.slane %v2560, 2
        %v2590 = vsel %vm2128, %v2587, %v2589
        %v2591 = vrot.slane %v2561, 2
        %v2592 = vsel %vm2128, %v2589, %v2591
        %v2593 = vrot.slane %v2562, 2
        %v2594 = vsel %vm2128, %v2591, %v2593
        %v2595 = vrot.slane %v2563, 2
        %v2596 = vsel %vm2128, %v2593, %v2595
        %v2597 = vrot.slane %v2564, 2
        %v2598 = vsel %vm2128, %v2595, %v2597
        %v2599 = vrot.slane %v2565, 2
        %v2600 = vsel %vm2128, %v2597, %v2599
        %v2601 = vrot.slane %v2566, 2
        %v2602 = vsel %vm2128, %v2599, %v2601
        %v2603 = vrot.slane %v2567, 2
        %v2604 = vsel %vm2128, %v2601, %v2603
        %v2606 = vsel %vm470, %v2570, 0
        %v2609 = vsel %vm470, %v2572, 0
        %v2612 = vsel %vm470, %v2574, 0
        %v2615 = vsel %vm470, %v2576, 0
        %v2618 = vsel %vm470, %v2578, 0
        %v2621 = vsel %vm470, %v2580, 0
        %v2624 = vsel %vm470, %v2582, 0
        %v2627 = vsel %vm470, %v2584, 0
        %v2630 = vsel %vm470, %v2586, 0
        %v2633 = vsel %vm470, %v2588, 0
        %v2636 = vsel %vm470, %v2590, 0
        %v2639 = vsel %vm470, %v2592, 0
        %v2642 = vsel %vm470, %v2594, 0
        %v2645 = vsel %vm470, %v2596, 0
        %v2648 = vsel %vm470, %v2598, 0
        %v2651 = vsel %vm470, %v2600, 0
        %v2654 = vsel %vm470, %v2602, 0
        %v2657 = vsel %vm470, %v2604, 0
        %v2660 = vsel %vm525, %v2474, 0
        %2662 = vmatprep.subr.bf16.mxu0 0
        %2663 = vmatpush1.bf16.msra.mxu0 0
        %2664 = vmatprep.subr.bf16.mxu0 0
        %2665 = vmatpush1.bf16.msra.mxu0 0
        %2666 = vmatprep.subr.bf16.mxu0 0
        %2667 = vmatpush1.bf16.msra.mxu0 0
        %2668 = vmatprep.subr.bf16.mxu0 0
        %2669 = vmatpush1.bf16.msra.mxu0 0
        %2670 = vmatprep.subr.bf16.mxu0 0
        %2671 = vmatpush1.bf16.msra.mxu0 0
        %2672 = vmatprep.subr.bf16.mxu0 0
        %2673 = vmatpush1.bf16.msra.mxu0 0
        %2674 = vmatprep.subr.bf16.mxu0 0
        %2675 = vmatpush1.bf16.msra.mxu0 0
        %2676 = vmatprep.subr.bf16.mxu0 0
        %2677 = vmatpush1.bf16.msra.mxu0 %v2660
        %2678 = vmatprep.subr.bf16.mxu0 0
        %2679 = vmatpush2.bf16.msra.mxu0 0
        %2680 = vmatprep.subr.bf16.mxu0 0
        %2681 = vmatpush2.bf16.msra.mxu0 0
        %2682 = vmatprep.subr.bf16.mxu0 0
        %2683 = vmatpush2.bf16.msra.mxu0 0
        %2684 = vmatprep.subr.bf16.mxu0 0
        %2685 = vmatpush2.bf16.msra.mxu0 0
        %2686 = vmatprep.subr.bf16.mxu0 0
        %2687 = vmatpush2.bf16.msra.mxu0 0
        %2688 = vmatprep.subr.bf16.mxu0 0
        %2689 = vmatpush2.bf16.msra.mxu0 0
        %2690 = vmatprep.subr.bf16.mxu0 0
        %2691 = vmatpush2.bf16.msra.mxu0 0
        %2692 = vmatprep.subr.bf16.mxu0 0
        %2693 = vmatpush2.bf16.msra.mxu0 0
        %2694 = vmatprep.mubr.bf16.mxu0 0
        %2695 = vmatmul.mubr.bf16.gmra.mxu0 %v2606
        %v2696 = vpop.f32.mrf.mxu0
        %v2697 = vadd.f32 0.0, %v2696
        %v2698 = vpop.f32.mrf.mxu0
        %v2699 = vpop.f32.mrf.mxu0
        %v2700 = vadd.f32 0.0, %v2699
        %v2701 = vpop.f32.mrf.mxu0
        %2702 = vmatprep.mubr.bf16.mxu0 0
        %2703 = vmatmul.mubr.bf16.gmra.mxu0 %v2609
        %v2704 = vpop.f32.mrf.mxu0
        %v2705 = vadd.f32 0.0, %v2704
        %v2706 = vpop.f32.mrf.mxu0
        %v2707 = vpop.f32.mrf.mxu0
        %v2708 = vadd.f32 0.0, %v2707
        %v2709 = vpop.f32.mrf.mxu0
        %2710 = vmatprep.mubr.bf16.mxu0 0
        %2711 = vmatmul.mubr.bf16.gmra.mxu0 %v2612
        %v2712 = vpop.f32.mrf.mxu0
        %v2713 = vadd.f32 0.0, %v2712
        %v2714 = vpop.f32.mrf.mxu0
        %v2715 = vpop.f32.mrf.mxu0
        %v2716 = vadd.f32 0.0, %v2715
        %v2717 = vpop.f32.mrf.mxu0
        %2718 = vmatprep.mubr.bf16.mxu0 0
        %2719 = vmatmul.mubr.bf16.gmra.mxu0 %v2615
        %v2720 = vpop.f32.mrf.mxu0
        %v2721 = vadd.f32 0.0, %v2720
        %v2722 = vpop.f32.mrf.mxu0
        %v2723 = vpop.f32.mrf.mxu0
        %v2724 = vadd.f32 0.0, %v2723
        %v2725 = vpop.f32.mrf.mxu0
        %2726 = vmatprep.mubr.bf16.mxu0 0
        %2727 = vmatmul.mubr.bf16.gmra.mxu0 %v2618
        %v2728 = vpop.f32.mrf.mxu0
        %v2729 = vadd.f32 0.0, %v2728
        %v2730 = vpop.f32.mrf.mxu0
        %v2731 = vpop.f32.mrf.mxu0
        %v2732 = vadd.f32 0.0, %v2731
        %v2733 = vpop.f32.mrf.mxu0
        %2734 = vmatprep.mubr.bf16.mxu0 0
        %2735 = vmatmul.mubr.bf16.gmra.mxu0 %v2621
        %v2736 = vpop.f32.mrf.mxu0
        %v2737 = vadd.f32 0.0, %v2736
        %v2738 = vpop.f32.mrf.mxu0
        %v2739 = vpop.f32.mrf.mxu0
        %v2740 = vadd.f32 0.0, %v2739
        %v2741 = vpop.f32.mrf.mxu0
        %2742 = vmatprep.mubr.bf16.mxu0 0
        %2743 = vmatmul.mubr.bf16.gmra.mxu0 %v2624
        %v2744 = vpop.f32.mrf.mxu0
        %v2745 = vadd.f32 0.0, %v2744
        %v2746 = vpop.f32.mrf.mxu0
        %v2747 = vpop.f32.mrf.mxu0
        %v2748 = vadd.f32 0.0, %v2747
        %v2749 = vpop.f32.mrf.mxu0
        %2750 = vmatprep.mubr.bf16.mxu0 0
        %2751 = vmatmul.mubr.bf16.gmra.mxu0 %v2627
        %v2752 = vpop.f32.mrf.mxu0
        %v2753 = vadd.f32 0.0, %v2752
        %v2754 = vpop.f32.mrf.mxu0
        %v2755 = vpop.f32.mrf.mxu0
        %v2756 = vadd.f32 0.0, %v2755
        %v2757 = vpop.f32.mrf.mxu0
        %2758 = vmatprep.mubr.bf16.mxu0 0
        %2759 = vmatmul.mubr.bf16.gmra.mxu0 %v2630
        %v2760 = vpop.f32.mrf.mxu0
        %v2761 = vadd.f32 0.0, %v2760
        %v2762 = vpop.f32.mrf.mxu0
        %v2763 = vpop.f32.mrf.mxu0
        %v2764 = vadd.f32 0.0, %v2763
        %v2765 = vpop.f32.mrf.mxu0
        %2766 = vmatprep.mubr.bf16.mxu0 0
        %2767 = vmatmul.mubr.bf16.gmra.mxu0 %v2633
        %v2768 = vpop.f32.mrf.mxu0
        %v2769 = vadd.f32 0.0, %v2768
        %v2770 = vpop.f32.mrf.mxu0
        %v2771 = vpop.f32.mrf.mxu0
        %v2772 = vadd.f32 0.0, %v2771
        %v2773 = vpop.f32.mrf.mxu0
        %2774 = vmatprep.mubr.bf16.mxu0 0
        %2775 = vmatmul.mubr.bf16.gmra.mxu0 %v2636
        %v2776 = vpop.f32.mrf.mxu0
        %v2777 = vadd.f32 0.0, %v2776
        %v2778 = vpop.f32.mrf.mxu0
        %v2779 = vpop.f32.mrf.mxu0
        %v2780 = vadd.f32 0.0, %v2779
        %v2781 = vpop.f32.mrf.mxu0
        %2782 = vmatprep.mubr.bf16.mxu0 0
        %2783 = vmatmul.mubr.bf16.gmra.mxu0 %v2639
        %v2784 = vpop.f32.mrf.mxu0
        %v2785 = vadd.f32 0.0, %v2784
        %v2786 = vpop.f32.mrf.mxu0
        %v2787 = vpop.f32.mrf.mxu0
        %v2788 = vadd.f32 0.0, %v2787
        %v2789 = vpop.f32.mrf.mxu0
        %2790 = vmatprep.mubr.bf16.mxu0 0
        %2791 = vmatmul.mubr.bf16.gmra.mxu0 %v2642
        %v2792 = vpop.f32.mrf.mxu0
        %v2793 = vadd.f32 0.0, %v2792
        %v2794 = vpop.f32.mrf.mxu0
        %v2795 = vpop.f32.mrf.mxu0
        %v2796 = vadd.f32 0.0, %v2795
        %v2797 = vpop.f32.mrf.mxu0
        %2798 = vmatprep.mubr.bf16.mxu0 0
        %2799 = vmatmul.mubr.bf16.gmra.mxu0 %v2645
        %v2800 = vpop.f32.mrf.mxu0
        %v2801 = vadd.f32 0.0, %v2800
        %v2802 = vpop.f32.mrf.mxu0
        %v2803 = vpop.f32.mrf.mxu0
        %v2804 = vadd.f32 0.0, %v2803
        %v2805 = vpop.f32.mrf.mxu0
        %2806 = vmatprep.mubr.bf16.mxu0 0
        %2807 = vmatmul.mubr.bf16.gmra.mxu0 %v2648
        %v2808 = vpop.f32.mrf.mxu0
        %v2809 = vadd.f32 0.0, %v2808
        %v2810 = vpop.f32.mrf.mxu0
        %v2811 = vpop.f32.mrf.mxu0
        %v2812 = vadd.f32 0.0, %v2811
        %v2813 = vpop.f32.mrf.mxu0
        %2814 = vmatprep.mubr.bf16.mxu0 0
        %2815 = vmatmul.mubr.bf16.gmra.mxu0 %v2651
        %v2816 = vpop.f32.mrf.mxu0
        %v2817 = vadd.f32 0.0, %v2816
        %v2818 = vpop.f32.mrf.mxu0
        %v2819 = vpop.f32.mrf.mxu0
        %v2820 = vadd.f32 0.0, %v2819
        %v2821 = vpop.f32.mrf.mxu0
        %2822 = vmatprep.mubr.bf16.mxu0 0
        %2823 = vmatmul.mubr.bf16.gmra.mxu0 %v2654
        %v2824 = vpop.f32.mrf.mxu0
        %v2825 = vadd.f32 0.0, %v2824
        %v2826 = vpop.f32.mrf.mxu0
        %v2827 = vpop.f32.mrf.mxu0
        %v2828 = vadd.f32 0.0, %v2827
        %v2829 = vpop.f32.mrf.mxu0
        %2830 = vmatprep.mubr.bf16.mxu0 0
        %2831 = vmatmul.mubr.bf16.gmra.mxu0 %v2657
        %v2832 = vpop.f32.mrf.mxu0
        %v2833 = vadd.f32 0.0, %v2832
        %v2834 = vpop.f32.mrf.mxu0
        %v2835 = vpop.f32.mrf.mxu0
        %v2836 = vadd.f32 0.0, %v2835
        %v2837 = vpop.f32.mrf.mxu0
        %2838 = vdwg.mxu0
        %v2839 = vadd.f32 %v2400, %v2697
        %v2840 = vadd.f32 %v2401, %v2700
        %v2841 = vadd.f32 %v2402, %v2705
        %v2842 = vadd.f32 %v2403, %v2708
        %v2843 = vadd.f32 %v2404, %v2713
        %v2844 = vadd.f32 %v2405, %v2716
        %v2845 = vadd.f32 %v2406, %v2721
        %v2846 = vadd.f32 %v2407, %v2724
        %v2847 = vadd.f32 %v2408, %v2729
        %v2848 = vadd.f32 %v2409, %v2732
        %v2849 = vadd.f32 %v2410, %v2737
        %v2850 = vadd.f32 %v2411, %v2740
        %v2851 = vadd.f32 %v2412, %v2745
        %v2852 = vadd.f32 %v2413, %v2748
        %v2853 = vadd.f32 %v2414, %v2753
        %v2854 = vadd.f32 %v2415, %v2756
        %v2855 = vadd.f32 %v2416, %v2761
        %v2856 = vadd.f32 %v2417, %v2764
        %v2857 = vadd.f32 %v2418, %v2769
        %v2858 = vadd.f32 %v2419, %v2772
        %v2859 = vadd.f32 %v2420, %v2777
        %v2860 = vadd.f32 %v2421, %v2780
        %v2861 = vadd.f32 %v2422, %v2785
        %v2862 = vadd.f32 %v2423, %v2788
        %v2863 = vadd.f32 %v2424, %v2793
        %v2864 = vadd.f32 %v2425, %v2796
        %v2865 = vadd.f32 %v2426, %v2801
        %v2866 = vadd.f32 %v2427, %v2804
        %v2867 = vadd.f32 %v2428, %v2809
        %v2868 = vadd.f32 %v2429, %v2812
        %v2869 = vadd.f32 %v2430, %v2817
        %v2870 = vadd.f32 %v2431, %v2820
        %v2871 = vadd.f32 %v2432, %v2825
        %v2872 = vadd.f32 %v2433, %v2828
        %v2873 = vadd.f32 %v2434, %v2833
        %v2874 = vadd.f32 %v2435, %v2836
        %v2875 = vld [vmem:[%s178 + $0xa0] sm:$0x7]
        %s2876 = scalar_lea.vmem %s186, 14
        %v2877 = vld [vmem:[%s2876] sm:$0x3]
        %v2879 = vunpack.c.l.b16 %v2875
        %v2880 = vpack.c.b16 %v2879, %v2879
        %vm2881 = vsmask.f32 5376
        %v2883 = vshrl.u32 %v2549, 16
        %v2885 = vrot.slane %v2883, 2
        %v2886 = vshll.u32 %v2549, 16
        %v2888 = vrot.slane %v2886, 3
        %v2889 = vor.u32 %v2885, %v2888
        %v2891 = vshrl.u32 %v2550, 16
        %v2893 = vrot.slane %v2891, 2
        %v2894 = vshll.u32 %v2550, 16
        %v2896 = vrot.slane %v2894, 3
        %v2897 = vor.u32 %v2893, %v2896
        %v2898 = vsel %vm2881, %v2889, %v2897
        %v2900 = vshrl.u32 %v2551, 16
        %v2902 = vrot.slane %v2900, 2
        %v2903 = vshll.u32 %v2551, 16
        %v2905 = vrot.slane %v2903, 3
        %v2906 = vor.u32 %v2902, %v2905
        %v2907 = vsel %vm2881, %v2897, %v2906
        %v2909 = vshrl.u32 %v2552, 16
        %v2911 = vrot.slane %v2909, 2
        %v2912 = vshll.u32 %v2552, 16
        %v2914 = vrot.slane %v2912, 3
        %v2915 = vor.u32 %v2911, %v2914
        %v2916 = vsel %vm2881, %v2906, %v2915
        %v2918 = vshrl.u32 %v2553, 16
        %v2920 = vrot.slane %v2918, 2
        %v2921 = vshll.u32 %v2553, 16
        %v2923 = vrot.slane %v2921, 3
        %v2924 = vor.u32 %v2920, %v2923
        %v2925 = vsel %vm2881, %v2915, %v2924
        %v2927 = vshrl.u32 %v2554, 16
        %v2929 = vrot.slane %v2927, 2
        %v2930 = vshll.u32 %v2554, 16
        %v2932 = vrot.slane %v2930, 3
        %v2933 = vor.u32 %v2929, %v2932
        %v2934 = vsel %vm2881, %v2924, %v2933
        %v2936 = vshrl.u32 %v2555, 16
        %v2938 = vrot.slane %v2936, 2
        %v2939 = vshll.u32 %v2555, 16
        %v2941 = vrot.slane %v2939, 3
        %v2942 = vor.u32 %v2938, %v2941
        %v2943 = vsel %vm2881, %v2933, %v2942
        %v2945 = vshrl.u32 %v2556, 16
        %v2947 = vrot.slane %v2945, 2
        %v2948 = vshll.u32 %v2556, 16
        %v2950 = vrot.slane %v2948, 3
        %v2951 = vor.u32 %v2947, %v2950
        %v2952 = vsel %vm2881, %v2942, %v2951
        %v2954 = vshrl.u32 %v2557, 16
        %v2956 = vrot.slane %v2954, 2
        %v2957 = vshll.u32 %v2557, 16
        %v2959 = vrot.slane %v2957, 3
        %v2960 = vor.u32 %v2956, %v2959
        %v2961 = vsel %vm2881, %v2951, %v2960
        %v2963 = vshrl.u32 %v2558, 16
        %v2965 = vrot.slane %v2963, 2
        %v2966 = vshll.u32 %v2558, 16
        %v2968 = vrot.slane %v2966, 3
        %v2969 = vor.u32 %v2965, %v2968
        %v2970 = vsel %vm2881, %v2960, %v2969
        %v2972 = vshrl.u32 %v2559, 16
        %v2974 = vrot.slane %v2972, 2
        %v2975 = vshll.u32 %v2559, 16
        %v2977 = vrot.slane %v2975, 3
        %v2978 = vor.u32 %v2974, %v2977
        %v2979 = vsel %vm2881, %v2969, %v2978
        %v2981 = vshrl.u32 %v2560, 16
        %v2983 = vrot.slane %v2981, 2
        %v2984 = vshll.u32 %v2560, 16
        %v2986 = vrot.slane %v2984, 3
        %v2987 = vor.u32 %v2983, %v2986
        %v2988 = vsel %vm2881, %v2978, %v2987
        %v2990 = vshrl.u32 %v2561, 16
        %v2992 = vrot.slane %v2990, 2
        %v2993 = vshll.u32 %v2561, 16
        %v2995 = vrot.slane %v2993, 3
        %v2996 = vor.u32 %v2992, %v2995
        %v2997 = vsel %vm2881, %v2987, %v2996
        %v2999 = vshrl.u32 %v2562, 16
        %v3001 = vrot.slane %v2999, 2
        %v3002 = vshll.u32 %v2562, 16
        %v3004 = vrot.slane %v3002, 3
        %v3005 = vor.u32 %v3001, %v3004
        %v3006 = vsel %vm2881, %v2996, %v3005
        %v3008 = vshrl.u32 %v2563, 16
        %v3010 = vrot.slane %v3008, 2
        %v3011 = vshll.u32 %v2563, 16
        %v3013 = vrot.slane %v3011, 3
        %v3014 = vor.u32 %v3010, %v3013
        %v3015 = vsel %vm2881, %v3005, %v3014
        %v3017 = vshrl.u32 %v2564, 16
        %v3019 = vrot.slane %v3017, 2
        %v3020 = vshll.u32 %v2564, 16
        %v3022 = vrot.slane %v3020, 3
        %v3023 = vor.u32 %v3019, %v3022
        %v3024 = vsel %vm2881, %v3014, %v3023
        %v3026 = vshrl.u32 %v2565, 16
        %v3028 = vrot.slane %v3026, 2
        %v3029 = vshll.u32 %v2565, 16
        %v3031 = vrot.slane %v3029, 3
        %v3032 = vor.u32 %v3028, %v3031
        %v3033 = vsel %vm2881, %v3023, %v3032
        %v3035 = vshrl.u32 %v2566, 16
        %v3037 = vrot.slane %v3035, 2
        %v3038 = vshll.u32 %v2566, 16
        %v3040 = vrot.slane %v3038, 3
        %v3041 = vor.u32 %v3037, %v3040
        %v3042 = vsel %vm2881, %v3032, %v3041
        %v3044 = vshrl.u32 %v2880, 16
        %v3046 = vrot.slane %v3044, 2
        %v3047 = vshll.u32 %v2880, 16
        %v3049 = vrot.slane %v3047, 3
        %v3050 = vor.u32 %v3046, %v3049
        %v3051 = vsel %vm2881, %v3041, %v3050
        %v3053 = vsel %vm470, %v2898, 0
        %v3056 = vsel %vm470, %v2907, 0
        %v3059 = vsel %vm470, %v2916, 0
        %v3062 = vsel %vm470, %v2925, 0
        %v3065 = vsel %vm470, %v2934, 0
        %v3068 = vsel %vm470, %v2943, 0
        %v3071 = vsel %vm470, %v2952, 0
        %v3074 = vsel %vm470, %v2961, 0
        %v3077 = vsel %vm470, %v2970, 0
        %v3080 = vsel %vm470, %v2979, 0
        %v3083 = vsel %vm470, %v2988, 0
        %v3086 = vsel %vm470, %v2997, 0
        %v3089 = vsel %vm470, %v3006, 0
        %v3092 = vsel %vm470, %v3015, 0
        %v3095 = vsel %vm470, %v3024, 0
        %v3098 = vsel %vm470, %v3033, 0
        %v3101 = vsel %vm470, %v3042, 0
        %v3104 = vsel %vm470, %v3051, 0
        %v3107 = vsel %vm525, %v2877, 0
        %3109 = vmatprep.subr.bf16.mxu0 0
        %3110 = vmatpush1.bf16.msra.mxu0 0
        %3111 = vmatprep.subr.bf16.mxu0 0
        %3112 = vmatpush1.bf16.msra.mxu0 0
        %3113 = vmatprep.subr.bf16.mxu0 0
        %3114 = vmatpush1.bf16.msra.mxu0 0
        %3115 = vmatprep.subr.bf16.mxu0 0
        %3116 = vmatpush1.bf16.msra.mxu0 0
        %3117 = vmatprep.subr.bf16.mxu0 0
        %3118 = vmatpush1.bf16.msra.mxu0 0
        %3119 = vmatprep.subr.bf16.mxu0 0
        %3120 = vmatpush1.bf16.msra.mxu0 0
        %3121 = vmatprep.subr.bf16.mxu0 0
        %3122 = vmatpush1.bf16.msra.mxu0 0
        %3123 = vmatprep.subr.bf16.mxu0 0
        %3124 = vmatpush1.bf16.msra.mxu0 %v3107
        %3125 = vmatprep.subr.bf16.mxu0 0
        %3126 = vmatpush2.bf16.msra.mxu0 0
        %3127 = vmatprep.subr.bf16.mxu0 0
        %3128 = vmatpush2.bf16.msra.mxu0 0
        %3129 = vmatprep.subr.bf16.mxu0 0
        %3130 = vmatpush2.bf16.msra.mxu0 0
        %3131 = vmatprep.subr.bf16.mxu0 0
        %3132 = vmatpush2.bf16.msra.mxu0 0
        %3133 = vmatprep.subr.bf16.mxu0 0
        %3134 = vmatpush2.bf16.msra.mxu0 0
        %3135 = vmatprep.subr.bf16.mxu0 0
        %3136 = vmatpush2.bf16.msra.mxu0 0
        %3137 = vmatprep.subr.bf16.mxu0 0
        %3138 = vmatpush2.bf16.msra.mxu0 0
        %3139 = vmatprep.subr.bf16.mxu0 0
        %3140 = vmatpush2.bf16.msra.mxu0 0
        %3141 = vmatprep.mubr.bf16.mxu0 0
        %3142 = vmatmul.mubr.bf16.gmra.mxu0 %v3053
        %v3143 = vpop.f32.mrf.mxu0
        %v3144 = vadd.f32 0.0, %v3143
        %v3145 = vpop.f32.mrf.mxu0
        %v3146 = vpop.f32.mrf.mxu0
        %v3147 = vadd.f32 0.0, %v3146
        %v3148 = vpop.f32.mrf.mxu0
        %3149 = vmatprep.mubr.bf16.mxu0 0
        %3150 = vmatmul.mubr.bf16.gmra.mxu0 %v3056
        %v3151 = vpop.f32.mrf.mxu0
        %v3152 = vadd.f32 0.0, %v3151
        %v3153 = vpop.f32.mrf.mxu0
        %v3154 = vpop.f32.mrf.mxu0
        %v3155 = vadd.f32 0.0, %v3154
        %v3156 = vpop.f32.mrf.mxu0
        %3157 = vmatprep.mubr.bf16.mxu0 0
        %3158 = vmatmul.mubr.bf16.gmra.mxu0 %v3059
        %v3159 = vpop.f32.mrf.mxu0
        %v3160 = vadd.f32 0.0, %v3159
        %v3161 = vpop.f32.mrf.mxu0
        %v3162 = vpop.f32.mrf.mxu0
        %v3163 = vadd.f32 0.0, %v3162
        %v3164 = vpop.f32.mrf.mxu0
        %3165 = vmatprep.mubr.bf16.mxu0 0
        %3166 = vmatmul.mubr.bf16.gmra.mxu0 %v3062
        %v3167 = vpop.f32.mrf.mxu0
        %v3168 = vadd.f32 0.0, %v3167
        %v3169 = vpop.f32.mrf.mxu0
        %v3170 = vpop.f32.mrf.mxu0
        %v3171 = vadd.f32 0.0, %v3170
        %v3172 = vpop.f32.mrf.mxu0
        %3173 = vmatprep.mubr.bf16.mxu0 0
        %3174 = vmatmul.mubr.bf16.gmra.mxu0 %v3065
        %v3175 = vpop.f32.mrf.mxu0
        %v3176 = vadd.f32 0.0, %v3175
        %v3177 = vpop.f32.mrf.mxu0
        %v3178 = vpop.f32.mrf.mxu0
        %v3179 = vadd.f32 0.0, %v3178
        %v3180 = vpop.f32.mrf.mxu0
        %3181 = vmatprep.mubr.bf16.mxu0 0
        %3182 = vmatmul.mubr.bf16.gmra.mxu0 %v3068
        %v3183 = vpop.f32.mrf.mxu0
        %v3184 = vadd.f32 0.0, %v3183
        %v3185 = vpop.f32.mrf.mxu0
        %v3186 = vpop.f32.mrf.mxu0
        %v3187 = vadd.f32 0.0, %v3186
        %v3188 = vpop.f32.mrf.mxu0
        %3189 = vmatprep.mubr.bf16.mxu0 0
        %3190 = vmatmul.mubr.bf16.gmra.mxu0 %v3071
        %v3191 = vpop.f32.mrf.mxu0
        %v3192 = vadd.f32 0.0, %v3191
        %v3193 = vpop.f32.mrf.mxu0
        %v3194 = vpop.f32.mrf.mxu0
        %v3195 = vadd.f32 0.0, %v3194
        %v3196 = vpop.f32.mrf.mxu0
        %3197 = vmatprep.mubr.bf16.mxu0 0
        %3198 = vmatmul.mubr.bf16.gmra.mxu0 %v3074
        %v3199 = vpop.f32.mrf.mxu0
        %v3200 = vadd.f32 0.0, %v3199
        %v3201 = vpop.f32.mrf.mxu0
        %v3202 = vpop.f32.mrf.mxu0
        %v3203 = vadd.f32 0.0, %v3202
        %v3204 = vpop.f32.mrf.mxu0
        %3205 = vmatprep.mubr.bf16.mxu0 0
        %3206 = vmatmul.mubr.bf16.gmra.mxu0 %v3077
        %v3207 = vpop.f32.mrf.mxu0
        %v3208 = vadd.f32 0.0, %v3207
        %v3209 = vpop.f32.mrf.mxu0
        %v3210 = vpop.f32.mrf.mxu0
        %v3211 = vadd.f32 0.0, %v3210
        %v3212 = vpop.f32.mrf.mxu0
        %3213 = vmatprep.mubr.bf16.mxu0 0
        %3214 = vmatmul.mubr.bf16.gmra.mxu0 %v3080
        %v3215 = vpop.f32.mrf.mxu0
        %v3216 = vadd.f32 0.0, %v3215
        %v3217 = vpop.f32.mrf.mxu0
        %v3218 = vpop.f32.mrf.mxu0
        %v3219 = vadd.f32 0.0, %v3218
        %v3220 = vpop.f32.mrf.mxu0
        %3221 = vmatprep.mubr.bf16.mxu0 0
        %3222 = vmatmul.mubr.bf16.gmra.mxu0 %v3083
        %v3223 = vpop.f32.mrf.mxu0
        %v3224 = vadd.f32 0.0, %v3223
        %v3225 = vpop.f32.mrf.mxu0
        %v3226 = vpop.f32.mrf.mxu0
        %v3227 = vadd.f32 0.0, %v3226
        %v3228 = vpop.f32.mrf.mxu0
        %3229 = vmatprep.mubr.bf16.mxu0 0
        %3230 = vmatmul.mubr.bf16.gmra.mxu0 %v3086
        %v3231 = vpop.f32.mrf.mxu0
        %v3232 = vadd.f32 0.0, %v3231
        %v3233 = vpop.f32.mrf.mxu0
        %v3234 = vpop.f32.mrf.mxu0
        %v3235 = vadd.f32 0.0, %v3234
        %v3236 = vpop.f32.mrf.mxu0
        %3237 = vmatprep.mubr.bf16.mxu0 0
        %3238 = vmatmul.mubr.bf16.gmra.mxu0 %v3089
        %v3239 = vpop.f32.mrf.mxu0
        %v3240 = vadd.f32 0.0, %v3239
        %v3241 = vpop.f32.mrf.mxu0
        %v3242 = vpop.f32.mrf.mxu0
        %v3243 = vadd.f32 0.0, %v3242
        %v3244 = vpop.f32.mrf.mxu0
        %3245 = vmatprep.mubr.bf16.mxu0 0
        %3246 = vmatmul.mubr.bf16.gmra.mxu0 %v3092
        %v3247 = vpop.f32.mrf.mxu0
        %v3248 = vadd.f32 0.0, %v3247
        %v3249 = vpop.f32.mrf.mxu0
        %v3250 = vpop.f32.mrf.mxu0
        %v3251 = vadd.f32 0.0, %v3250
        %v3252 = vpop.f32.mrf.mxu0
        %3253 = vmatprep.mubr.bf16.mxu0 0
        %3254 = vmatmul.mubr.bf16.gmra.mxu0 %v3095
        %v3255 = vpop.f32.mrf.mxu0
        %v3256 = vadd.f32 0.0, %v3255
        %v3257 = vpop.f32.mrf.mxu0
        %v3258 = vpop.f32.mrf.mxu0
        %v3259 = vadd.f32 0.0, %v3258
        %v3260 = vpop.f32.mrf.mxu0
        %3261 = vmatprep.mubr.bf16.mxu0 0
        %3262 = vmatmul.mubr.bf16.gmra.mxu0 %v3098
        %v3263 = vpop.f32.mrf.mxu0
        %v3264 = vadd.f32 0.0, %v3263
        %v3265 = vpop.f32.mrf.mxu0
        %v3266 = vpop.f32.mrf.mxu0
        %v3267 = vadd.f32 0.0, %v3266
        %v3268 = vpop.f32.mrf.mxu0
        %3269 = vmatprep.mubr.bf16.mxu0 0
        %3270 = vmatmul.mubr.bf16.gmra.mxu0 %v3101
        %v3271 = vpop.f32.mrf.mxu0
        %v3272 = vadd.f32 0.0, %v3271
        %v3273 = vpop.f32.mrf.mxu0
        %v3274 = vpop.f32.mrf.mxu0
        %v3275 = vadd.f32 0.0, %v3274
        %v3276 = vpop.f32.mrf.mxu0
        %3277 = vmatprep.mubr.bf16.mxu0 0
        %3278 = vmatmul.mubr.bf16.gmra.mxu0 %v3104
        %v3279 = vpop.f32.mrf.mxu0
        %v3280 = vadd.f32 0.0, %v3279
        %v3281 = vpop.f32.mrf.mxu0
        %v3282 = vpop.f32.mrf.mxu0
        %v3283 = vadd.f32 0.0, %v3282
        %v3284 = vpop.f32.mrf.mxu0
        %3285 = vdwg.mxu0
        %v3286 = vadd.f32 %v2839, %v3144
        %v3287 = vadd.f32 %v2840, %v3147
        %v3288 = vadd.f32 %v2841, %v3152
        %v3289 = vadd.f32 %v2842, %v3155
        %v3290 = vadd.f32 %v2843, %v3160
        %v3291 = vadd.f32 %v2844, %v3163
        %v3292 = vadd.f32 %v2845, %v3168
        %v3293 = vadd.f32 %v2846, %v3171
        %v3294 = vadd.f32 %v2847, %v3176
        %v3295 = vadd.f32 %v2848, %v3179
        %v3296 = vadd.f32 %v2849, %v3184
        %v3297 = vadd.f32 %v2850, %v3187
        %v3298 = vadd.f32 %v2851, %v3192
        %v3299 = vadd.f32 %v2852, %v3195
        %v3300 = vadd.f32 %v2853, %v3200
        %v3301 = vadd.f32 %v2854, %v3203
        %v3302 = vadd.f32 %v2855, %v3208
        %v3303 = vadd.f32 %v2856, %v3211
        %v3304 = vadd.f32 %v2857, %v3216
        %v3305 = vadd.f32 %v2858, %v3219
        %v3306 = vadd.f32 %v2859, %v3224
        %v3307 = vadd.f32 %v2860, %v3227
        %v3308 = vadd.f32 %v2861, %v3232
        %v3309 = vadd.f32 %v2862, %v3235
        %v3310 = vadd.f32 %v2863, %v3240
        %v3311 = vadd.f32 %v2864, %v3243
        %v3312 = vadd.f32 %v2865, %v3248
        %v3313 = vadd.f32 %v2866, %v3251
        %v3314 = vadd.f32 %v2867, %v3256
        %v3315 = vadd.f32 %v2868, %v3259
        %v3316 = vadd.f32 %v2869, %v3264
        %v3317 = vadd.f32 %v2870, %v3267
        %v3318 = vadd.f32 %v2871, %v3272
        %v3319 = vadd.f32 %v2872, %v3275
        %v3320 = vadd.f32 %v2873, %v3280
        %v3321 = vadd.f32 %v2874, %v3283
        %v3322 = vld [vmem:[%s178 + $0x10] sm:$0x8]
        %s3323 = scalar_lea.vmem %s186, 16
        %v3324 = vld [vmem:[%s3323] sm:$0x3]
        %v3326 = vunpack.c.l.b16 %v3322
        %v3327 = vpack.c.b16 %v2513, %v3326
        %vm3328 = vcmask 1044480
        %v3329 = vrot.slane %v3327, 3
        %v3330 = vrot.slane %v2550, 3
        %v3331 = vsel %vm3328, %v3329, %v3330
        %v3332 = vrot.slane %v2551, 3
        %v3333 = vsel %vm3328, %v3330, %v3332
        %v3334 = vrot.slane %v2552, 3
        %v3335 = vsel %vm3328, %v3332, %v3334
        %v3336 = vrot.slane %v2553, 3
        %v3337 = vsel %vm3328, %v3334, %v3336
        %v3338 = vrot.slane %v2554, 3
        %v3339 = vsel %vm3328, %v3336, %v3338
        %v3340 = vrot.slane %v2555, 3
        %v3341 = vsel %vm3328, %v3338, %v3340
        %v3342 = vrot.slane %v2556, 3
        %v3343 = vsel %vm3328, %v3340, %v3342
        %v3344 = vrot.slane %v2557, 3
        %v3345 = vsel %vm3328, %v3342, %v3344
        %v3346 = vrot.slane %v2558, 3
        %v3347 = vsel %vm3328, %v3344, %v3346
        %v3348 = vrot.slane %v2559, 3
        %v3349 = vsel %vm3328, %v3346, %v3348
        %v3350 = vrot.slane %v2560, 3
        %v3351 = vsel %vm3328, %v3348, %v3350
        %v3352 = vrot.slane %v2561, 3
        %v3353 = vsel %vm3328, %v3350, %v3352
        %v3354 = vrot.slane %v2562, 3
        %v3355 = vsel %vm3328, %v3352, %v3354
        %v3356 = vrot.slane %v2563, 3
        %v3357 = vsel %vm3328, %v3354, %v3356
        %v3358 = vrot.slane %v2564, 3
        %v3359 = vsel %vm3328, %v3356, %v3358
        %v3360 = vrot.slane %v2565, 3
        %v3361 = vsel %vm3328, %v3358, %v3360
        %v3362 = vrot.slane %v2566, 3
        %v3363 = vsel %vm3328, %v3360, %v3362
        %v3364 = vrot.slane %v2880, 3
        %v3365 = vsel %vm3328, %v3362, %v3364
        %v3367 = vsel %vm470, %v3331, 0
        %v3370 = vsel %vm470, %v3333, 0
        %v3373 = vsel %vm470, %v3335, 0
        %v3376 = vsel %vm470, %v3337, 0
        %v3379 = vsel %vm470, %v3339, 0
        %v3382 = vsel %vm470, %v3341, 0
        %v3385 = vsel %vm470, %v3343, 0
        %v3388 = vsel %vm470, %v3345, 0
        %v3391 = vsel %vm470, %v3347, 0
        %v3394 = vsel %vm470, %v3349, 0
        %v3397 = vsel %vm470, %v3351, 0
        %v3400 = vsel %vm470, %v3353, 0
        %v3403 = vsel %vm470, %v3355, 0
        %v3406 = vsel %vm470, %v3357, 0
        %v3409 = vsel %vm470, %v3359, 0
        %v3412 = vsel %vm470, %v3361, 0
        %v3415 = vsel %vm470, %v3363, 0
        %v3418 = vsel %vm470, %v3365, 0
        %v3421 = vsel %vm525, %v3324, 0
        %3423 = vmatprep.subr.bf16.mxu0 0
        %3424 = vmatpush1.bf16.msra.mxu0 0
        %3425 = vmatprep.subr.bf16.mxu0 0
        %3426 = vmatpush1.bf16.msra.mxu0 0
        %3427 = vmatprep.subr.bf16.mxu0 0
        %3428 = vmatpush1.bf16.msra.mxu0 0
        %3429 = vmatprep.subr.bf16.mxu0 0
        %3430 = vmatpush1.bf16.msra.mxu0 0
        %3431 = vmatprep.subr.bf16.mxu0 0
        %3432 = vmatpush1.bf16.msra.mxu0 0
        %3433 = vmatprep.subr.bf16.mxu0 0
        %3434 = vmatpush1.bf16.msra.mxu0 0
        %3435 = vmatprep.subr.bf16.mxu0 0
        %3436 = vmatpush1.bf16.msra.mxu0 0
        %3437 = vmatprep.subr.bf16.mxu0 0
        %3438 = vmatpush1.bf16.msra.mxu0 %v3421
        %3439 = vmatprep.subr.bf16.mxu0 0
        %3440 = vmatpush2.bf16.msra.mxu0 0
        %3441 = vmatprep.subr.bf16.mxu0 0
        %3442 = vmatpush2.bf16.msra.mxu0 0
        %3443 = vmatprep.subr.bf16.mxu0 0
        %3444 = vmatpush2.bf16.msra.mxu0 0
        %3445 = vmatprep.subr.bf16.mxu0 0
        %3446 = vmatpush2.bf16.msra.mxu0 0
        %3447 = vmatprep.subr.bf16.mxu0 0
        %3448 = vmatpush2.bf16.msra.mxu0 0
        %3449 = vmatprep.subr.bf16.mxu0 0
        %3450 = vmatpush2.bf16.msra.mxu0 0
        %3451 = vmatprep.subr.bf16.mxu0 0
        %3452 = vmatpush2.bf16.msra.mxu0 0
        %3453 = vmatprep.subr.bf16.mxu0 0
        %3454 = vmatpush2.bf16.msra.mxu0 0
        %3455 = vmatprep.mubr.bf16.mxu0 0
        %3456 = vmatmul.mubr.bf16.gmra.mxu0 %v3367
        %v3457 = vpop.f32.mrf.mxu0
        %v3458 = vadd.f32 0.0, %v3457
        %v3459 = vpop.f32.mrf.mxu0
        %v3460 = vpop.f32.mrf.mxu0
        %v3461 = vadd.f32 0.0, %v3460
        %v3462 = vpop.f32.mrf.mxu0
        %3463 = vmatprep.mubr.bf16.mxu0 0
        %3464 = vmatmul.mubr.bf16.gmra.mxu0 %v3370
        %v3465 = vpop.f32.mrf.mxu0
        %v3466 = vadd.f32 0.0, %v3465
        %v3467 = vpop.f32.mrf.mxu0
        %v3468 = vpop.f32.mrf.mxu0
        %v3469 = vadd.f32 0.0, %v3468
        %v3470 = vpop.f32.mrf.mxu0
        %3471 = vmatprep.mubr.bf16.mxu0 0
        %3472 = vmatmul.mubr.bf16.gmra.mxu0 %v3373
        %v3473 = vpop.f32.mrf.mxu0
        %v3474 = vadd.f32 0.0, %v3473
        %v3475 = vpop.f32.mrf.mxu0
        %v3476 = vpop.f32.mrf.mxu0
        %v3477 = vadd.f32 0.0, %v3476
        %v3478 = vpop.f32.mrf.mxu0
        %3479 = vmatprep.mubr.bf16.mxu0 0
        %3480 = vmatmul.mubr.bf16.gmra.mxu0 %v3376
        %v3481 = vpop.f32.mrf.mxu0
        %v3482 = vadd.f32 0.0, %v3481
        %v3483 = vpop.f32.mrf.mxu0
        %v3484 = vpop.f32.mrf.mxu0
        %v3485 = vadd.f32 0.0, %v3484
        %v3486 = vpop.f32.mrf.mxu0
        %3487 = vmatprep.mubr.bf16.mxu0 0
        %3488 = vmatmul.mubr.bf16.gmra.mxu0 %v3379
        %v3489 = vpop.f32.mrf.mxu0
        %v3490 = vadd.f32 0.0, %v3489
        %v3491 = vpop.f32.mrf.mxu0
        %v3492 = vpop.f32.mrf.mxu0
        %v3493 = vadd.f32 0.0, %v3492
        %v3494 = vpop.f32.mrf.mxu0
        %3495 = vmatprep.mubr.bf16.mxu0 0
        %3496 = vmatmul.mubr.bf16.gmra.mxu0 %v3382
        %v3497 = vpop.f32.mrf.mxu0
        %v3498 = vadd.f32 0.0, %v3497
        %v3499 = vpop.f32.mrf.mxu0
        %v3500 = vpop.f32.mrf.mxu0
        %v3501 = vadd.f32 0.0, %v3500
        %v3502 = vpop.f32.mrf.mxu0
        %3503 = vmatprep.mubr.bf16.mxu0 0
        %3504 = vmatmul.mubr.bf16.gmra.mxu0 %v3385
        %v3505 = vpop.f32.mrf.mxu0
        %v3506 = vadd.f32 0.0, %v3505
        %v3507 = vpop.f32.mrf.mxu0
        %v3508 = vpop.f32.mrf.mxu0
        %v3509 = vadd.f32 0.0, %v3508
        %v3510 = vpop.f32.mrf.mxu0
        %3511 = vmatprep.mubr.bf16.mxu0 0
        %3512 = vmatmul.mubr.bf16.gmra.mxu0 %v3388
        %v3513 = vpop.f32.mrf.mxu0
        %v3514 = vadd.f32 0.0, %v3513
        %v3515 = vpop.f32.mrf.mxu0
        %v3516 = vpop.f32.mrf.mxu0
        %v3517 = vadd.f32 0.0, %v3516
        %v3518 = vpop.f32.mrf.mxu0
        %3519 = vmatprep.mubr.bf16.mxu0 0
        %3520 = vmatmul.mubr.bf16.gmra.mxu0 %v3391
        %v3521 = vpop.f32.mrf.mxu0
        %v3522 = vadd.f32 0.0, %v3521
        %v3523 = vpop.f32.mrf.mxu0
        %v3524 = vpop.f32.mrf.mxu0
        %v3525 = vadd.f32 0.0, %v3524
        %v3526 = vpop.f32.mrf.mxu0
        %3527 = vmatprep.mubr.bf16.mxu0 0
        %3528 = vmatmul.mubr.bf16.gmra.mxu0 %v3394
        %v3529 = vpop.f32.mrf.mxu0
        %v3530 = vadd.f32 0.0, %v3529
        %v3531 = vpop.f32.mrf.mxu0
        %v3532 = vpop.f32.mrf.mxu0
        %v3533 = vadd.f32 0.0, %v3532
        %v3534 = vpop.f32.mrf.mxu0
        %3535 = vmatprep.mubr.bf16.mxu0 0
        %3536 = vmatmul.mubr.bf16.gmra.mxu0 %v3397
        %v3537 = vpop.f32.mrf.mxu0
        %v3538 = vadd.f32 0.0, %v3537
        %v3539 = vpop.f32.mrf.mxu0
        %v3540 = vpop.f32.mrf.mxu0
        %v3541 = vadd.f32 0.0, %v3540
        %v3542 = vpop.f32.mrf.mxu0
        %3543 = vmatprep.mubr.bf16.mxu0 0
        %3544 = vmatmul.mubr.bf16.gmra.mxu0 %v3400
        %v3545 = vpop.f32.mrf.mxu0
        %v3546 = vadd.f32 0.0, %v3545
        %v3547 = vpop.f32.mrf.mxu0
        %v3548 = vpop.f32.mrf.mxu0
        %v3549 = vadd.f32 0.0, %v3548
        %v3550 = vpop.f32.mrf.mxu0
        %3551 = vmatprep.mubr.bf16.mxu0 0
        %3552 = vmatmul.mubr.bf16.gmra.mxu0 %v3403
        %v3553 = vpop.f32.mrf.mxu0
        %v3554 = vadd.f32 0.0, %v3553
        %v3555 = vpop.f32.mrf.mxu0
        %v3556 = vpop.f32.mrf.mxu0
        %v3557 = vadd.f32 0.0, %v3556
        %v3558 = vpop.f32.mrf.mxu0
        %3559 = vmatprep.mubr.bf16.mxu0 0
        %3560 = vmatmul.mubr.bf16.gmra.mxu0 %v3406
        %v3561 = vpop.f32.mrf.mxu0
        %v3562 = vadd.f32 0.0, %v3561
        %v3563 = vpop.f32.mrf.mxu0
        %v3564 = vpop.f32.mrf.mxu0
        %v3565 = vadd.f32 0.0, %v3564
        %v3566 = vpop.f32.mrf.mxu0
        %3567 = vmatprep.mubr.bf16.mxu0 0
        %3568 = vmatmul.mubr.bf16.gmra.mxu0 %v3409
        %v3569 = vpop.f32.mrf.mxu0
        %v3570 = vadd.f32 0.0, %v3569
        %v3571 = vpop.f32.mrf.mxu0
        %v3572 = vpop.f32.mrf.mxu0
        %v3573 = vadd.f32 0.0, %v3572
        %v3574 = vpop.f32.mrf.mxu0
        %3575 = vmatprep.mubr.bf16.mxu0 0
        %3576 = vmatmul.mubr.bf16.gmra.mxu0 %v3412
        %v3577 = vpop.f32.mrf.mxu0
        %v3578 = vadd.f32 0.0, %v3577
        %v3579 = vpop.f32.mrf.mxu0
        %v3580 = vpop.f32.mrf.mxu0
        %v3581 = vadd.f32 0.0, %v3580
        %v3582 = vpop.f32.mrf.mxu0
        %3583 = vmatprep.mubr.bf16.mxu0 0
        %3584 = vmatmul.mubr.bf16.gmra.mxu0 %v3415
        %v3585 = vpop.f32.mrf.mxu0
        %v3586 = vadd.f32 0.0, %v3585
        %v3587 = vpop.f32.mrf.mxu0
        %v3588 = vpop.f32.mrf.mxu0
        %v3589 = vadd.f32 0.0, %v3588
        %v3590 = vpop.f32.mrf.mxu0
        %3591 = vmatprep.mubr.bf16.mxu0 0
        %3592 = vmatmul.mubr.bf16.gmra.mxu0 %v3418
        %v3593 = vpop.f32.mrf.mxu0
        %v3594 = vadd.f32 0.0, %v3593
        %v3595 = vpop.f32.mrf.mxu0
        %v3596 = vpop.f32.mrf.mxu0
        %v3597 = vadd.f32 0.0, %v3596
        %v3598 = vpop.f32.mrf.mxu0
        %3599 = vdwg.mxu0
        %v3600 = vadd.f32 %v3286, %v3458
        %v3601 = vadd.f32 %v3287, %v3461
        %v3602 = vadd.f32 %v3288, %v3466
        %v3603 = vadd.f32 %v3289, %v3469
        %v3604 = vadd.f32 %v3290, %v3474
        %v3605 = vadd.f32 %v3291, %v3477
        %v3606 = vadd.f32 %v3292, %v3482
        %v3607 = vadd.f32 %v3293, %v3485
        %v3608 = vadd.f32 %v3294, %v3490
        %v3609 = vadd.f32 %v3295, %v3493
        %v3610 = vadd.f32 %v3296, %v3498
        %v3611 = vadd.f32 %v3297, %v3501
        %v3612 = vadd.f32 %v3298, %v3506
        %v3613 = vadd.f32 %v3299, %v3509
        %v3614 = vadd.f32 %v3300, %v3514
        %v3615 = vadd.f32 %v3301, %v3517
        %v3616 = vadd.f32 %v3302, %v3522
        %v3617 = vadd.f32 %v3303, %v3525
        %v3618 = vadd.f32 %v3304, %v3530
        %v3619 = vadd.f32 %v3305, %v3533
        %v3620 = vadd.f32 %v3306, %v3538
        %v3621 = vadd.f32 %v3307, %v3541
        %v3622 = vadd.f32 %v3308, %v3546
        %v3623 = vadd.f32 %v3309, %v3549
        %v3624 = vadd.f32 %v3310, %v3554
        %v3625 = vadd.f32 %v3311, %v3557
        %v3626 = vadd.f32 %v3312, %v3562
        %v3627 = vadd.f32 %v3313, %v3565
        %v3628 = vadd.f32 %v3314, %v3570
        %v3629 = vadd.f32 %v3315, %v3573
        %v3630 = vadd.f32 %v3316, %v3578
        %v3631 = vadd.f32 %v3317, %v3581
        %v3632 = vadd.f32 %v3318, %v3586
        %v3633 = vadd.f32 %v3319, %v3589
        %v3634 = vadd.f32 %v3320, %v3594
        %v3635 = vadd.f32 %v3321, %v3597
        %v3636 = vpack.c.bf16 %v3601, %v3600
        %v3637 = vpack.c.bf16 %v3603, %v3602
        %v3638 = vpack.c.bf16 %v3605, %v3604
        %v3639 = vpack.c.bf16 %v3607, %v3606
        %v3640 = vpack.c.bf16 %v3609, %v3608
        %v3641 = vpack.c.bf16 %v3611, %v3610
        %v3642 = vpack.c.bf16 %v3613, %v3612
        %v3643 = vpack.c.bf16 %v3615, %v3614
        %v3644 = vpack.c.bf16 %v3617, %v3616
        %v3645 = vpack.c.bf16 %v3619, %v3618
        %v3646 = vpack.c.bf16 %v3621, %v3620
        %v3647 = vpack.c.bf16 %v3623, %v3622
        %v3648 = vpack.c.bf16 %v3625, %v3624
        %v3649 = vpack.c.bf16 %v3627, %v3626
        %v3650 = vpack.c.bf16 %v3629, %v3628
        %v3651 = vpack.c.bf16 %v3631, %v3630
        %v3652 = vpack.c.bf16 %v3633, %v3632
        %v3653 = vpack.c.bf16 %v3635, %v3634
        %v3672 = vunpack.c.l.b16 %v3636
        %v3673 = vunpack.c.h.b16 %v3636
        %v3674 = vunpack.c.l.b16 %v3637
        %v3675 = vunpack.c.h.b16 %v3637
        %v3676 = vunpack.c.l.b16 %v3638
        %v3677 = vunpack.c.h.b16 %v3638
        %v3678 = vunpack.c.l.b16 %v3639
        %v3679 = vunpack.c.h.b16 %v3639
        %v3680 = vunpack.c.l.b16 %v3640
        %v3681 = vunpack.c.h.b16 %v3640
        %v3682 = vunpack.c.l.b16 %v3641
        %v3683 = vunpack.c.h.b16 %v3641
        %v3684 = vunpack.c.l.b16 %v3642
        %v3685 = vunpack.c.h.b16 %v3642
        %v3686 = vunpack.c.l.b16 %v3643
        %v3687 = vunpack.c.h.b16 %v3643
        %v3688 = vunpack.c.l.b16 %v3644
        %v3689 = vunpack.c.h.b16 %v3644
        %v3690 = vunpack.c.l.b16 %v3645
        %v3691 = vunpack.c.h.b16 %v3645
        %v3692 = vunpack.c.l.b16 %v3646
        %v3693 = vunpack.c.h.b16 %v3646
        %v3694 = vunpack.c.l.b16 %v3647
        %v3695 = vunpack.c.h.b16 %v3647
        %v3696 = vunpack.c.l.b16 %v3648
        %v3697 = vunpack.c.h.b16 %v3648
        %v3698 = vunpack.c.l.b16 %v3649
        %v3699 = vunpack.c.h.b16 %v3649
        %v3700 = vunpack.c.l.b16 %v3650
        %v3701 = vunpack.c.h.b16 %v3650
        %v3702 = vunpack.c.l.b16 %v3651
        %v3703 = vunpack.c.h.b16 %v3651
        %v3704 = vunpack.c.l.b16 %v3652
        %v3705 = vunpack.c.h.b16 %v3652
        %v3706 = vunpack.c.l.b16 %v3653
        %v3707 = vunpack.c.h.b16 %v3653
        %v3708 = vpack.c.b16 %v3672, %v3672
        %v3709 = vpack.c.b16 %v3673, %v3673
        %v3710 = vpack.c.b16 %v3674, %v3674
        %v3711 = vpack.c.b16 %v3675, %v3675
        %v3712 = vpack.c.b16 %v3676, %v3676
        %v3713 = vpack.c.b16 %v3677, %v3677
        %v3714 = vpack.c.b16 %v3678, %v3678
        %v3715 = vpack.c.b16 %v3679, %v3679
        %v3716 = vpack.c.b16 %v3680, %v3680
        %v3717 = vpack.c.b16 %v3681, %v3681
        %v3718 = vpack.c.b16 %v3682, %v3682
        %v3719 = vpack.c.b16 %v3683, %v3683
        %v3720 = vpack.c.b16 %v3684, %v3684
        %v3721 = vpack.c.b16 %v3685, %v3685
        %v3722 = vpack.c.b16 %v3686, %v3686
        %v3723 = vpack.c.b16 %v3687, %v3687
        %v3724 = vpack.c.b16 %v3688, %v3688
        %v3725 = vpack.c.b16 %v3689, %v3689
        %v3726 = vpack.c.b16 %v3690, %v3690
        %v3727 = vpack.c.b16 %v3691, %v3691
        %v3728 = vpack.c.b16 %v3692, %v3692
        %v3729 = vpack.c.b16 %v3693, %v3693
        %v3730 = vpack.c.b16 %v3694, %v3694
        %v3731 = vpack.c.b16 %v3695, %v3695
        %v3732 = vpack.c.b16 %v3696, %v3696
        %v3733 = vpack.c.b16 %v3697, %v3697
        %v3734 = vpack.c.b16 %v3698, %v3698
        %v3735 = vpack.c.b16 %v3699, %v3699
        %v3736 = vpack.c.b16 %v3700, %v3700
        %v3737 = vpack.c.b16 %v3701, %v3701
        %v3738 = vpack.c.b16 %v3702, %v3702
        %v3739 = vpack.c.b16 %v3703, %v3703
        %v3740 = vpack.c.b16 %v3704, %v3704
        %v3741 = vpack.c.b16 %v3705, %v3705
        %v3742 = vpack.c.b16 %v3706, %v3706
        %v3743 = vpack.c.b16 %v3707, %v3707
        %3780 = vst [vmem:[%s173] sm:$0xf] %v3708
        %3781 = vst [vmem:[%s173 + $0x4] sm:$0xf] %v3709
        %3782 = vst [vmem:[%s173 + $0x8] sm:$0xf] %v3710
        %3783 = vst [vmem:[%s173 + $0xc] sm:$0xf] %v3711
        %3784 = vst [vmem:[%s173 + $0x10] sm:$0xf] %v3712
        %3785 = vst [vmem:[%s173 + $0x14] sm:$0xf] %v3713
        %3786 = vst [vmem:[%s173 + $0x18] sm:$0xf] %v3714
        %3787 = vst [vmem:[%s173 + $0x1c] sm:$0xf] %v3715
        %3788 = vst [vmem:[%s173 + $0x20] sm:$0xf] %v3716
        %3789 = vst [vmem:[%s173 + $0x24] sm:$0xf] %v3717
        %3790 = vst [vmem:[%s173 + $0x28] sm:$0xf] %v3718
        %3791 = vst [vmem:[%s173 + $0x2c] sm:$0xf] %v3719
        %3792 = vst [vmem:[%s173 + $0x30] sm:$0xf] %v3720
        %3793 = vst [vmem:[%s173 + $0x34] sm:$0xf] %v3721
        %3794 = vst [vmem:[%s173 + $0x38] sm:$0xf] %v3722
        %3795 = vst [vmem:[%s173 + $0x3c] sm:$0xf] %v3723
        %3796 = vst [vmem:[%s173 + $0x40] sm:$0xf] %v3724
        %3797 = vst [vmem:[%s173 + $0x44] sm:$0xf] %v3725
        %3798 = vst [vmem:[%s173 + $0x48] sm:$0xf] %v3726
        %3799 = vst [vmem:[%s173 + $0x4c] sm:$0xf] %v3727
        %3800 = vst [vmem:[%s173 + $0x50] sm:$0xf] %v3728
        %3801 = vst [vmem:[%s173 + $0x54] sm:$0xf] %v3729
        %3802 = vst [vmem:[%s173 + $0x58] sm:$0xf] %v3730
        %3803 = vst [vmem:[%s173 + $0x5c] sm:$0xf] %v3731
        %3804 = vst [vmem:[%s173 + $0x60] sm:$0xf] %v3732
        %3805 = vst [vmem:[%s173 + $0x64] sm:$0xf] %v3733
        %3806 = vst [vmem:[%s173 + $0x68] sm:$0xf] %v3734
        %3807 = vst [vmem:[%s173 + $0x6c] sm:$0xf] %v3735
        %3808 = vst [vmem:[%s173 + $0x70] sm:$0xf] %v3736
        %3809 = vst [vmem:[%s173 + $0x74] sm:$0xf] %v3737
        %3810 = vst [vmem:[%s173 + $0x78] sm:$0xf] %v3738
        %3811 = vst [vmem:[%s173 + $0x7c] sm:$0xf] %v3739
        %3812 = vst [vmem:[%s173 + $0x80] sm:$0xf] %v3740
        %3813 = vst [vmem:[%s173 + $0x84] sm:$0xf] %v3741
        %3814 = vst [vmem:[%s173 + $0x88] sm:$0xf] %v3742
        %3815 = vst [vmem:[%s173 + $0x8c] sm:$0xf] %v3743
        %s3816 = sand.u32 %s92, 1
        %s3817 = scalar_lea.sflag [#allocation3], %s3816
        %s3818 = sand.u32 %s92, 1
        %s3819 = smul.addr %s3818, 144
        %s3820 = scalar_lea.vmem [#allocation2], %s3819
        // Predicated region
        $region29: #{tpu_custom_call.1} parent=27 // pred_check
          %p3821 = pneg %p102
        $region30: #{tpu_custom_call.1} parent=27 // pred_check_branch
          %3823 = sbr.rel (%p3821) target = $region32
        $region31: #{tpu_custom_call.1} parent=27 // pred_region
          %s3825 = ssub.s32 2304, 2304
          %3826 = vsyncadd %s3817, %s3825
          %s3827 = smul.addr %s20, 36
          %s3828 = sadd.s32 %s21, %s3827
          %s3829 = smul.addr %s3828, 64
          %s3830 = scalar_lea.hbm %s2, %s3829
          %s3831 = sshll.u32 %s3820, 4
          %s3832 = int_to_ptr.vmem [resolvable:$true] %s3831
          %3837 = dma.vmem_to_hbm [thread:$0]  %s3832, 2304, %s3830, %s3817, 64, 64, 4
        $region32: #{tpu_custom_call.1} parent=27 // pred_fallthru
          _
      $region28: #{tpu_custom_call.1} parent=5 // pred_fallthru
        _
      %p3838 = scmp.le.s32.totalorder 2, %s11
      // Predicated region
      $region33: #{tpu_custom_call.1} parent=5 // pred_check
        %p3839 = pneg %p3838
      $region34: #{tpu_custom_call.1} parent=5 // pred_check_branch
        %3841 = sbr.rel (%p3839) target = $region36
      $region35: #{tpu_custom_call.1} parent=5 // pred_region
        %s3842 = ssub.s32 %s11, 2
        // Predicated region
        $region37: #{tpu_custom_call.1} parent=35 // pred_check
          %p3843 = pneg %p108
        $region38: #{tpu_custom_call.1} parent=35 // pred_check_branch
          %3845 = sbr.rel (%p3843) target = $region40
        $region39: #{tpu_custom_call.1} parent=35 // pred_region
          %s3846 = sand.u32 %s93, 1
          %s3847 = scalar_lea.sflag [#allocation3], %s3846
          %s3848 = sand.u32 %s93, 1
          %s3849 = smul.addr %s3848, 144
          %s3850 = scalar_lea.vmem [#allocation2], %s3849
          %3851 = dma.done %s3847, 2304
        $region40: #{tpu_custom_call.1} parent=35 // pred_fallthru
          _
      $region36: #{tpu_custom_call.1} parent=5 // pred_fallthru
        _
    $region6: #{tpu_custom_call.1} parent=1 // loop_footer
      %s15 = sadd.s32 1, %s11
    $region7: #{tpu_custom_call.1} parent=1 // loop_footer_branch
      %10 = sbr.rel target = $region3
    $region8: #{tpu_custom_call.1} parent=1 // loop_exit
      _
    %3852 = vsyncpa [#allocation3], 1
    %s3853 = scalar_lea.sflag [#allocation3], 1
    %3854 = vsyncpa %s3853, 1

// kernel: tpu_custom_call.1
$region0: #{tpu_custom_call.1}
  #allocation0 [shape = 'u32[]', space=smem, size = 0x4, offset = 0x4, fixed_abs, tag = 'smem constant byte address 0x4 - core index']
  #allocation1 [shape = 'u32[144,128]{1,0:T(1,128)}', space=vmem, size = 0x12000, scoped, tag = 'internal scratch']
  %s0 = inlined_call_operand.vmem [shape: f32[2,328,4], index: 0, kind: input, shape index: {}]
  %s1 = inlined_call_operand.vmem [shape: bf16[2,9,4,128], index: 1, kind: input, shape index: {}]
  %s2 = inlined_call_operand.hbm [shape: bf16[2,288,128], index: 2, kind: output, shape index: {}]
  %s3 = sld [smem:[#allocation0]]
  $region41: #{tpu_custom_call.1} parent=0
    _
  %s5 = ssub.s32 1, %s3
  %s6 = scalar_select 0, %s5, %s3
  $region1: #{tpu_custom_call.1} parent=0
    #allocation2 [shape = 'u8[147456]{0}', space=vmem, size = 0x24000, scoped, tag = 'output window, operand 0']
    #allocation3 [shape = 's32[2]{0}', space=sflag, size = 0x8, scoped, tag = 'scoped memory for tpu_custom_call.1']
    %7 = vsyncpa [#allocation3], 0
    %s8 = scalar_lea.sflag [#allocation3], 1
    %9 = vsyncpa %s8, 0
    loop: start=0, step=1, limit=4
    $region2: #{tpu_custom_call.1} parent=1 // loop_pre_header
      _
    $region3: #{tpu_custom_call.1} parent=1 // loop_header
      %s11 = sphi 0, %s15
      %p12 = scmp.ge.s32.totalorder %s11, 4
      %s18 = sphi 0, %s30
      %s19 = sphi 0, %s26
      %s20 = sphi 0, %s18
      %s21 = sphi 0, %s19
      %s22 = sphi 0, %s20
      %s23 = sphi 0, %s21
      %s33 = sphi 0, %s35
      %s36 = sphi 0, %s33
      %s37 = sphi 0, %s36
      %s53 = sphi 0, %s37
      %s61 = sphi 0, %s63
      %s64 = sphi 0, %s61
      %s65 = sphi 0, %s64
      %s81 = sphi 0, %s65
      %s89 = sphi 0, %s91
      %s92 = sphi 0, %s89
      %s93 = sphi 0, %s92
      %s109 = sphi 0, %s93
    $region4: #{tpu_custom_call.1} parent=1 // loop_header_branch
      %14 = sbr.rel (%p12) target = $region8
    $region5: #{tpu_custom_call.1} parent=1 // loop_body
      %s16 = ssub.s32 %s11, 1
      %s17 = ssub.s32 %s11, 2
      %s24 = sadd.s32 1, %s19
      %p25 = scmp.ge.s32.totalorder %s24, 1
      %s26 = scalar_select %p25, 0, %s24
      %s27 = sadd.s32 1, %s18
      %s28 = scalar_select %p25, %s27, %s18
      %p29 = scmp.ge.s32.totalorder %s28, 2
      %s30 = scalar_select %p29, 0, %s28
      %s31 = ssub.s32 %s18, %s30
      %p32 = scmp.eq.s32.totalorder %s31, 0
      %s34 = sadd.s32 %s33, 1
      %s35 = scalar_select %p32, %s33, %s34
      %p38 = pneg %p32
      %p39 = scmp.eq.s32.totalorder %s11, 1
      %p40 = por %p38, %p39
      %p41 = scmp.ne.s32.totalorder %s33, %s36
      %p42 = scmp.eq.s32.totalorder %s11, 0
      %p43 = por %p41, %p42
      %p44 = scmp.ne.s32.totalorder %s33, %s36
      %p45 = scmp.eq.s32.totalorder %s16, 1
      %p46 = por %p44, %p45
      %p47 = scmp.ne.s32.totalorder %s36, %s37
      %p48 = scmp.eq.s32.totalorder %s16, 0
      %p49 = por %p47, %p48
      %p50 = scmp.ne.s32.totalorder %s36, %s37
      %p51 = scmp.eq.s32.totalorder %s17, 1
      %p52 = por %p50, %p51
      %p54 = scmp.ne.s32.totalorder %s37, %s53
      %p55 = scmp.eq.s32.totalorder %s17, 0
      %p56 = por %p54, %p55
      %s57 = ssub.s32 %s18, %s30
      %s58 = ssub.s32 %s19, %s26
      %s59 = sor.u32 %s57, %s58
      %p60 = scmp.eq.s32.totalorder %s59, 0
      %s62 = sadd.s32 %s61, 1
      %s63 = scalar_select %p60, %s61, %s62
      %p66 = pneg %p60
      %p67 = scmp.eq.s32.totalorder %s11, 1
      %p68 = por %p66, %p67
      %p69 = scmp.ne.s32.totalorder %s61, %s64
      %p70 = scmp.eq.s32.totalorder %s11, 0
      %p71 = por %p69, %p70
      %p72 = scmp.ne.s32.totalorder %s61, %s64
      %p73 = scmp.eq.s32.totalorder %s16, 1
      %p74 = por %p72, %p73
      %p75 = scmp.ne.s32.totalorder %s64, %s65
      %p76 = scmp.eq.s32.totalorder %s16, 0
      %p77 = por %p75, %p76
      %p78 = scmp.ne.s32.totalorder %s64, %s65
      %p79 = scmp.eq.s32.totalorder %s17, 1
      %p80 = por %p78, %p79
      %p82 = scmp.ne.s32.totalorder %s65, %s81
      %p83 = scmp.eq.s32.totalorder %s17, 0
      %p84 = por %p82, %p83
      %s85 = ssub.s32 %s18, %s30
      %s86 = ssub.s32 %s19, %s26
      %s87 = sor.u32 %s85, %s86
      %p88 = scmp.eq.s32.totalorder %s87, 0
      %s90 = sadd.s32 %s89, 1
      %s91 = scalar_select %p88, %s89, %s90
      %p94 = pneg %p88
      %p95 = scmp.eq.s32.totalorder %s11, 1
      %p96 = por %p94, %p95
      %p97 = scmp.ne.s32.totalorder %s89, %s92
      %p98 = scmp.eq.s32.totalorder %s11, 0
      %p99 = por %p97, %p98
      %p100 = scmp.ne.s32.totalorder %s89, %s92
      %p101 = scmp.eq.s32.totalorder %s16, 1
      %p102 = por %p100, %p101
      %p103 = scmp.ne.s32.totalorder %s92, %s93
      %p104 = scmp.eq.s32.totalorder %s16, 0
      %p105 = por %p103, %p104
      %p106 = scmp.ne.s32.totalorder %s92, %s93
      %p107 = scmp.eq.s32.totalorder %s17, 1
      %p108 = por %p106, %p107
      %p110 = scmp.ne.s32.totalorder %s93, %s109
      %p111 = scmp.eq.s32.totalorder %s17, 0
      %p112 = por %p110, %p111
      %p113 = scmp.le.s32.totalorder 1, %s11
      %p114 = scmp.lt.s32.totalorder %s11, 3
      %p115 = pnand %p113, %p114
      %p116 = pneg %p115
      // Predicated region
      $region9: #{tpu_custom_call.1} parent=5 // pred_check
        _
      $region10: #{tpu_custom_call.1} parent=5 // pred_check_branch
        %118 = sbr.rel (%p115) target = $region12
      $region11: #{tpu_custom_call.1} parent=5 // pred_region
        %s119 = ssub.s32 %s11, 1
      $region12: #{tpu_custom_call.1} parent=5 // pred_fallthru
        _
      %p120 = scmp.lt.s32.totalorder %s11, 2
      // Predicated region
      $region13: #{tpu_custom_call.1} parent=5 // pred_check
        %p121 = pneg %p120
      $region14: #{tpu_custom_call.1} parent=5 // pred_check_branch
        %123 = sbr.rel (%p121) target = $region16
      $region15: #{tpu_custom_call.1} parent=5 // pred_region
        // Predicated region
        $region17: #{tpu_custom_call.1} parent=15 // pred_check
          %p124 = pneg %p43
        $region18: #{tpu_custom_call.1} parent=15 // pred_check_branch
          %126 = sbr.rel (%p124) target = $region20
        $region19: #{tpu_custom_call.1} parent=15 // pred_region
          %p127 = scmp.lt.s32.totalorder %s18, 1
          %s128 = scalar_select %p127, %s18, 1
          %s129 = smul.addr %s128, 41
          %s130 = smul.addr %s129, 8
          %s131 = scalar_lea.vmem %s0, %s130
        $region20: #{tpu_custom_call.1} parent=15 // pred_fallthru
          _
        // Predicated region
        $region21: #{tpu_custom_call.1} parent=15 // pred_check
          %p132 = pneg %p71
        $region22: #{tpu_custom_call.1} parent=15 // pred_check_branch
          %134 = sbr.rel (%p132) target = $region24
        $region23: #{tpu_custom_call.1} parent=15 // pred_region
          %p135 = scmp.lt.s32.totalorder %s18, 1
          %s136 = scalar_select %p135, %s18, 1
          %p137 = scmp.lt.s32.totalorder %s19, 0
          %s138 = scalar_select %p137, %s19, 0
          %s139 = smul.addr %s136, 9
          %s140 = sadd.s32 %s138, %s139
          %s141 = smul.addr %s140, 2
          %s142 = scalar_lea.vmem %s1, %s141
        $region24: #{tpu_custom_call.1} parent=15 // pred_fallthru
          _
      $region16: #{tpu_custom_call.1} parent=5 // pred_fallthru
        _
      %p143 = scmp.le.s32.totalorder 1, %s11
      %p144 = scmp.lt.s32.totalorder %s11, 3
      %p145 = pnand %p143, %p144
      %p146 = pneg %p145
      // Predicated region
      $region25: #{tpu_custom_call.1} parent=5 // pred_check
        _
      $region26: #{tpu_custom_call.1} parent=5 // pred_check_branch
        %148 = sbr.rel (%p145) target = $region28
      $region27: #{tpu_custom_call.1} parent=5 // pred_region
        %s149 = ssub.s32 %s11, 1
        %p150 = scmp.lt.s32.totalorder %s20, 1
        %s151 = scalar_select %p150, %s20, 1
        %s152 = smul.addr %s151, 41
        %s153 = smul.addr %s152, 8
        %s154 = scalar_lea.vmem %s0, %s153
        %p155 = pneg %p49
        %p156 = pneg %p46
        %p157 = scmp.lt.s32.totalorder %s20, 1
        %s158 = scalar_select %p157, %s20, 1
        %p159 = scmp.lt.s32.totalorder %s21, 0
        %s160 = scalar_select %p159, %s21, 0
        %s161 = smul.addr %s158, 9
        %s162 = sadd.s32 %s160, %s161
        %s163 = smul.addr %s162, 2
        %s164 = scalar_lea.vmem %s1, %s163
        %p165 = pneg %p77
        %p166 = pneg %p74
        %p167 = pneg %p105
        %p168 = pneg %p102
        %s169 = sand.u32 %s92, 1
        %s170 = scalar_lea.sflag [#allocation3], %s169
        %s171 = sand.u32 %s92, 1
        %s172 = smul.addr %s171, 144
        %s173 = scalar_lea.vmem [#allocation2], %s172
        %p174 = scmp.lt.s32.totalorder %s20, 1
        %s175 = scalar_select %p174, %s20, 1
        %s176 = smul.addr %s175, 41
        %s177 = smul.addr %s176, 8
        %s178 = scalar_lea.vmem %s0, %s177
        %p179 = scmp.lt.s32.totalorder %s20, 1
        %s180 = scalar_select %p179, %s20, 1
        %p181 = scmp.lt.s32.totalorder %s21, 0
        %s182 = scalar_select %p181, %s21, 0
        %s183 = smul.addr %s180, 9
        %s184 = sadd.s32 %s182, %s183
        %s185 = smul.addr %s184, 2
        %s186 = scalar_lea.vmem %s1, %s185
        %v188 = vld [vmem:[%s178] sm:$0xff]
        %v189 = vld [vmem:[%s178 + $0x8] sm:$0xff]
        %v190 = vld [vmem:[%s178 + $0x10] sm:$0xff]
        %v191 = vld [vmem:[%s178 + $0x18] sm:$0xff]
        %v192 = vld [vmem:[%s178 + $0x20] sm:$0xff]
        %v193 = vld [vmem:[%s178 + $0x28] sm:$0xff]
        %v194 = vld [vmem:[%s178 + $0x30] sm:$0xff]
        %v195 = vld [vmem:[%s178 + $0x38] sm:$0xff]
        %v196 = vld [vmem:[%s178 + $0x40] sm:$0xff]
        %v197 = vld [vmem:[%s178 + $0x48] sm:$0xff]
        %v198 = vld [vmem:[%s178 + $0x50] sm:$0xff]
        %v199 = vld [vmem:[%s178 + $0x58] sm:$0xff]
        %v200 = vld [vmem:[%s178 + $0x60] sm:$0xff]
        %v201 = vld [vmem:[%s178 + $0x68] sm:$0xff]
        %v202 = vld [vmem:[%s178 + $0x70] sm:$0xff]
        %v203 = vld [vmem:[%s178 + $0x78] sm:$0xff]
        %v204 = vld [vmem:[%s178 + $0x80] sm:$0xff]
        %v205 = vld [vmem:[%s178 + $0x88] sm:$0xff]
        %v206 = vld [vmem:[%s178 + $0x90] sm:$0xff]
        %v207 = vld [vmem:[%s178 + $0x98] sm:$0xff]
        %v208 = vld [vmem:[%s178 + $0xa0] sm:$0xff]
        %v209 = vld [vmem:[%s178 + $0xa8] sm:$0xff]
        %v210 = vld [vmem:[%s178 + $0xb0] sm:$0xff]
        %v211 = vld [vmem:[%s178 + $0xb8] sm:$0xff]
        %v212 = vld [vmem:[%s178 + $0xc0] sm:$0xff]
        %v213 = vld [vmem:[%s178 + $0xc8] sm:$0xff]
        %v214 = vld [vmem:[%s178 + $0xd0] sm:$0xff]
        %v215 = vld [vmem:[%s178 + $0xd8] sm:$0xff]
        %v216 = vld [vmem:[%s178 + $0xe0] sm:$0xff]
        %v217 = vld [vmem:[%s178 + $0xe8] sm:$0xff]
        %v218 = vld [vmem:[%s178 + $0xf0] sm:$0xff]
        %v219 = vld [vmem:[%s178 + $0xf8] sm:$0xff]
        %v220 = vld [vmem:[%s178 + $0x100] sm:$0xff]
        %v221 = vld [vmem:[%s178 + $0x108] sm:$0xff]
        %v222 = vld [vmem:[%s178 + $0x110] sm:$0xff]
        %v223 = vld [vmem:[%s178 + $0x118] sm:$0xff]
        %v224 = vpack.c.bf16 %v189, %v188
        %v225 = vpack.c.bf16 %v191, %v190
        %v226 = vpack.c.bf16 %v193, %v192
        %v227 = vpack.c.bf16 %v195, %v194
        %v228 = vpack.c.bf16 %v197, %v196
        %v229 = vpack.c.bf16 %v199, %v198
        %v230 = vpack.c.bf16 %v201, %v200
        %v231 = vpack.c.bf16 %v203, %v202
        %v232 = vpack.c.bf16 %v205, %v204
        %v233 = vpack.c.bf16 %v207, %v206
        %v234 = vpack.c.bf16 %v209, %v208
        %v235 = vpack.c.bf16 %v211, %v210
        %v236 = vpack.c.bf16 %v213, %v212
        %v237 = vpack.c.bf16 %v215, %v214
        %v238 = vpack.c.bf16 %v217, %v216
        %v239 = vpack.c.bf16 %v219, %v218
        %v240 = vpack.c.bf16 %v221, %v220
        %v241 = vpack.c.bf16 %v223, %v222
        %v242 = vld [vmem:[%s186] sm:$0x3]
        %v243 = vld [vmem:[%s178 + $0x1] sm:$0xff]
        %v244 = vld [vmem:[%s178 + $0x9] sm:$0xff]
        %v245 = vld [vmem:[%s178 + $0x11] sm:$0xff]
        %v246 = vld [vmem:[%s178 + $0x19] sm:$0xff]
        %v247 = vld [vmem:[%s178 + $0x21] sm:$0xff]
        %v248 = vld [vmem:[%s178 + $0x29] sm:$0xff]
        %v249 = vld [vmem:[%s178 + $0x31] sm:$0xff]
        %v250 = vld [vmem:[%s178 + $0x39] sm:$0xff]
        %v251 = vld [vmem:[%s178 + $0x41] sm:$0xff]
        %v252 = vld [vmem:[%s178 + $0x49] sm:$0xff]
        %v253 = vld [vmem:[%s178 + $0x51] sm:$0xff]
        %v254 = vld [vmem:[%s178 + $0x59] sm:$0xff]
        %v255 = vld [vmem:[%s178 + $0x61] sm:$0xff]
        %v256 = vld [vmem:[%s178 + $0x69] sm:$0xff]
        %v257 = vld [vmem:[%s178 + $0x71] sm:$0xff]
        %v258 = vld [vmem:[%s178 + $0x79] sm:$0xff]
        %v259 = vld [vmem:[%s178 + $0x81] sm:$0xff]
        %v260 = vld [vmem:[%s178 + $0x89] sm:$0xff]
        %v261 = vld [vmem:[%s178 + $0x91] sm:$0xff]
        %v262 = vld [vmem:[%s178 + $0x99] sm:$0xff]
        %v263 = vld [vmem:[%s178 + $0xa1] sm:$0xff]
        %v264 = vld [vmem:[%s178 + $0xa9] sm:$0xff]
        %v265 = vld [vmem:[%s178 + $0xb1] sm:$0xff]
        %v266 = vld [vmem:[%s178 + $0xb9] sm:$0xff]
        %v267 = vld [vmem:[%s178 + $0xc1] sm:$0xff]
        %v268 = vld [vmem:[%s178 + $0xc9] sm:$0xff]
        %v269 = vld [vmem:[%s178 + $0xd1] sm:$0xff]
        %v270 = vld [vmem:[%s178 + $0xd9] sm:$0xff]
        %v271 = vld [vmem:[%s178 + $0xe1] sm:$0xff]
        %v272 = vld [vmem:[%s178 + $0xe9] sm:$0xff]
        %v273 = vld [vmem:[%s178 + $0xf1] sm:$0xff]
        %v274 = vld [vmem:[%s178 + $0xf9] sm:$0xff]
        %v275 = vld [vmem:[%s178 + $0x101] sm:$0xff]
        %v276 = vld [vmem:[%s178 + $0x109] sm:$0xff]
        %v277 = vld [vmem:[%s178 + $0x111] sm:$0xff]
        %v278 = vld [vmem:[%s178 + $0x119] sm:$0xff]
        %v279 = vpack.c.bf16 %v244, %v243
        %v280 = vpack.c.bf16 %v246, %v245
        %v281 = vpack.c.bf16 %v248, %v247
        %v282 = vpack.c.bf16 %v250, %v249
        %v283 = vpack.c.bf16 %v252, %v251
        %v284 = vpack.c.bf16 %v254, %v253
        %v285 = vpack.c.bf16 %v256, %v255
        %v286 = vpack.c.bf16 %v258, %v257
        %v287 = vpack.c.bf16 %v260, %v259
        %v288 = vpack.c.bf16 %v262, %v261
        %v289 = vpack.c.bf16 %v264, %v263
        %v290 = vpack.c.bf16 %v266, %v265
        %v291 = vpack.c.bf16 %v268, %v267
        %v292 = vpack.c.bf16 %v270, %v269
        %v293 = vpack.c.bf16 %v272, %v271
        %v294 = vpack.c.bf16 %v274, %v273
        %v295 = vpack.c.bf16 %v276, %v275
        %v296 = vpack.c.bf16 %v278, %v277
        %s297 = scalar_lea.vmem %s186, 2
        %v298 = vld [vmem:[%s297] sm:$0x3]
        %vm299 = vcmask 31744
        %v301 = vsel %vm299, %v279, 0
        %v304 = vsel %vm299, %v280, 0
        %v307 = vsel %vm299, %v281, 0
        %v310 = vsel %vm299, %v282, 0
        %v313 = vsel %vm299, %v283, 0
        %v316 = vsel %vm299, %v284, 0
        %v319 = vsel %vm299, %v285, 0
        %v322 = vsel %vm299, %v286, 0
        %v325 = vsel %vm299, %v287, 0
        %v328 = vsel %vm299, %v288, 0
        %v331 = vsel %vm299, %v289, 0
        %v334 = vsel %vm299, %v290, 0
        %v337 = vsel %vm299, %v291, 0
        %v340 = vsel %vm299, %v292, 0
        %v343 = vsel %vm299, %v293, 0
        %v346 = vsel %vm299, %v294, 0
        %v349 = vsel %vm299, %v295, 0
        %v352 = vsel %vm299, %v296, 0
        %vm354 = vcmask 1041408
        %v356 = vsel %vm354, %v298, 0
        %358 = vmatprep.subr.bf16.mxu0 0
        %359 = vmatpush1.bf16.msra.mxu0 0
        %360 = vmatprep.subr.bf16.mxu0 0
        %361 = vmatpush1.bf16.msra.mxu0 0
        %362 = vmatprep.subr.bf16.mxu0 0
        %363 = vmatpush1.bf16.msra.mxu0 0
        %364 = vmatprep.subr.bf16.mxu0 0
        %365 = vmatpush1.bf16.msra.mxu0 0
        %366 = vmatprep.subr.bf16.mxu0 0
        %367 = vmatpush1.bf16.msra.mxu0 0
        %368 = vmatprep.subr.bf16.mxu0 0
        %369 = vmatpush1.bf16.msra.mxu0 0
        %370 = vmatprep.subr.bf16.mxu0 0
        %371 = vmatpush1.bf16.msra.mxu0 0
        %372 = vmatprep.subr.bf16.mxu0 0
        %373 = vmatpush1.bf16.msra.mxu0 %v356
        %374 = vmatprep.subr.bf16.mxu0 0
        %375 = vmatpush2.bf16.msra.mxu0 0
        %376 = vmatprep.subr.bf16.mxu0 0
        %377 = vmatpush2.bf16.msra.mxu0 0
        %378 = vmatprep.subr.bf16.mxu0 0
        %379 = vmatpush2.bf16.msra.mxu0 0
        %380 = vmatprep.subr.bf16.mxu0 0
        %381 = vmatpush2.bf16.msra.mxu0 0
        %382 = vmatprep.subr.bf16.mxu0 0
        %383 = vmatpush2.bf16.msra.mxu0 0
        %384 = vmatprep.subr.bf16.mxu0 0
        %385 = vmatpush2.bf16.msra.mxu0 0
        %386 = vmatprep.subr.bf16.mxu0 0
        %387 = vmatpush2.bf16.msra.mxu0 0
        %388 = vmatprep.subr.bf16.mxu0 0
        %389 = vmatpush2.bf16.msra.mxu0 0
        %390 = vmatprep.mubr.bf16.mxu0 0
        %391 = vmatmul.mubr.bf16.gmra.mxu0 %v301
        %v392 = vpop.f32.mrf.mxu0
        %v393 = vadd.f32 0.0, %v392
        %v394 = vpop.f32.mrf.mxu0
        %v395 = vpop.f32.mrf.mxu0
        %v396 = vadd.f32 0.0, %v395
        %v397 = vpop.f32.mrf.mxu0
        %398 = vmatprep.mubr.bf16.mxu0 0
        %399 = vmatmul.mubr.bf16.gmra.mxu0 %v304
        %v400 = vpop.f32.mrf.mxu0
        %v401 = vadd.f32 0.0, %v400
        %v402 = vpop.f32.mrf.mxu0
        %v403 = vpop.f32.mrf.mxu0
        %v404 = vadd.f32 0.0, %v403
        %v405 = vpop.f32.mrf.mxu0
        %406 = vmatprep.mubr.bf16.mxu0 0
        %407 = vmatmul.mubr.bf16.gmra.mxu0 %v307
        %v408 = vpop.f32.mrf.mxu0
        %v409 = vadd.f32 0.0, %v408
        %v410 = vpop.f32.mrf.mxu0
        %v411 = vpop.f32.mrf.mxu0
        %v412 = vadd.f32 0.0, %v411
        %v413 = vpop.f32.mrf.mxu0
        %414 = vmatprep.mubr.bf16.mxu0 0
        %415 = vmatmul.mubr.bf16.gmra.mxu0 %v310
        %v416 = vpop.f32.mrf.mxu0
        %v417 = vadd.f32 0.0, %v416
        %v418 = vpop.f32.mrf.mxu0
        %v419 = vpop.f32.mrf.mxu0
        %v420 = vadd.f32 0.0, %v419
        %v421 = vpop.f32.mrf.mxu0
        %422 = vmatprep.mubr.bf16.mxu0 0
        %423 = vmatmul.mubr.bf16.gmra.mxu0 %v313
        %v424 = vpop.f32.mrf.mxu0
        %v425 = vadd.f32 0.0, %v424
        %v426 = vpop.f32.mrf.mxu0
        %v427 = vpop.f32.mrf.mxu0
        %v428 = vadd.f32 0.0, %v427
        %v429 = vpop.f32.mrf.mxu0
        %430 = vmatprep.mubr.bf16.mxu0 0
        %431 = vmatmul.mubr.bf16.gmra.mxu0 %v316
        %v432 = vpop.f32.mrf.mxu0
        %v433 = vadd.f32 0.0, %v432
        %v434 = vpop.f32.mrf.mxu0
        %v435 = vpop.f32.mrf.mxu0
        %v436 = vadd.f32 0.0, %v435
        %v437 = vpop.f32.mrf.mxu0
        %438 = vmatprep.mubr.bf16.mxu0 0
        %439 = vmatmul.mubr.bf16.gmra.mxu0 %v319
        %v440 = vpop.f32.mrf.mxu0
        %v441 = vadd.f32 0.0, %v440
        %v442 = vpop.f32.mrf.mxu0
        %v443 = vpop.f32.mrf.mxu0
        %v444 = vadd.f32 0.0, %v443
        %v445 = vpop.f32.mrf.mxu0
        %446 = vmatprep.mubr.bf16.mxu0 0
        %447 = vmatmul.mubr.bf16.gmra.mxu0 %v322
        %v448 = vpop.f32.mrf.mxu0
        %v449 = vadd.f32 0.0, %v448
        %v450 = vpop.f32.mrf.mxu0
        %v451 = vpop.f32.mrf.mxu0
        %v452 = vadd.f32 0.0, %v451
        %v453 = vpop.f32.mrf.mxu0
        %454 = vmatprep.mubr.bf16.mxu0 0
        %455 = vmatmul.mubr.bf16.gmra.mxu0 %v325
        %v456 = vpop.f32.mrf.mxu0
        %v457 = vadd.f32 0.0, %v456
        %v458 = vpop.f32.mrf.mxu0
        %v459 = vpop.f32.mrf.mxu0
        %v460 = vadd.f32 0.0, %v459
        %v461 = vpop.f32.mrf.mxu0
        %462 = vmatprep.mubr.bf16.mxu0 0
        %463 = vmatmul.mubr.bf16.gmra.mxu0 %v328
        %v464 = vpop.f32.mrf.mxu0
        %v465 = vadd.f32 0.0, %v464
        %v466 = vpop.f32.mrf.mxu0
        %v467 = vpop.f32.mrf.mxu0
        %v468 = vadd.f32 0.0, %v467
        %v469 = vpop.f32.mrf.mxu0
        %470 = vmatprep.mubr.bf16.mxu0 0
        %471 = vmatmul.mubr.bf16.gmra.mxu0 %v331
        %v472 = vpop.f32.mrf.mxu0
        %v473 = vadd.f32 0.0, %v472
        %v474 = vpop.f32.mrf.mxu0
        %v475 = vpop.f32.mrf.mxu0
        %v476 = vadd.f32 0.0, %v475
        %v477 = vpop.f32.mrf.mxu0
        %478 = vmatprep.mubr.bf16.mxu0 0
        %479 = vmatmul.mubr.bf16.gmra.mxu0 %v334
        %v480 = vpop.f32.mrf.mxu0
        %v481 = vadd.f32 0.0, %v480
        %v482 = vpop.f32.mrf.mxu0
        %v483 = vpop.f32.mrf.mxu0
        %v484 = vadd.f32 0.0, %v483
        %v485 = vpop.f32.mrf.mxu0
        %486 = vmatprep.mubr.bf16.mxu0 0
        %487 = vmatmul.mubr.bf16.gmra.mxu0 %v337
        %v488 = vpop.f32.mrf.mxu0
        %v489 = vadd.f32 0.0, %v488
        %v490 = vpop.f32.mrf.mxu0
        %v491 = vpop.f32.mrf.mxu0
        %v492 = vadd.f32 0.0, %v491
        %v493 = vpop.f32.mrf.mxu0
        %494 = vmatprep.mubr.bf16.mxu0 0
        %495 = vmatmul.mubr.bf16.gmra.mxu0 %v340
        %v496 = vpop.f32.mrf.mxu0
        %v497 = vadd.f32 0.0, %v496
        %v498 = vpop.f32.mrf.mxu0
        %v499 = vpop.f32.mrf.mxu0
        %v500 = vadd.f32 0.0, %v499
        %v501 = vpop.f32.mrf.mxu0
        %502 = vmatprep.mubr.bf16.mxu0 0
        %503 = vmatmul.mubr.bf16.gmra.mxu0 %v343
        %v504 = vpop.f32.mrf.mxu0
        %v505 = vadd.f32 0.0, %v504
        %v506 = vpop.f32.mrf.mxu0
        %v507 = vpop.f32.mrf.mxu0
        %v508 = vadd.f32 0.0, %v507
        %v509 = vpop.f32.mrf.mxu0
        %510 = vmatprep.mubr.bf16.mxu0 0
        %511 = vmatmul.mubr.bf16.gmra.mxu0 %v346
        %v512 = vpop.f32.mrf.mxu0
        %v513 = vadd.f32 0.0, %v512
        %v514 = vpop.f32.mrf.mxu0
        %v515 = vpop.f32.mrf.mxu0
        %v516 = vadd.f32 0.0, %v515
        %v517 = vpop.f32.mrf.mxu0
        %518 = vmatprep.mubr.bf16.mxu0 0
        %519 = vmatmul.mubr.bf16.gmra.mxu0 %v349
        %v520 = vpop.f32.mrf.mxu0
        %v521 = vadd.f32 0.0, %v520
        %v522 = vpop.f32.mrf.mxu0
        %v523 = vpop.f32.mrf.mxu0
        %v524 = vadd.f32 0.0, %v523
        %v525 = vpop.f32.mrf.mxu0
        %526 = vmatprep.mubr.bf16.mxu0 0
        %527 = vmatmul.mubr.bf16.gmra.mxu0 %v352
        %v528 = vpop.f32.mrf.mxu0
        %v529 = vadd.f32 0.0, %v528
        %v530 = vpop.f32.mrf.mxu0
        %v531 = vpop.f32.mrf.mxu0
        %v532 = vadd.f32 0.0, %v531
        %v533 = vpop.f32.mrf.mxu0
        %534 = vdwg.mxu0
        %v536 = vsel %vm299, %v224, 0
        %v539 = vsel %vm299, %v225, 0
        %v542 = vsel %vm299, %v226, 0
        %v545 = vsel %vm299, %v227, 0
        %v548 = vsel %vm299, %v228, 0
        %v551 = vsel %vm299, %v229, 0
        %v554 = vsel %vm299, %v230, 0
        %v557 = vsel %vm299, %v231, 0
        %v560 = vsel %vm299, %v232, 0
        %v563 = vsel %vm299, %v233, 0
        %v566 = vsel %vm299, %v234, 0
        %v569 = vsel %vm299, %v235, 0
        %v572 = vsel %vm299, %v236, 0
        %v575 = vsel %vm299, %v237, 0
        %v578 = vsel %vm299, %v238, 0
        %v581 = vsel %vm299, %v239, 0
        %v584 = vsel %vm299, %v240, 0
        %v587 = vsel %vm299, %v241, 0
        %v590 = vsel %vm354, %v242, 0
        %592 = vmatprep.subr.bf16.mxu0 0
        %593 = vmatpush1.bf16.msra.mxu0 0
        %594 = vmatprep.subr.bf16.mxu0 0
        %595 = vmatpush1.bf16.msra.mxu0 0
        %596 = vmatprep.subr.bf16.mxu0 0
        %597 = vmatpush1.bf16.msra.mxu0 0
        %598 = vmatprep.subr.bf16.mxu0 0
        %599 = vmatpush1.bf16.msra.mxu0 0
        %600 = vmatprep.subr.bf16.mxu0 0
        %601 = vmatpush1.bf16.msra.mxu0 0
        %602 = vmatprep.subr.bf16.mxu0 0
        %603 = vmatpush1.bf16.msra.mxu0 0
        %604 = vmatprep.subr.bf16.mxu0 0
        %605 = vmatpush1.bf16.msra.mxu0 0
        %606 = vmatprep.subr.bf16.mxu0 0
        %607 = vmatpush1.bf16.msra.mxu0 %v590
        %608 = vmatprep.subr.bf16.mxu0 0
        %609 = vmatpush2.bf16.msra.mxu0 0
        %610 = vmatprep.subr.bf16.mxu0 0
        %611 = vmatpush2.bf16.msra.mxu0 0
        %612 = vmatprep.subr.bf16.mxu0 0
        %613 = vmatpush2.bf16.msra.mxu0 0
        %614 = vmatprep.subr.bf16.mxu0 0
        %615 = vmatpush2.bf16.msra.mxu0 0
        %616 = vmatprep.subr.bf16.mxu0 0
        %617 = vmatpush2.bf16.msra.mxu0 0
        %618 = vmatprep.subr.bf16.mxu0 0
        %619 = vmatpush2.bf16.msra.mxu0 0
        %620 = vmatprep.subr.bf16.mxu0 0
        %621 = vmatpush2.bf16.msra.mxu0 0
        %622 = vmatprep.subr.bf16.mxu0 0
        %623 = vmatpush2.bf16.msra.mxu0 0
        %624 = vmatprep.mubr.bf16.mxu0 0
        %625 = vmatmul.mubr.bf16.gmra.mxu0 %v536
        %v626 = vpop.f32.mrf.mxu0
        %v627 = vadd.f32 %v393, %v626
        %v628 = vpop.f32.mrf.mxu0
        %v629 = vpop.f32.mrf.mxu0
        %v630 = vadd.f32 %v396, %v629
        %v631 = vpop.f32.mrf.mxu0
        %632 = vmatprep.mubr.bf16.mxu0 0
        %633 = vmatmul.mubr.bf16.gmra.mxu0 %v539
        %v634 = vpop.f32.mrf.mxu0
        %v635 = vadd.f32 %v401, %v634
        %v636 = vpop.f32.mrf.mxu0
        %v637 = vpop.f32.mrf.mxu0
        %v638 = vadd.f32 %v404, %v637
        %v639 = vpop.f32.mrf.mxu0
        %640 = vmatprep.mubr.bf16.mxu0 0
        %641 = vmatmul.mubr.bf16.gmra.mxu0 %v542
        %v642 = vpop.f32.mrf.mxu0
        %v643 = vadd.f32 %v409, %v642
        %v644 = vpop.f32.mrf.mxu0
        %v645 = vpop.f32.mrf.mxu0
        %v646 = vadd.f32 %v412, %v645
        %v647 = vpop.f32.mrf.mxu0
        %648 = vmatprep.mubr.bf16.mxu0 0
        %649 = vmatmul.mubr.bf16.gmra.mxu0 %v545
        %v650 = vpop.f32.mrf.mxu0
        %v651 = vadd.f32 %v417, %v650
        %v652 = vpop.f32.mrf.mxu0
        %v653 = vpop.f32.mrf.mxu0
        %v654 = vadd.f32 %v420, %v653
        %v655 = vpop.f32.mrf.mxu0
        %656 = vmatprep.mubr.bf16.mxu0 0
        %657 = vmatmul.mubr.bf16.gmra.mxu0 %v548
        %v658 = vpop.f32.mrf.mxu0
        %v659 = vadd.f32 %v425, %v658
        %v660 = vpop.f32.mrf.mxu0
        %v661 = vpop.f32.mrf.mxu0
        %v662 = vadd.f32 %v428, %v661
        %v663 = vpop.f32.mrf.mxu0
        %664 = vmatprep.mubr.bf16.mxu0 0
        %665 = vmatmul.mubr.bf16.gmra.mxu0 %v551
        %v666 = vpop.f32.mrf.mxu0
        %v667 = vadd.f32 %v433, %v666
        %v668 = vpop.f32.mrf.mxu0
        %v669 = vpop.f32.mrf.mxu0
        %v670 = vadd.f32 %v436, %v669
        %v671 = vpop.f32.mrf.mxu0
        %672 = vmatprep.mubr.bf16.mxu0 0
        %673 = vmatmul.mubr.bf16.gmra.mxu0 %v554
        %v674 = vpop.f32.mrf.mxu0
        %v675 = vadd.f32 %v441, %v674
        %v676 = vpop.f32.mrf.mxu0
        %v677 = vpop.f32.mrf.mxu0
        %v678 = vadd.f32 %v444, %v677
        %v679 = vpop.f32.mrf.mxu0
        %680 = vmatprep.mubr.bf16.mxu0 0
        %681 = vmatmul.mubr.bf16.gmra.mxu0 %v557
        %v682 = vpop.f32.mrf.mxu0
        %v683 = vadd.f32 %v449, %v682
        %v684 = vpop.f32.mrf.mxu0
        %v685 = vpop.f32.mrf.mxu0
        %v686 = vadd.f32 %v452, %v685
        %v687 = vpop.f32.mrf.mxu0
        %688 = vmatprep.mubr.bf16.mxu0 0
        %689 = vmatmul.mubr.bf16.gmra.mxu0 %v560
        %v690 = vpop.f32.mrf.mxu0
        %v691 = vadd.f32 %v457, %v690
        %v692 = vpop.f32.mrf.mxu0
        %v693 = vpop.f32.mrf.mxu0
        %v694 = vadd.f32 %v460, %v693
        %v695 = vpop.f32.mrf.mxu0
        %696 = vmatprep.mubr.bf16.mxu0 0
        %697 = vmatmul.mubr.bf16.gmra.mxu0 %v563
        %v698 = vpop.f32.mrf.mxu0
        %v699 = vadd.f32 %v465, %v698
        %v700 = vpop.f32.mrf.mxu0
        %v701 = vpop.f32.mrf.mxu0
        %v702 = vadd.f32 %v468, %v701
        %v703 = vpop.f32.mrf.mxu0
        %704 = vmatprep.mubr.bf16.mxu0 0
        %705 = vmatmul.mubr.bf16.gmra.mxu0 %v566
        %v706 = vpop.f32.mrf.mxu0
        %v707 = vadd.f32 %v473, %v706
        %v708 = vpop.f32.mrf.mxu0
        %v709 = vpop.f32.mrf.mxu0
        %v710 = vadd.f32 %v476, %v709
        %v711 = vpop.f32.mrf.mxu0
        %712 = vmatprep.mubr.bf16.mxu0 0
        %713 = vmatmul.mubr.bf16.gmra.mxu0 %v569
        %v714 = vpop.f32.mrf.mxu0
        %v715 = vadd.f32 %v481, %v714
        %v716 = vpop.f32.mrf.mxu0
        %v717 = vpop.f32.mrf.mxu0
        %v718 = vadd.f32 %v484, %v717
        %v719 = vpop.f32.mrf.mxu0
        %720 = vmatprep.mubr.bf16.mxu0 0
        %721 = vmatmul.mubr.bf16.gmra.mxu0 %v572
        %v722 = vpop.f32.mrf.mxu0
        %v723 = vadd.f32 %v489, %v722
        %v724 = vpop.f32.mrf.mxu0
        %v725 = vpop.f32.mrf.mxu0
        %v726 = vadd.f32 %v492, %v725
        %v727 = vpop.f32.mrf.mxu0
        %728 = vmatprep.mubr.bf16.mxu0 0
        %729 = vmatmul.mubr.bf16.gmra.mxu0 %v575
        %v730 = vpop.f32.mrf.mxu0
        %v731 = vadd.f32 %v497, %v730
        %v732 = vpop.f32.mrf.mxu0
        %v733 = vpop.f32.mrf.mxu0
        %v734 = vadd.f32 %v500, %v733
        %v735 = vpop.f32.mrf.mxu0
        %736 = vmatprep.mubr.bf16.mxu0 0
        %737 = vmatmul.mubr.bf16.gmra.mxu0 %v578
        %v738 = vpop.f32.mrf.mxu0
        %v739 = vadd.f32 %v505, %v738
        %v740 = vpop.f32.mrf.mxu0
        %v741 = vpop.f32.mrf.mxu0
        %v742 = vadd.f32 %v508, %v741
        %v743 = vpop.f32.mrf.mxu0
        %744 = vmatprep.mubr.bf16.mxu0 0
        %745 = vmatmul.mubr.bf16.gmra.mxu0 %v581
        %v746 = vpop.f32.mrf.mxu0
        %v747 = vadd.f32 %v513, %v746
        %v748 = vpop.f32.mrf.mxu0
        %v749 = vpop.f32.mrf.mxu0
        %v750 = vadd.f32 %v516, %v749
        %v751 = vpop.f32.mrf.mxu0
        %752 = vmatprep.mubr.bf16.mxu0 0
        %753 = vmatmul.mubr.bf16.gmra.mxu0 %v584
        %v754 = vpop.f32.mrf.mxu0
        %v755 = vadd.f32 %v521, %v754
        %v756 = vpop.f32.mrf.mxu0
        %v757 = vpop.f32.mrf.mxu0
        %v758 = vadd.f32 %v524, %v757
        %v759 = vpop.f32.mrf.mxu0
        %760 = vmatprep.mubr.bf16.mxu0 0
        %761 = vmatmul.mubr.bf16.gmra.mxu0 %v587
        %v762 = vpop.f32.mrf.mxu0
        %v763 = vadd.f32 %v529, %v762
        %v764 = vpop.f32.mrf.mxu0
        %v765 = vpop.f32.mrf.mxu0
        %v766 = vadd.f32 %v532, %v765
        %v767 = vpop.f32.mrf.mxu0
        %768 = vdwg.mxu0
        %v769 = vld [vmem:[%s178 + $0x2] sm:$0xff]
        %v770 = vld [vmem:[%s178 + $0xa] sm:$0xff]
        %v771 = vld [vmem:[%s178 + $0x12] sm:$0xff]
        %v772 = vld [vmem:[%s178 + $0x1a] sm:$0xff]
        %v773 = vld [vmem:[%s178 + $0x22] sm:$0xff]
        %v774 = vld [vmem:[%s178 + $0x2a] sm:$0xff]
        %v775 = vld [vmem:[%s178 + $0x32] sm:$0xff]
        %v776 = vld [vmem:[%s178 + $0x3a] sm:$0xff]
        %v777 = vld [vmem:[%s178 + $0x42] sm:$0xff]
        %v778 = vld [vmem:[%s178 + $0x4a] sm:$0xff]
        %v779 = vld [vmem:[%s178 + $0x52] sm:$0xff]
        %v780 = vld [vmem:[%s178 + $0x5a] sm:$0xff]
        %v781 = vld [vmem:[%s178 + $0x62] sm:$0xff]
        %v782 = vld [vmem:[%s178 + $0x6a] sm:$0xff]
        %v783 = vld [vmem:[%s178 + $0x72] sm:$0xff]
        %v784 = vld [vmem:[%s178 + $0x7a] sm:$0xff]
        %v785 = vld [vmem:[%s178 + $0x82] sm:$0xff]
        %v786 = vld [vmem:[%s178 + $0x8a] sm:$0xff]
        %v787 = vld [vmem:[%s178 + $0x92] sm:$0xff]
        %v788 = vld [vmem:[%s178 + $0x9a] sm:$0xff]
        %v789 = vld [vmem:[%s178 + $0xa2] sm:$0xff]
        %v790 = vld [vmem:[%s178 + $0xaa] sm:$0xff]
        %v791 = vld [vmem:[%s178 + $0xb2] sm:$0xff]
        %v792 = vld [vmem:[%s178 + $0xba] sm:$0xff]
        %v793 = vld [vmem:[%s178 + $0xc2] sm:$0xff]
        %v794 = vld [vmem:[%s178 + $0xca] sm:$0xff]
        %v795 = vld [vmem:[%s178 + $0xd2] sm:$0xff]
        %v796 = vld [vmem:[%s178 + $0xda] sm:$0xff]
        %v797 = vld [vmem:[%s178 + $0xe2] sm:$0xff]
        %v798 = vld [vmem:[%s178 + $0xea] sm:$0xff]
        %v799 = vld [vmem:[%s178 + $0xf2] sm:$0xff]
        %v800 = vld [vmem:[%s178 + $0xfa] sm:$0xff]
        %v801 = vld [vmem:[%s178 + $0x102] sm:$0xff]
        %v802 = vld [vmem:[%s178 + $0x10a] sm:$0xff]
        %v803 = vld [vmem:[%s178 + $0x112] sm:$0xff]
        %v804 = vld [vmem:[%s178 + $0x11a] sm:$0xff]
        %v805 = vpack.c.bf16 %v770, %v769
        %v806 = vpack.c.bf16 %v772, %v771
        %v807 = vpack.c.bf16 %v774, %v773
        %v808 = vpack.c.bf16 %v776, %v775
        %v809 = vpack.c.bf16 %v778, %v777
        %v810 = vpack.c.bf16 %v780, %v779
        %v811 = vpack.c.bf16 %v782, %v781
        %v812 = vpack.c.bf16 %v784, %v783
        %v813 = vpack.c.bf16 %v786, %v785
        %v814 = vpack.c.bf16 %v788, %v787
        %v815 = vpack.c.bf16 %v790, %v789
        %v816 = vpack.c.bf16 %v792, %v791
        %v817 = vpack.c.bf16 %v794, %v793
        %v818 = vpack.c.bf16 %v796, %v795
        %v819 = vpack.c.bf16 %v798, %v797
        %v820 = vpack.c.bf16 %v800, %v799
        %v821 = vpack.c.bf16 %v802, %v801
        %v822 = vpack.c.bf16 %v804, %v803
        %s823 = scalar_lea.vmem %s186, 4
        %v824 = vld [vmem:[%s823] sm:$0x3]
        %v826 = vsel %vm299, %v805, 0
        %v829 = vsel %vm299, %v806, 0
        %v832 = vsel %vm299, %v807, 0
        %v835 = vsel %vm299, %v808, 0
        %v838 = vsel %vm299, %v809, 0
        %v841 = vsel %vm299, %v810, 0
        %v844 = vsel %vm299, %v811, 0
        %v847 = vsel %vm299, %v812, 0
        %v850 = vsel %vm299, %v813, 0
        %v853 = vsel %vm299, %v814, 0
        %v856 = vsel %vm299, %v815, 0
        %v859 = vsel %vm299, %v816, 0
        %v862 = vsel %vm299, %v817, 0
        %v865 = vsel %vm299, %v818, 0
        %v868 = vsel %vm299, %v819, 0
        %v871 = vsel %vm299, %v820, 0
        %v874 = vsel %vm299, %v821, 0
        %v877 = vsel %vm299, %v822, 0
        %v880 = vsel %vm354, %v824, 0
        %882 = vmatprep.subr.bf16.mxu0 0
        %883 = vmatpush1.bf16.msra.mxu0 0
        %884 = vmatprep.subr.bf16.mxu0 0
        %885 = vmatpush1.bf16.msra.mxu0 0
        %886 = vmatprep.subr.bf16.mxu0 0
        %887 = vmatpush1.bf16.msra.mxu0 0
        %888 = vmatprep.subr.bf16.mxu0 0
        %889 = vmatpush1.bf16.msra.mxu0 0
        %890 = vmatprep.subr.bf16.mxu0 0
        %891 = vmatpush1.bf16.msra.mxu0 0
        %892 = vmatprep.subr.bf16.mxu0 0
        %893 = vmatpush1.bf16.msra.mxu0 0
        %894 = vmatprep.subr.bf16.mxu0 0
        %895 = vmatpush1.bf16.msra.mxu0 0
        %896 = vmatprep.subr.bf16.mxu0 0
        %897 = vmatpush1.bf16.msra.mxu0 %v880
        %898 = vmatprep.subr.bf16.mxu0 0
        %899 = vmatpush2.bf16.msra.mxu0 0
        %900 = vmatprep.subr.bf16.mxu0 0
        %901 = vmatpush2.bf16.msra.mxu0 0
        %902 = vmatprep.subr.bf16.mxu0 0
        %903 = vmatpush2.bf16.msra.mxu0 0
        %904 = vmatprep.subr.bf16.mxu0 0
        %905 = vmatpush2.bf16.msra.mxu0 0
        %906 = vmatprep.subr.bf16.mxu0 0
        %907 = vmatpush2.bf16.msra.mxu0 0
        %908 = vmatprep.subr.bf16.mxu0 0
        %909 = vmatpush2.bf16.msra.mxu0 0
        %910 = vmatprep.subr.bf16.mxu0 0
        %911 = vmatpush2.bf16.msra.mxu0 0
        %912 = vmatprep.subr.bf16.mxu0 0
        %913 = vmatpush2.bf16.msra.mxu0 0
        %914 = vmatprep.mubr.bf16.mxu0 0
        %915 = vmatmul.mubr.bf16.gmra.mxu0 %v826
        %v916 = vpop.f32.mrf.mxu0
        %v917 = vadd.f32 0.0, %v916
        %v918 = vpop.f32.mrf.mxu0
        %v919 = vpop.f32.mrf.mxu0
        %v920 = vadd.f32 0.0, %v919
        %v921 = vpop.f32.mrf.mxu0
        %922 = vmatprep.mubr.bf16.mxu0 0
        %923 = vmatmul.mubr.bf16.gmra.mxu0 %v829
        %v924 = vpop.f32.mrf.mxu0
        %v925 = vadd.f32 0.0, %v924
        %v926 = vpop.f32.mrf.mxu0
        %v927 = vpop.f32.mrf.mxu0
        %v928 = vadd.f32 0.0, %v927
        %v929 = vpop.f32.mrf.mxu0
        %930 = vmatprep.mubr.bf16.mxu0 0
        %931 = vmatmul.mubr.bf16.gmra.mxu0 %v832
        %v932 = vpop.f32.mrf.mxu0
        %v933 = vadd.f32 0.0, %v932
        %v934 = vpop.f32.mrf.mxu0
        %v935 = vpop.f32.mrf.mxu0
        %v936 = vadd.f32 0.0, %v935
        %v937 = vpop.f32.mrf.mxu0
        %938 = vmatprep.mubr.bf16.mxu0 0
        %939 = vmatmul.mubr.bf16.gmra.mxu0 %v835
        %v940 = vpop.f32.mrf.mxu0
        %v941 = vadd.f32 0.0, %v940
        %v942 = vpop.f32.mrf.mxu0
        %v943 = vpop.f32.mrf.mxu0
        %v944 = vadd.f32 0.0, %v943
        %v945 = vpop.f32.mrf.mxu0
        %946 = vmatprep.mubr.bf16.mxu0 0
        %947 = vmatmul.mubr.bf16.gmra.mxu0 %v838
        %v948 = vpop.f32.mrf.mxu0
        %v949 = vadd.f32 0.0, %v948
        %v950 = vpop.f32.mrf.mxu0
        %v951 = vpop.f32.mrf.mxu0
        %v952 = vadd.f32 0.0, %v951
        %v953 = vpop.f32.mrf.mxu0
        %954 = vmatprep.mubr.bf16.mxu0 0
        %955 = vmatmul.mubr.bf16.gmra.mxu0 %v841
        %v956 = vpop.f32.mrf.mxu0
        %v957 = vadd.f32 0.0, %v956
        %v958 = vpop.f32.mrf.mxu0
        %v959 = vpop.f32.mrf.mxu0
        %v960 = vadd.f32 0.0, %v959
        %v961 = vpop.f32.mrf.mxu0
        %962 = vmatprep.mubr.bf16.mxu0 0
        %963 = vmatmul.mubr.bf16.gmra.mxu0 %v844
        %v964 = vpop.f32.mrf.mxu0
        %v965 = vadd.f32 0.0, %v964
        %v966 = vpop.f32.mrf.mxu0
        %v967 = vpop.f32.mrf.mxu0
        %v968 = vadd.f32 0.0, %v967
        %v969 = vpop.f32.mrf.mxu0
        %970 = vmatprep.mubr.bf16.mxu0 0
        %971 = vmatmul.mubr.bf16.gmra.mxu0 %v847
        %v972 = vpop.f32.mrf.mxu0
        %v973 = vadd.f32 0.0, %v972
        %v974 = vpop.f32.mrf.mxu0
        %v975 = vpop.f32.mrf.mxu0
        %v976 = vadd.f32 0.0, %v975
        %v977 = vpop.f32.mrf.mxu0
        %978 = vmatprep.mubr.bf16.mxu0 0
        %979 = vmatmul.mubr.bf16.gmra.mxu0 %v850
        %v980 = vpop.f32.mrf.mxu0
        %v981 = vadd.f32 0.0, %v980
        %v982 = vpop.f32.mrf.mxu0
        %v983 = vpop.f32.mrf.mxu0
        %v984 = vadd.f32 0.0, %v983
        %v985 = vpop.f32.mrf.mxu0
        %986 = vmatprep.mubr.bf16.mxu0 0
        %987 = vmatmul.mubr.bf16.gmra.mxu0 %v853
        %v988 = vpop.f32.mrf.mxu0
        %v989 = vadd.f32 0.0, %v988
        %v990 = vpop.f32.mrf.mxu0
        %v991 = vpop.f32.mrf.mxu0
        %v992 = vadd.f32 0.0, %v991
        %v993 = vpop.f32.mrf.mxu0
        %994 = vmatprep.mubr.bf16.mxu0 0
        %995 = vmatmul.mubr.bf16.gmra.mxu0 %v856
        %v996 = vpop.f32.mrf.mxu0
        %v997 = vadd.f32 0.0, %v996
        %v998 = vpop.f32.mrf.mxu0
        %v999 = vpop.f32.mrf.mxu0
        %v1000 = vadd.f32 0.0, %v999
        %v1001 = vpop.f32.mrf.mxu0
        %1002 = vmatprep.mubr.bf16.mxu0 0
        %1003 = vmatmul.mubr.bf16.gmra.mxu0 %v859
        %v1004 = vpop.f32.mrf.mxu0
        %v1005 = vadd.f32 0.0, %v1004
        %v1006 = vpop.f32.mrf.mxu0
        %v1007 = vpop.f32.mrf.mxu0
        %v1008 = vadd.f32 0.0, %v1007
        %v1009 = vpop.f32.mrf.mxu0
        %1010 = vmatprep.mubr.bf16.mxu0 0
        %1011 = vmatmul.mubr.bf16.gmra.mxu0 %v862
        %v1012 = vpop.f32.mrf.mxu0
        %v1013 = vadd.f32 0.0, %v1012
        %v1014 = vpop.f32.mrf.mxu0
        %v1015 = vpop.f32.mrf.mxu0
        %v1016 = vadd.f32 0.0, %v1015
        %v1017 = vpop.f32.mrf.mxu0
        %1018 = vmatprep.mubr.bf16.mxu0 0
        %1019 = vmatmul.mubr.bf16.gmra.mxu0 %v865
        %v1020 = vpop.f32.mrf.mxu0
        %v1021 = vadd.f32 0.0, %v1020
        %v1022 = vpop.f32.mrf.mxu0
        %v1023 = vpop.f32.mrf.mxu0
        %v1024 = vadd.f32 0.0, %v1023
        %v1025 = vpop.f32.mrf.mxu0
        %1026 = vmatprep.mubr.bf16.mxu0 0
        %1027 = vmatmul.mubr.bf16.gmra.mxu0 %v868
        %v1028 = vpop.f32.mrf.mxu0
        %v1029 = vadd.f32 0.0, %v1028
        %v1030 = vpop.f32.mrf.mxu0
        %v1031 = vpop.f32.mrf.mxu0
        %v1032 = vadd.f32 0.0, %v1031
        %v1033 = vpop.f32.mrf.mxu0
        %1034 = vmatprep.mubr.bf16.mxu0 0
        %1035 = vmatmul.mubr.bf16.gmra.mxu0 %v871
        %v1036 = vpop.f32.mrf.mxu0
        %v1037 = vadd.f32 0.0, %v1036
        %v1038 = vpop.f32.mrf.mxu0
        %v1039 = vpop.f32.mrf.mxu0
        %v1040 = vadd.f32 0.0, %v1039
        %v1041 = vpop.f32.mrf.mxu0
        %1042 = vmatprep.mubr.bf16.mxu0 0
        %1043 = vmatmul.mubr.bf16.gmra.mxu0 %v874
        %v1044 = vpop.f32.mrf.mxu0
        %v1045 = vadd.f32 0.0, %v1044
        %v1046 = vpop.f32.mrf.mxu0
        %v1047 = vpop.f32.mrf.mxu0
        %v1048 = vadd.f32 0.0, %v1047
        %v1049 = vpop.f32.mrf.mxu0
        %1050 = vmatprep.mubr.bf16.mxu0 0
        %1051 = vmatmul.mubr.bf16.gmra.mxu0 %v877
        %v1052 = vpop.f32.mrf.mxu0
        %v1053 = vadd.f32 0.0, %v1052
        %v1054 = vpop.f32.mrf.mxu0
        %v1055 = vpop.f32.mrf.mxu0
        %v1056 = vadd.f32 0.0, %v1055
        %v1057 = vpop.f32.mrf.mxu0
        %1058 = vdwg.mxu0
        %v1059 = vadd.f32 %v627, %v917
        %v1060 = vadd.f32 %v630, %v920
        %v1061 = vadd.f32 %v635, %v925
        %v1062 = vadd.f32 %v638, %v928
        %v1063 = vadd.f32 %v643, %v933
        %v1064 = vadd.f32 %v646, %v936
        %v1065 = vadd.f32 %v651, %v941
        %v1066 = vadd.f32 %v654, %v944
        %v1067 = vadd.f32 %v659, %v949
        %v1068 = vadd.f32 %v662, %v952
        %v1069 = vadd.f32 %v667, %v957
        %v1070 = vadd.f32 %v670, %v960
        %v1071 = vadd.f32 %v675, %v965
        %v1072 = vadd.f32 %v678, %v968
        %v1073 = vadd.f32 %v683, %v973
        %v1074 = vadd.f32 %v686, %v976
        %v1075 = vadd.f32 %v691, %v981
        %v1076 = vadd.f32 %v694, %v984
        %v1077 = vadd.f32 %v699, %v989
        %v1078 = vadd.f32 %v702, %v992
        %v1079 = vadd.f32 %v707, %v997
        %v1080 = vadd.f32 %v710, %v1000
        %v1081 = vadd.f32 %v715, %v1005
        %v1082 = vadd.f32 %v718, %v1008
        %v1083 = vadd.f32 %v723, %v1013
        %v1084 = vadd.f32 %v726, %v1016
        %v1085 = vadd.f32 %v731, %v1021
        %v1086 = vadd.f32 %v734, %v1024
        %v1087 = vadd.f32 %v739, %v1029
        %v1088 = vadd.f32 %v742, %v1032
        %v1089 = vadd.f32 %v747, %v1037
        %v1090 = vadd.f32 %v750, %v1040
        %v1091 = vadd.f32 %v755, %v1045
        %v1092 = vadd.f32 %v758, %v1048
        %v1093 = vadd.f32 %v763, %v1053
        %v1094 = vadd.f32 %v766, %v1056
        %v1095 = vld [vmem:[%s178 + $0x12] sm:$0xff]
        %v1096 = vld [vmem:[%s178 + $0x1a] sm:$0xff]
        %v1097 = vld [vmem:[%s178 + $0x22] sm:$0xff]
        %v1098 = vld [vmem:[%s178 + $0x2a] sm:$0xff]
        %v1099 = vld [vmem:[%s178 + $0x32] sm:$0xff]
        %v1100 = vld [vmem:[%s178 + $0x3a] sm:$0xff]
        %v1101 = vld [vmem:[%s178 + $0x42] sm:$0xff]
        %v1102 = vld [vmem:[%s178 + $0x4a] sm:$0xff]
        %v1103 = vld [vmem:[%s178 + $0x52] sm:$0xff]
        %v1104 = vld [vmem:[%s178 + $0x5a] sm:$0xff]
        %v1105 = vld [vmem:[%s178 + $0x62] sm:$0xff]
        %v1106 = vld [vmem:[%s178 + $0x6a] sm:$0xff]
        %v1107 = vld [vmem:[%s178 + $0x72] sm:$0xff]
        %v1108 = vld [vmem:[%s178 + $0x7a] sm:$0xff]
        %v1109 = vld [vmem:[%s178 + $0x82] sm:$0xff]
        %v1110 = vld [vmem:[%s178 + $0x8a] sm:$0xff]
        %v1111 = vld [vmem:[%s178 + $0x92] sm:$0xff]
        %v1112 = vld [vmem:[%s178 + $0x9a] sm:$0xff]
        %v1113 = vld [vmem:[%s178 + $0xa2] sm:$0xff]
        %v1114 = vld [vmem:[%s178 + $0xaa] sm:$0xff]
        %v1115 = vld [vmem:[%s178 + $0xb2] sm:$0xff]
        %v1116 = vld [vmem:[%s178 + $0xba] sm:$0xff]
        %v1117 = vld [vmem:[%s178 + $0xc2] sm:$0xff]
        %v1118 = vld [vmem:[%s178 + $0xca] sm:$0xff]
        %v1119 = vld [vmem:[%s178 + $0xd2] sm:$0xff]
        %v1120 = vld [vmem:[%s178 + $0xda] sm:$0xff]
        %v1121 = vld [vmem:[%s178 + $0xe2] sm:$0xff]
        %v1122 = vld [vmem:[%s178 + $0xea] sm:$0xff]
        %v1123 = vld [vmem:[%s178 + $0xf2] sm:$0xff]
        %v1124 = vld [vmem:[%s178 + $0xfa] sm:$0xff]
        %v1125 = vld [vmem:[%s178 + $0x102] sm:$0xff]
        %v1126 = vld [vmem:[%s178 + $0x10a] sm:$0xff]
        %v1127 = vld [vmem:[%s178 + $0x112] sm:$0xff]
        %v1128 = vld [vmem:[%s178 + $0x11a] sm:$0xff]
        %v1129 = vld [vmem:[%s178 + $0x122] sm:$0xff]
        %v1130 = vld [vmem:[%s178 + $0x12a] sm:$0xff]
        %v1131 = vpack.c.bf16 %v1096, %v1095
        %v1132 = vpack.c.bf16 %v1098, %v1097
        %v1133 = vpack.c.bf16 %v1100, %v1099
        %v1134 = vpack.c.bf16 %v1102, %v1101
        %v1135 = vpack.c.bf16 %v1104, %v1103
        %v1136 = vpack.c.bf16 %v1106, %v1105
        %v1137 = vpack.c.bf16 %v1108, %v1107
        %v1138 = vpack.c.bf16 %v1110, %v1109
        %v1139 = vpack.c.bf16 %v1112, %v1111
        %v1140 = vpack.c.bf16 %v1114, %v1113
        %v1141 = vpack.c.bf16 %v1116, %v1115
        %v1142 = vpack.c.bf16 %v1118, %v1117
        %v1143 = vpack.c.bf16 %v1120, %v1119
        %v1144 = vpack.c.bf16 %v1122, %v1121
        %v1145 = vpack.c.bf16 %v1124, %v1123
        %v1146 = vpack.c.bf16 %v1126, %v1125
        %v1147 = vpack.c.bf16 %v1128, %v1127
        %v1148 = vpack.c.bf16 %v1130, %v1129
        %s1149 = scalar_lea.vmem %s186, 6
        %v1150 = vld [vmem:[%s1149] sm:$0x3]
        %v1152 = vsel %vm299, %v1131, 0
        %v1155 = vsel %vm299, %v1132, 0
        %v1158 = vsel %vm299, %v1133, 0
        %v1161 = vsel %vm299, %v1134, 0
        %v1164 = vsel %vm299, %v1135, 0
        %v1167 = vsel %vm299, %v1136, 0
        %v1170 = vsel %vm299, %v1137, 0
        %v1173 = vsel %vm299, %v1138, 0
        %v1176 = vsel %vm299, %v1139, 0
        %v1179 = vsel %vm299, %v1140, 0
        %v1182 = vsel %vm299, %v1141, 0
        %v1185 = vsel %vm299, %v1142, 0
        %v1188 = vsel %vm299, %v1143, 0
        %v1191 = vsel %vm299, %v1144, 0
        %v1194 = vsel %vm299, %v1145, 0
        %v1197 = vsel %vm299, %v1146, 0
        %v1200 = vsel %vm299, %v1147, 0
        %v1203 = vsel %vm299, %v1148, 0
        %v1206 = vsel %vm354, %v1150, 0
        %1208 = vmatprep.subr.bf16.mxu0 0
        %1209 = vmatpush1.bf16.msra.mxu0 0
        %1210 = vmatprep.subr.bf16.mxu0 0
        %1211 = vmatpush1.bf16.msra.mxu0 0
        %1212 = vmatprep.subr.bf16.mxu0 0
        %1213 = vmatpush1.bf16.msra.mxu0 0
        %1214 = vmatprep.subr.bf16.mxu0 0
        %1215 = vmatpush1.bf16.msra.mxu0 0
        %1216 = vmatprep.subr.bf16.mxu0 0
        %1217 = vmatpush1.bf16.msra.mxu0 0
        %1218 = vmatprep.subr.bf16.mxu0 0
        %1219 = vmatpush1.bf16.msra.mxu0 0
        %1220 = vmatprep.subr.bf16.mxu0 0
        %1221 = vmatpush1.bf16.msra.mxu0 0
        %1222 = vmatprep.subr.bf16.mxu0 0
        %1223 = vmatpush1.bf16.msra.mxu0 %v1206
        %1224 = vmatprep.subr.bf16.mxu0 0
        %1225 = vmatpush2.bf16.msra.mxu0 0
        %1226 = vmatprep.subr.bf16.mxu0 0
        %1227 = vmatpush2.bf16.msra.mxu0 0
        %1228 = vmatprep.subr.bf16.mxu0 0
        %1229 = vmatpush2.bf16.msra.mxu0 0
        %1230 = vmatprep.subr.bf16.mxu0 0
        %1231 = vmatpush2.bf16.msra.mxu0 0
        %1232 = vmatprep.subr.bf16.mxu0 0
        %1233 = vmatpush2.bf16.msra.mxu0 0
        %1234 = vmatprep.subr.bf16.mxu0 0
        %1235 = vmatpush2.bf16.msra.mxu0 0
        %1236 = vmatprep.subr.bf16.mxu0 0
        %1237 = vmatpush2.bf16.msra.mxu0 0
        %1238 = vmatprep.subr.bf16.mxu0 0
        %1239 = vmatpush2.bf16.msra.mxu0 0
        %1240 = vmatprep.mubr.bf16.mxu0 0
        %1241 = vmatmul.mubr.bf16.gmra.mxu0 %v1152
        %v1242 = vpop.f32.mrf.mxu0
        %v1243 = vadd.f32 0.0, %v1242
        %v1244 = vpop.f32.mrf.mxu0
        %v1245 = vpop.f32.mrf.mxu0
        %v1246 = vadd.f32 0.0, %v1245
        %v1247 = vpop.f32.mrf.mxu0
        %1248 = vmatprep.mubr.bf16.mxu0 0
        %1249 = vmatmul.mubr.bf16.gmra.mxu0 %v1155
        %v1250 = vpop.f32.mrf.mxu0
        %v1251 = vadd.f32 0.0, %v1250
        %v1252 = vpop.f32.mrf.mxu0
        %v1253 = vpop.f32.mrf.mxu0
        %v1254 = vadd.f32 0.0, %v1253
        %v1255 = vpop.f32.mrf.mxu0
        %1256 = vmatprep.mubr.bf16.mxu0 0
        %1257 = vmatmul.mubr.bf16.gmra.mxu0 %v1158
        %v1258 = vpop.f32.mrf.mxu0
        %v1259 = vadd.f32 0.0, %v1258
        %v1260 = vpop.f32.mrf.mxu0
        %v1261 = vpop.f32.mrf.mxu0
        %v1262 = vadd.f32 0.0, %v1261
        %v1263 = vpop.f32.mrf.mxu0
        %1264 = vmatprep.mubr.bf16.mxu0 0
        %1265 = vmatmul.mubr.bf16.gmra.mxu0 %v1161
        %v1266 = vpop.f32.mrf.mxu0
        %v1267 = vadd.f32 0.0, %v1266
        %v1268 = vpop.f32.mrf.mxu0
        %v1269 = vpop.f32.mrf.mxu0
        %v1270 = vadd.f32 0.0, %v1269
        %v1271 = vpop.f32.mrf.mxu0
        %1272 = vmatprep.mubr.bf16.mxu0 0
        %1273 = vmatmul.mubr.bf16.gmra.mxu0 %v1164
        %v1274 = vpop.f32.mrf.mxu0
        %v1275 = vadd.f32 0.0, %v1274
        %v1276 = vpop.f32.mrf.mxu0
        %v1277 = vpop.f32.mrf.mxu0
        %v1278 = vadd.f32 0.0, %v1277
        %v1279 = vpop.f32.mrf.mxu0
        %1280 = vmatprep.mubr.bf16.mxu0 0
        %1281 = vmatmul.mubr.bf16.gmra.mxu0 %v1167
        %v1282 = vpop.f32.mrf.mxu0
        %v1283 = vadd.f32 0.0, %v1282
        %v1284 = vpop.f32.mrf.mxu0
        %v1285 = vpop.f32.mrf.mxu0
        %v1286 = vadd.f32 0.0, %v1285
        %v1287 = vpop.f32.mrf.mxu0
        %1288 = vmatprep.mubr.bf16.mxu0 0
        %1289 = vmatmul.mubr.bf16.gmra.mxu0 %v1170
        %v1290 = vpop.f32.mrf.mxu0
        %v1291 = vadd.f32 0.0, %v1290
        %v1292 = vpop.f32.mrf.mxu0
        %v1293 = vpop.f32.mrf.mxu0
        %v1294 = vadd.f32 0.0, %v1293
        %v1295 = vpop.f32.mrf.mxu0
        %1296 = vmatprep.mubr.bf16.mxu0 0
        %1297 = vmatmul.mubr.bf16.gmra.mxu0 %v1173
        %v1298 = vpop.f32.mrf.mxu0
        %v1299 = vadd.f32 0.0, %v1298
        %v1300 = vpop.f32.mrf.mxu0
        %v1301 = vpop.f32.mrf.mxu0
        %v1302 = vadd.f32 0.0, %v1301
        %v1303 = vpop.f32.mrf.mxu0
        %1304 = vmatprep.mubr.bf16.mxu0 0
        %1305 = vmatmul.mubr.bf16.gmra.mxu0 %v1176
        %v1306 = vpop.f32.mrf.mxu0
        %v1307 = vadd.f32 0.0, %v1306
        %v1308 = vpop.f32.mrf.mxu0
        %v1309 = vpop.f32.mrf.mxu0
        %v1310 = vadd.f32 0.0, %v1309
        %v1311 = vpop.f32.mrf.mxu0
        %1312 = vmatprep.mubr.bf16.mxu0 0
        %1313 = vmatmul.mubr.bf16.gmra.mxu0 %v1179
        %v1314 = vpop.f32.mrf.mxu0
        %v1315 = vadd.f32 0.0, %v1314
        %v1316 = vpop.f32.mrf.mxu0
        %v1317 = vpop.f32.mrf.mxu0
        %v1318 = vadd.f32 0.0, %v1317
        %v1319 = vpop.f32.mrf.mxu0
        %1320 = vmatprep.mubr.bf16.mxu0 0
        %1321 = vmatmul.mubr.bf16.gmra.mxu0 %v1182
        %v1322 = vpop.f32.mrf.mxu0
        %v1323 = vadd.f32 0.0, %v1322
        %v1324 = vpop.f32.mrf.mxu0
        %v1325 = vpop.f32.mrf.mxu0
        %v1326 = vadd.f32 0.0, %v1325
        %v1327 = vpop.f32.mrf.mxu0
        %1328 = vmatprep.mubr.bf16.mxu0 0
        %1329 = vmatmul.mubr.bf16.gmra.mxu0 %v1185
        %v1330 = vpop.f32.mrf.mxu0
        %v1331 = vadd.f32 0.0, %v1330
        %v1332 = vpop.f32.mrf.mxu0
        %v1333 = vpop.f32.mrf.mxu0
        %v1334 = vadd.f32 0.0, %v1333
        %v1335 = vpop.f32.mrf.mxu0
        %1336 = vmatprep.mubr.bf16.mxu0 0
        %1337 = vmatmul.mubr.bf16.gmra.mxu0 %v1188
        %v1338 = vpop.f32.mrf.mxu0
        %v1339 = vadd.f32 0.0, %v1338
        %v1340 = vpop.f32.mrf.mxu0
        %v1341 = vpop.f32.mrf.mxu0
        %v1342 = vadd.f32 0.0, %v1341
        %v1343 = vpop.f32.mrf.mxu0
        %1344 = vmatprep.mubr.bf16.mxu0 0
        %1345 = vmatmul.mubr.bf16.gmra.mxu0 %v1191
        %v1346 = vpop.f32.mrf.mxu0
        %v1347 = vadd.f32 0.0, %v1346
        %v1348 = vpop.f32.mrf.mxu0
        %v1349 = vpop.f32.mrf.mxu0
        %v1350 = vadd.f32 0.0, %v1349
        %v1351 = vpop.f32.mrf.mxu0
        %1352 = vmatprep.mubr.bf16.mxu0 0
        %1353 = vmatmul.mubr.bf16.gmra.mxu0 %v1194
        %v1354 = vpop.f32.mrf.mxu0
        %v1355 = vadd.f32 0.0, %v1354
        %v1356 = vpop.f32.mrf.mxu0
        %v1357 = vpop.f32.mrf.mxu0
        %v1358 = vadd.f32 0.0, %v1357
        %v1359 = vpop.f32.mrf.mxu0
        %1360 = vmatprep.mubr.bf16.mxu0 0
        %1361 = vmatmul.mubr.bf16.gmra.mxu0 %v1197
        %v1362 = vpop.f32.mrf.mxu0
        %v1363 = vadd.f32 0.0, %v1362
        %v1364 = vpop.f32.mrf.mxu0
        %v1365 = vpop.f32.mrf.mxu0
        %v1366 = vadd.f32 0.0, %v1365
        %v1367 = vpop.f32.mrf.mxu0
        %1368 = vmatprep.mubr.bf16.mxu0 0
        %1369 = vmatmul.mubr.bf16.gmra.mxu0 %v1200
        %v1370 = vpop.f32.mrf.mxu0
        %v1371 = vadd.f32 0.0, %v1370
        %v1372 = vpop.f32.mrf.mxu0
        %v1373 = vpop.f32.mrf.mxu0
        %v1374 = vadd.f32 0.0, %v1373
        %v1375 = vpop.f32.mrf.mxu0
        %1376 = vmatprep.mubr.bf16.mxu0 0
        %1377 = vmatmul.mubr.bf16.gmra.mxu0 %v1203
        %v1378 = vpop.f32.mrf.mxu0
        %v1379 = vadd.f32 0.0, %v1378
        %v1380 = vpop.f32.mrf.mxu0
        %v1381 = vpop.f32.mrf.mxu0
        %v1382 = vadd.f32 0.0, %v1381
        %v1383 = vpop.f32.mrf.mxu0
        %1384 = vdwg.mxu0
        %v1385 = vadd.f32 %v1059, %v1243
        %v1386 = vadd.f32 %v1060, %v1246
        %v1387 = vadd.f32 %v1061, %v1251
        %v1388 = vadd.f32 %v1062, %v1254
        %v1389 = vadd.f32 %v1063, %v1259
        %v1390 = vadd.f32 %v1064, %v1262
        %v1391 = vadd.f32 %v1065, %v1267
        %v1392 = vadd.f32 %v1066, %v1270
        %v1393 = vadd.f32 %v1067, %v1275
        %v1394 = vadd.f32 %v1068, %v1278
        %v1395 = vadd.f32 %v1069, %v1283
        %v1396 = vadd.f32 %v1070, %v1286
        %v1397 = vadd.f32 %v1071, %v1291
        %v1398 = vadd.f32 %v1072, %v1294
        %v1399 = vadd.f32 %v1073, %v1299
        %v1400 = vadd.f32 %v1074, %v1302
        %v1401 = vadd.f32 %v1075, %v1307
        %v1402 = vadd.f32 %v1076, %v1310
        %v1403 = vadd.f32 %v1077, %v1315
        %v1404 = vadd.f32 %v1078, %v1318
        %v1405 = vadd.f32 %v1079, %v1323
        %v1406 = vadd.f32 %v1080, %v1326
        %v1407 = vadd.f32 %v1081, %v1331
        %v1408 = vadd.f32 %v1082, %v1334
        %v1409 = vadd.f32 %v1083, %v1339
        %v1410 = vadd.f32 %v1084, %v1342
        %v1411 = vadd.f32 %v1085, %v1347
        %v1412 = vadd.f32 %v1086, %v1350
        %v1413 = vadd.f32 %v1087, %v1355
        %v1414 = vadd.f32 %v1088, %v1358
        %v1415 = vadd.f32 %v1089, %v1363
        %v1416 = vadd.f32 %v1090, %v1366
        %v1417 = vadd.f32 %v1091, %v1371
        %v1418 = vadd.f32 %v1092, %v1374
        %v1419 = vadd.f32 %v1093, %v1379
        %v1420 = vadd.f32 %v1094, %v1382
        %v1421 = vld [vmem:[%s178 + $0x13] sm:$0xff]
        %v1422 = vld [vmem:[%s178 + $0x1b] sm:$0xff]
        %v1423 = vld [vmem:[%s178 + $0x23] sm:$0xff]
        %v1424 = vld [vmem:[%s178 + $0x2b] sm:$0xff]
        %v1425 = vld [vmem:[%s178 + $0x33] sm:$0xff]
        %v1426 = vld [vmem:[%s178 + $0x3b] sm:$0xff]
        %v1427 = vld [vmem:[%s178 + $0x43] sm:$0xff]
        %v1428 = vld [vmem:[%s178 + $0x4b] sm:$0xff]
        %v1429 = vld [vmem:[%s178 + $0x53] sm:$0xff]
        %v1430 = vld [vmem:[%s178 + $0x5b] sm:$0xff]
        %v1431 = vld [vmem:[%s178 + $0x63] sm:$0xff]
        %v1432 = vld [vmem:[%s178 + $0x6b] sm:$0xff]
        %v1433 = vld [vmem:[%s178 + $0x73] sm:$0xff]
        %v1434 = vld [vmem:[%s178 + $0x7b] sm:$0xff]
        %v1435 = vld [vmem:[%s178 + $0x83] sm:$0xff]
        %v1436 = vld [vmem:[%s178 + $0x8b] sm:$0xff]
        %v1437 = vld [vmem:[%s178 + $0x93] sm:$0xff]
        %v1438 = vld [vmem:[%s178 + $0x9b] sm:$0xff]
        %v1439 = vld [vmem:[%s178 + $0xa3] sm:$0xff]
        %v1440 = vld [vmem:[%s178 + $0xab] sm:$0xff]
        %v1441 = vld [vmem:[%s178 + $0xb3] sm:$0xff]
        %v1442 = vld [vmem:[%s178 + $0xbb] sm:$0xff]
        %v1443 = vld [vmem:[%s178 + $0xc3] sm:$0xff]
        %v1444 = vld [vmem:[%s178 + $0xcb] sm:$0xff]
        %v1445 = vld [vmem:[%s178 + $0xd3] sm:$0xff]
        %v1446 = vld [vmem:[%s178 + $0xdb] sm:$0xff]
        %v1447 = vld [vmem:[%s178 + $0xe3] sm:$0xff]
        %v1448 = vld [vmem:[%s178 + $0xeb] sm:$0xff]
        %v1449 = vld [vmem:[%s178 + $0xf3] sm:$0xff]
        %v1450 = vld [vmem:[%s178 + $0xfb] sm:$0xff]
        %v1451 = vld [vmem:[%s178 + $0x103] sm:$0xff]
        %v1452 = vld [vmem:[%s178 + $0x10b] sm:$0xff]
        %v1453 = vld [vmem:[%s178 + $0x113] sm:$0xff]
        %v1454 = vld [vmem:[%s178 + $0x11b] sm:$0xff]
        %v1455 = vld [vmem:[%s178 + $0x123] sm:$0xff]
        %v1456 = vld [vmem:[%s178 + $0x12b] sm:$0xff]
        %v1457 = vpack.c.bf16 %v1422, %v1421
        %v1458 = vpack.c.bf16 %v1424, %v1423
        %v1459 = vpack.c.bf16 %v1426, %v1425
        %v1460 = vpack.c.bf16 %v1428, %v1427
        %v1461 = vpack.c.bf16 %v1430, %v1429
        %v1462 = vpack.c.bf16 %v1432, %v1431
        %v1463 = vpack.c.bf16 %v1434, %v1433
        %v1464 = vpack.c.bf16 %v1436, %v1435
        %v1465 = vpack.c.bf16 %v1438, %v1437
        %v1466 = vpack.c.bf16 %v1440, %v1439
        %v1467 = vpack.c.bf16 %v1442, %v1441
        %v1468 = vpack.c.bf16 %v1444, %v1443
        %v1469 = vpack.c.bf16 %v1446, %v1445
        %v1470 = vpack.c.bf16 %v1448, %v1447
        %v1471 = vpack.c.bf16 %v1450, %v1449
        %v1472 = vpack.c.bf16 %v1452, %v1451
        %v1473 = vpack.c.bf16 %v1454, %v1453
        %v1474 = vpack.c.bf16 %v1456, %v1455
        %s1475 = scalar_lea.vmem %s186, 8
        %v1476 = vld [vmem:[%s1475] sm:$0x3]
        %v1478 = vsel %vm299, %v1457, 0
        %v1481 = vsel %vm299, %v1458, 0
        %v1484 = vsel %vm299, %v1459, 0
        %v1487 = vsel %vm299, %v1460, 0
        %v1490 = vsel %vm299, %v1461, 0
        %v1493 = vsel %vm299, %v1462, 0
        %v1496 = vsel %vm299, %v1463, 0
        %v1499 = vsel %vm299, %v1464, 0
        %v1502 = vsel %vm299, %v1465, 0
        %v1505 = vsel %vm299, %v1466, 0
        %v1508 = vsel %vm299, %v1467, 0
        %v1511 = vsel %vm299, %v1468, 0
        %v1514 = vsel %vm299, %v1469, 0
        %v1517 = vsel %vm299, %v1470, 0
        %v1520 = vsel %vm299, %v1471, 0
        %v1523 = vsel %vm299, %v1472, 0
        %v1526 = vsel %vm299, %v1473, 0
        %v1529 = vsel %vm299, %v1474, 0
        %v1532 = vsel %vm354, %v1476, 0
        %1534 = vmatprep.subr.bf16.mxu0 0
        %1535 = vmatpush1.bf16.msra.mxu0 0
        %1536 = vmatprep.subr.bf16.mxu0 0
        %1537 = vmatpush1.bf16.msra.mxu0 0
        %1538 = vmatprep.subr.bf16.mxu0 0
        %1539 = vmatpush1.bf16.msra.mxu0 0
        %1540 = vmatprep.subr.bf16.mxu0 0
        %1541 = vmatpush1.bf16.msra.mxu0 0
        %1542 = vmatprep.subr.bf16.mxu0 0
        %1543 = vmatpush1.bf16.msra.mxu0 0
        %1544 = vmatprep.subr.bf16.mxu0 0
        %1545 = vmatpush1.bf16.msra.mxu0 0
        %1546 = vmatprep.subr.bf16.mxu0 0
        %1547 = vmatpush1.bf16.msra.mxu0 0
        %1548 = vmatprep.subr.bf16.mxu0 0
        %1549 = vmatpush1.bf16.msra.mxu0 %v1532
        %1550 = vmatprep.subr.bf16.mxu0 0
        %1551 = vmatpush2.bf16.msra.mxu0 0
        %1552 = vmatprep.subr.bf16.mxu0 0
        %1553 = vmatpush2.bf16.msra.mxu0 0
        %1554 = vmatprep.subr.bf16.mxu0 0
        %1555 = vmatpush2.bf16.msra.mxu0 0
        %1556 = vmatprep.subr.bf16.mxu0 0
        %1557 = vmatpush2.bf16.msra.mxu0 0
        %1558 = vmatprep.subr.bf16.mxu0 0
        %1559 = vmatpush2.bf16.msra.mxu0 0
        %1560 = vmatprep.subr.bf16.mxu0 0
        %1561 = vmatpush2.bf16.msra.mxu0 0
        %1562 = vmatprep.subr.bf16.mxu0 0
        %1563 = vmatpush2.bf16.msra.mxu0 0
        %1564 = vmatprep.subr.bf16.mxu0 0
        %1565 = vmatpush2.bf16.msra.mxu0 0
        %1566 = vmatprep.mubr.bf16.mxu0 0
        %1567 = vmatmul.mubr.bf16.gmra.mxu0 %v1478
        %v1568 = vpop.f32.mrf.mxu0
        %v1569 = vadd.f32 0.0, %v1568
        %v1570 = vpop.f32.mrf.mxu0
        %v1571 = vpop.f32.mrf.mxu0
        %v1572 = vadd.f32 0.0, %v1571
        %v1573 = vpop.f32.mrf.mxu0
        %1574 = vmatprep.mubr.bf16.mxu0 0
        %1575 = vmatmul.mubr.bf16.gmra.mxu0 %v1481
        %v1576 = vpop.f32.mrf.mxu0
        %v1577 = vadd.f32 0.0, %v1576
        %v1578 = vpop.f32.mrf.mxu0
        %v1579 = vpop.f32.mrf.mxu0
        %v1580 = vadd.f32 0.0, %v1579
        %v1581 = vpop.f32.mrf.mxu0
        %1582 = vmatprep.mubr.bf16.mxu0 0
        %1583 = vmatmul.mubr.bf16.gmra.mxu0 %v1484
        %v1584 = vpop.f32.mrf.mxu0
        %v1585 = vadd.f32 0.0, %v1584
        %v1586 = vpop.f32.mrf.mxu0
        %v1587 = vpop.f32.mrf.mxu0
        %v1588 = vadd.f32 0.0, %v1587
        %v1589 = vpop.f32.mrf.mxu0
        %1590 = vmatprep.mubr.bf16.mxu0 0
        %1591 = vmatmul.mubr.bf16.gmra.mxu0 %v1487
        %v1592 = vpop.f32.mrf.mxu0
        %v1593 = vadd.f32 0.0, %v1592
        %v1594 = vpop.f32.mrf.mxu0
        %v1595 = vpop.f32.mrf.mxu0
        %v1596 = vadd.f32 0.0, %v1595
        %v1597 = vpop.f32.mrf.mxu0
        %1598 = vmatprep.mubr.bf16.mxu0 0
        %1599 = vmatmul.mubr.bf16.gmra.mxu0 %v1490
        %v1600 = vpop.f32.mrf.mxu0
        %v1601 = vadd.f32 0.0, %v1600
        %v1602 = vpop.f32.mrf.mxu0
        %v1603 = vpop.f32.mrf.mxu0
        %v1604 = vadd.f32 0.0, %v1603
        %v1605 = vpop.f32.mrf.mxu0
        %1606 = vmatprep.mubr.bf16.mxu0 0
        %1607 = vmatmul.mubr.bf16.gmra.mxu0 %v1493
        %v1608 = vpop.f32.mrf.mxu0
        %v1609 = vadd.f32 0.0, %v1608
        %v1610 = vpop.f32.mrf.mxu0
        %v1611 = vpop.f32.mrf.mxu0
        %v1612 = vadd.f32 0.0, %v1611
        %v1613 = vpop.f32.mrf.mxu0
        %1614 = vmatprep.mubr.bf16.mxu0 0
        %1615 = vmatmul.mubr.bf16.gmra.mxu0 %v1496
        %v1616 = vpop.f32.mrf.mxu0
        %v1617 = vadd.f32 0.0, %v1616
        %v1618 = vpop.f32.mrf.mxu0
        %v1619 = vpop.f32.mrf.mxu0
        %v1620 = vadd.f32 0.0, %v1619
        %v1621 = vpop.f32.mrf.mxu0
        %1622 = vmatprep.mubr.bf16.mxu0 0
        %1623 = vmatmul.mubr.bf16.gmra.mxu0 %v1499
        %v1624 = vpop.f32.mrf.mxu0
        %v1625 = vadd.f32 0.0, %v1624
        %v1626 = vpop.f32.mrf.mxu0
        %v1627 = vpop.f32.mrf.mxu0
        %v1628 = vadd.f32 0.0, %v1627
        %v1629 = vpop.f32.mrf.mxu0
        %1630 = vmatprep.mubr.bf16.mxu0 0
        %1631 = vmatmul.mubr.bf16.gmra.mxu0 %v1502
        %v1632 = vpop.f32.mrf.mxu0
        %v1633 = vadd.f32 0.0, %v1632
        %v1634 = vpop.f32.mrf.mxu0
        %v1635 = vpop.f32.mrf.mxu0
        %v1636 = vadd.f32 0.0, %v1635
        %v1637 = vpop.f32.mrf.mxu0
        %1638 = vmatprep.mubr.bf16.mxu0 0
        %1639 = vmatmul.mubr.bf16.gmra.mxu0 %v1505
        %v1640 = vpop.f32.mrf.mxu0
        %v1641 = vadd.f32 0.0, %v1640
        %v1642 = vpop.f32.mrf.mxu0
        %v1643 = vpop.f32.mrf.mxu0
        %v1644 = vadd.f32 0.0, %v1643
        %v1645 = vpop.f32.mrf.mxu0
        %1646 = vmatprep.mubr.bf16.mxu0 0
        %1647 = vmatmul.mubr.bf16.gmra.mxu0 %v1508
        %v1648 = vpop.f32.mrf.mxu0
        %v1649 = vadd.f32 0.0, %v1648
        %v1650 = vpop.f32.mrf.mxu0
        %v1651 = vpop.f32.mrf.mxu0
        %v1652 = vadd.f32 0.0, %v1651
        %v1653 = vpop.f32.mrf.mxu0
        %1654 = vmatprep.mubr.bf16.mxu0 0
        %1655 = vmatmul.mubr.bf16.gmra.mxu0 %v1511
        %v1656 = vpop.f32.mrf.mxu0
        %v1657 = vadd.f32 0.0, %v1656
        %v1658 = vpop.f32.mrf.mxu0
        %v1659 = vpop.f32.mrf.mxu0
        %v1660 = vadd.f32 0.0, %v1659
        %v1661 = vpop.f32.mrf.mxu0
        %1662 = vmatprep.mubr.bf16.mxu0 0
        %1663 = vmatmul.mubr.bf16.gmra.mxu0 %v1514
        %v1664 = vpop.f32.mrf.mxu0
        %v1665 = vadd.f32 0.0, %v1664
        %v1666 = vpop.f32.mrf.mxu0
        %v1667 = vpop.f32.mrf.mxu0
        %v1668 = vadd.f32 0.0, %v1667
        %v1669 = vpop.f32.mrf.mxu0
        %1670 = vmatprep.mubr.bf16.mxu0 0
        %1671 = vmatmul.mubr.bf16.gmra.mxu0 %v1517
        %v1672 = vpop.f32.mrf.mxu0
        %v1673 = vadd.f32 0.0, %v1672
        %v1674 = vpop.f32.mrf.mxu0
        %v1675 = vpop.f32.mrf.mxu0
        %v1676 = vadd.f32 0.0, %v1675
        %v1677 = vpop.f32.mrf.mxu0
        %1678 = vmatprep.mubr.bf16.mxu0 0
        %1679 = vmatmul.mubr.bf16.gmra.mxu0 %v1520
        %v1680 = vpop.f32.mrf.mxu0
        %v1681 = vadd.f32 0.0, %v1680
        %v1682 = vpop.f32.mrf.mxu0
        %v1683 = vpop.f32.mrf.mxu0
        %v1684 = vadd.f32 0.0, %v1683
        %v1685 = vpop.f32.mrf.mxu0
        %1686 = vmatprep.mubr.bf16.mxu0 0
        %1687 = vmatmul.mubr.bf16.gmra.mxu0 %v1523
        %v1688 = vpop.f32.mrf.mxu0
        %v1689 = vadd.f32 0.0, %v1688
        %v1690 = vpop.f32.mrf.mxu0
        %v1691 = vpop.f32.mrf.mxu0
        %v1692 = vadd.f32 0.0, %v1691
        %v1693 = vpop.f32.mrf.mxu0
        %1694 = vmatprep.mubr.bf16.mxu0 0
        %1695 = vmatmul.mubr.bf16.gmra.mxu0 %v1526
        %v1696 = vpop.f32.mrf.mxu0
        %v1697 = vadd.f32 0.0, %v1696
        %v1698 = vpop.f32.mrf.mxu0
        %v1699 = vpop.f32.mrf.mxu0
        %v1700 = vadd.f32 0.0, %v1699
        %v1701 = vpop.f32.mrf.mxu0
        %1702 = vmatprep.mubr.bf16.mxu0 0
        %1703 = vmatmul.mubr.bf16.gmra.mxu0 %v1529
        %v1704 = vpop.f32.mrf.mxu0
        %v1705 = vadd.f32 0.0, %v1704
        %v1706 = vpop.f32.mrf.mxu0
        %v1707 = vpop.f32.mrf.mxu0
        %v1708 = vadd.f32 0.0, %v1707
        %v1709 = vpop.f32.mrf.mxu0
        %1710 = vdwg.mxu0
        %v1711 = vadd.f32 %v1385, %v1569
        %v1712 = vadd.f32 %v1386, %v1572
        %v1713 = vadd.f32 %v1387, %v1577
        %v1714 = vadd.f32 %v1388, %v1580
        %v1715 = vadd.f32 %v1389, %v1585
        %v1716 = vadd.f32 %v1390, %v1588
        %v1717 = vadd.f32 %v1391, %v1593
        %v1718 = vadd.f32 %v1392, %v1596
        %v1719 = vadd.f32 %v1393, %v1601
        %v1720 = vadd.f32 %v1394, %v1604
        %v1721 = vadd.f32 %v1395, %v1609
        %v1722 = vadd.f32 %v1396, %v1612
        %v1723 = vadd.f32 %v1397, %v1617
        %v1724 = vadd.f32 %v1398, %v1620
        %v1725 = vadd.f32 %v1399, %v1625
        %v1726 = vadd.f32 %v1400, %v1628
        %v1727 = vadd.f32 %v1401, %v1633
        %v1728 = vadd.f32 %v1402, %v1636
        %v1729 = vadd.f32 %v1403, %v1641
        %v1730 = vadd.f32 %v1404, %v1644
        %v1731 = vadd.f32 %v1405, %v1649
        %v1732 = vadd.f32 %v1406, %v1652
        %v1733 = vadd.f32 %v1407, %v1657
        %v1734 = vadd.f32 %v1408, %v1660
        %v1735 = vadd.f32 %v1409, %v1665
        %v1736 = vadd.f32 %v1410, %v1668
        %v1737 = vadd.f32 %v1411, %v1673
        %v1738 = vadd.f32 %v1412, %v1676
        %v1739 = vadd.f32 %v1413, %v1681
        %v1740 = vadd.f32 %v1414, %v1684
        %v1741 = vadd.f32 %v1415, %v1689
        %v1742 = vadd.f32 %v1416, %v1692
        %v1743 = vadd.f32 %v1417, %v1697
        %v1744 = vadd.f32 %v1418, %v1700
        %v1745 = vadd.f32 %v1419, %v1705
        %v1746 = vadd.f32 %v1420, %v1708
        %v1747 = vld [vmem:[%s178 + $0x14] sm:$0xff]
        %v1748 = vld [vmem:[%s178 + $0x1c] sm:$0xff]
        %v1749 = vld [vmem:[%s178 + $0x24] sm:$0xff]
        %v1750 = vld [vmem:[%s178 + $0x2c] sm:$0xff]
        %v1751 = vld [vmem:[%s178 + $0x34] sm:$0xff]
        %v1752 = vld [vmem:[%s178 + $0x3c] sm:$0xff]
        %v1753 = vld [vmem:[%s178 + $0x44] sm:$0xff]
        %v1754 = vld [vmem:[%s178 + $0x4c] sm:$0xff]
        %v1755 = vld [vmem:[%s178 + $0x54] sm:$0xff]
        %v1756 = vld [vmem:[%s178 + $0x5c] sm:$0xff]
        %v1757 = vld [vmem:[%s178 + $0x64] sm:$0xff]
        %v1758 = vld [vmem:[%s178 + $0x6c] sm:$0xff]
        %v1759 = vld [vmem:[%s178 + $0x74] sm:$0xff]
        %v1760 = vld [vmem:[%s178 + $0x7c] sm:$0xff]
        %v1761 = vld [vmem:[%s178 + $0x84] sm:$0xff]
        %v1762 = vld [vmem:[%s178 + $0x8c] sm:$0xff]
        %v1763 = vld [vmem:[%s178 + $0x94] sm:$0xff]
        %v1764 = vld [vmem:[%s178 + $0x9c] sm:$0xff]
        %v1765 = vld [vmem:[%s178 + $0xa4] sm:$0xff]
        %v1766 = vld [vmem:[%s178 + $0xac] sm:$0xff]
        %v1767 = vld [vmem:[%s178 + $0xb4] sm:$0xff]
        %v1768 = vld [vmem:[%s178 + $0xbc] sm:$0xff]
        %v1769 = vld [vmem:[%s178 + $0xc4] sm:$0xff]
        %v1770 = vld [vmem:[%s178 + $0xcc] sm:$0xff]
        %v1771 = vld [vmem:[%s178 + $0xd4] sm:$0xff]
        %v1772 = vld [vmem:[%s178 + $0xdc] sm:$0xff]
        %v1773 = vld [vmem:[%s178 + $0xe4] sm:$0xff]
        %v1774 = vld [vmem:[%s178 + $0xec] sm:$0xff]
        %v1775 = vld [vmem:[%s178 + $0xf4] sm:$0xff]
        %v1776 = vld [vmem:[%s178 + $0xfc] sm:$0xff]
        %v1777 = vld [vmem:[%s178 + $0x104] sm:$0xff]
        %v1778 = vld [vmem:[%s178 + $0x10c] sm:$0xff]
        %v1779 = vld [vmem:[%s178 + $0x114] sm:$0xff]
        %v1780 = vld [vmem:[%s178 + $0x11c] sm:$0xff]
        %v1781 = vld [vmem:[%s178 + $0x124] sm:$0xff]
        %v1782 = vld [vmem:[%s178 + $0x12c] sm:$0xff]
        %v1783 = vpack.c.bf16 %v1748, %v1747
        %v1784 = vpack.c.bf16 %v1750, %v1749
        %v1785 = vpack.c.bf16 %v1752, %v1751
        %v1786 = vpack.c.bf16 %v1754, %v1753
        %v1787 = vpack.c.bf16 %v1756, %v1755
        %v1788 = vpack.c.bf16 %v1758, %v1757
        %v1789 = vpack.c.bf16 %v1760, %v1759
        %v1790 = vpack.c.bf16 %v1762, %v1761
        %v1791 = vpack.c.bf16 %v1764, %v1763
        %v1792 = vpack.c.bf16 %v1766, %v1765
        %v1793 = vpack.c.bf16 %v1768, %v1767
        %v1794 = vpack.c.bf16 %v1770, %v1769
        %v1795 = vpack.c.bf16 %v1772, %v1771
        %v1796 = vpack.c.bf16 %v1774, %v1773
        %v1797 = vpack.c.bf16 %v1776, %v1775
        %v1798 = vpack.c.bf16 %v1778, %v1777
        %v1799 = vpack.c.bf16 %v1780, %v1779
        %v1800 = vpack.c.bf16 %v1782, %v1781
        %s1801 = scalar_lea.vmem %s186, 10
        %v1802 = vld [vmem:[%s1801] sm:$0x3]
        %v1804 = vsel %vm299, %v1783, 0
        %v1807 = vsel %vm299, %v1784, 0
        %v1810 = vsel %vm299, %v1785, 0
        %v1813 = vsel %vm299, %v1786, 0
        %v1816 = vsel %vm299, %v1787, 0
        %v1819 = vsel %vm299, %v1788, 0
        %v1822 = vsel %vm299, %v1789, 0
        %v1825 = vsel %vm299, %v1790, 0
        %v1828 = vsel %vm299, %v1791, 0
        %v1831 = vsel %vm299, %v1792, 0
        %v1834 = vsel %vm299, %v1793, 0
        %v1837 = vsel %vm299, %v1794, 0
        %v1840 = vsel %vm299, %v1795, 0
        %v1843 = vsel %vm299, %v1796, 0
        %v1846 = vsel %vm299, %v1797, 0
        %v1849 = vsel %vm299, %v1798, 0
        %v1852 = vsel %vm299, %v1799, 0
        %v1855 = vsel %vm299, %v1800, 0
        %v1858 = vsel %vm354, %v1802, 0
        %1860 = vmatprep.subr.bf16.mxu0 0
        %1861 = vmatpush1.bf16.msra.mxu0 0
        %1862 = vmatprep.subr.bf16.mxu0 0
        %1863 = vmatpush1.bf16.msra.mxu0 0
        %1864 = vmatprep.subr.bf16.mxu0 0
        %1865 = vmatpush1.bf16.msra.mxu0 0
        %1866 = vmatprep.subr.bf16.mxu0 0
        %1867 = vmatpush1.bf16.msra.mxu0 0
        %1868 = vmatprep.subr.bf16.mxu0 0
        %1869 = vmatpush1.bf16.msra.mxu0 0
        %1870 = vmatprep.subr.bf16.mxu0 0
        %1871 = vmatpush1.bf16.msra.mxu0 0
        %1872 = vmatprep.subr.bf16.mxu0 0
        %1873 = vmatpush1.bf16.msra.mxu0 0
        %1874 = vmatprep.subr.bf16.mxu0 0
        %1875 = vmatpush1.bf16.msra.mxu0 %v1858
        %1876 = vmatprep.subr.bf16.mxu0 0
        %1877 = vmatpush2.bf16.msra.mxu0 0
        %1878 = vmatprep.subr.bf16.mxu0 0
        %1879 = vmatpush2.bf16.msra.mxu0 0
        %1880 = vmatprep.subr.bf16.mxu0 0
        %1881 = vmatpush2.bf16.msra.mxu0 0
        %1882 = vmatprep.subr.bf16.mxu0 0
        %1883 = vmatpush2.bf16.msra.mxu0 0
        %1884 = vmatprep.subr.bf16.mxu0 0
        %1885 = vmatpush2.bf16.msra.mxu0 0
        %1886 = vmatprep.subr.bf16.mxu0 0
        %1887 = vmatpush2.bf16.msra.mxu0 0
        %1888 = vmatprep.subr.bf16.mxu0 0
        %1889 = vmatpush2.bf16.msra.mxu0 0
        %1890 = vmatprep.subr.bf16.mxu0 0
        %1891 = vmatpush2.bf16.msra.mxu0 0
        %1892 = vmatprep.mubr.bf16.mxu0 0
        %1893 = vmatmul.mubr.bf16.gmra.mxu0 %v1804
        %v1894 = vpop.f32.mrf.mxu0
        %v1895 = vadd.f32 0.0, %v1894
        %v1896 = vpop.f32.mrf.mxu0
        %v1897 = vpop.f32.mrf.mxu0
        %v1898 = vadd.f32 0.0, %v1897
        %v1899 = vpop.f32.mrf.mxu0
        %1900 = vmatprep.mubr.bf16.mxu0 0
        %1901 = vmatmul.mubr.bf16.gmra.mxu0 %v1807
        %v1902 = vpop.f32.mrf.mxu0
        %v1903 = vadd.f32 0.0, %v1902
        %v1904 = vpop.f32.mrf.mxu0
        %v1905 = vpop.f32.mrf.mxu0
        %v1906 = vadd.f32 0.0, %v1905
        %v1907 = vpop.f32.mrf.mxu0
        %1908 = vmatprep.mubr.bf16.mxu0 0
        %1909 = vmatmul.mubr.bf16.gmra.mxu0 %v1810
        %v1910 = vpop.f32.mrf.mxu0
        %v1911 = vadd.f32 0.0, %v1910
        %v1912 = vpop.f32.mrf.mxu0
        %v1913 = vpop.f32.mrf.mxu0
        %v1914 = vadd.f32 0.0, %v1913
        %v1915 = vpop.f32.mrf.mxu0
        %1916 = vmatprep.mubr.bf16.mxu0 0
        %1917 = vmatmul.mubr.bf16.gmra.mxu0 %v1813
        %v1918 = vpop.f32.mrf.mxu0
        %v1919 = vadd.f32 0.0, %v1918
        %v1920 = vpop.f32.mrf.mxu0
        %v1921 = vpop.f32.mrf.mxu0
        %v1922 = vadd.f32 0.0, %v1921
        %v1923 = vpop.f32.mrf.mxu0
        %1924 = vmatprep.mubr.bf16.mxu0 0
        %1925 = vmatmul.mubr.bf16.gmra.mxu0 %v1816
        %v1926 = vpop.f32.mrf.mxu0
        %v1927 = vadd.f32 0.0, %v1926
        %v1928 = vpop.f32.mrf.mxu0
        %v1929 = vpop.f32.mrf.mxu0
        %v1930 = vadd.f32 0.0, %v1929
        %v1931 = vpop.f32.mrf.mxu0
        %1932 = vmatprep.mubr.bf16.mxu0 0
        %1933 = vmatmul.mubr.bf16.gmra.mxu0 %v1819
        %v1934 = vpop.f32.mrf.mxu0
        %v1935 = vadd.f32 0.0, %v1934
        %v1936 = vpop.f32.mrf.mxu0
        %v1937 = vpop.f32.mrf.mxu0
        %v1938 = vadd.f32 0.0, %v1937
        %v1939 = vpop.f32.mrf.mxu0
        %1940 = vmatprep.mubr.bf16.mxu0 0
        %1941 = vmatmul.mubr.bf16.gmra.mxu0 %v1822
        %v1942 = vpop.f32.mrf.mxu0
        %v1943 = vadd.f32 0.0, %v1942
        %v1944 = vpop.f32.mrf.mxu0
        %v1945 = vpop.f32.mrf.mxu0
        %v1946 = vadd.f32 0.0, %v1945
        %v1947 = vpop.f32.mrf.mxu0
        %1948 = vmatprep.mubr.bf16.mxu0 0
        %1949 = vmatmul.mubr.bf16.gmra.mxu0 %v1825
        %v1950 = vpop.f32.mrf.mxu0
        %v1951 = vadd.f32 0.0, %v1950
        %v1952 = vpop.f32.mrf.mxu0
        %v1953 = vpop.f32.mrf.mxu0
        %v1954 = vadd.f32 0.0, %v1953
        %v1955 = vpop.f32.mrf.mxu0
        %1956 = vmatprep.mubr.bf16.mxu0 0
        %1957 = vmatmul.mubr.bf16.gmra.mxu0 %v1828
        %v1958 = vpop.f32.mrf.mxu0
        %v1959 = vadd.f32 0.0, %v1958
        %v1960 = vpop.f32.mrf.mxu0
        %v1961 = vpop.f32.mrf.mxu0
        %v1962 = vadd.f32 0.0, %v1961
        %v1963 = vpop.f32.mrf.mxu0
        %1964 = vmatprep.mubr.bf16.mxu0 0
        %1965 = vmatmul.mubr.bf16.gmra.mxu0 %v1831
        %v1966 = vpop.f32.mrf.mxu0
        %v1967 = vadd.f32 0.0, %v1966
        %v1968 = vpop.f32.mrf.mxu0
        %v1969 = vpop.f32.mrf.mxu0
        %v1970 = vadd.f32 0.0, %v1969
        %v1971 = vpop.f32.mrf.mxu0
        %1972 = vmatprep.mubr.bf16.mxu0 0
        %1973 = vmatmul.mubr.bf16.gmra.mxu0 %v1834
        %v1974 = vpop.f32.mrf.mxu0
        %v1975 = vadd.f32 0.0, %v1974
        %v1976 = vpop.f32.mrf.mxu0
        %v1977 = vpop.f32.mrf.mxu0
        %v1978 = vadd.f32 0.0, %v1977
        %v1979 = vpop.f32.mrf.mxu0
        %1980 = vmatprep.mubr.bf16.mxu0 0
        %1981 = vmatmul.mubr.bf16.gmra.mxu0 %v1837
        %v1982 = vpop.f32.mrf.mxu0
        %v1983 = vadd.f32 0.0, %v1982
        %v1984 = vpop.f32.mrf.mxu0
        %v1985 = vpop.f32.mrf.mxu0
        %v1986 = vadd.f32 0.0, %v1985
        %v1987 = vpop.f32.mrf.mxu0
        %1988 = vmatprep.mubr.bf16.mxu0 0
        %1989 = vmatmul.mubr.bf16.gmra.mxu0 %v1840
        %v1990 = vpop.f32.mrf.mxu0
        %v1991 = vadd.f32 0.0, %v1990
        %v1992 = vpop.f32.mrf.mxu0
        %v1993 = vpop.f32.mrf.mxu0
        %v1994 = vadd.f32 0.0, %v1993
        %v1995 = vpop.f32.mrf.mxu0
        %1996 = vmatprep.mubr.bf16.mxu0 0
        %1997 = vmatmul.mubr.bf16.gmra.mxu0 %v1843
        %v1998 = vpop.f32.mrf.mxu0
        %v1999 = vadd.f32 0.0, %v1998
        %v2000 = vpop.f32.mrf.mxu0
        %v2001 = vpop.f32.mrf.mxu0
        %v2002 = vadd.f32 0.0, %v2001
        %v2003 = vpop.f32.mrf.mxu0
        %2004 = vmatprep.mubr.bf16.mxu0 0
        %2005 = vmatmul.mubr.bf16.gmra.mxu0 %v1846
        %v2006 = vpop.f32.mrf.mxu0
        %v2007 = vadd.f32 0.0, %v2006
        %v2008 = vpop.f32.mrf.mxu0
        %v2009 = vpop.f32.mrf.mxu0
        %v2010 = vadd.f32 0.0, %v2009
        %v2011 = vpop.f32.mrf.mxu0
        %2012 = vmatprep.mubr.bf16.mxu0 0
        %2013 = vmatmul.mubr.bf16.gmra.mxu0 %v1849
        %v2014 = vpop.f32.mrf.mxu0
        %v2015 = vadd.f32 0.0, %v2014
        %v2016 = vpop.f32.mrf.mxu0
        %v2017 = vpop.f32.mrf.mxu0
        %v2018 = vadd.f32 0.0, %v2017
        %v2019 = vpop.f32.mrf.mxu0
        %2020 = vmatprep.mubr.bf16.mxu0 0
        %2021 = vmatmul.mubr.bf16.gmra.mxu0 %v1852
        %v2022 = vpop.f32.mrf.mxu0
        %v2023 = vadd.f32 0.0, %v2022
        %v2024 = vpop.f32.mrf.mxu0
        %v2025 = vpop.f32.mrf.mxu0
        %v2026 = vadd.f32 0.0, %v2025
        %v2027 = vpop.f32.mrf.mxu0
        %2028 = vmatprep.mubr.bf16.mxu0 0
        %2029 = vmatmul.mubr.bf16.gmra.mxu0 %v1855
        %v2030 = vpop.f32.mrf.mxu0
        %v2031 = vadd.f32 0.0, %v2030
        %v2032 = vpop.f32.mrf.mxu0
        %v2033 = vpop.f32.mrf.mxu0
        %v2034 = vadd.f32 0.0, %v2033
        %v2035 = vpop.f32.mrf.mxu0
        %2036 = vdwg.mxu0
        %v2037 = vadd.f32 %v1711, %v1895
        %v2038 = vadd.f32 %v1712, %v1898
        %v2039 = vadd.f32 %v1713, %v1903
        %v2040 = vadd.f32 %v1714, %v1906
        %v2041 = vadd.f32 %v1715, %v1911
        %v2042 = vadd.f32 %v1716, %v1914
        %v2043 = vadd.f32 %v1717, %v1919
        %v2044 = vadd.f32 %v1718, %v1922
        %v2045 = vadd.f32 %v1719, %v1927
        %v2046 = vadd.f32 %v1720, %v1930
        %v2047 = vadd.f32 %v1721, %v1935
        %v2048 = vadd.f32 %v1722, %v1938
        %v2049 = vadd.f32 %v1723, %v1943
        %v2050 = vadd.f32 %v1724, %v1946
        %v2051 = vadd.f32 %v1725, %v1951
        %v2052 = vadd.f32 %v1726, %v1954
        %v2053 = vadd.f32 %v1727, %v1959
        %v2054 = vadd.f32 %v1728, %v1962
        %v2055 = vadd.f32 %v1729, %v1967
        %v2056 = vadd.f32 %v1730, %v1970
        %v2057 = vadd.f32 %v1731, %v1975
        %v2058 = vadd.f32 %v1732, %v1978
        %v2059 = vadd.f32 %v1733, %v1983
        %v2060 = vadd.f32 %v1734, %v1986
        %v2061 = vadd.f32 %v1735, %v1991
        %v2062 = vadd.f32 %v1736, %v1994
        %v2063 = vadd.f32 %v1737, %v1999
        %v2064 = vadd.f32 %v1738, %v2002
        %v2065 = vadd.f32 %v1739, %v2007
        %v2066 = vadd.f32 %v1740, %v2010
        %v2067 = vadd.f32 %v1741, %v2015
        %v2068 = vadd.f32 %v1742, %v2018
        %v2069 = vadd.f32 %v1743, %v2023
        %v2070 = vadd.f32 %v1744, %v2026
        %v2071 = vadd.f32 %v1745, %v2031
        %v2072 = vadd.f32 %v1746, %v2034
        %v2073 = vld [vmem:[%s178 + $0x24] sm:$0xff]
        %v2074 = vld [vmem:[%s178 + $0x2c] sm:$0xff]
        %v2075 = vld [vmem:[%s178 + $0x34] sm:$0xff]
        %v2076 = vld [vmem:[%s178 + $0x3c] sm:$0xff]
        %v2077 = vld [vmem:[%s178 + $0x44] sm:$0xff]
        %v2078 = vld [vmem:[%s178 + $0x4c] sm:$0xff]
        %v2079 = vld [vmem:[%s178 + $0x54] sm:$0xff]
        %v2080 = vld [vmem:[%s178 + $0x5c] sm:$0xff]
        %v2081 = vld [vmem:[%s178 + $0x64] sm:$0xff]
        %v2082 = vld [vmem:[%s178 + $0x6c] sm:$0xff]
        %v2083 = vld [vmem:[%s178 + $0x74] sm:$0xff]
        %v2084 = vld [vmem:[%s178 + $0x7c] sm:$0xff]
        %v2085 = vld [vmem:[%s178 + $0x84] sm:$0xff]
        %v2086 = vld [vmem:[%s178 + $0x8c] sm:$0xff]
        %v2087 = vld [vmem:[%s178 + $0x94] sm:$0xff]
        %v2088 = vld [vmem:[%s178 + $0x9c] sm:$0xff]
        %v2089 = vld [vmem:[%s178 + $0xa4] sm:$0xff]
        %v2090 = vld [vmem:[%s178 + $0xac] sm:$0xff]
        %v2091 = vld [vmem:[%s178 + $0xb4] sm:$0xff]
        %v2092 = vld [vmem:[%s178 + $0xbc] sm:$0xff]
        %v2093 = vld [vmem:[%s178 + $0xc4] sm:$0xff]
        %v2094 = vld [vmem:[%s178 + $0xcc] sm:$0xff]
        %v2095 = vld [vmem:[%s178 + $0xd4] sm:$0xff]
        %v2096 = vld [vmem:[%s178 + $0xdc] sm:$0xff]
        %v2097 = vld [vmem:[%s178 + $0xe4] sm:$0xff]
        %v2098 = vld [vmem:[%s178 + $0xec] sm:$0xff]
        %v2099 = vld [vmem:[%s178 + $0xf4] sm:$0xff]
        %v2100 = vld [vmem:[%s178 + $0xfc] sm:$0xff]
        %v2101 = vld [vmem:[%s178 + $0x104] sm:$0xff]
        %v2102 = vld [vmem:[%s178 + $0x10c] sm:$0xff]
        %v2103 = vld [vmem:[%s178 + $0x114] sm:$0xff]
        %v2104 = vld [vmem:[%s178 + $0x11c] sm:$0xff]
        %v2105 = vld [vmem:[%s178 + $0x124] sm:$0xff]
        %v2106 = vld [vmem:[%s178 + $0x12c] sm:$0xff]
        %v2107 = vld [vmem:[%s178 + $0x134] sm:$0xff]
        %v2108 = vld [vmem:[%s178 + $0x13c] sm:$0xff]
        %v2109 = vpack.c.bf16 %v2074, %v2073
        %v2110 = vpack.c.bf16 %v2076, %v2075
        %v2111 = vpack.c.bf16 %v2078, %v2077
        %v2112 = vpack.c.bf16 %v2080, %v2079
        %v2113 = vpack.c.bf16 %v2082, %v2081
        %v2114 = vpack.c.bf16 %v2084, %v2083
        %v2115 = vpack.c.bf16 %v2086, %v2085
        %v2116 = vpack.c.bf16 %v2088, %v2087
        %v2117 = vpack.c.bf16 %v2090, %v2089
        %v2118 = vpack.c.bf16 %v2092, %v2091
        %v2119 = vpack.c.bf16 %v2094, %v2093
        %v2120 = vpack.c.bf16 %v2096, %v2095
        %v2121 = vpack.c.bf16 %v2098, %v2097
        %v2122 = vpack.c.bf16 %v2100, %v2099
        %v2123 = vpack.c.bf16 %v2102, %v2101
        %v2124 = vpack.c.bf16 %v2104, %v2103
        %v2125 = vpack.c.bf16 %v2106, %v2105
        %v2126 = vpack.c.bf16 %v2108, %v2107
        %s2127 = scalar_lea.vmem %s186, 12
        %v2128 = vld [vmem:[%s2127] sm:$0x3]
        %v2130 = vsel %vm299, %v2109, 0
        %v2133 = vsel %vm299, %v2110, 0
        %v2136 = vsel %vm299, %v2111, 0
        %v2139 = vsel %vm299, %v2112, 0
        %v2142 = vsel %vm299, %v2113, 0
        %v2145 = vsel %vm299, %v2114, 0
        %v2148 = vsel %vm299, %v2115, 0
        %v2151 = vsel %vm299, %v2116, 0
        %v2154 = vsel %vm299, %v2117, 0
        %v2157 = vsel %vm299, %v2118, 0
        %v2160 = vsel %vm299, %v2119, 0
        %v2163 = vsel %vm299, %v2120, 0
        %v2166 = vsel %vm299, %v2121, 0
        %v2169 = vsel %vm299, %v2122, 0
        %v2172 = vsel %vm299, %v2123, 0
        %v2175 = vsel %vm299, %v2124, 0
        %v2178 = vsel %vm299, %v2125, 0
        %v2181 = vsel %vm299, %v2126, 0
        %v2184 = vsel %vm354, %v2128, 0
        %2186 = vmatprep.subr.bf16.mxu0 0
        %2187 = vmatpush1.bf16.msra.mxu0 0
        %2188 = vmatprep.subr.bf16.mxu0 0
        %2189 = vmatpush1.bf16.msra.mxu0 0
        %2190 = vmatprep.subr.bf16.mxu0 0
        %2191 = vmatpush1.bf16.msra.mxu0 0
        %2192 = vmatprep.subr.bf16.mxu0 0
        %2193 = vmatpush1.bf16.msra.mxu0 0
        %2194 = vmatprep.subr.bf16.mxu0 0
        %2195 = vmatpush1.bf16.msra.mxu0 0
        %2196 = vmatprep.subr.bf16.mxu0 0
        %2197 = vmatpush1.bf16.msra.mxu0 0
        %2198 = vmatprep.subr.bf16.mxu0 0
        %2199 = vmatpush1.bf16.msra.mxu0 0
        %2200 = vmatprep.subr.bf16.mxu0 0
        %2201 = vmatpush1.bf16.msra.mxu0 %v2184
        %2202 = vmatprep.subr.bf16.mxu0 0
        %2203 = vmatpush2.bf16.msra.mxu0 0
        %2204 = vmatprep.subr.bf16.mxu0 0
        %2205 = vmatpush2.bf16.msra.mxu0 0
        %2206 = vmatprep.subr.bf16.mxu0 0
        %2207 = vmatpush2.bf16.msra.mxu0 0
        %2208 = vmatprep.subr.bf16.mxu0 0
        %2209 = vmatpush2.bf16.msra.mxu0 0
        %2210 = vmatprep.subr.bf16.mxu0 0
        %2211 = vmatpush2.bf16.msra.mxu0 0
        %2212 = vmatprep.subr.bf16.mxu0 0
        %2213 = vmatpush2.bf16.msra.mxu0 0
        %2214 = vmatprep.subr.bf16.mxu0 0
        %2215 = vmatpush2.bf16.msra.mxu0 0
        %2216 = vmatprep.subr.bf16.mxu0 0
        %2217 = vmatpush2.bf16.msra.mxu0 0
        %2218 = vmatprep.mubr.bf16.mxu0 0
        %2219 = vmatmul.mubr.bf16.gmra.mxu0 %v2130
        %v2220 = vpop.f32.mrf.mxu0
        %v2221 = vadd.f32 0.0, %v2220
        %v2222 = vpop.f32.mrf.mxu0
        %v2223 = vpop.f32.mrf.mxu0
        %v2224 = vadd.f32 0.0, %v2223
        %v2225 = vpop.f32.mrf.mxu0
        %2226 = vmatprep.mubr.bf16.mxu0 0
        %2227 = vmatmul.mubr.bf16.gmra.mxu0 %v2133
        %v2228 = vpop.f32.mrf.mxu0
        %v2229 = vadd.f32 0.0, %v2228
        %v2230 = vpop.f32.mrf.mxu0
        %v2231 = vpop.f32.mrf.mxu0
        %v2232 = vadd.f32 0.0, %v2231
        %v2233 = vpop.f32.mrf.mxu0
        %2234 = vmatprep.mubr.bf16.mxu0 0
        %2235 = vmatmul.mubr.bf16.gmra.mxu0 %v2136
        %v2236 = vpop.f32.mrf.mxu0
        %v2237 = vadd.f32 0.0, %v2236
        %v2238 = vpop.f32.mrf.mxu0
        %v2239 = vpop.f32.mrf.mxu0
        %v2240 = vadd.f32 0.0, %v2239
        %v2241 = vpop.f32.mrf.mxu0
        %2242 = vmatprep.mubr.bf16.mxu0 0
        %2243 = vmatmul.mubr.bf16.gmra.mxu0 %v2139
        %v2244 = vpop.f32.mrf.mxu0
        %v2245 = vadd.f32 0.0, %v2244
        %v2246 = vpop.f32.mrf.mxu0
        %v2247 = vpop.f32.mrf.mxu0
        %v2248 = vadd.f32 0.0, %v2247
        %v2249 = vpop.f32.mrf.mxu0
        %2250 = vmatprep.mubr.bf16.mxu0 0
        %2251 = vmatmul.mubr.bf16.gmra.mxu0 %v2142
        %v2252 = vpop.f32.mrf.mxu0
        %v2253 = vadd.f32 0.0, %v2252
        %v2254 = vpop.f32.mrf.mxu0
        %v2255 = vpop.f32.mrf.mxu0
        %v2256 = vadd.f32 0.0, %v2255
        %v2257 = vpop.f32.mrf.mxu0
        %2258 = vmatprep.mubr.bf16.mxu0 0
        %2259 = vmatmul.mubr.bf16.gmra.mxu0 %v2145
        %v2260 = vpop.f32.mrf.mxu0
        %v2261 = vadd.f32 0.0, %v2260
        %v2262 = vpop.f32.mrf.mxu0
        %v2263 = vpop.f32.mrf.mxu0
        %v2264 = vadd.f32 0.0, %v2263
        %v2265 = vpop.f32.mrf.mxu0
        %2266 = vmatprep.mubr.bf16.mxu0 0
        %2267 = vmatmul.mubr.bf16.gmra.mxu0 %v2148
        %v2268 = vpop.f32.mrf.mxu0
        %v2269 = vadd.f32 0.0, %v2268
        %v2270 = vpop.f32.mrf.mxu0
        %v2271 = vpop.f32.mrf.mxu0
        %v2272 = vadd.f32 0.0, %v2271
        %v2273 = vpop.f32.mrf.mxu0
        %2274 = vmatprep.mubr.bf16.mxu0 0
        %2275 = vmatmul.mubr.bf16.gmra.mxu0 %v2151
        %v2276 = vpop.f32.mrf.mxu0
        %v2277 = vadd.f32 0.0, %v2276
        %v2278 = vpop.f32.mrf.mxu0
        %v2279 = vpop.f32.mrf.mxu0
        %v2280 = vadd.f32 0.0, %v2279
        %v2281 = vpop.f32.mrf.mxu0
        %2282 = vmatprep.mubr.bf16.mxu0 0
        %2283 = vmatmul.mubr.bf16.gmra.mxu0 %v2154
        %v2284 = vpop.f32.mrf.mxu0
        %v2285 = vadd.f32 0.0, %v2284
        %v2286 = vpop.f32.mrf.mxu0
        %v2287 = vpop.f32.mrf.mxu0
        %v2288 = vadd.f32 0.0, %v2287
        %v2289 = vpop.f32.mrf.mxu0
        %2290 = vmatprep.mubr.bf16.mxu0 0
        %2291 = vmatmul.mubr.bf16.gmra.mxu0 %v2157
        %v2292 = vpop.f32.mrf.mxu0
        %v2293 = vadd.f32 0.0, %v2292
        %v2294 = vpop.f32.mrf.mxu0
        %v2295 = vpop.f32.mrf.mxu0
        %v2296 = vadd.f32 0.0, %v2295
        %v2297 = vpop.f32.mrf.mxu0
        %2298 = vmatprep.mubr.bf16.mxu0 0
        %2299 = vmatmul.mubr.bf16.gmra.mxu0 %v2160
        %v2300 = vpop.f32.mrf.mxu0
        %v2301 = vadd.f32 0.0, %v2300
        %v2302 = vpop.f32.mrf.mxu0
        %v2303 = vpop.f32.mrf.mxu0
        %v2304 = vadd.f32 0.0, %v2303
        %v2305 = vpop.f32.mrf.mxu0
        %2306 = vmatprep.mubr.bf16.mxu0 0
        %2307 = vmatmul.mubr.bf16.gmra.mxu0 %v2163
        %v2308 = vpop.f32.mrf.mxu0
        %v2309 = vadd.f32 0.0, %v2308
        %v2310 = vpop.f32.mrf.mxu0
        %v2311 = vpop.f32.mrf.mxu0
        %v2312 = vadd.f32 0.0, %v2311
        %v2313 = vpop.f32.mrf.mxu0
        %2314 = vmatprep.mubr.bf16.mxu0 0
        %2315 = vmatmul.mubr.bf16.gmra.mxu0 %v2166
        %v2316 = vpop.f32.mrf.mxu0
        %v2317 = vadd.f32 0.0, %v2316
        %v2318 = vpop.f32.mrf.mxu0
        %v2319 = vpop.f32.mrf.mxu0
        %v2320 = vadd.f32 0.0, %v2319
        %v2321 = vpop.f32.mrf.mxu0
        %2322 = vmatprep.mubr.bf16.mxu0 0
        %2323 = vmatmul.mubr.bf16.gmra.mxu0 %v2169
        %v2324 = vpop.f32.mrf.mxu0
        %v2325 = vadd.f32 0.0, %v2324
        %v2326 = vpop.f32.mrf.mxu0
        %v2327 = vpop.f32.mrf.mxu0
        %v2328 = vadd.f32 0.0, %v2327
        %v2329 = vpop.f32.mrf.mxu0
        %2330 = vmatprep.mubr.bf16.mxu0 0
        %2331 = vmatmul.mubr.bf16.gmra.mxu0 %v2172
        %v2332 = vpop.f32.mrf.mxu0
        %v2333 = vadd.f32 0.0, %v2332
        %v2334 = vpop.f32.mrf.mxu0
        %v2335 = vpop.f32.mrf.mxu0
        %v2336 = vadd.f32 0.0, %v2335
        %v2337 = vpop.f32.mrf.mxu0
        %2338 = vmatprep.mubr.bf16.mxu0 0
        %2339 = vmatmul.mubr.bf16.gmra.mxu0 %v2175
        %v2340 = vpop.f32.mrf.mxu0
        %v2341 = vadd.f32 0.0, %v2340
        %v2342 = vpop.f32.mrf.mxu0
        %v2343 = vpop.f32.mrf.mxu0
        %v2344 = vadd.f32 0.0, %v2343
        %v2345 = vpop.f32.mrf.mxu0
        %2346 = vmatprep.mubr.bf16.mxu0 0
        %2347 = vmatmul.mubr.bf16.gmra.mxu0 %v2178
        %v2348 = vpop.f32.mrf.mxu0
        %v2349 = vadd.f32 0.0, %v2348
        %v2350 = vpop.f32.mrf.mxu0
        %v2351 = vpop.f32.mrf.mxu0
        %v2352 = vadd.f32 0.0, %v2351
        %v2353 = vpop.f32.mrf.mxu0
        %2354 = vmatprep.mubr.bf16.mxu0 0
        %2355 = vmatmul.mubr.bf16.gmra.mxu0 %v2181
        %v2356 = vpop.f32.mrf.mxu0
        %v2357 = vadd.f32 0.0, %v2356
        %v2358 = vpop.f32.mrf.mxu0
        %v2359 = vpop.f32.mrf.mxu0
        %v2360 = vadd.f32 0.0, %v2359
        %v2361 = vpop.f32.mrf.mxu0
        %2362 = vdwg.mxu0
        %v2363 = vadd.f32 %v2037, %v2221
        %v2364 = vadd.f32 %v2038, %v2224
        %v2365 = vadd.f32 %v2039, %v2229
        %v2366 = vadd.f32 %v2040, %v2232
        %v2367 = vadd.f32 %v2041, %v2237
        %v2368 = vadd.f32 %v2042, %v2240
        %v2369 = vadd.f32 %v2043, %v2245
        %v2370 = vadd.f32 %v2044, %v2248
        %v2371 = vadd.f32 %v2045, %v2253
        %v2372 = vadd.f32 %v2046, %v2256
        %v2373 = vadd.f32 %v2047, %v2261
        %v2374 = vadd.f32 %v2048, %v2264
        %v2375 = vadd.f32 %v2049, %v2269
        %v2376 = vadd.f32 %v2050, %v2272
        %v2377 = vadd.f32 %v2051, %v2277
        %v2378 = vadd.f32 %v2052, %v2280
        %v2379 = vadd.f32 %v2053, %v2285
        %v2380 = vadd.f32 %v2054, %v2288
        %v2381 = vadd.f32 %v2055, %v2293
        %v2382 = vadd.f32 %v2056, %v2296
        %v2383 = vadd.f32 %v2057, %v2301
        %v2384 = vadd.f32 %v2058, %v2304
        %v2385 = vadd.f32 %v2059, %v2309
        %v2386 = vadd.f32 %v2060, %v2312
        %v2387 = vadd.f32 %v2061, %v2317
        %v2388 = vadd.f32 %v2062, %v2320
        %v2389 = vadd.f32 %v2063, %v2325
        %v2390 = vadd.f32 %v2064, %v2328
        %v2391 = vadd.f32 %v2065, %v2333
        %v2392 = vadd.f32 %v2066, %v2336
        %v2393 = vadd.f32 %v2067, %v2341
        %v2394 = vadd.f32 %v2068, %v2344
        %v2395 = vadd.f32 %v2069, %v2349
        %v2396 = vadd.f32 %v2070, %v2352
        %v2397 = vadd.f32 %v2071, %v2357
        %v2398 = vadd.f32 %v2072, %v2360
        %v2399 = vld [vmem:[%s178 + $0x25] sm:$0xff]
        %v2400 = vld [vmem:[%s178 + $0x2d] sm:$0xff]
        %v2401 = vld [vmem:[%s178 + $0x35] sm:$0xff]
        %v2402 = vld [vmem:[%s178 + $0x3d] sm:$0xff]
        %v2403 = vld [vmem:[%s178 + $0x45] sm:$0xff]
        %v2404 = vld [vmem:[%s178 + $0x4d] sm:$0xff]
        %v2405 = vld [vmem:[%s178 + $0x55] sm:$0xff]
        %v2406 = vld [vmem:[%s178 + $0x5d] sm:$0xff]
        %v2407 = vld [vmem:[%s178 + $0x65] sm:$0xff]
        %v2408 = vld [vmem:[%s178 + $0x6d] sm:$0xff]
        %v2409 = vld [vmem:[%s178 + $0x75] sm:$0xff]
        %v2410 = vld [vmem:[%s178 + $0x7d] sm:$0xff]
        %v2411 = vld [vmem:[%s178 + $0x85] sm:$0xff]
        %v2412 = vld [vmem:[%s178 + $0x8d] sm:$0xff]
        %v2413 = vld [vmem:[%s178 + $0x95] sm:$0xff]
        %v2414 = vld [vmem:[%s178 + $0x9d] sm:$0xff]
        %v2415 = vld [vmem:[%s178 + $0xa5] sm:$0xff]
        %v2416 = vld [vmem:[%s178 + $0xad] sm:$0xff]
        %v2417 = vld [vmem:[%s178 + $0xb5] sm:$0xff]
        %v2418 = vld [vmem:[%s178 + $0xbd] sm:$0xff]
        %v2419 = vld [vmem:[%s178 + $0xc5] sm:$0xff]
        %v2420 = vld [vmem:[%s178 + $0xcd] sm:$0xff]
        %v2421 = vld [vmem:[%s178 + $0xd5] sm:$0xff]
        %v2422 = vld [vmem:[%s178 + $0xdd] sm:$0xff]
        %v2423 = vld [vmem:[%s178 + $0xe5] sm:$0xff]
        %v2424 = vld [vmem:[%s178 + $0xed] sm:$0xff]
        %v2425 = vld [vmem:[%s178 + $0xf5] sm:$0xff]
        %v2426 = vld [vmem:[%s178 + $0xfd] sm:$0xff]
        %v2427 = vld [vmem:[%s178 + $0x105] sm:$0xff]
        %v2428 = vld [vmem:[%s178 + $0x10d] sm:$0xff]
        %v2429 = vld [vmem:[%s178 + $0x115] sm:$0xff]
        %v2430 = vld [vmem:[%s178 + $0x11d] sm:$0xff]
        %v2431 = vld [vmem:[%s178 + $0x125] sm:$0xff]
        %v2432 = vld [vmem:[%s178 + $0x12d] sm:$0xff]
        %v2433 = vld [vmem:[%s178 + $0x135] sm:$0xff]
        %v2434 = vld [vmem:[%s178 + $0x13d] sm:$0xff]
        %v2435 = vpack.c.bf16 %v2400, %v2399
        %v2436 = vpack.c.bf16 %v2402, %v2401
        %v2437 = vpack.c.bf16 %v2404, %v2403
        %v2438 = vpack.c.bf16 %v2406, %v2405
        %v2439 = vpack.c.bf16 %v2408, %v2407
        %v2440 = vpack.c.bf16 %v2410, %v2409
        %v2441 = vpack.c.bf16 %v2412, %v2411
        %v2442 = vpack.c.bf16 %v2414, %v2413
        %v2443 = vpack.c.bf16 %v2416, %v2415
        %v2444 = vpack.c.bf16 %v2418, %v2417
        %v2445 = vpack.c.bf16 %v2420, %v2419
        %v2446 = vpack.c.bf16 %v2422, %v2421
        %v2447 = vpack.c.bf16 %v2424, %v2423
        %v2448 = vpack.c.bf16 %v2426, %v2425
        %v2449 = vpack.c.bf16 %v2428, %v2427
        %v2450 = vpack.c.bf16 %v2430, %v2429
        %v2451 = vpack.c.bf16 %v2432, %v2431
        %v2452 = vpack.c.bf16 %v2434, %v2433
        %s2453 = scalar_lea.vmem %s186, 14
        %v2454 = vld [vmem:[%s2453] sm:$0x3]
        %v2456 = vsel %vm299, %v2435, 0
        %v2459 = vsel %vm299, %v2436, 0
        %v2462 = vsel %vm299, %v2437, 0
        %v2465 = vsel %vm299, %v2438, 0
        %v2468 = vsel %vm299, %v2439, 0
        %v2471 = vsel %vm299, %v2440, 0
        %v2474 = vsel %vm299, %v2441, 0
        %v2477 = vsel %vm299, %v2442, 0
        %v2480 = vsel %vm299, %v2443, 0
        %v2483 = vsel %vm299, %v2444, 0
        %v2486 = vsel %vm299, %v2445, 0
        %v2489 = vsel %vm299, %v2446, 0
        %v2492 = vsel %vm299, %v2447, 0
        %v2495 = vsel %vm299, %v2448, 0
        %v2498 = vsel %vm299, %v2449, 0
        %v2501 = vsel %vm299, %v2450, 0
        %v2504 = vsel %vm299, %v2451, 0
        %v2507 = vsel %vm299, %v2452, 0
        %v2510 = vsel %vm354, %v2454, 0
        %2512 = vmatprep.subr.bf16.mxu0 0
        %2513 = vmatpush1.bf16.msra.mxu0 0
        %2514 = vmatprep.subr.bf16.mxu0 0
        %2515 = vmatpush1.bf16.msra.mxu0 0
        %2516 = vmatprep.subr.bf16.mxu0 0
        %2517 = vmatpush1.bf16.msra.mxu0 0
        %2518 = vmatprep.subr.bf16.mxu0 0
        %2519 = vmatpush1.bf16.msra.mxu0 0
        %2520 = vmatprep.subr.bf16.mxu0 0
        %2521 = vmatpush1.bf16.msra.mxu0 0
        %2522 = vmatprep.subr.bf16.mxu0 0
        %2523 = vmatpush1.bf16.msra.mxu0 0
        %2524 = vmatprep.subr.bf16.mxu0 0
        %2525 = vmatpush1.bf16.msra.mxu0 0
        %2526 = vmatprep.subr.bf16.mxu0 0
        %2527 = vmatpush1.bf16.msra.mxu0 %v2510
        %2528 = vmatprep.subr.bf16.mxu0 0
        %2529 = vmatpush2.bf16.msra.mxu0 0
        %2530 = vmatprep.subr.bf16.mxu0 0
        %2531 = vmatpush2.bf16.msra.mxu0 0
        %2532 = vmatprep.subr.bf16.mxu0 0
        %2533 = vmatpush2.bf16.msra.mxu0 0
        %2534 = vmatprep.subr.bf16.mxu0 0
        %2535 = vmatpush2.bf16.msra.mxu0 0
        %2536 = vmatprep.subr.bf16.mxu0 0
        %2537 = vmatpush2.bf16.msra.mxu0 0
        %2538 = vmatprep.subr.bf16.mxu0 0
        %2539 = vmatpush2.bf16.msra.mxu0 0
        %2540 = vmatprep.subr.bf16.mxu0 0
        %2541 = vmatpush2.bf16.msra.mxu0 0
        %2542 = vmatprep.subr.bf16.mxu0 0
        %2543 = vmatpush2.bf16.msra.mxu0 0
        %2544 = vmatprep.mubr.bf16.mxu0 0
        %2545 = vmatmul.mubr.bf16.gmra.mxu0 %v2456
        %v2546 = vpop.f32.mrf.mxu0
        %v2547 = vadd.f32 0.0, %v2546
        %v2548 = vpop.f32.mrf.mxu0
        %v2549 = vpop.f32.mrf.mxu0
        %v2550 = vadd.f32 0.0, %v2549
        %v2551 = vpop.f32.mrf.mxu0
        %2552 = vmatprep.mubr.bf16.mxu0 0
        %2553 = vmatmul.mubr.bf16.gmra.mxu0 %v2459
        %v2554 = vpop.f32.mrf.mxu0
        %v2555 = vadd.f32 0.0, %v2554
        %v2556 = vpop.f32.mrf.mxu0
        %v2557 = vpop.f32.mrf.mxu0
        %v2558 = vadd.f32 0.0, %v2557
        %v2559 = vpop.f32.mrf.mxu0
        %2560 = vmatprep.mubr.bf16.mxu0 0
        %2561 = vmatmul.mubr.bf16.gmra.mxu0 %v2462
        %v2562 = vpop.f32.mrf.mxu0
        %v2563 = vadd.f32 0.0, %v2562
        %v2564 = vpop.f32.mrf.mxu0
        %v2565 = vpop.f32.mrf.mxu0
        %v2566 = vadd.f32 0.0, %v2565
        %v2567 = vpop.f32.mrf.mxu0
        %2568 = vmatprep.mubr.bf16.mxu0 0
        %2569 = vmatmul.mubr.bf16.gmra.mxu0 %v2465
        %v2570 = vpop.f32.mrf.mxu0
        %v2571 = vadd.f32 0.0, %v2570
        %v2572 = vpop.f32.mrf.mxu0
        %v2573 = vpop.f32.mrf.mxu0
        %v2574 = vadd.f32 0.0, %v2573
        %v2575 = vpop.f32.mrf.mxu0
        %2576 = vmatprep.mubr.bf16.mxu0 0
        %2577 = vmatmul.mubr.bf16.gmra.mxu0 %v2468
        %v2578 = vpop.f32.mrf.mxu0
        %v2579 = vadd.f32 0.0, %v2578
        %v2580 = vpop.f32.mrf.mxu0
        %v2581 = vpop.f32.mrf.mxu0
        %v2582 = vadd.f32 0.0, %v2581
        %v2583 = vpop.f32.mrf.mxu0
        %2584 = vmatprep.mubr.bf16.mxu0 0
        %2585 = vmatmul.mubr.bf16.gmra.mxu0 %v2471
        %v2586 = vpop.f32.mrf.mxu0
        %v2587 = vadd.f32 0.0, %v2586
        %v2588 = vpop.f32.mrf.mxu0
        %v2589 = vpop.f32.mrf.mxu0
        %v2590 = vadd.f32 0.0, %v2589
        %v2591 = vpop.f32.mrf.mxu0
        %2592 = vmatprep.mubr.bf16.mxu0 0
        %2593 = vmatmul.mubr.bf16.gmra.mxu0 %v2474
        %v2594 = vpop.f32.mrf.mxu0
        %v2595 = vadd.f32 0.0, %v2594
        %v2596 = vpop.f32.mrf.mxu0
        %v2597 = vpop.f32.mrf.mxu0
        %v2598 = vadd.f32 0.0, %v2597
        %v2599 = vpop.f32.mrf.mxu0
        %2600 = vmatprep.mubr.bf16.mxu0 0
        %2601 = vmatmul.mubr.bf16.gmra.mxu0 %v2477
        %v2602 = vpop.f32.mrf.mxu0
        %v2603 = vadd.f32 0.0, %v2602
        %v2604 = vpop.f32.mrf.mxu0
        %v2605 = vpop.f32.mrf.mxu0
        %v2606 = vadd.f32 0.0, %v2605
        %v2607 = vpop.f32.mrf.mxu0
        %2608 = vmatprep.mubr.bf16.mxu0 0
        %2609 = vmatmul.mubr.bf16.gmra.mxu0 %v2480
        %v2610 = vpop.f32.mrf.mxu0
        %v2611 = vadd.f32 0.0, %v2610
        %v2612 = vpop.f32.mrf.mxu0
        %v2613 = vpop.f32.mrf.mxu0
        %v2614 = vadd.f32 0.0, %v2613
        %v2615 = vpop.f32.mrf.mxu0
        %2616 = vmatprep.mubr.bf16.mxu0 0
        %2617 = vmatmul.mubr.bf16.gmra.mxu0 %v2483
        %v2618 = vpop.f32.mrf.mxu0
        %v2619 = vadd.f32 0.0, %v2618
        %v2620 = vpop.f32.mrf.mxu0
        %v2621 = vpop.f32.mrf.mxu0
        %v2622 = vadd.f32 0.0, %v2621
        %v2623 = vpop.f32.mrf.mxu0
        %2624 = vmatprep.mubr.bf16.mxu0 0
        %2625 = vmatmul.mubr.bf16.gmra.mxu0 %v2486
        %v2626 = vpop.f32.mrf.mxu0
        %v2627 = vadd.f32 0.0, %v2626
        %v2628 = vpop.f32.mrf.mxu0
        %v2629 = vpop.f32.mrf.mxu0
        %v2630 = vadd.f32 0.0, %v2629
        %v2631 = vpop.f32.mrf.mxu0
        %2632 = vmatprep.mubr.bf16.mxu0 0
        %2633 = vmatmul.mubr.bf16.gmra.mxu0 %v2489
        %v2634 = vpop.f32.mrf.mxu0
        %v2635 = vadd.f32 0.0, %v2634
        %v2636 = vpop.f32.mrf.mxu0
        %v2637 = vpop.f32.mrf.mxu0
        %v2638 = vadd.f32 0.0, %v2637
        %v2639 = vpop.f32.mrf.mxu0
        %2640 = vmatprep.mubr.bf16.mxu0 0
        %2641 = vmatmul.mubr.bf16.gmra.mxu0 %v2492
        %v2642 = vpop.f32.mrf.mxu0
        %v2643 = vadd.f32 0.0, %v2642
        %v2644 = vpop.f32.mrf.mxu0
        %v2645 = vpop.f32.mrf.mxu0
        %v2646 = vadd.f32 0.0, %v2645
        %v2647 = vpop.f32.mrf.mxu0
        %2648 = vmatprep.mubr.bf16.mxu0 0
        %2649 = vmatmul.mubr.bf16.gmra.mxu0 %v2495
        %v2650 = vpop.f32.mrf.mxu0
        %v2651 = vadd.f32 0.0, %v2650
        %v2652 = vpop.f32.mrf.mxu0
        %v2653 = vpop.f32.mrf.mxu0
        %v2654 = vadd.f32 0.0, %v2653
        %v2655 = vpop.f32.mrf.mxu0
        %2656 = vmatprep.mubr.bf16.mxu0 0
        %2657 = vmatmul.mubr.bf16.gmra.mxu0 %v2498
        %v2658 = vpop.f32.mrf.mxu0
        %v2659 = vadd.f32 0.0, %v2658
        %v2660 = vpop.f32.mrf.mxu0
        %v2661 = vpop.f32.mrf.mxu0
        %v2662 = vadd.f32 0.0, %v2661
        %v2663 = vpop.f32.mrf.mxu0
        %2664 = vmatprep.mubr.bf16.mxu0 0
        %2665 = vmatmul.mubr.bf16.gmra.mxu0 %v2501
        %v2666 = vpop.f32.mrf.mxu0
        %v2667 = vadd.f32 0.0, %v2666
        %v2668 = vpop.f32.mrf.mxu0
        %v2669 = vpop.f32.mrf.mxu0
        %v2670 = vadd.f32 0.0, %v2669
        %v2671 = vpop.f32.mrf.mxu0
        %2672 = vmatprep.mubr.bf16.mxu0 0
        %2673 = vmatmul.mubr.bf16.gmra.mxu0 %v2504
        %v2674 = vpop.f32.mrf.mxu0
        %v2675 = vadd.f32 0.0, %v2674
        %v2676 = vpop.f32.mrf.mxu0
        %v2677 = vpop.f32.mrf.mxu0
        %v2678 = vadd.f32 0.0, %v2677
        %v2679 = vpop.f32.mrf.mxu0
        %2680 = vmatprep.mubr.bf16.mxu0 0
        %2681 = vmatmul.mubr.bf16.gmra.mxu0 %v2507
        %v2682 = vpop.f32.mrf.mxu0
        %v2683 = vadd.f32 0.0, %v2682
        %v2684 = vpop.f32.mrf.mxu0
        %v2685 = vpop.f32.mrf.mxu0
        %v2686 = vadd.f32 0.0, %v2685
        %v2687 = vpop.f32.mrf.mxu0
        %2688 = vdwg.mxu0
        %v2689 = vadd.f32 %v2363, %v2547
        %v2690 = vadd.f32 %v2364, %v2550
        %v2691 = vadd.f32 %v2365, %v2555
        %v2692 = vadd.f32 %v2366, %v2558
        %v2693 = vadd.f32 %v2367, %v2563
        %v2694 = vadd.f32 %v2368, %v2566
        %v2695 = vadd.f32 %v2369, %v2571
        %v2696 = vadd.f32 %v2370, %v2574
        %v2697 = vadd.f32 %v2371, %v2579
        %v2698 = vadd.f32 %v2372, %v2582
        %v2699 = vadd.f32 %v2373, %v2587
        %v2700 = vadd.f32 %v2374, %v2590
        %v2701 = vadd.f32 %v2375, %v2595
        %v2702 = vadd.f32 %v2376, %v2598
        %v2703 = vadd.f32 %v2377, %v2603
        %v2704 = vadd.f32 %v2378, %v2606
        %v2705 = vadd.f32 %v2379, %v2611
        %v2706 = vadd.f32 %v2380, %v2614
        %v2707 = vadd.f32 %v2381, %v2619
        %v2708 = vadd.f32 %v2382, %v2622
        %v2709 = vadd.f32 %v2383, %v2627
        %v2710 = vadd.f32 %v2384, %v2630
        %v2711 = vadd.f32 %v2385, %v2635
        %v2712 = vadd.f32 %v2386, %v2638
        %v2713 = vadd.f32 %v2387, %v2643
        %v2714 = vadd.f32 %v2388, %v2646
        %v2715 = vadd.f32 %v2389, %v2651
        %v2716 = vadd.f32 %v2390, %v2654
        %v2717 = vadd.f32 %v2391, %v2659
        %v2718 = vadd.f32 %v2392, %v2662
        %v2719 = vadd.f32 %v2393, %v2667
        %v2720 = vadd.f32 %v2394, %v2670
        %v2721 = vadd.f32 %v2395, %v2675
        %v2722 = vadd.f32 %v2396, %v2678
        %v2723 = vadd.f32 %v2397, %v2683
        %v2724 = vadd.f32 %v2398, %v2686
        %v2725 = vld [vmem:[%s178 + $0x26] sm:$0xff]
        %v2726 = vld [vmem:[%s178 + $0x2e] sm:$0xff]
        %v2727 = vld [vmem:[%s178 + $0x36] sm:$0xff]
        %v2728 = vld [vmem:[%s178 + $0x3e] sm:$0xff]
        %v2729 = vld [vmem:[%s178 + $0x46] sm:$0xff]
        %v2730 = vld [vmem:[%s178 + $0x4e] sm:$0xff]
        %v2731 = vld [vmem:[%s178 + $0x56] sm:$0xff]
        %v2732 = vld [vmem:[%s178 + $0x5e] sm:$0xff]
        %v2733 = vld [vmem:[%s178 + $0x66] sm:$0xff]
        %v2734 = vld [vmem:[%s178 + $0x6e] sm:$0xff]
        %v2735 = vld [vmem:[%s178 + $0x76] sm:$0xff]
        %v2736 = vld [vmem:[%s178 + $0x7e] sm:$0xff]
        %v2737 = vld [vmem:[%s178 + $0x86] sm:$0xff]
        %v2738 = vld [vmem:[%s178 + $0x8e] sm:$0xff]
        %v2739 = vld [vmem:[%s178 + $0x96] sm:$0xff]
        %v2740 = vld [vmem:[%s178 + $0x9e] sm:$0xff]
        %v2741 = vld [vmem:[%s178 + $0xa6] sm:$0xff]
        %v2742 = vld [vmem:[%s178 + $0xae] sm:$0xff]
        %v2743 = vld [vmem:[%s178 + $0xb6] sm:$0xff]
        %v2744 = vld [vmem:[%s178 + $0xbe] sm:$0xff]
        %v2745 = vld [vmem:[%s178 + $0xc6] sm:$0xff]
        %v2746 = vld [vmem:[%s178 + $0xce] sm:$0xff]
        %v2747 = vld [vmem:[%s178 + $0xd6] sm:$0xff]
        %v2748 = vld [vmem:[%s178 + $0xde] sm:$0xff]
        %v2749 = vld [vmem:[%s178 + $0xe6] sm:$0xff]
        %v2750 = vld [vmem:[%s178 + $0xee] sm:$0xff]
        %v2751 = vld [vmem:[%s178 + $0xf6] sm:$0xff]
        %v2752 = vld [vmem:[%s178 + $0xfe] sm:$0xff]
        %v2753 = vld [vmem:[%s178 + $0x106] sm:$0xff]
        %v2754 = vld [vmem:[%s178 + $0x10e] sm:$0xff]
        %v2755 = vld [vmem:[%s178 + $0x116] sm:$0xff]
        %v2756 = vld [vmem:[%s178 + $0x11e] sm:$0xff]
        %v2757 = vld [vmem:[%s178 + $0x126] sm:$0xff]
        %v2758 = vld [vmem:[%s178 + $0x12e] sm:$0xff]
        %v2759 = vld [vmem:[%s178 + $0x136] sm:$0xff]
        %v2760 = vld [vmem:[%s178 + $0x13e] sm:$0xff]
        %v2761 = vpack.c.bf16 %v2726, %v2725
        %v2762 = vpack.c.bf16 %v2728, %v2727
        %v2763 = vpack.c.bf16 %v2730, %v2729
        %v2764 = vpack.c.bf16 %v2732, %v2731
        %v2765 = vpack.c.bf16 %v2734, %v2733
        %v2766 = vpack.c.bf16 %v2736, %v2735
        %v2767 = vpack.c.bf16 %v2738, %v2737
        %v2768 = vpack.c.bf16 %v2740, %v2739
        %v2769 = vpack.c.bf16 %v2742, %v2741
        %v2770 = vpack.c.bf16 %v2744, %v2743
        %v2771 = vpack.c.bf16 %v2746, %v2745
        %v2772 = vpack.c.bf16 %v2748, %v2747
        %v2773 = vpack.c.bf16 %v2750, %v2749
        %v2774 = vpack.c.bf16 %v2752, %v2751
        %v2775 = vpack.c.bf16 %v2754, %v2753
        %v2776 = vpack.c.bf16 %v2756, %v2755
        %v2777 = vpack.c.bf16 %v2758, %v2757
        %v2778 = vpack.c.bf16 %v2760, %v2759
        %s2779 = scalar_lea.vmem %s186, 16
        %v2780 = vld [vmem:[%s2779] sm:$0x3]
        %v2782 = vsel %vm299, %v2761, 0
        %v2785 = vsel %vm299, %v2762, 0
        %v2788 = vsel %vm299, %v2763, 0
        %v2791 = vsel %vm299, %v2764, 0
        %v2794 = vsel %vm299, %v2765, 0
        %v2797 = vsel %vm299, %v2766, 0
        %v2800 = vsel %vm299, %v2767, 0
        %v2803 = vsel %vm299, %v2768, 0
        %v2806 = vsel %vm299, %v2769, 0
        %v2809 = vsel %vm299, %v2770, 0
        %v2812 = vsel %vm299, %v2771, 0
        %v2815 = vsel %vm299, %v2772, 0
        %v2818 = vsel %vm299, %v2773, 0
        %v2821 = vsel %vm299, %v2774, 0
        %v2824 = vsel %vm299, %v2775, 0
        %v2827 = vsel %vm299, %v2776, 0
        %v2830 = vsel %vm299, %v2777, 0
        %v2833 = vsel %vm299, %v2778, 0
        %v2836 = vsel %vm354, %v2780, 0
        %2838 = vmatprep.subr.bf16.mxu0 0
        %2839 = vmatpush1.bf16.msra.mxu0 0
        %2840 = vmatprep.subr.bf16.mxu0 0
        %2841 = vmatpush1.bf16.msra.mxu0 0
        %2842 = vmatprep.subr.bf16.mxu0 0
        %2843 = vmatpush1.bf16.msra.mxu0 0
        %2844 = vmatprep.subr.bf16.mxu0 0
        %2845 = vmatpush1.bf16.msra.mxu0 0
        %2846 = vmatprep.subr.bf16.mxu0 0
        %2847 = vmatpush1.bf16.msra.mxu0 0
        %2848 = vmatprep.subr.bf16.mxu0 0
        %2849 = vmatpush1.bf16.msra.mxu0 0
        %2850 = vmatprep.subr.bf16.mxu0 0
        %2851 = vmatpush1.bf16.msra.mxu0 0
        %2852 = vmatprep.subr.bf16.mxu0 0
        %2853 = vmatpush1.bf16.msra.mxu0 %v2836
        %2854 = vmatprep.subr.bf16.mxu0 0
        %2855 = vmatpush2.bf16.msra.mxu0 0
        %2856 = vmatprep.subr.bf16.mxu0 0
        %2857 = vmatpush2.bf16.msra.mxu0 0
        %2858 = vmatprep.subr.bf16.mxu0 0
        %2859 = vmatpush2.bf16.msra.mxu0 0
        %2860 = vmatprep.subr.bf16.mxu0 0
        %2861 = vmatpush2.bf16.msra.mxu0 0
        %2862 = vmatprep.subr.bf16.mxu0 0
        %2863 = vmatpush2.bf16.msra.mxu0 0
        %2864 = vmatprep.subr.bf16.mxu0 0
        %2865 = vmatpush2.bf16.msra.mxu0 0
        %2866 = vmatprep.subr.bf16.mxu0 0
        %2867 = vmatpush2.bf16.msra.mxu0 0
        %2868 = vmatprep.subr.bf16.mxu0 0
        %2869 = vmatpush2.bf16.msra.mxu0 0
        %2870 = vmatprep.mubr.bf16.mxu0 0
        %2871 = vmatmul.mubr.bf16.gmra.mxu0 %v2782
        %v2872 = vpop.f32.mrf.mxu0
        %v2873 = vadd.f32 0.0, %v2872
        %v2874 = vpop.f32.mrf.mxu0
        %v2875 = vpop.f32.mrf.mxu0
        %v2876 = vadd.f32 0.0, %v2875
        %v2877 = vpop.f32.mrf.mxu0
        %2878 = vmatprep.mubr.bf16.mxu0 0
        %2879 = vmatmul.mubr.bf16.gmra.mxu0 %v2785
        %v2880 = vpop.f32.mrf.mxu0
        %v2881 = vadd.f32 0.0, %v2880
        %v2882 = vpop.f32.mrf.mxu0
        %v2883 = vpop.f32.mrf.mxu0
        %v2884 = vadd.f32 0.0, %v2883
        %v2885 = vpop.f32.mrf.mxu0
        %2886 = vmatprep.mubr.bf16.mxu0 0
        %2887 = vmatmul.mubr.bf16.gmra.mxu0 %v2788
        %v2888 = vpop.f32.mrf.mxu0
        %v2889 = vadd.f32 0.0, %v2888
        %v2890 = vpop.f32.mrf.mxu0
        %v2891 = vpop.f32.mrf.mxu0
        %v2892 = vadd.f32 0.0, %v2891
        %v2893 = vpop.f32.mrf.mxu0
        %2894 = vmatprep.mubr.bf16.mxu0 0
        %2895 = vmatmul.mubr.bf16.gmra.mxu0 %v2791
        %v2896 = vpop.f32.mrf.mxu0
        %v2897 = vadd.f32 0.0, %v2896
        %v2898 = vpop.f32.mrf.mxu0
        %v2899 = vpop.f32.mrf.mxu0
        %v2900 = vadd.f32 0.0, %v2899
        %v2901 = vpop.f32.mrf.mxu0
        %2902 = vmatprep.mubr.bf16.mxu0 0
        %2903 = vmatmul.mubr.bf16.gmra.mxu0 %v2794
        %v2904 = vpop.f32.mrf.mxu0
        %v2905 = vadd.f32 0.0, %v2904
        %v2906 = vpop.f32.mrf.mxu0
        %v2907 = vpop.f32.mrf.mxu0
        %v2908 = vadd.f32 0.0, %v2907
        %v2909 = vpop.f32.mrf.mxu0
        %2910 = vmatprep.mubr.bf16.mxu0 0
        %2911 = vmatmul.mubr.bf16.gmra.mxu0 %v2797
        %v2912 = vpop.f32.mrf.mxu0
        %v2913 = vadd.f32 0.0, %v2912
        %v2914 = vpop.f32.mrf.mxu0
        %v2915 = vpop.f32.mrf.mxu0
        %v2916 = vadd.f32 0.0, %v2915
        %v2917 = vpop.f32.mrf.mxu0
        %2918 = vmatprep.mubr.bf16.mxu0 0
        %2919 = vmatmul.mubr.bf16.gmra.mxu0 %v2800
        %v2920 = vpop.f32.mrf.mxu0
        %v2921 = vadd.f32 0.0, %v2920
        %v2922 = vpop.f32.mrf.mxu0
        %v2923 = vpop.f32.mrf.mxu0
        %v2924 = vadd.f32 0.0, %v2923
        %v2925 = vpop.f32.mrf.mxu0
        %2926 = vmatprep.mubr.bf16.mxu0 0
        %2927 = vmatmul.mubr.bf16.gmra.mxu0 %v2803
        %v2928 = vpop.f32.mrf.mxu0
        %v2929 = vadd.f32 0.0, %v2928
        %v2930 = vpop.f32.mrf.mxu0
        %v2931 = vpop.f32.mrf.mxu0
        %v2932 = vadd.f32 0.0, %v2931
        %v2933 = vpop.f32.mrf.mxu0
        %2934 = vmatprep.mubr.bf16.mxu0 0
        %2935 = vmatmul.mubr.bf16.gmra.mxu0 %v2806
        %v2936 = vpop.f32.mrf.mxu0
        %v2937 = vadd.f32 0.0, %v2936
        %v2938 = vpop.f32.mrf.mxu0
        %v2939 = vpop.f32.mrf.mxu0
        %v2940 = vadd.f32 0.0, %v2939
        %v2941 = vpop.f32.mrf.mxu0
        %2942 = vmatprep.mubr.bf16.mxu0 0
        %2943 = vmatmul.mubr.bf16.gmra.mxu0 %v2809
        %v2944 = vpop.f32.mrf.mxu0
        %v2945 = vadd.f32 0.0, %v2944
        %v2946 = vpop.f32.mrf.mxu0
        %v2947 = vpop.f32.mrf.mxu0
        %v2948 = vadd.f32 0.0, %v2947
        %v2949 = vpop.f32.mrf.mxu0
        %2950 = vmatprep.mubr.bf16.mxu0 0
        %2951 = vmatmul.mubr.bf16.gmra.mxu0 %v2812
        %v2952 = vpop.f32.mrf.mxu0
        %v2953 = vadd.f32 0.0, %v2952
        %v2954 = vpop.f32.mrf.mxu0
        %v2955 = vpop.f32.mrf.mxu0
        %v2956 = vadd.f32 0.0, %v2955
        %v2957 = vpop.f32.mrf.mxu0
        %2958 = vmatprep.mubr.bf16.mxu0 0
        %2959 = vmatmul.mubr.bf16.gmra.mxu0 %v2815
        %v2960 = vpop.f32.mrf.mxu0
        %v2961 = vadd.f32 0.0, %v2960
        %v2962 = vpop.f32.mrf.mxu0
        %v2963 = vpop.f32.mrf.mxu0
        %v2964 = vadd.f32 0.0, %v2963
        %v2965 = vpop.f32.mrf.mxu0
        %2966 = vmatprep.mubr.bf16.mxu0 0
        %2967 = vmatmul.mubr.bf16.gmra.mxu0 %v2818
        %v2968 = vpop.f32.mrf.mxu0
        %v2969 = vadd.f32 0.0, %v2968
        %v2970 = vpop.f32.mrf.mxu0
        %v2971 = vpop.f32.mrf.mxu0
        %v2972 = vadd.f32 0.0, %v2971
        %v2973 = vpop.f32.mrf.mxu0
        %2974 = vmatprep.mubr.bf16.mxu0 0
        %2975 = vmatmul.mubr.bf16.gmra.mxu0 %v2821
        %v2976 = vpop.f32.mrf.mxu0
        %v2977 = vadd.f32 0.0, %v2976
        %v2978 = vpop.f32.mrf.mxu0
        %v2979 = vpop.f32.mrf.mxu0
        %v2980 = vadd.f32 0.0, %v2979
        %v2981 = vpop.f32.mrf.mxu0
        %2982 = vmatprep.mubr.bf16.mxu0 0
        %2983 = vmatmul.mubr.bf16.gmra.mxu0 %v2824
        %v2984 = vpop.f32.mrf.mxu0
        %v2985 = vadd.f32 0.0, %v2984
        %v2986 = vpop.f32.mrf.mxu0
        %v2987 = vpop.f32.mrf.mxu0
        %v2988 = vadd.f32 0.0, %v2987
        %v2989 = vpop.f32.mrf.mxu0
        %2990 = vmatprep.mubr.bf16.mxu0 0
        %2991 = vmatmul.mubr.bf16.gmra.mxu0 %v2827
        %v2992 = vpop.f32.mrf.mxu0
        %v2993 = vadd.f32 0.0, %v2992
        %v2994 = vpop.f32.mrf.mxu0
        %v2995 = vpop.f32.mrf.mxu0
        %v2996 = vadd.f32 0.0, %v2995
        %v2997 = vpop.f32.mrf.mxu0
        %2998 = vmatprep.mubr.bf16.mxu0 0
        %2999 = vmatmul.mubr.bf16.gmra.mxu0 %v2830
        %v3000 = vpop.f32.mrf.mxu0
        %v3001 = vadd.f32 0.0, %v3000
        %v3002 = vpop.f32.mrf.mxu0
        %v3003 = vpop.f32.mrf.mxu0
        %v3004 = vadd.f32 0.0, %v3003
        %v3005 = vpop.f32.mrf.mxu0
        %3006 = vmatprep.mubr.bf16.mxu0 0
        %3007 = vmatmul.mubr.bf16.gmra.mxu0 %v2833
        %v3008 = vpop.f32.mrf.mxu0
        %v3009 = vadd.f32 0.0, %v3008
        %v3010 = vpop.f32.mrf.mxu0
        %v3011 = vpop.f32.mrf.mxu0
        %v3012 = vadd.f32 0.0, %v3011
        %v3013 = vpop.f32.mrf.mxu0
        %3014 = vdwg.mxu0
        %v3015 = vadd.f32 %v2689, %v2873
        %v3016 = vadd.f32 %v2690, %v2876
        %v3017 = vadd.f32 %v2691, %v2881
        %v3018 = vadd.f32 %v2692, %v2884
        %v3019 = vadd.f32 %v2693, %v2889
        %v3020 = vadd.f32 %v2694, %v2892
        %v3021 = vadd.f32 %v2695, %v2897
        %v3022 = vadd.f32 %v2696, %v2900
        %v3023 = vadd.f32 %v2697, %v2905
        %v3024 = vadd.f32 %v2698, %v2908
        %v3025 = vadd.f32 %v2699, %v2913
        %v3026 = vadd.f32 %v2700, %v2916
        %v3027 = vadd.f32 %v2701, %v2921
        %v3028 = vadd.f32 %v2702, %v2924
        %v3029 = vadd.f32 %v2703, %v2929
        %v3030 = vadd.f32 %v2704, %v2932
        %v3031 = vadd.f32 %v2705, %v2937
        %v3032 = vadd.f32 %v2706, %v2940
        %v3033 = vadd.f32 %v2707, %v2945
        %v3034 = vadd.f32 %v2708, %v2948
        %v3035 = vadd.f32 %v2709, %v2953
        %v3036 = vadd.f32 %v2710, %v2956
        %v3037 = vadd.f32 %v2711, %v2961
        %v3038 = vadd.f32 %v2712, %v2964
        %v3039 = vadd.f32 %v2713, %v2969
        %v3040 = vadd.f32 %v2714, %v2972
        %v3041 = vadd.f32 %v2715, %v2977
        %v3042 = vadd.f32 %v2716, %v2980
        %v3043 = vadd.f32 %v2717, %v2985
        %v3044 = vadd.f32 %v2718, %v2988
        %v3045 = vadd.f32 %v2719, %v2993
        %v3046 = vadd.f32 %v2720, %v2996
        %v3047 = vadd.f32 %v2721, %v3001
        %v3048 = vadd.f32 %v2722, %v3004
        %v3049 = vadd.f32 %v2723, %v3009
        %v3050 = vadd.f32 %v2724, %v3012
        %v3051 = vpack.c.bf16 %v3016, %v3015
        %v3052 = vpack.c.bf16 %v3018, %v3017
        %v3053 = vpack.c.bf16 %v3020, %v3019
        %v3054 = vpack.c.bf16 %v3022, %v3021
        %v3055 = vpack.c.bf16 %v3024, %v3023
        %v3056 = vpack.c.bf16 %v3026, %v3025
        %v3057 = vpack.c.bf16 %v3028, %v3027
        %v3058 = vpack.c.bf16 %v3030, %v3029
        %v3059 = vpack.c.bf16 %v3032, %v3031
        %v3060 = vpack.c.bf16 %v3034, %v3033
        %v3061 = vpack.c.bf16 %v3036, %v3035
        %v3062 = vpack.c.bf16 %v3038, %v3037
        %v3063 = vpack.c.bf16 %v3040, %v3039
        %v3064 = vpack.c.bf16 %v3042, %v3041
        %v3065 = vpack.c.bf16 %v3044, %v3043
        %v3066 = vpack.c.bf16 %v3046, %v3045
        %v3067 = vpack.c.bf16 %v3048, %v3047
        %v3068 = vpack.c.bf16 %v3050, %v3049
        %v3087 = vunpack.c.l.b16 %v3051
        %v3088 = vunpack.c.h.b16 %v3051
        %v3089 = vunpack.c.l.b16 %v3052
        %v3090 = vunpack.c.h.b16 %v3052
        %v3091 = vunpack.c.l.b16 %v3053
        %v3092 = vunpack.c.h.b16 %v3053
        %v3093 = vunpack.c.l.b16 %v3054
        %v3094 = vunpack.c.h.b16 %v3054
        %v3095 = vunpack.c.l.b16 %v3055
        %v3096 = vunpack.c.h.b16 %v3055
        %v3097 = vunpack.c.l.b16 %v3056
        %v3098 = vunpack.c.h.b16 %v3056
        %v3099 = vunpack.c.l.b16 %v3057
        %v3100 = vunpack.c.h.b16 %v3057
        %v3101 = vunpack.c.l.b16 %v3058
        %v3102 = vunpack.c.h.b16 %v3058
        %v3103 = vunpack.c.l.b16 %v3059
        %v3104 = vunpack.c.h.b16 %v3059
        %v3105 = vunpack.c.l.b16 %v3060
        %v3106 = vunpack.c.h.b16 %v3060
        %v3107 = vunpack.c.l.b16 %v3061
        %v3108 = vunpack.c.h.b16 %v3061
        %v3109 = vunpack.c.l.b16 %v3062
        %v3110 = vunpack.c.h.b16 %v3062
        %v3111 = vunpack.c.l.b16 %v3063
        %v3112 = vunpack.c.h.b16 %v3063
        %v3113 = vunpack.c.l.b16 %v3064
        %v3114 = vunpack.c.h.b16 %v3064
        %v3115 = vunpack.c.l.b16 %v3065
        %v3116 = vunpack.c.h.b16 %v3065
        %v3117 = vunpack.c.l.b16 %v3066
        %v3118 = vunpack.c.h.b16 %v3066
        %v3119 = vunpack.c.l.b16 %v3067
        %v3120 = vunpack.c.h.b16 %v3067
        %v3121 = vunpack.c.l.b16 %v3068
        %v3122 = vunpack.c.h.b16 %v3068
        %v3123 = vpack.c.b16 %v3087, %v3087
        %v3124 = vpack.c.b16 %v3088, %v3088
        %v3125 = vpack.c.b16 %v3089, %v3089
        %v3126 = vpack.c.b16 %v3090, %v3090
        %v3127 = vpack.c.b16 %v3091, %v3091
        %v3128 = vpack.c.b16 %v3092, %v3092
        %v3129 = vpack.c.b16 %v3093, %v3093
        %v3130 = vpack.c.b16 %v3094, %v3094
        %v3131 = vpack.c.b16 %v3095, %v3095
        %v3132 = vpack.c.b16 %v3096, %v3096
        %v3133 = vpack.c.b16 %v3097, %v3097
        %v3134 = vpack.c.b16 %v3098, %v3098
        %v3135 = vpack.c.b16 %v3099, %v3099
        %v3136 = vpack.c.b16 %v3100, %v3100
        %v3137 = vpack.c.b16 %v3101, %v3101
        %v3138 = vpack.c.b16 %v3102, %v3102
        %v3139 = vpack.c.b16 %v3103, %v3103
        %v3140 = vpack.c.b16 %v3104, %v3104
        %v3141 = vpack.c.b16 %v3105, %v3105
        %v3142 = vpack.c.b16 %v3106, %v3106
        %v3143 = vpack.c.b16 %v3107, %v3107
        %v3144 = vpack.c.b16 %v3108, %v3108
        %v3145 = vpack.c.b16 %v3109, %v3109
        %v3146 = vpack.c.b16 %v3110, %v3110
        %v3147 = vpack.c.b16 %v3111, %v3111
        %v3148 = vpack.c.b16 %v3112, %v3112
        %v3149 = vpack.c.b16 %v3113, %v3113
        %v3150 = vpack.c.b16 %v3114, %v3114
        %v3151 = vpack.c.b16 %v3115, %v3115
        %v3152 = vpack.c.b16 %v3116, %v3116
        %v3153 = vpack.c.b16 %v3117, %v3117
        %v3154 = vpack.c.b16 %v3118, %v3118
        %v3155 = vpack.c.b16 %v3119, %v3119
        %v3156 = vpack.c.b16 %v3120, %v3120
        %v3157 = vpack.c.b16 %v3121, %v3121
        %v3158 = vpack.c.b16 %v3122, %v3122
        %3195 = vst [vmem:[%s173] sm:$0xf] %v3123
        %3196 = vst [vmem:[%s173 + $0x4] sm:$0xf] %v3124
        %3197 = vst [vmem:[%s173 + $0x8] sm:$0xf] %v3125
        %3198 = vst [vmem:[%s173 + $0xc] sm:$0xf] %v3126
        %3199 = vst [vmem:[%s173 + $0x10] sm:$0xf] %v3127
        %3200 = vst [vmem:[%s173 + $0x14] sm:$0xf] %v3128
        %3201 = vst [vmem:[%s173 + $0x18] sm:$0xf] %v3129
        %3202 = vst [vmem:[%s173 + $0x1c] sm:$0xf] %v3130
        %3203 = vst [vmem:[%s173 + $0x20] sm:$0xf] %v3131
        %3204 = vst [vmem:[%s173 + $0x24] sm:$0xf] %v3132
        %3205 = vst [vmem:[%s173 + $0x28] sm:$0xf] %v3133
        %3206 = vst [vmem:[%s173 + $0x2c] sm:$0xf] %v3134
        %3207 = vst [vmem:[%s173 + $0x30] sm:$0xf] %v3135
        %3208 = vst [vmem:[%s173 + $0x34] sm:$0xf] %v3136
        %3209 = vst [vmem:[%s173 + $0x38] sm:$0xf] %v3137
        %3210 = vst [vmem:[%s173 + $0x3c] sm:$0xf] %v3138
        %3211 = vst [vmem:[%s173 + $0x40] sm:$0xf] %v3139
        %3212 = vst [vmem:[%s173 + $0x44] sm:$0xf] %v3140
        %3213 = vst [vmem:[%s173 + $0x48] sm:$0xf] %v3141
        %3214 = vst [vmem:[%s173 + $0x4c] sm:$0xf] %v3142
        %3215 = vst [vmem:[%s173 + $0x50] sm:$0xf] %v3143
        %3216 = vst [vmem:[%s173 + $0x54] sm:$0xf] %v3144
        %3217 = vst [vmem:[%s173 + $0x58] sm:$0xf] %v3145
        %3218 = vst [vmem:[%s173 + $0x5c] sm:$0xf] %v3146
        %3219 = vst [vmem:[%s173 + $0x60] sm:$0xf] %v3147
        %3220 = vst [vmem:[%s173 + $0x64] sm:$0xf] %v3148
        %3221 = vst [vmem:[%s173 + $0x68] sm:$0xf] %v3149
        %3222 = vst [vmem:[%s173 + $0x6c] sm:$0xf] %v3150
        %3223 = vst [vmem:[%s173 + $0x70] sm:$0xf] %v3151
        %3224 = vst [vmem:[%s173 + $0x74] sm:$0xf] %v3152
        %3225 = vst [vmem:[%s173 + $0x78] sm:$0xf] %v3153
        %3226 = vst [vmem:[%s173 + $0x7c] sm:$0xf] %v3154
        %3227 = vst [vmem:[%s173 + $0x80] sm:$0xf] %v3155
        %3228 = vst [vmem:[%s173 + $0x84] sm:$0xf] %v3156
        %3229 = vst [vmem:[%s173 + $0x88] sm:$0xf] %v3157
        %3230 = vst [vmem:[%s173 + $0x8c] sm:$0xf] %v3158
        %s3231 = sand.u32 %s92, 1
        %s3232 = scalar_lea.sflag [#allocation3], %s3231
        %s3233 = sand.u32 %s92, 1
        %s3234 = smul.addr %s3233, 144
        %s3235 = scalar_lea.vmem [#allocation2], %s3234
        // Predicated region
        $region29: #{tpu_custom_call.1} parent=27 // pred_check
          %p3236 = pneg %p102
        $region30: #{tpu_custom_call.1} parent=27 // pred_check_branch
          %3238 = sbr.rel (%p3236) target = $region32
        $region31: #{tpu_custom_call.1} parent=27 // pred_region
          %s3240 = ssub.s32 2304, 2304
          %3241 = vsyncadd %s3232, %s3240
          %s3242 = smul.addr %s20, 36
          %s3243 = sadd.s32 %s21, %s3242
          %s3244 = smul.addr %s3243, 64
          %s3245 = scalar_lea.hbm %s2, %s3244
          %s3246 = sshll.u32 %s3235, 4
          %s3247 = int_to_ptr.vmem [resolvable:$true] %s3246
          %3252 = dma.vmem_to_hbm [thread:$0]  %s3247, 2304, %s3245, %s3232, 64, 64, 4
        $region32: #{tpu_custom_call.1} parent=27 // pred_fallthru
          _
      $region28: #{tpu_custom_call.1} parent=5 // pred_fallthru
        _
      %p3253 = scmp.le.s32.totalorder 2, %s11
      // Predicated region
      $region33: #{tpu_custom_call.1} parent=5 // pred_check
        %p3254 = pneg %p3253
      $region34: #{tpu_custom_call.1} parent=5 // pred_check_branch
        %3256 = sbr.rel (%p3254) target = $region36
      $region35: #{tpu_custom_call.1} parent=5 // pred_region
        %s3257 = ssub.s32 %s11, 2
        // Predicated region
        $region37: #{tpu_custom_call.1} parent=35 // pred_check
          %p3258 = pneg %p108
        $region38: #{tpu_custom_call.1} parent=35 // pred_check_branch
          %3260 = sbr.rel (%p3258) target = $region40
        $region39: #{tpu_custom_call.1} parent=35 // pred_region
          %s3261 = sand.u32 %s93, 1
          %s3262 = scalar_lea.sflag [#allocation3], %s3261
          %s3263 = sand.u32 %s93, 1
          %s3264 = smul.addr %s3263, 144
          %s3265 = scalar_lea.vmem [#allocation2], %s3264
          %3266 = dma.done %s3262, 2304
        $region40: #{tpu_custom_call.1} parent=35 // pred_fallthru
          _
      $region36: #{tpu_custom_call.1} parent=5 // pred_fallthru
        _
    $region6: #{tpu_custom_call.1} parent=1 // loop_footer
      %s15 = sadd.s32 1, %s11
    $region7: #{tpu_custom_call.1} parent=1 // loop_footer_branch
      %10 = sbr.rel target = $region3
    $region8: #{tpu_custom_call.1} parent=1 // loop_exit
      _
    %3267 = vsyncpa [#allocation3], 1
    %s3268 = scalar_lea.sflag [#allocation3], 1
    %3269 = vsyncpa %s3268, 1

</llo_original>
